<compile_context>
chip_gen: v6e
topology: v6e:2x2x1
jax: 0.10.0
libtpu: 0.0.40
codegen_flags: <defaults>
</compile_context>

<pallas_src>
import functools

import jax
import jax.numpy as jnp
from jax.experimental import pallas as pl
from jax.experimental.pallas import tpu as pltpu


# ---------------------------------------------------------------------------
# Fused encoder + classifier kernel (one pallas_call for the whole model)
# ---------------------------------------------------------------------------
def _encoder_kernel(emb_hbm_ref, mask_ref, emb_g_ref, emb_b_ref,
                    w_qkv_ref, b_qkv_ref, w_o_ref, b_o_ref,
                    ln1_g_ref, ln1_b_ref, w_in_ref, b_in_ref,
                    w_out_ref, b_out_ref, ln2_g_ref, ln2_b_ref,
                    w1_ref, b1_ref, w2t_ref, b2_ref,
                    out_ref, x_ref, dma_sem, *, BT, S, H, nH):
    """Grid = (m_tiles, n_layers).  x_ref: (BT*S, H) bf16 activation carry."""
    Dh = H // nH
    TM = BT * S
    m_idx = pl.program_id(0)
    layer = pl.program_id(1)
    n_layers = pl.num_programs(1)

    def ln(xf32, g, b, eps=1e-12):
        mu = jnp.mean(xf32, axis=-1, keepdims=True)
        xc = xf32 - mu
        var = jnp.mean(xc * xc, axis=-1, keepdims=True)
        return xc * jax.lax.rsqrt(var + eps) * g + b

    # ---- layer 0: DMA this M-tile's embeddings HBM -> scratch, LN in place --
    @pl.when(layer == 0)
    def _():
        row0 = pl.multiple_of(m_idx * TM, TM)
        cp = pltpu.make_async_copy(emb_hbm_ref.at[pl.ds(row0, TM), :],
                                   x_ref, dma_sem)
        cp.start()
        cp.wait()
        e = x_ref[...].astype(jnp.float32)
        x_ref[...] = ln(e, emb_g_ref[...], emb_b_ref[...]).astype(jnp.bfloat16)

    x_bf = x_ref[...]                               # (TM, H) bf16 carry
    x_f32 = x_bf.astype(jnp.float32)

    # ---- fused Q/K/V projection: one (H, 3H) bf16 matmul, f32 accumulate ----
    qkv = jnp.dot(x_bf, w_qkv_ref[0],
                  preferred_element_type=jnp.float32) + b_qkv_ref[0]
    qkv_bf = qkv.astype(jnp.bfloat16)

    # gather heads onto a merged (head, choice) batch axis -> single batched
    # einsums instead of a per-head loop of tiny MXU pushes.
    def heads(col0):
        parts = [qkv_bf[:, col0 + h * Dh: col0 + (h + 1) * Dh]
                 for h in range(nH)]
        return jnp.concatenate(parts, axis=0).reshape(nH * BT, S, Dh)

    q = heads(0)
    k = heads(H)
    v = heads(2 * H)

    s = jnp.einsum("bqd,bkd->bqk", q, k,
                   preferred_element_type=jnp.float32)          # (nH*BT,S,S)
    bias = jnp.concatenate([mask_ref[...]] * nH, axis=0)        # (nH*BT,1,S)
    s = s * (1.0 / (Dh ** 0.5)) + bias
    mx = jnp.max(s, axis=-1, keepdims=True)
    p = jnp.exp(s - mx)
    p = p * pl.reciprocal(jnp.sum(p, axis=-1, keepdims=True), approx=True)
    ctx = jnp.einsum("bqk,bkd->bqd", p.astype(jnp.bfloat16), v,
                     preferred_element_type=jnp.float32)        # (nH*BT,S,Dh)
    ctx = ctx.reshape(nH, TM, Dh)
    ctx = jnp.concatenate([ctx[h] for h in range(nH)], axis=-1)  # (TM, H) f32

    # ---- attention output proj + residual + LayerNorm -----------------------
    attn = jnp.dot(ctx.astype(jnp.bfloat16), w_o_ref[0],
                   preferred_element_type=jnp.float32) + b_o_ref[0]
    x1 = ln(x_f32 + attn, ln1_g_ref[0], ln1_b_ref[0])

    # ---- FFN (tanh-GELU) + residual + LayerNorm ------------------------------
    hmid = jnp.dot(x1.astype(jnp.bfloat16), w_in_ref[0],
                   preferred_element_type=jnp.float32) + b_in_ref[0]
    c = 0.7978845608028654  # sqrt(2/pi)
    hmid = 0.5 * hmid * (1.0 + jnp.tanh(c * (hmid + 0.044715 * hmid * hmid * hmid)))
    ffn = jnp.dot(hmid.astype(jnp.bfloat16), w_out_ref[0],
                  preferred_element_type=jnp.float32) + b_out_ref[0]
    x2 = ln(x1 + ffn, ln2_g_ref[0], ln2_b_ref[0])
    x_ref[...] = x2.astype(jnp.bfloat16)            # carry to next layer

    # ---- classifier head folded into the last layer step --------------------
    @pl.when(layer == n_layers - 1)
    def _():
        # [CLS] = row 0 of each choice's S-row block; select via one-hot
        # reduce over the S axis (avoids strided packed-bf16 loads).
        sel = (jax.lax.broadcasted_iota(jnp.int32, (1, S, 1), 1) == 0
               ).astype(jnp.float32)
        cls = jnp.sum(x2.reshape(BT, S, H) * sel, axis=1)       # (BT, H) f32
        h1 = jnp.dot(cls.astype(jnp.bfloat16), w1_ref[...],
                     preferred_element_type=jnp.float32) + b1_ref[...]
        sc = jnp.sum(h1 * w2t_ref[...], axis=-1, keepdims=True) + b2_ref[...]
        out_ref[...] = sc


# ---------------------------------------------------------------------------
# One-time weight preparation (hoisted out of forward; backbone is frozen)
# ---------------------------------------------------------------------------
def prepare_params(params):
    L = len(params["layers"])
    H = params["word_emb"].shape[1]
    inter = params["layers"][0]["w_in"].shape[1]

    def stack(name, dt=jnp.float32):
        return jnp.stack([lp[name] for lp in params["layers"]]).astype(dt)

    prep = {
        "word_emb": params["word_emb"],
        "pos_emb": params["pos_emb"],
        "type_emb": params["type_emb"],
        "emb_ln_g": params["emb_ln_g"].reshape(1, H),
        "emb_ln_b": params["emb_ln_b"].reshape(1, H),
        "w_qkv": jnp.stack(
            [jnp.concatenate([lp["wq"], lp["wk"], lp["wv"]], axis=1)
             for lp in params["layers"]]).astype(jnp.bfloat16),   # (L,H,3H)
        "b_qkv": jnp.stack(
            [jnp.concatenate([lp["bq"], lp["bk"], lp["bv"]])
             for lp in params["layers"]]).reshape(L, 1, 3 * H),
        "w_o": stack("wo", jnp.bfloat16),
        "b_o": stack("bo").reshape(L, 1, H),
        "ln1_g": stack("ln1_g").reshape(L, 1, H),
        "ln1_b": stack("ln1_b").reshape(L, 1, H),
        "w_in": stack("w_in", jnp.bfloat16),
        "b_in": stack("b_in").reshape(L, 1, inter),
        "w_out": stack("w_out", jnp.bfloat16),
        "b_out": stack("b_out").reshape(L, 1, H),
        "ln2_g": stack("ln2_g").reshape(L, 1, H),
        "ln2_b": stack("ln2_b").reshape(L, 1, H),
        "w1": params["w1"].astype(jnp.bfloat16),                 # (H, 32)
        "b1": params["b1"].reshape(1, 32),
        "w2t": params["w2"].reshape(1, 32),                      # (32,1)->(1,32)
        "b2": params["b2"].reshape(1, 1),
    }
    return prep


# ---------------------------------------------------------------------------
# Forward wrapper: embeddings (JAX gather) + one fused pallas_call
# ---------------------------------------------------------------------------
def _forward(prep, input_ids, attention_mask, *, nH, num_choices=4,
             bn_tile=None):
    """input_ids/attention_mask: (batch*num_choices, seq) -> (batch, num_choices)."""
    BN, S = input_ids.shape
    H = prep["emb_ln_g"].shape[1]
    L = prep["w_qkv"].shape[0]
    inter = prep["w_in"].shape[2]
    M = BN * S

    BT = BN if bn_tile is None else bn_tile
    assert BN % BT == 0 and (BT * S) % 8 == 0
    TM = BT * S
    n_m = BN // BT

    # embeddings (gather is plain-JAX glue); LayerNorm happens in-kernel.
    # Passed to the kernel as bf16 (halves the largest HBM->VMEM transfer).
    # TODO(synk): token_type id is always 0 (no segment ids in the spec inputs).
    emb = (prep["word_emb"][input_ids]
           + prep["pos_emb"][:S][None, :, :]
           + prep["type_emb"][0][None, None, :]
           ).reshape(M, H).astype(jnp.bfloat16)

    mask_bias = ((1.0 - attention_mask.astype(jnp.float32)) * -10000.0
                 ).reshape(BN, 1, S)

    kernel = functools.partial(_encoder_kernel, BT=BT, S=S, H=H, nH=nH)

    # advisory cost estimate for the XLA scheduler
    flops = int(L * (2 * M * H * (4 * H + 2 * inter) + 4 * M * S * H)
                + 2 * BN * H * 32)
    transcendentals = int(L * (BN * nH * S * S + M * inter))
    weight_bytes = int(L * (4 * H * H + 2 * H * inter) * 2)     # bf16
    bytes_accessed = int(n_m * weight_bytes + M * H * 2 + M * 4 + BN * 4)

    # explicit VMEM budget: activation scratch + double-buffered layer weights
    # + headroom for f32 intermediates (qkv / scores / ffn)
    per_layer_w = (4 * H * H + 2 * H * inter) * 2               # bf16 bytes
    vmem_need = TM * H * 2 + 2 * per_layer_w + 6 * TM * max(3 * H, inter) * 4
    vmem_limit = int(min(max(2 * vmem_need, 32 * 1024 * 1024), 64 * 1024 * 1024))

    scores = pl.pallas_call(
        kernel,
        out_shape=jax.ShapeDtypeStruct((BN, 1), jnp.float32),
        grid=(n_m, L),
        in_specs=[
            pl.BlockSpec(memory_space=pl.ANY),                    # emb (HBM)
            pl.BlockSpec((BT, 1, S), lambda m, l: (m, 0, 0)),     # mask bias
            pl.BlockSpec((1, H), lambda m, l: (0, 0)),            # emb LN gamma
            pl.BlockSpec((1, H), lambda m, l: (0, 0)),            # emb LN beta
            pl.BlockSpec((1, H, 3 * H), lambda m, l: (l, 0, 0)),  # w_qkv
            pl.BlockSpec((1, 1, 3 * H), lambda m, l: (l, 0, 0)),  # b_qkv
            pl.BlockSpec((1, H, H), lambda m, l: (l, 0, 0)),      # w_o
            pl.BlockSpec((1, 1, H), lambda m, l: (l, 0, 0)),      # b_o
            pl.BlockSpec((1, 1, H), lambda m, l: (l, 0, 0)),      # ln1_g
            pl.BlockSpec((1, 1, H), lambda m, l: (l, 0, 0)),      # ln1_b
            pl.BlockSpec((1, H, inter), lambda m, l: (l, 0, 0)),  # w_in
            pl.BlockSpec((1, 1, inter), lambda m, l: (l, 0, 0)),  # b_in
            pl.BlockSpec((1, inter, H), lambda m, l: (l, 0, 0)),  # w_out
            pl.BlockSpec((1, 1, H), lambda m, l: (l, 0, 0)),      # b_out
            pl.BlockSpec((1, 1, H), lambda m, l: (l, 0, 0)),      # ln2_g
            pl.BlockSpec((1, 1, H), lambda m, l: (l, 0, 0)),      # ln2_b
            pl.BlockSpec((H, 32), lambda m, l: (0, 0)),           # classifier1 W
            pl.BlockSpec((1, 32), lambda m, l: (0, 0)),           # classifier1 b
            pl.BlockSpec((1, 32), lambda m, l: (0, 0)),           # classifier2 W^T
            pl.BlockSpec((1, 1), lambda m, l: (0, 0)),            # classifier2 b
        ],
        out_specs=pl.BlockSpec((BT, 1), lambda m, l: (m, 0)),
        scratch_shapes=[pltpu.VMEM((TM, H), jnp.bfloat16),        # activation carry
                        pltpu.SemaphoreType.DMA(())],             # emb DMA sem
        compiler_params=pltpu.CompilerParams(
            dimension_semantics=("parallel", "arbitrary"),
            vmem_limit_bytes=vmem_limit),
        cost_estimate=pl.CostEstimate(flops=flops,
                                      transcendentals=transcendentals,
                                      bytes_accessed=bytes_accessed),
    )(emb, mask_bias,
      prep["emb_ln_g"], prep["emb_ln_b"],
      prep["w_qkv"], prep["b_qkv"], prep["w_o"], prep["b_o"],
      prep["ln1_g"], prep["ln1_b"], prep["w_in"], prep["b_in"],
      prep["w_out"], prep["b_out"], prep["ln2_g"], prep["ln2_b"],
      prep["w1"], prep["b1"], prep["w2t"], prep["b2"])

    return scores.reshape(-1, num_choices)


forward = jax.jit(_forward, static_argnames=("nH", "num_choices", "bn_tile"))


# ---------------------------------------------------------------------------
# Deterministic parameter init (synthetic "pretrained" frozen weights)
# ---------------------------------------------------------------------------
def init_params(key, vocab, H, inter, n_layers, max_pos):
    keys = jax.random.split(key, 8 + n_layers)
    init = lambda k, shape: (0.02 * jax.random.normal(k, shape)).astype(jnp.float32)
    ones = lambda n: jnp.ones((n,), jnp.float32)
    zeros = lambda n: jnp.zeros((n,), jnp.float32)

    params = {
        "word_emb": init(keys[0], (vocab, H)),
        "pos_emb": init(keys[1], (max_pos, H)),
        "type_emb": init(keys[2], (2, H)),
        "emb_ln_g": ones(H), "emb_ln_b": zeros(H),
        "w1": init(keys[3], (H, 32)), "b1": zeros(32),
        "w2": init(keys[4], (32, 1)), "b2": zeros(1),
        "layers": [],
    }
    for li in range(n_layers):
        lk = jax.random.split(keys[8 + li], 6)
        params["layers"].append({
            "wq": init(lk[0], (H, H)), "bq": zeros(H),
            "wk": init(lk[1], (H, H)), "bk": zeros(H),
            "wv": init(lk[2], (H, H)), "bv": zeros(H),
            "wo": init(lk[3], (H, H)), "bo": zeros(H),
            "ln1_g": ones(H), "ln1_b": zeros(H),
            "w_in": init(lk[4], (H, inter)), "b_in": zeros(inter),
            "w_out": init(lk[5], (inter, H)), "b_out": zeros(H),
            "ln2_g": ones(H), "ln2_b": zeros(H),
        })
    return params


# ---------------------------------------------------------------------------
if __name__ == "__main__":
    key = jax.random.PRNGKey(0)
    batch, num_choices, S = 4, 4, 16
    VOCAB, H, NH, INTER, LAYERS, MAXPOS = 1000, 128, 4, 256, 2, 64
    BN = batch * num_choices
    BN_TILE = 8                       # -> grid m-axis of size 2 ("parallel")

    k_ids, k_mask, k_params = jax.random.split(key, 3)
    input_ids = jax.random.randint(k_ids, (BN, S), 0, VOCAB, dtype=jnp.int32)
    lens = jax.random.randint(k_mask, (BN,), S // 2, S + 1)
    attention_mask = (jnp.arange(S)[None, :] < lens[:, None]).astype(jnp.int32)

    params = init_params(k_params, VOCAB, H, INTER, LAYERS, MAXPOS)
    prep = prepare_params(params)     # hoisted: frozen weights prepared ONCE
    prep = jax.block_until_ready(prep)

    scores = forward(prep, input_ids, attention_mask, nH=NH,
                     num_choices=num_choices, bn_tile=BN_TILE)
    scores = jax.block_until_ready(scores)
    assert scores.shape == (batch, num_choices), scores.shape
    assert scores.dtype == jnp.float32
    assert bool(jnp.all(jnp.isfinite(scores)))
    print("KERNEL_OK")
</pallas_src>

<mosaic_0001>
module attributes {stable_mosaic.version = 11 : i64} {
  func.func @_encoder_kernel(%arg0: i32, %arg1: i32, %arg2: memref<256x128xbf16, #tpu.memory_space<any>>, %arg3: memref<8x1x16xf32, #tpu.memory_space<vmem>>, %arg4: memref<1x128xf32, #tpu.memory_space<vmem>>, %arg5: memref<1x128xf32, #tpu.memory_space<vmem>>, %arg6: memref<1x128x384xbf16, #tpu.memory_space<vmem>>, %arg7: memref<1x1x384xf32, #tpu.memory_space<vmem>>, %arg8: memref<1x128x128xbf16, #tpu.memory_space<vmem>>, %arg9: memref<1x1x128xf32, #tpu.memory_space<vmem>>, %arg10: memref<1x1x128xf32, #tpu.memory_space<vmem>>, %arg11: memref<1x1x128xf32, #tpu.memory_space<vmem>>, %arg12: memref<1x128x256xbf16, #tpu.memory_space<vmem>>, %arg13: memref<1x1x256xf32, #tpu.memory_space<vmem>>, %arg14: memref<1x256x128xbf16, #tpu.memory_space<vmem>>, %arg15: memref<1x1x128xf32, #tpu.memory_space<vmem>>, %arg16: memref<1x1x128xf32, #tpu.memory_space<vmem>>, %arg17: memref<1x1x128xf32, #tpu.memory_space<vmem>>, %arg18: memref<128x32xbf16, #tpu.memory_space<vmem>>, %arg19: memref<1x32xf32, #tpu.memory_space<vmem>>, %arg20: memref<1x32xf32, #tpu.memory_space<vmem>>, %arg21: memref<1x1xf32, #tpu.memory_space<vmem>>, %arg22: memref<8x1xf32, #tpu.memory_space<vmem>>, %arg23: memref<128x128xbf16, #tpu.memory_space<vmem>>, %arg24: memref<!tpu.dma_semaphore, #tpu.memory_space<semaphore_mem>>) attributes {dimension_semantics = [#tpu.dimension_semantics<parallel>, #tpu.dimension_semantics<arbitrary>], iteration_bounds = array<i64: 2, 2>, scalar_prefetch = 0 : i64, scratch_operands = 2 : i64, tpu.core_type = #tpu.core_type<tc>, window_params = [{}, {transform_indices = @transform_1, window_bounds = array<i64: 8, 1, 16>}, {pipeline_mode = #tpu.pipeline_mode<synchronous>, transform_indices = @transform_2, window_bounds = array<i64: 1, 128>}, {pipeline_mode = #tpu.pipeline_mode<synchronous>, transform_indices = @transform_3, window_bounds = array<i64: 1, 128>}, {transform_indices = @transform_4, window_bounds = array<i64: 1, 128, 384>}, {transform_indices = @transform_5, window_bounds = array<i64: 1, 1, 384>}, {transform_indices = @transform_6, window_bounds = array<i64: 1, 128, 128>}, {transform_indices = @transform_7, window_bounds = array<i64: 1, 1, 128>}, {transform_indices = @transform_8, window_bounds = array<i64: 1, 1, 128>}, {transform_indices = @transform_9, window_bounds = array<i64: 1, 1, 128>}, {transform_indices = @transform_10, window_bounds = array<i64: 1, 128, 256>}, {transform_indices = @transform_11, window_bounds = array<i64: 1, 1, 256>}, {transform_indices = @transform_12, window_bounds = array<i64: 1, 256, 128>}, {transform_indices = @transform_13, window_bounds = array<i64: 1, 1, 128>}, {transform_indices = @transform_14, window_bounds = array<i64: 1, 1, 128>}, {transform_indices = @transform_15, window_bounds = array<i64: 1, 1, 128>}, {pipeline_mode = #tpu.pipeline_mode<synchronous>, transform_indices = @transform_16, window_bounds = array<i64: 128, 32>}, {pipeline_mode = #tpu.pipeline_mode<synchronous>, transform_indices = @transform_17, window_bounds = array<i64: 1, 32>}, {pipeline_mode = #tpu.pipeline_mode<synchronous>, transform_indices = @transform_18, window_bounds = array<i64: 1, 32>}, {pipeline_mode = #tpu.pipeline_mode<synchronous>, transform_indices = @transform_19, window_bounds = array<i64: 1, 1>}, {transform_indices = @transform_20, window_bounds = array<i64: 8, 1>}]} {
    %c0_i32 = arith.constant 0 : i32
    %0 = arith.cmpi eq, %arg1, %c0_i32 : i32
    %1 = arith.extui %0 : i1 to i32
    %c0_i32_0 = arith.constant 0 : i32
    %2 = arith.cmpi ne, %1, %c0_i32_0 : i32
    scf.if %2 {
      %c128_i32 = arith.constant 128 : i32
      %152 = arith.muli %arg0, %c128_i32 : i32
      %153 = tpu.assume_multiple %152, 128 : i32
      %c0_i32_66 = arith.constant 0 : i32
      %154 = tpu.memref_slice %arg2[%153, %c0_i32_66] : memref<256x128xbf16, #tpu.memory_space<any>> -> memref<128x128xbf16, #tpu.memory_space<any>>
      tpu.enqueue_dma source(%154 : memref<128x128xbf16, #tpu.memory_space<any>>) target(%arg23 : memref<128x128xbf16, #tpu.memory_space<vmem>>) target_semaphore(%arg24 : memref<!tpu.dma_semaphore, #tpu.memory_space<semaphore_mem>>)
      %c0_i32_67 = arith.constant 0 : i32
      %155 = tpu.memref_slice %arg2[%153, %c0_i32_67] : memref<256x128xbf16, #tpu.memory_space<any>> -> memref<128x128xbf16, #tpu.memory_space<any>>
      tpu.wait_dma2 semaphore(%arg24 : memref<!tpu.dma_semaphore, #tpu.memory_space<semaphore_mem>>) src(%155 : memref<128x128xbf16, #tpu.memory_space<any>>) dst(%arg23 : memref<128x128xbf16, #tpu.memory_space<vmem>>)
      %c0_68 = arith.constant 0 : index
      %c0_69 = arith.constant 0 : index
      %156 = vector.load %arg23[%c0_68, %c0_69] : memref<128x128xbf16, #tpu.memory_space<vmem>>, vector<128x128xbf16>
      %157 = arith.extf %156 : vector<128x128xbf16> to vector<128x128xf32>
      %c0_70 = arith.constant 0 : index
      %c0_71 = arith.constant 0 : index
      %158 = vector.load %arg4[%c0_70, %c0_71] : memref<1x128xf32, #tpu.memory_space<vmem>>, vector<1x128xf32>
      %c0_72 = arith.constant 0 : index
      %c0_73 = arith.constant 0 : index
      %159 = vector.load %arg5[%c0_72, %c0_73] : memref<1x128xf32, #tpu.memory_space<vmem>>, vector<1x128xf32>
      %cst_74 = arith.constant dense<0.000000e+00> : vector<128xf32>
      %160 = vector.multi_reduction <add>, %157, %cst_74 [1] : vector<128x128xf32> to vector<128xf32>
      %161 = vector.shape_cast %160 : vector<128xf32> to vector<128x1xf32>
      %cst_75 = arith.constant 1.280000e+02 : f32
      %162 = vector.broadcast %cst_75 : f32 to vector<128x1xf32>
      %163 = arith.divf %161, %162 : vector<128x1xf32>
      %164 = vector.broadcast %163 : vector<128x1xf32> to vector<128x128xf32>
      %165 = arith.subf %157, %164 : vector<128x128xf32>
      %166 = arith.mulf %165, %165 : vector<128x128xf32>
      %cst_76 = arith.constant dense<0.000000e+00> : vector<128xf32>
      %167 = vector.multi_reduction <add>, %166, %cst_76 [1] : vector<128x128xf32> to vector<128xf32>
      %168 = vector.shape_cast %167 : vector<128xf32> to vector<128x1xf32>
      %cst_77 = arith.constant 1.280000e+02 : f32
      %169 = vector.broadcast %cst_77 : f32 to vector<128x1xf32>
      %170 = arith.divf %168, %169 : vector<128x1xf32>
      %cst_78 = arith.constant 9.99999996E-13 : f32
      %171 = vector.broadcast %cst_78 : f32 to vector<128x1xf32>
      %172 = arith.addf %170, %171 : vector<128x1xf32>
      %173 = math.rsqrt %172 : vector<128x1xf32>
      %174 = vector.broadcast %173 : vector<128x1xf32> to vector<128x128xf32>
      %175 = arith.mulf %165, %174 : vector<128x128xf32>
      %176 = vector.broadcast %158 : vector<1x128xf32> to vector<128x128xf32>
      %177 = arith.mulf %175, %176 : vector<128x128xf32>
      %178 = vector.broadcast %159 : vector<1x128xf32> to vector<128x128xf32>
      %179 = arith.addf %177, %178 : vector<128x128xf32>
      %180 = arith.truncf %179 : vector<128x128xf32> to vector<128x128xbf16>
      %c0_79 = arith.constant 0 : index
      %c0_80 = arith.constant 0 : index
      %181 = vector.load %arg23[%c0_79, %c0_80] : memref<128x128xbf16, #tpu.memory_space<vmem>>, vector<128x128xbf16>
      tpu.vector_store %arg23[%c0_79, %c0_80], %180 {strides = array<i32>} : memref<128x128xbf16, #tpu.memory_space<vmem>>, vector<128x128xbf16>,
    } else {
    }
    %c0 = arith.constant 0 : index
    %c0_1 = arith.constant 0 : index
    %3 = vector.load %arg23[%c0, %c0_1] : memref<128x128xbf16, #tpu.memory_space<vmem>>, vector<128x128xbf16>
    %4 = arith.extf %3 : vector<128x128xbf16> to vector<128x128xf32>
    %c0_2 = arith.constant 0 : index
    %c0_3 = arith.constant 0 : index
    %c0_4 = arith.constant 0 : index
    %5 = vector.load %arg6[%c0_2, %c0_3, %c0_4] : memref<1x128x384xbf16, #tpu.memory_space<vmem>>, vector<1x128x384xbf16>
    %6 = vector.shape_cast %5 : vector<1x128x384xbf16> to vector<128x384xbf16>
    %cst = arith.constant dense<0.000000e+00> : vector<128x384xf32>
    %7 = tpu.matmul %3, %6, %cst {dimension_numbers = #tpu.dot_dimension_numbers<[1], [0], [0], [1], [0, 0, 1, 1], [], []>} : vector<128x128xbf16>, vector<128x384xbf16>, vector<128x384xf32> -> vector<128x384xf32>
    %c0_5 = arith.constant 0 : index
    %c0_6 = arith.constant 0 : index
    %c0_7 = arith.constant 0 : index
    %8 = vector.load %arg7[%c0_5, %c0_6, %c0_7] : memref<1x1x384xf32, #tpu.memory_space<vmem>>, vector<1x1x384xf32>
    %9 = vector.shape_cast %8 : vector<1x1x384xf32> to vector<1x384xf32>
    %10 = vector.broadcast %9 : vector<1x384xf32> to vector<128x384xf32>
    %11 = arith.addf %7, %10 : vector<128x384xf32>
    %12 = arith.truncf %11 : vector<128x384xf32> to vector<128x384xbf16>
    %13 = vector.extract_strided_slice %12 {offsets = [0, 0], sizes = [128, 32], strides = [1, 1]} : vector<128x384xbf16> to vector<128x32xbf16>
    %14 = vector.extract_strided_slice %12 {offsets = [0, 32], sizes = [128, 32], strides = [1, 1]} : vector<128x384xbf16> to vector<128x32xbf16>
    %15 = vector.extract_strided_slice %12 {offsets = [0, 64], sizes = [128, 32], strides = [1, 1]} : vector<128x384xbf16> to vector<128x32xbf16>
    %16 = vector.extract_strided_slice %12 {offsets = [0, 96], sizes = [128, 32], strides = [1, 1]} : vector<128x384xbf16> to vector<128x32xbf16>
    %17 = tpu.concatenate %13, %14, %15, %16 in 0 : vector<128x32xbf16>, vector<128x32xbf16>, vector<128x32xbf16>, vector<128x32xbf16> -> vector<512x32xbf16>
    %18 = vector.shape_cast %17 : vector<512x32xbf16> to vector<32x16x32xbf16>
    %19 = vector.extract_strided_slice %12 {offsets = [0, 128], sizes = [128, 32], strides = [1, 1]} : vector<128x384xbf16> to vector<128x32xbf16>
    %20 = vector.extract_strided_slice %12 {offsets = [0, 160], sizes = [128, 32], strides = [1, 1]} : vector<128x384xbf16> to vector<128x32xbf16>
    %21 = vector.extract_strided_slice %12 {offsets = [0, 192], sizes = [128, 32], strides = [1, 1]} : vector<128x384xbf16> to vector<128x32xbf16>
    %22 = vector.extract_strided_slice %12 {offsets = [0, 224], sizes = [128, 32], strides = [1, 1]} : vector<128x384xbf16> to vector<128x32xbf16>
    %23 = tpu.concatenate %19, %20, %21, %22 in 0 : vector<128x32xbf16>, vector<128x32xbf16>, vector<128x32xbf16>, vector<128x32xbf16> -> vector<512x32xbf16>
    %24 = vector.shape_cast %23 : vector<512x32xbf16> to vector<32x16x32xbf16>
    %25 = vector.extract_strided_slice %12 {offsets = [0, 256], sizes = [128, 32], strides = [1, 1]} : vector<128x384xbf16> to vector<128x32xbf16>
    %26 = vector.extract_strided_slice %12 {offsets = [0, 288], sizes = [128, 32], strides = [1, 1]} : vector<128x384xbf16> to vector<128x32xbf16>
    %27 = vector.extract_strided_slice %12 {offsets = [0, 320], sizes = [128, 32], strides = [1, 1]} : vector<128x384xbf16> to vector<128x32xbf16>
    %28 = vector.extract_strided_slice %12 {offsets = [0, 352], sizes = [128, 32], strides = [1, 1]} : vector<128x384xbf16> to vector<128x32xbf16>
    %29 = tpu.concatenate %25, %26, %27, %28 in 0 : vector<128x32xbf16>, vector<128x32xbf16>, vector<128x32xbf16>, vector<128x32xbf16> -> vector<512x32xbf16>
    %30 = vector.shape_cast %29 : vector<512x32xbf16> to vector<32x16x32xbf16>
    "tpu.trace_start"() <{level = 10 : i32, message = "bqd,bkd->bqk"}> : () -> ()
    %cst_8 = arith.constant dense<0.000000e+00> : vector<32x16x16xf32>
    %31 = tpu.matmul %18, %24, %cst_8 {dimension_numbers = #tpu.dot_dimension_numbers<[2], [2], [1], [1], [0, 0, 0, 1, 1, 1], [0], [0]>} : vector<32x16x32xbf16>, vector<32x16x32xbf16>, vector<32x16x16xf32> -> vector<32x16x16xf32>
    "tpu.trace_stop"() : () -> ()
    %c0_9 = arith.constant 0 : index
    %c0_10 = arith.constant 0 : index
    %c0_11 = arith.constant 0 : index
    %32 = vector.load %arg3[%c0_9, %c0_10, %c0_11] : memref<8x1x16xf32, #tpu.memory_space<vmem>>, vector<8x1x16xf32>
    %33 = tpu.concatenate %32, %32, %32, %32 in 0 : vector<8x1x16xf32>, vector<8x1x16xf32>, vector<8x1x16xf32>, vector<8x1x16xf32> -> vector<32x1x16xf32>
    %cst_12 = arith.constant 0.176776692 : f32
    %34 = vector.broadcast %cst_12 : f32 to vector<32x16x16xf32>
    %35 = arith.mulf %31, %34 : vector<32x16x16xf32>
    %36 = vector.broadcast %33 : vector<32x1x16xf32> to vector<32x16x16xf32>
    %37 = arith.addf %35, %36 : vector<32x16x16xf32>
    %cst_13 = arith.constant dense<0xFF800000> : vector<32x16xf32>
    %38 = vector.multi_reduction <maximumf>, %37, %cst_13 [2] : vector<32x16x16xf32> to vector<32x16xf32>
    %39 = vector.shape_cast %38 : vector<32x16xf32> to vector<32x16x1xf32>
    %40 = vector.broadcast %39 : vector<32x16x1xf32> to vector<32x16x16xf32>
    %41 = arith.subf %37, %40 : vector<32x16x16xf32>
    %42 = math.exp %41 : vector<32x16x16xf32>
    %cst_14 = arith.constant dense<0.000000e+00> : vector<32x16xf32>
    %43 = vector.multi_reduction <add>, %42, %cst_14 [2] : vector<32x16x16xf32> to vector<32x16xf32>
    %44 = vector.shape_cast %43 : vector<32x16xf32> to vector<32x16x1xf32>
    %45 = tpu.reciprocal %44 {approx = true} : vector<32x16x1xf32> -> vector<32x16x1xf32>
    %46 = vector.broadcast %45 : vector<32x16x1xf32> to vector<32x16x16xf32>
    %47 = arith.mulf %42, %46 : vector<32x16x16xf32>
    %48 = arith.truncf %47 : vector<32x16x16xf32> to vector<32x16x16xbf16>
    "tpu.trace_start"() <{level = 10 : i32, message = "bqk,bkd->bqd"}> : () -> ()
    %cst_15 = arith.constant dense<0.000000e+00> : vector<32x16x32xf32>
    %49 = tpu.matmul %48, %30, %cst_15 {dimension_numbers = #tpu.dot_dimension_numbers<[2], [1], [1], [2], [0, 0, 0, 1, 1, 2], [0], [0]>} : vector<32x16x16xbf16>, vector<32x16x32xbf16>, vector<32x16x32xf32> -> vector<32x16x32xf32>
    "tpu.trace_stop"() : () -> ()
    %50 = vector.shape_cast %49 : vector<32x16x32xf32> to vector<4x128x32xf32>
    %51 = vector.extract_strided_slice %50 {offsets = [0, 0, 0], sizes = [1, 128, 32], strides = [1, 1, 1]} : vector<4x128x32xf32> to vector<1x128x32xf32>
    %52 = vector.shape_cast %51 : vector<1x128x32xf32> to vector<128x32xf32>
    %53 = vector.extract_strided_slice %50 {offsets = [1, 0, 0], sizes = [1, 128, 32], strides = [1, 1, 1]} : vector<4x128x32xf32> to vector<1x128x32xf32>
    %54 = vector.shape_cast %53 : vector<1x128x32xf32> to vector<128x32xf32>
    %55 = vector.extract_strided_slice %50 {offsets = [2, 0, 0], sizes = [1, 128, 32], strides = [1, 1, 1]} : vector<4x128x32xf32> to vector<1x128x32xf32>
    %56 = vector.shape_cast %55 : vector<1x128x32xf32> to vector<128x32xf32>
    %57 = vector.extract_strided_slice %50 {offsets = [3, 0, 0], sizes = [1, 128, 32], strides = [1, 1, 1]} : vector<4x128x32xf32> to vector<1x128x32xf32>
    %58 = vector.shape_cast %57 : vector<1x128x32xf32> to vector<128x32xf32>
    %59 = tpu.concatenate %52, %54, %56, %58 in 1 : vector<128x32xf32>, vector<128x32xf32>, vector<128x32xf32>, vector<128x32xf32> -> vector<128x128xf32>
    %60 = arith.truncf %59 : vector<128x128xf32> to vector<128x128xbf16>
    %c0_16 = arith.constant 0 : index
    %c0_17 = arith.constant 0 : index
    %c0_18 = arith.constant 0 : index
    %61 = vector.load %arg8[%c0_16, %c0_17, %c0_18] : memref<1x128x128xbf16, #tpu.memory_space<vmem>>, vector<1x128x128xbf16>
    %62 = vector.shape_cast %61 : vector<1x128x128xbf16> to vector<128x128xbf16>
    %cst_19 = arith.constant dense<0.000000e+00> : vector<128x128xf32>
    %63 = tpu.matmul %60, %62, %cst_19 {dimension_numbers = #tpu.dot_dimension_numbers<[1], [0], [0], [1], [0, 0, 1, 1], [], []>} : vector<128x128xbf16>, vector<128x128xbf16>, vector<128x128xf32> -> vector<128x128xf32>
    %c0_20 = arith.constant 0 : index
    %c0_21 = arith.constant 0 : index
    %c0_22 = arith.constant 0 : index
    %64 = vector.load %arg9[%c0_20, %c0_21, %c0_22] : memref<1x1x128xf32, #tpu.memory_space<vmem>>, vector<1x1x128xf32>
    %65 = vector.shape_cast %64 : vector<1x1x128xf32> to vector<1x128xf32>
    %66 = vector.broadcast %65 : vector<1x128xf32> to vector<128x128xf32>
    %67 = arith.addf %63, %66 : vector<128x128xf32>
    %68 = arith.addf %4, %67 : vector<128x128xf32>
    %c0_23 = arith.constant 0 : index
    %c0_24 = arith.constant 0 : index
    %c0_25 = arith.constant 0 : index
    %69 = vector.load %arg10[%c0_23, %c0_24, %c0_25] : memref<1x1x128xf32, #tpu.memory_space<vmem>>, vector<1x1x128xf32>
    %70 = vector.shape_cast %69 : vector<1x1x128xf32> to vector<1x128xf32>
    %c0_26 = arith.constant 0 : index
    %c0_27 = arith.constant 0 : index
    %c0_28 = arith.constant 0 : index
    %71 = vector.load %arg11[%c0_26, %c0_27, %c0_28] : memref<1x1x128xf32, #tpu.memory_space<vmem>>, vector<1x1x128xf32>
    %72 = vector.shape_cast %71 : vector<1x1x128xf32> to vector<1x128xf32>
    %cst_29 = arith.constant dense<0.000000e+00> : vector<128xf32>
    %73 = vector.multi_reduction <add>, %68, %cst_29 [1] : vector<128x128xf32> to vector<128xf32>
    %74 = vector.shape_cast %73 : vector<128xf32> to vector<128x1xf32>
    %cst_30 = arith.constant 1.280000e+02 : f32
    %75 = vector.broadcast %cst_30 : f32 to vector<128x1xf32>
    %76 = arith.divf %74, %75 : vector<128x1xf32>
    %77 = vector.broadcast %76 : vector<128x1xf32> to vector<128x128xf32>
    %78 = arith.subf %68, %77 : vector<128x128xf32>
    %79 = arith.mulf %78, %78 : vector<128x128xf32>
    %cst_31 = arith.constant dense<0.000000e+00> : vector<128xf32>
    %80 = vector.multi_reduction <add>, %79, %cst_31 [1] : vector<128x128xf32> to vector<128xf32>
    %81 = vector.shape_cast %80 : vector<128xf32> to vector<128x1xf32>
    %cst_32 = arith.constant 1.280000e+02 : f32
    %82 = vector.broadcast %cst_32 : f32 to vector<128x1xf32>
    %83 = arith.divf %81, %82 : vector<128x1xf32>
    %cst_33 = arith.constant 9.99999996E-13 : f32
    %84 = vector.broadcast %cst_33 : f32 to vector<128x1xf32>
    %85 = arith.addf %83, %84 : vector<128x1xf32>
    %86 = math.rsqrt %85 : vector<128x1xf32>
    %87 = vector.broadcast %86 : vector<128x1xf32> to vector<128x128xf32>
    %88 = arith.mulf %78, %87 : vector<128x128xf32>
    %89 = vector.broadcast %70 : vector<1x128xf32> to vector<128x128xf32>
    %90 = arith.mulf %88, %89 : vector<128x128xf32>
    %91 = vector.broadcast %72 : vector<1x128xf32> to vector<128x128xf32>
    %92 = arith.addf %90, %91 : vector<128x128xf32>
    %93 = arith.truncf %92 : vector<128x128xf32> to vector<128x128xbf16>
    %c0_34 = arith.constant 0 : index
    %c0_35 = arith.constant 0 : index
    %c0_36 = arith.constant 0 : index
    %94 = vector.load %arg12[%c0_34, %c0_35, %c0_36] : memref<1x128x256xbf16, #tpu.memory_space<vmem>>, vector<1x128x256xbf16>
    %95 = vector.shape_cast %94 : vector<1x128x256xbf16> to vector<128x256xbf16>
    %cst_37 = arith.constant dense<0.000000e+00> : vector<128x256xf32>
    %96 = tpu.matmul %93, %95, %cst_37 {dimension_numbers = #tpu.dot_dimension_numbers<[1], [0], [0], [1], [0, 0, 1, 1], [], []>} : vector<128x128xbf16>, vector<128x256xbf16>, vector<128x256xf32> -> vector<128x256xf32>
    %c0_38 = arith.constant 0 : index
    %c0_39 = arith.constant 0 : index
    %c0_40 = arith.constant 0 : index
    %97 = vector.load %arg13[%c0_38, %c0_39, %c0_40] : memref<1x1x256xf32, #tpu.memory_space<vmem>>, vector<1x1x256xf32>
    %98 = vector.shape_cast %97 : vector<1x1x256xf32> to vector<1x256xf32>
    %99 = vector.broadcast %98 : vector<1x256xf32> to vector<128x256xf32>
    %100 = arith.addf %96, %99 : vector<128x256xf32>
    %cst_41 = arith.constant 5.000000e-01 : f32
    %101 = vector.broadcast %cst_41 : f32 to vector<128x256xf32>
    %102 = arith.mulf %101, %100 : vector<128x256xf32>
    %cst_42 = arith.constant 4.471500e-02 : f32
    %103 = vector.broadcast %cst_42 : f32 to vector<128x256xf32>
    %104 = arith.mulf %103, %100 : vector<128x256xf32>
    %105 = arith.mulf %104, %100 : vector<128x256xf32>
    %106 = arith.mulf %105, %100 : vector<128x256xf32>
    %107 = arith.addf %100, %106 : vector<128x256xf32>
    %cst_43 = arith.constant 0.797884583 : f32
    %108 = vector.broadcast %cst_43 : f32 to vector<128x256xf32>
    %109 = arith.mulf %108, %107 : vector<128x256xf32>
    %110 = math.tanh %109 : vector<128x256xf32>
    %cst_44 = arith.constant 1.000000e+00 : f32
    %111 = vector.broadcast %cst_44 : f32 to vector<128x256xf32>
    %112 = arith.addf %111, %110 : vector<128x256xf32>
    %113 = arith.mulf %102, %112 : vector<128x256xf32>
    %114 = arith.truncf %113 : vector<128x256xf32> to vector<128x256xbf16>
    %c0_45 = arith.constant 0 : index
    %c0_46 = arith.constant 0 : index
    %c0_47 = arith.constant 0 : index
    %115 = vector.load %arg14[%c0_45, %c0_46, %c0_47] : memref<1x256x128xbf16, #tpu.memory_space<vmem>>, vector<1x256x128xbf16>
    %116 = vector.shape_cast %115 : vector<1x256x128xbf16> to vector<256x128xbf16>
    %cst_48 = arith.constant dense<0.000000e+00> : vector<128x128xf32>
    %117 = tpu.matmul %114, %116, %cst_48 {dimension_numbers = #tpu.dot_dimension_numbers<[1], [0], [0], [1], [0, 0, 1, 1], [], []>} : vector<128x256xbf16>, vector<256x128xbf16>, vector<128x128xf32> -> vector<128x128xf32>
    %c0_49 = arith.constant 0 : index
    %c0_50 = arith.constant 0 : index
    %c0_51 = arith.constant 0 : index
    %118 = vector.load %arg15[%c0_49, %c0_50, %c0_51] : memref<1x1x128xf32, #tpu.memory_space<vmem>>, vector<1x1x128xf32>
    %119 = vector.shape_cast %118 : vector<1x1x128xf32> to vector<1x128xf32>
    %120 = vector.broadcast %119 : vector<1x128xf32> to vector<128x128xf32>
    %121 = arith.addf %117, %120 : vector<128x128xf32>
    %122 = arith.addf %92, %121 : vector<128x128xf32>
    %c0_52 = arith.constant 0 : index
    %c0_53 = arith.constant 0 : index
    %c0_54 = arith.constant 0 : index
    %123 = vector.load %arg16[%c0_52, %c0_53, %c0_54] : memref<1x1x128xf32, #tpu.memory_space<vmem>>, vector<1x1x128xf32>
    %124 = vector.shape_cast %123 : vector<1x1x128xf32> to vector<1x128xf32>
    %c0_55 = arith.constant 0 : index
    %c0_56 = arith.constant 0 : index
    %c0_57 = arith.constant 0 : index
    %125 = vector.load %arg17[%c0_55, %c0_56, %c0_57] : memref<1x1x128xf32, #tpu.memory_space<vmem>>, vector<1x1x128xf32>
    %126 = vector.shape_cast %125 : vector<1x1x128xf32> to vector<1x128xf32>
    %cst_58 = arith.constant dense<0.000000e+00> : vector<128xf32>
    %127 = vector.multi_reduction <add>, %122, %cst_58 [1] : vector<128x128xf32> to vector<128xf32>
    %128 = vector.shape_cast %127 : vector<128xf32> to vector<128x1xf32>
    %cst_59 = arith.constant 1.280000e+02 : f32
    %129 = vector.broadcast %cst_59 : f32 to vector<128x1xf32>
    %130 = arith.divf %128, %129 : vector<128x1xf32>
    %131 = vector.broadcast %130 : vector<128x1xf32> to vector<128x128xf32>
    %132 = arith.subf %122, %131 : vector<128x128xf32>
    %133 = arith.mulf %132, %132 : vector<128x128xf32>
    %cst_60 = arith.constant dense<0.000000e+00> : vector<128xf32>
    %134 = vector.multi_reduction <add>, %133, %cst_60 [1] : vector<128x128xf32> to vector<128xf32>
    %135 = vector.shape_cast %134 : vector<128xf32> to vector<128x1xf32>
    %cst_61 = arith.constant 1.280000e+02 : f32
    %136 = vector.broadcast %cst_61 : f32 to vector<128x1xf32>
    %137 = arith.divf %135, %136 : vector<128x1xf32>
    %cst_62 = arith.constant 9.99999996E-13 : f32
    %138 = vector.broadcast %cst_62 : f32 to vector<128x1xf32>
    %139 = arith.addf %137, %138 : vector<128x1xf32>
    %140 = math.rsqrt %139 : vector<128x1xf32>
    %141 = vector.broadcast %140 : vector<128x1xf32> to vector<128x128xf32>
    %142 = arith.mulf %132, %141 : vector<128x128xf32>
    %143 = vector.broadcast %124 : vector<1x128xf32> to vector<128x128xf32>
    %144 = arith.mulf %142, %143 : vector<128x128xf32>
    %145 = vector.broadcast %126 : vector<1x128xf32> to vector<128x128xf32>
    %146 = arith.addf %144, %145 : vector<128x128xf32>
    %147 = arith.truncf %146 : vector<128x128xf32> to vector<128x128xbf16>
    %c0_63 = arith.constant 0 : index
    %c0_64 = arith.constant 0 : index
    %148 = vector.load %arg23[%c0_63, %c0_64] : memref<128x128xbf16, #tpu.memory_space<vmem>>, vector<128x128xbf16>
    tpu.vector_store %arg23[%c0_63, %c0_64], %147 {strides = array<i32>} : memref<128x128xbf16, #tpu.memory_space<vmem>>, vector<128x128xbf16>,
    %c1_i32 = arith.constant 1 : i32
    %149 = arith.cmpi eq, %arg1, %c1_i32 : i32
    %150 = arith.extui %149 : i1 to i32
    %c0_i32_65 = arith.constant 0 : i32
    %151 = arith.cmpi ne, %150, %c0_i32_65 : i32
    scf.if %151 {
      %152 = tpu.iota {dimensions = array<i32: 1>} : vector<1x16x1xi32>
      %c0_i32_66 = arith.constant 0 : i32
      %153 = vector.broadcast %c0_i32_66 : i32 to vector<1x16x1xi32>
      %154 = arith.cmpi eq, %152, %153 : vector<1x16x1xi32>
      %155 = arith.extui %154 : vector<1x16x1xi1> to vector<1x16x1xi32>
      %156 = arith.sitofp %155 : vector<1x16x1xi32> to vector<1x16x1xf32>
      %157 = vector.shape_cast %146 : vector<128x128xf32> to vector<8x16x128xf32>
      %158 = vector.broadcast %156 : vector<1x16x1xf32> to vector<8x16x128xf32>
      %159 = arith.mulf %157, %158 : vector<8x16x128xf32>
      %cst_67 = arith.constant dense<0.000000e+00> : vector<8x128xf32>
      %160 = vector.multi_reduction <add>, %159, %cst_67 [1] : vector<8x16x128xf32> to vector<8x128xf32>
      %161 = arith.truncf %160 : vector<8x128xf32> to vector<8x128xbf16>
      %c0_68 = arith.constant 0 : index
      %c0_69 = arith.constant 0 : index
      %162 = vector.load %arg18[%c0_68, %c0_69] : memref<128x32xbf16, #tpu.memory_space<vmem>>, vector<128x32xbf16>
      %cst_70 = arith.constant dense<0.000000e+00> : vector<8x32xf32>
      %163 = tpu.matmul %161, %162, %cst_70 {dimension_numbers = #tpu.dot_dimension_numbers<[1], [0], [0], [1], [0, 0, 1, 1], [], []>} : vector<8x128xbf16>, vector<128x32xbf16>, vector<8x32xf32> -> vector<8x32xf32>
      %c0_71 = arith.constant 0 : index
      %c0_72 = arith.constant 0 : index
      %164 = vector.load %arg19[%c0_71, %c0_72] : memref<1x32xf32, #tpu.memory_space<vmem>>, vector<1x32xf32>
      %165 = vector.broadcast %164 : vector<1x32xf32> to vector<8x32xf32>
      %166 = arith.addf %163, %165 : vector<8x32xf32>
      %c0_73 = arith.constant 0 : index
      %c0_74 = arith.constant 0 : index
      %167 = vector.load %arg20[%c0_73, %c0_74] : memref<1x32xf32, #tpu.memory_space<vmem>>, vector<1x32xf32>
      %168 = vector.broadcast %167 : vector<1x32xf32> to vector<8x32xf32>
      %169 = arith.mulf %166, %168 : vector<8x32xf32>
      %cst_75 = arith.constant dense<0.000000e+00> : vector<8xf32>
      %170 = vector.multi_reduction <add>, %169, %cst_75 [1] : vector<8x32xf32> to vector<8xf32>
      %171 = vector.shape_cast %170 : vector<8xf32> to vector<8x1xf32>
      %c0_76 = arith.constant 0 : index
      %c0_77 = arith.constant 0 : index
      %172 = vector.load %arg21[%c0_76, %c0_77] : memref<1x1xf32, #tpu.memory_space<vmem>>, vector<1x1xf32>
      %173 = vector.broadcast %172 : vector<1x1xf32> to vector<8x1xf32>
      %174 = arith.addf %171, %173 : vector<8x1xf32>
      %c0_78 = arith.constant 0 : index
      %c0_79 = arith.constant 0 : index
      %175 = vector.load %arg22[%c0_78, %c0_79] : memref<8x1xf32, #tpu.memory_space<vmem>>, vector<8x1xf32>
      tpu.vector_store %arg22[%c0_78, %c0_79], %174 {strides = array<i32>} : memref<8x1xf32, #tpu.memory_space<vmem>>, vector<8x1xf32>,
    } else {
    }
    return
  }
  func.func @transform_1(%arg0: i32, %arg1: i32) -> (i32, i32, i32) {
    %c0_i32 = arith.constant 0 : i32
    %c0_i32_0 = arith.constant 0 : i32
    %c0_i32_1 = arith.constant 0 : i32
    return %arg0, %c0_i32, %c0_i32_0 : i32, i32, i32
  }
  func.func @transform_2(%arg0: i32, %arg1: i32) -> (i32, i32) {
    %c0_i32 = arith.constant 0 : i32
    %c0_i32_0 = arith.constant 0 : i32
    %c0_i32_1 = arith.constant 0 : i32
    return %c0_i32, %c0_i32_0 : i32, i32
  }
  func.func @transform_3(%arg0: i32, %arg1: i32) -> (i32, i32) {
    %c0_i32 = arith.constant 0 : i32
    %c0_i32_0 = arith.constant 0 : i32
    %c0_i32_1 = arith.constant 0 : i32
    return %c0_i32, %c0_i32_0 : i32, i32
  }
  func.func @transform_4(%arg0: i32, %arg1: i32) -> (i32, i32, i32) {
    %c0_i32 = arith.constant 0 : i32
    %c0_i32_0 = arith.constant 0 : i32
    %c0_i32_1 = arith.constant 0 : i32
    return %arg1, %c0_i32, %c0_i32_0 : i32, i32, i32
  }
  func.func @transform_5(%arg0: i32, %arg1: i32) -> (i32, i32, i32) {
    %c0_i32 = arith.constant 0 : i32
    %c0_i32_0 = arith.constant 0 : i32
    %c0_i32_1 = arith.constant 0 : i32
    return %arg1, %c0_i32, %c0_i32_0 : i32, i32, i32
  }
  func.func @transform_6(%arg0: i32, %arg1: i32) -> (i32, i32, i32) {
    %c0_i32 = arith.constant 0 : i32
    %c0_i32_0 = arith.constant 0 : i32
    %c0_i32_1 = arith.constant 0 : i32
    return %arg1, %c0_i32, %c0_i32_0 : i32, i32, i32
  }
  func.func @transform_7(%arg0: i32, %arg1: i32) -> (i32, i32, i32) {
    %c0_i32 = arith.constant 0 : i32
    %c0_i32_0 = arith.constant 0 : i32
    %c0_i32_1 = arith.constant 0 : i32
    return %arg1, %c0_i32, %c0_i32_0 : i32, i32, i32
  }
  func.func @transform_8(%arg0: i32, %arg1: i32) -> (i32, i32, i32) {
    %c0_i32 = arith.constant 0 : i32
    %c0_i32_0 = arith.constant 0 : i32
    %c0_i32_1 = arith.constant 0 : i32
    return %arg1, %c0_i32, %c0_i32_0 : i32, i32, i32
  }
  func.func @transform_9(%arg0: i32, %arg1: i32) -> (i32, i32, i32) {
    %c0_i32 = arith.constant 0 : i32
    %c0_i32_0 = arith.constant 0 : i32
    %c0_i32_1 = arith.constant 0 : i32
    return %arg1, %c0_i32, %c0_i32_0 : i32, i32, i32
  }
  func.func @transform_10(%arg0: i32, %arg1: i32) -> (i32, i32, i32) {
    %c0_i32 = arith.constant 0 : i32
    %c0_i32_0 = arith.constant 0 : i32
    %c0_i32_1 = arith.constant 0 : i32
    return %arg1, %c0_i32, %c0_i32_0 : i32, i32, i32
  }
  func.func @transform_11(%arg0: i32, %arg1: i32) -> (i32, i32, i32) {
    %c0_i32 = arith.constant 0 : i32
    %c0_i32_0 = arith.constant 0 : i32
    %c0_i32_1 = arith.constant 0 : i32
    return %arg1, %c0_i32, %c0_i32_0 : i32, i32, i32
  }
  func.func @transform_12(%arg0: i32, %arg1: i32) -> (i32, i32, i32) {
    %c0_i32 = arith.constant 0 : i32
    %c0_i32_0 = arith.constant 0 : i32
    %c0_i32_1 = arith.constant 0 : i32
    return %arg1, %c0_i32, %c0_i32_0 : i32, i32, i32
  }
  func.func @transform_13(%arg0: i32, %arg1: i32) -> (i32, i32, i32) {
    %c0_i32 = arith.constant 0 : i32
    %c0_i32_0 = arith.constant 0 : i32
    %c0_i32_1 = arith.constant 0 : i32
    return %arg1, %c0_i32, %c0_i32_0 : i32, i32, i32
  }
  func.func @transform_14(%arg0: i32, %arg1: i32) -> (i32, i32, i32) {
    %c0_i32 = arith.constant 0 : i32
    %c0_i32_0 = arith.constant 0 : i32
    %c0_i32_1 = arith.constant 0 : i32
    return %arg1, %c0_i32, %c0_i32_0 : i32, i32, i32
  }
  func.func @transform_15(%arg0: i32, %arg1: i32) -> (i32, i32, i32) {
    %c0_i32 = arith.constant 0 : i32
    %c0_i32_0 = arith.constant 0 : i32
    %c0_i32_1 = arith.constant 0 : i32
    return %arg1, %c0_i32, %c0_i32_0 : i32, i32, i32
  }
  func.func @transform_16(%arg0: i32, %arg1: i32) -> (i32, i32) {
    %c0_i32 = arith.constant 0 : i32
    %c0_i32_0 = arith.constant 0 : i32
    %c0_i32_1 = arith.constant 0 : i32
    return %c0_i32, %c0_i32_0 : i32, i32
  }
  func.func @transform_17(%arg0: i32, %arg1: i32) -> (i32, i32) {
    %c0_i32 = arith.constant 0 : i32
    %c0_i32_0 = arith.constant 0 : i32
    %c0_i32_1 = arith.constant 0 : i32
    return %c0_i32, %c0_i32_0 : i32, i32
  }
  func.func @transform_18(%arg0: i32, %arg1: i32) -> (i32, i32) {
    %c0_i32 = arith.constant 0 : i32
    %c0_i32_0 = arith.constant 0 : i32
    %c0_i32_1 = arith.constant 0 : i32
    return %c0_i32, %c0_i32_0 : i32, i32
  }
  func.func @transform_19(%arg0: i32, %arg1: i32) -> (i32, i32) {
    %c0_i32 = arith.constant 0 : i32
    %c0_i32_0 = arith.constant 0 : i32
    %c0_i32_1 = arith.constant 0 : i32
    return %c0_i32, %c0_i32_0 : i32, i32
  }
  func.func @transform_20(%arg0: i32, %arg1: i32) -> (i32, i32) {
    %c0_i32 = arith.constant 0 : i32
    %c0_i32_0 = arith.constant 0 : i32
    return %arg0, %c0_i32 : i32, i32
  }
}

</mosaic_0001>

<llo_original>
// kernel: _forward.1
$region0: #{_forward.1}
  #allocation0 [shape = 'u32[]', space=smem, size = 0x4, offset = 0x4, fixed_abs, tag = 'smem constant byte address 0x4 - core index']
  #allocation1 [shape = 'u32[144,128]{1,0:T(1,128)}', space=vmem, size = 0x12000, scoped, tag = 'internal scratch']
  #allocation2 [shape = 'bf16[128,128]{1,0:T(8,128)(2,1)}', space=vmem, size = 0x8000, scoped, tag = 'scratch operand']
  #allocation3 [shape = 's32[1]{0}', space=sflag, size = 0x4, scoped, tag = 'scratch operand']
  #allocation4 [shape = 'f32[1,1]{1,0:T(1,128)S(1)}', space=vmem, size = 0x200, scoped, tag = 'scoped memory for _forward.1']
  #allocation5 [shape = 's32[]', space=sflag, size = 0x4, offset = 0, fixed_abs, tag = 'sflag constant byte address 0x0 - dummy sync flag']
  %s0 = inlined_call_operand.vmem [shape: bf16[256,128], index: 0, kind: input, shape index: {}]
  %s1 = inlined_call_operand.vmem [shape: f32[16,1,16], index: 1, kind: input, shape index: {}]
  %s2 = inlined_call_operand.vmem [shape: f32[1,128], index: 2, kind: input, shape index: {}]
  %s3 = inlined_call_operand.vmem [shape: f32[1,128], index: 3, kind: input, shape index: {}]
  %s4 = inlined_call_operand.vmem [shape: bf16[2,128,384], index: 4, kind: input, shape index: {}]
  %s5 = inlined_call_operand.vmem [shape: f32[2,1,384], index: 5, kind: input, shape index: {}]
  %s6 = inlined_call_operand.vmem [shape: bf16[2,128,128], index: 6, kind: input, shape index: {}]
  %s7 = inlined_call_operand.vmem [shape: f32[2,1,128], index: 7, kind: input, shape index: {}]
  %s8 = inlined_call_operand.vmem [shape: f32[2,1,128], index: 8, kind: input, shape index: {}]
  %s9 = inlined_call_operand.vmem [shape: f32[2,1,128], index: 9, kind: input, shape index: {}]
  %s10 = inlined_call_operand.vmem [shape: bf16[2,128,256], index: 10, kind: input, shape index: {}]
  %s11 = inlined_call_operand.vmem [shape: f32[2,1,256], index: 11, kind: input, shape index: {}]
  %s12 = inlined_call_operand.vmem [shape: bf16[2,256,128], index: 12, kind: input, shape index: {}]
  %s13 = inlined_call_operand.vmem [shape: f32[2,1,128], index: 13, kind: input, shape index: {}]
  %s14 = inlined_call_operand.vmem [shape: f32[2,1,128], index: 14, kind: input, shape index: {}]
  %s15 = inlined_call_operand.vmem [shape: f32[2,1,128], index: 15, kind: input, shape index: {}]
  %s16 = inlined_call_operand.vmem [shape: bf16[128,32], index: 16, kind: input, shape index: {}]
  %s17 = inlined_call_operand.vmem [shape: f32[1,32], index: 17, kind: input, shape index: {}]
  %s18 = inlined_call_operand.vmem [shape: f32[1,32], index: 18, kind: input, shape index: {}]
  %s19 = inlined_call_operand.<no memory space> [shape: f32[1,1], index: 19, kind: input, shape index: {}]
  %s20 = inlined_call_operand.vmem [shape: f32[16,1], index: 20, kind: output, shape index: {}]
  %s21 = sld [smem:[#allocation0]]
  $region151: #{_forward.1} parent=0
    _
  %s23 = ssub.s32 1, %s21
  %s24 = scalar_select 0, %s23, %s21
  %v25 = vstv %s19
  %26 = vst [vmem:[#allocation4] sm:$0x1] %v25
  loop: start=0, step=1, limit=6
  $region2: #{_forward.1} parent=0 // loop_pre_header
    _
  $region3: #{_forward.1} parent=0 // loop_header
    %s28 = sphi 0, %s32
    %p29 = scmp.ge.s32.totalorder %s28, 6
    %s35 = sphi 0, %s47
    %s36 = sphi 0, %s43
    %s37 = sphi 0, %s35
    %s38 = sphi 0, %s36
    %s39 = sphi 0, %s37
    %s40 = sphi 0, %s38
    %s50 = sphi 0, %s52
    %s53 = sphi 0, %s50
    %s54 = sphi 0, %s53
    %s70 = sphi 0, %s54
    %s74 = sphi 0, %s74
    %s76 = sphi 0, %s74
    %s77 = sphi 0, %s76
    %s91 = sphi 0, %s77
    %s95 = sphi 0, %s95
    %s97 = sphi 0, %s95
    %s98 = sphi 0, %s97
    %s112 = sphi 0, %s98
    %s118 = sphi 0, %s120
    %s121 = sphi 0, %s118
    %s122 = sphi 0, %s121
    %s138 = sphi 0, %s122
    %s144 = sphi 0, %s146
    %s147 = sphi 0, %s144
    %s148 = sphi 0, %s147
    %s164 = sphi 0, %s148
    %s170 = sphi 0, %s172
    %s173 = sphi 0, %s170
    %s174 = sphi 0, %s173
    %s190 = sphi 0, %s174
    %s196 = sphi 0, %s198
    %s199 = sphi 0, %s196
    %s200 = sphi 0, %s199
    %s216 = sphi 0, %s200
    %s222 = sphi 0, %s224
    %s225 = sphi 0, %s222
    %s226 = sphi 0, %s225
    %s242 = sphi 0, %s226
    %s248 = sphi 0, %s250
    %s251 = sphi 0, %s248
    %s252 = sphi 0, %s251
    %s268 = sphi 0, %s252
    %s274 = sphi 0, %s276
    %s277 = sphi 0, %s274
    %s278 = sphi 0, %s277
    %s294 = sphi 0, %s278
    %s300 = sphi 0, %s302
    %s303 = sphi 0, %s300
    %s304 = sphi 0, %s303
    %s320 = sphi 0, %s304
    %s326 = sphi 0, %s328
    %s329 = sphi 0, %s326
    %s330 = sphi 0, %s329
    %s346 = sphi 0, %s330
    %s352 = sphi 0, %s354
    %s355 = sphi 0, %s352
    %s356 = sphi 0, %s355
    %s372 = sphi 0, %s356
    %s378 = sphi 0, %s380
    %s381 = sphi 0, %s378
    %s382 = sphi 0, %s381
    %s398 = sphi 0, %s382
    %s404 = sphi 0, %s406
    %s407 = sphi 0, %s404
    %s408 = sphi 0, %s407
    %s424 = sphi 0, %s408
    %s428 = sphi 0, %s428
    %s430 = sphi 0, %s428
    %s431 = sphi 0, %s430
    %s445 = sphi 0, %s431
    %s449 = sphi 0, %s449
    %s451 = sphi 0, %s449
    %s452 = sphi 0, %s451
    %s466 = sphi 0, %s452
    %s470 = sphi 0, %s470
    %s472 = sphi 0, %s470
    %s473 = sphi 0, %s472
    %s487 = sphi 0, %s473
    %s491 = sphi 0, %s491
    %s493 = sphi 0, %s491
    %s494 = sphi 0, %s493
    %s508 = sphi 0, %s494
    %s514 = sphi 0, %s516
    %s517 = sphi 0, %s514
    %s518 = sphi 0, %s517
    %s534 = sphi 0, %s518
  $region4: #{_forward.1} parent=0 // loop_header_branch
    %31 = sbr.rel (%p29) target = $region8
  $region5: #{_forward.1} parent=0 // loop_body
    %s33 = ssub.s32 %s28, 1
    %s34 = ssub.s32 %s28, 2
    %s41 = sadd.s32 1, %s36
    %p42 = scmp.ge.s32.totalorder %s41, 2
    %s43 = scalar_select %p42, 0, %s41
    %s44 = sadd.s32 1, %s35
    %s45 = scalar_select %p42, %s44, %s35
    %p46 = scmp.ge.s32.totalorder %s45, 2
    %s47 = scalar_select %p46, 0, %s45
    %s48 = ssub.s32 %s35, %s47
    %p49 = scmp.eq.s32.totalorder %s48, 0
    %s51 = sadd.s32 %s50, 1
    %s52 = scalar_select %p49, %s50, %s51
    %p55 = pneg %p49
    %p56 = scmp.eq.s32.totalorder %s28, 3
    %p57 = por %p55, %p56
    %p58 = scmp.ne.s32.totalorder %s50, %s53
    %p59 = scmp.eq.s32.totalorder %s28, 0
    %p60 = por %p58, %p59
    %p61 = scmp.ne.s32.totalorder %s50, %s53
    %p62 = scmp.eq.s32.totalorder %s33, 3
    %p63 = por %p61, %p62
    %p64 = scmp.ne.s32.totalorder %s53, %s54
    %p65 = scmp.eq.s32.totalorder %s33, 0
    %p66 = por %p64, %p65
    %p67 = scmp.ne.s32.totalorder %s53, %s54
    %p68 = scmp.eq.s32.totalorder %s34, 3
    %p69 = por %p67, %p68
    %p71 = scmp.ne.s32.totalorder %s54, %s70
    %p72 = scmp.eq.s32.totalorder %s34, 0
    %p73 = por %p71, %p72
    %s75 = sadd.s32 %s74, 1
    %p78 = scmp.eq.s32.totalorder %s28, 3
    %p79 = scmp.ne.s32.totalorder %s74, %s76
    %p80 = scmp.eq.s32.totalorder %s28, 0
    %p81 = por %p79, %p80
    %p82 = scmp.ne.s32.totalorder %s74, %s76
    %p83 = scmp.eq.s32.totalorder %s33, 3
    %p84 = por %p82, %p83
    %p85 = scmp.ne.s32.totalorder %s76, %s77
    %p86 = scmp.eq.s32.totalorder %s33, 0
    %p87 = por %p85, %p86
    %p88 = scmp.ne.s32.totalorder %s76, %s77
    %p89 = scmp.eq.s32.totalorder %s34, 3
    %p90 = por %p88, %p89
    %p92 = scmp.ne.s32.totalorder %s77, %s91
    %p93 = scmp.eq.s32.totalorder %s34, 0
    %p94 = por %p92, %p93
    %s96 = sadd.s32 %s95, 1
    %p99 = scmp.eq.s32.totalorder %s28, 3
    %p100 = scmp.ne.s32.totalorder %s95, %s97
    %p101 = scmp.eq.s32.totalorder %s28, 0
    %p102 = por %p100, %p101
    %p103 = scmp.ne.s32.totalorder %s95, %s97
    %p104 = scmp.eq.s32.totalorder %s33, 3
    %p105 = por %p103, %p104
    %p106 = scmp.ne.s32.totalorder %s97, %s98
    %p107 = scmp.eq.s32.totalorder %s33, 0
    %p108 = por %p106, %p107
    %p109 = scmp.ne.s32.totalorder %s97, %s98
    %p110 = scmp.eq.s32.totalorder %s34, 3
    %p111 = por %p109, %p110
    %p113 = scmp.ne.s32.totalorder %s98, %s112
    %p114 = scmp.eq.s32.totalorder %s34, 0
    %p115 = por %p113, %p114
    %s116 = ssub.s32 %s36, %s43
    %p117 = scmp.eq.s32.totalorder %s116, 0
    %s119 = sadd.s32 %s118, 1
    %s120 = scalar_select %p117, %s118, %s119
    %p123 = pneg %p117
    %p124 = scmp.eq.s32.totalorder %s28, 3
    %p125 = por %p123, %p124
    %p126 = scmp.ne.s32.totalorder %s118, %s121
    %p127 = scmp.eq.s32.totalorder %s28, 0
    %p128 = por %p126, %p127
    %p129 = scmp.ne.s32.totalorder %s118, %s121
    %p130 = scmp.eq.s32.totalorder %s33, 3
    %p131 = por %p129, %p130
    %p132 = scmp.ne.s32.totalorder %s121, %s122
    %p133 = scmp.eq.s32.totalorder %s33, 0
    %p134 = por %p132, %p133
    %p135 = scmp.ne.s32.totalorder %s121, %s122
    %p136 = scmp.eq.s32.totalorder %s34, 3
    %p137 = por %p135, %p136
    %p139 = scmp.ne.s32.totalorder %s122, %s138
    %p140 = scmp.eq.s32.totalorder %s34, 0
    %p141 = por %p139, %p140
    %s142 = ssub.s32 %s36, %s43
    %p143 = scmp.eq.s32.totalorder %s142, 0
    %s145 = sadd.s32 %s144, 1
    %s146 = scalar_select %p143, %s144, %s145
    %p149 = pneg %p143
    %p150 = scmp.eq.s32.totalorder %s28, 3
    %p151 = por %p149, %p150
    %p152 = scmp.ne.s32.totalorder %s144, %s147
    %p153 = scmp.eq.s32.totalorder %s28, 0
    %p154 = por %p152, %p153
    %p155 = scmp.ne.s32.totalorder %s144, %s147
    %p156 = scmp.eq.s32.totalorder %s33, 3
    %p157 = por %p155, %p156
    %p158 = scmp.ne.s32.totalorder %s147, %s148
    %p159 = scmp.eq.s32.totalorder %s33, 0
    %p160 = por %p158, %p159
    %p161 = scmp.ne.s32.totalorder %s147, %s148
    %p162 = scmp.eq.s32.totalorder %s34, 3
    %p163 = por %p161, %p162
    %p165 = scmp.ne.s32.totalorder %s148, %s164
    %p166 = scmp.eq.s32.totalorder %s34, 0
    %p167 = por %p165, %p166
    %s168 = ssub.s32 %s36, %s43
    %p169 = scmp.eq.s32.totalorder %s168, 0
    %s171 = sadd.s32 %s170, 1
    %s172 = scalar_select %p169, %s170, %s171
    %p175 = pneg %p169
    %p176 = scmp.eq.s32.totalorder %s28, 3
    %p177 = por %p175, %p176
    %p178 = scmp.ne.s32.totalorder %s170, %s173
    %p179 = scmp.eq.s32.totalorder %s28, 0
    %p180 = por %p178, %p179
    %p181 = scmp.ne.s32.totalorder %s170, %s173
    %p182 = scmp.eq.s32.totalorder %s33, 3
    %p183 = por %p181, %p182
    %p184 = scmp.ne.s32.totalorder %s173, %s174
    %p185 = scmp.eq.s32.totalorder %s33, 0
    %p186 = por %p184, %p185
    %p187 = scmp.ne.s32.totalorder %s173, %s174
    %p188 = scmp.eq.s32.totalorder %s34, 3
    %p189 = por %p187, %p188
    %p191 = scmp.ne.s32.totalorder %s174, %s190
    %p192 = scmp.eq.s32.totalorder %s34, 0
    %p193 = por %p191, %p192
    %s194 = ssub.s32 %s36, %s43
    %p195 = scmp.eq.s32.totalorder %s194, 0
    %s197 = sadd.s32 %s196, 1
    %s198 = scalar_select %p195, %s196, %s197
    %p201 = pneg %p195
    %p202 = scmp.eq.s32.totalorder %s28, 3
    %p203 = por %p201, %p202
    %p204 = scmp.ne.s32.totalorder %s196, %s199
    %p205 = scmp.eq.s32.totalorder %s28, 0
    %p206 = por %p204, %p205
    %p207 = scmp.ne.s32.totalorder %s196, %s199
    %p208 = scmp.eq.s32.totalorder %s33, 3
    %p209 = por %p207, %p208
    %p210 = scmp.ne.s32.totalorder %s199, %s200
    %p211 = scmp.eq.s32.totalorder %s33, 0
    %p212 = por %p210, %p211
    %p213 = scmp.ne.s32.totalorder %s199, %s200
    %p214 = scmp.eq.s32.totalorder %s34, 3
    %p215 = por %p213, %p214
    %p217 = scmp.ne.s32.totalorder %s200, %s216
    %p218 = scmp.eq.s32.totalorder %s34, 0
    %p219 = por %p217, %p218
    %s220 = ssub.s32 %s36, %s43
    %p221 = scmp.eq.s32.totalorder %s220, 0
    %s223 = sadd.s32 %s222, 1
    %s224 = scalar_select %p221, %s222, %s223
    %p227 = pneg %p221
    %p228 = scmp.eq.s32.totalorder %s28, 3
    %p229 = por %p227, %p228
    %p230 = scmp.ne.s32.totalorder %s222, %s225
    %p231 = scmp.eq.s32.totalorder %s28, 0
    %p232 = por %p230, %p231
    %p233 = scmp.ne.s32.totalorder %s222, %s225
    %p234 = scmp.eq.s32.totalorder %s33, 3
    %p235 = por %p233, %p234
    %p236 = scmp.ne.s32.totalorder %s225, %s226
    %p237 = scmp.eq.s32.totalorder %s33, 0
    %p238 = por %p236, %p237
    %p239 = scmp.ne.s32.totalorder %s225, %s226
    %p240 = scmp.eq.s32.totalorder %s34, 3
    %p241 = por %p239, %p240
    %p243 = scmp.ne.s32.totalorder %s226, %s242
    %p244 = scmp.eq.s32.totalorder %s34, 0
    %p245 = por %p243, %p244
    %s246 = ssub.s32 %s36, %s43
    %p247 = scmp.eq.s32.totalorder %s246, 0
    %s249 = sadd.s32 %s248, 1
    %s250 = scalar_select %p247, %s248, %s249
    %p253 = pneg %p247
    %p254 = scmp.eq.s32.totalorder %s28, 3
    %p255 = por %p253, %p254
    %p256 = scmp.ne.s32.totalorder %s248, %s251
    %p257 = scmp.eq.s32.totalorder %s28, 0
    %p258 = por %p256, %p257
    %p259 = scmp.ne.s32.totalorder %s248, %s251
    %p260 = scmp.eq.s32.totalorder %s33, 3
    %p261 = por %p259, %p260
    %p262 = scmp.ne.s32.totalorder %s251, %s252
    %p263 = scmp.eq.s32.totalorder %s33, 0
    %p264 = por %p262, %p263
    %p265 = scmp.ne.s32.totalorder %s251, %s252
    %p266 = scmp.eq.s32.totalorder %s34, 3
    %p267 = por %p265, %p266
    %p269 = scmp.ne.s32.totalorder %s252, %s268
    %p270 = scmp.eq.s32.totalorder %s34, 0
    %p271 = por %p269, %p270
    %s272 = ssub.s32 %s36, %s43
    %p273 = scmp.eq.s32.totalorder %s272, 0
    %s275 = sadd.s32 %s274, 1
    %s276 = scalar_select %p273, %s274, %s275
    %p279 = pneg %p273
    %p280 = scmp.eq.s32.totalorder %s28, 3
    %p281 = por %p279, %p280
    %p282 = scmp.ne.s32.totalorder %s274, %s277
    %p283 = scmp.eq.s32.totalorder %s28, 0
    %p284 = por %p282, %p283
    %p285 = scmp.ne.s32.totalorder %s274, %s277
    %p286 = scmp.eq.s32.totalorder %s33, 3
    %p287 = por %p285, %p286
    %p288 = scmp.ne.s32.totalorder %s277, %s278
    %p289 = scmp.eq.s32.totalorder %s33, 0
    %p290 = por %p288, %p289
    %p291 = scmp.ne.s32.totalorder %s277, %s278
    %p292 = scmp.eq.s32.totalorder %s34, 3
    %p293 = por %p291, %p292
    %p295 = scmp.ne.s32.totalorder %s278, %s294
    %p296 = scmp.eq.s32.totalorder %s34, 0
    %p297 = por %p295, %p296
    %s298 = ssub.s32 %s36, %s43
    %p299 = scmp.eq.s32.totalorder %s298, 0
    %s301 = sadd.s32 %s300, 1
    %s302 = scalar_select %p299, %s300, %s301
    %p305 = pneg %p299
    %p306 = scmp.eq.s32.totalorder %s28, 3
    %p307 = por %p305, %p306
    %p308 = scmp.ne.s32.totalorder %s300, %s303
    %p309 = scmp.eq.s32.totalorder %s28, 0
    %p310 = por %p308, %p309
    %p311 = scmp.ne.s32.totalorder %s300, %s303
    %p312 = scmp.eq.s32.totalorder %s33, 3
    %p313 = por %p311, %p312
    %p314 = scmp.ne.s32.totalorder %s303, %s304
    %p315 = scmp.eq.s32.totalorder %s33, 0
    %p316 = por %p314, %p315
    %p317 = scmp.ne.s32.totalorder %s303, %s304
    %p318 = scmp.eq.s32.totalorder %s34, 3
    %p319 = por %p317, %p318
    %p321 = scmp.ne.s32.totalorder %s304, %s320
    %p322 = scmp.eq.s32.totalorder %s34, 0
    %p323 = por %p321, %p322
    %s324 = ssub.s32 %s36, %s43
    %p325 = scmp.eq.s32.totalorder %s324, 0
    %s327 = sadd.s32 %s326, 1
    %s328 = scalar_select %p325, %s326, %s327
    %p331 = pneg %p325
    %p332 = scmp.eq.s32.totalorder %s28, 3
    %p333 = por %p331, %p332
    %p334 = scmp.ne.s32.totalorder %s326, %s329
    %p335 = scmp.eq.s32.totalorder %s28, 0
    %p336 = por %p334, %p335
    %p337 = scmp.ne.s32.totalorder %s326, %s329
    %p338 = scmp.eq.s32.totalorder %s33, 3
    %p339 = por %p337, %p338
    %p340 = scmp.ne.s32.totalorder %s329, %s330
    %p341 = scmp.eq.s32.totalorder %s33, 0
    %p342 = por %p340, %p341
    %p343 = scmp.ne.s32.totalorder %s329, %s330
    %p344 = scmp.eq.s32.totalorder %s34, 3
    %p345 = por %p343, %p344
    %p347 = scmp.ne.s32.totalorder %s330, %s346
    %p348 = scmp.eq.s32.totalorder %s34, 0
    %p349 = por %p347, %p348
    %s350 = ssub.s32 %s36, %s43
    %p351 = scmp.eq.s32.totalorder %s350, 0
    %s353 = sadd.s32 %s352, 1
    %s354 = scalar_select %p351, %s352, %s353
    %p357 = pneg %p351
    %p358 = scmp.eq.s32.totalorder %s28, 3
    %p359 = por %p357, %p358
    %p360 = scmp.ne.s32.totalorder %s352, %s355
    %p361 = scmp.eq.s32.totalorder %s28, 0
    %p362 = por %p360, %p361
    %p363 = scmp.ne.s32.totalorder %s352, %s355
    %p364 = scmp.eq.s32.totalorder %s33, 3
    %p365 = por %p363, %p364
    %p366 = scmp.ne.s32.totalorder %s355, %s356
    %p367 = scmp.eq.s32.totalorder %s33, 0
    %p368 = por %p366, %p367
    %p369 = scmp.ne.s32.totalorder %s355, %s356
    %p370 = scmp.eq.s32.totalorder %s34, 3
    %p371 = por %p369, %p370
    %p373 = scmp.ne.s32.totalorder %s356, %s372
    %p374 = scmp.eq.s32.totalorder %s34, 0
    %p375 = por %p373, %p374
    %s376 = ssub.s32 %s36, %s43
    %p377 = scmp.eq.s32.totalorder %s376, 0
    %s379 = sadd.s32 %s378, 1
    %s380 = scalar_select %p377, %s378, %s379
    %p383 = pneg %p377
    %p384 = scmp.eq.s32.totalorder %s28, 3
    %p385 = por %p383, %p384
    %p386 = scmp.ne.s32.totalorder %s378, %s381
    %p387 = scmp.eq.s32.totalorder %s28, 0
    %p388 = por %p386, %p387
    %p389 = scmp.ne.s32.totalorder %s378, %s381
    %p390 = scmp.eq.s32.totalorder %s33, 3
    %p391 = por %p389, %p390
    %p392 = scmp.ne.s32.totalorder %s381, %s382
    %p393 = scmp.eq.s32.totalorder %s33, 0
    %p394 = por %p392, %p393
    %p395 = scmp.ne.s32.totalorder %s381, %s382
    %p396 = scmp.eq.s32.totalorder %s34, 3
    %p397 = por %p395, %p396
    %p399 = scmp.ne.s32.totalorder %s382, %s398
    %p400 = scmp.eq.s32.totalorder %s34, 0
    %p401 = por %p399, %p400
    %s402 = ssub.s32 %s36, %s43
    %p403 = scmp.eq.s32.totalorder %s402, 0
    %s405 = sadd.s32 %s404, 1
    %s406 = scalar_select %p403, %s404, %s405
    %p409 = pneg %p403
    %p410 = scmp.eq.s32.totalorder %s28, 3
    %p411 = por %p409, %p410
    %p412 = scmp.ne.s32.totalorder %s404, %s407
    %p413 = scmp.eq.s32.totalorder %s28, 0
    %p414 = por %p412, %p413
    %p415 = scmp.ne.s32.totalorder %s404, %s407
    %p416 = scmp.eq.s32.totalorder %s33, 3
    %p417 = por %p415, %p416
    %p418 = scmp.ne.s32.totalorder %s407, %s408
    %p419 = scmp.eq.s32.totalorder %s33, 0
    %p420 = por %p418, %p419
    %p421 = scmp.ne.s32.totalorder %s407, %s408
    %p422 = scmp.eq.s32.totalorder %s34, 3
    %p423 = por %p421, %p422
    %p425 = scmp.ne.s32.totalorder %s408, %s424
    %p426 = scmp.eq.s32.totalorder %s34, 0
    %p427 = por %p425, %p426
    %s429 = sadd.s32 %s428, 1
    %p432 = scmp.eq.s32.totalorder %s28, 3
    %p433 = scmp.ne.s32.totalorder %s428, %s430
    %p434 = scmp.eq.s32.totalorder %s28, 0
    %p435 = por %p433, %p434
    %p436 = scmp.ne.s32.totalorder %s428, %s430
    %p437 = scmp.eq.s32.totalorder %s33, 3
    %p438 = por %p436, %p437
    %p439 = scmp.ne.s32.totalorder %s430, %s431
    %p440 = scmp.eq.s32.totalorder %s33, 0
    %p441 = por %p439, %p440
    %p442 = scmp.ne.s32.totalorder %s430, %s431
    %p443 = scmp.eq.s32.totalorder %s34, 3
    %p444 = por %p442, %p443
    %p446 = scmp.ne.s32.totalorder %s431, %s445
    %p447 = scmp.eq.s32.totalorder %s34, 0
    %p448 = por %p446, %p447
    %s450 = sadd.s32 %s449, 1
    %p453 = scmp.eq.s32.totalorder %s28, 3
    %p454 = scmp.ne.s32.totalorder %s449, %s451
    %p455 = scmp.eq.s32.totalorder %s28, 0
    %p456 = por %p454, %p455
    %p457 = scmp.ne.s32.totalorder %s449, %s451
    %p458 = scmp.eq.s32.totalorder %s33, 3
    %p459 = por %p457, %p458
    %p460 = scmp.ne.s32.totalorder %s451, %s452
    %p461 = scmp.eq.s32.totalorder %s33, 0
    %p462 = por %p460, %p461
    %p463 = scmp.ne.s32.totalorder %s451, %s452
    %p464 = scmp.eq.s32.totalorder %s34, 3
    %p465 = por %p463, %p464
    %p467 = scmp.ne.s32.totalorder %s452, %s466
    %p468 = scmp.eq.s32.totalorder %s34, 0
    %p469 = por %p467, %p468
    %s471 = sadd.s32 %s470, 1
    %p474 = scmp.eq.s32.totalorder %s28, 3
    %p475 = scmp.ne.s32.totalorder %s470, %s472
    %p476 = scmp.eq.s32.totalorder %s28, 0
    %p477 = por %p475, %p476
    %p478 = scmp.ne.s32.totalorder %s470, %s472
    %p479 = scmp.eq.s32.totalorder %s33, 3
    %p480 = por %p478, %p479
    %p481 = scmp.ne.s32.totalorder %s472, %s473
    %p482 = scmp.eq.s32.totalorder %s33, 0
    %p483 = por %p481, %p482
    %p484 = scmp.ne.s32.totalorder %s472, %s473
    %p485 = scmp.eq.s32.totalorder %s34, 3
    %p486 = por %p484, %p485
    %p488 = scmp.ne.s32.totalorder %s473, %s487
    %p489 = scmp.eq.s32.totalorder %s34, 0
    %p490 = por %p488, %p489
    %s492 = sadd.s32 %s491, 1
    %p495 = scmp.eq.s32.totalorder %s28, 3
    %p496 = scmp.ne.s32.totalorder %s491, %s493
    %p497 = scmp.eq.s32.totalorder %s28, 0
    %p498 = por %p496, %p497
    %p499 = scmp.ne.s32.totalorder %s491, %s493
    %p500 = scmp.eq.s32.totalorder %s33, 3
    %p501 = por %p499, %p500
    %p502 = scmp.ne.s32.totalorder %s493, %s494
    %p503 = scmp.eq.s32.totalorder %s33, 0
    %p504 = por %p502, %p503
    %p505 = scmp.ne.s32.totalorder %s493, %s494
    %p506 = scmp.eq.s32.totalorder %s34, 3
    %p507 = por %p505, %p506
    %p509 = scmp.ne.s32.totalorder %s494, %s508
    %p510 = scmp.eq.s32.totalorder %s34, 0
    %p511 = por %p509, %p510
    %s512 = ssub.s32 %s35, %s47
    %p513 = scmp.eq.s32.totalorder %s512, 0
    %s515 = sadd.s32 %s514, 1
    %s516 = scalar_select %p513, %s514, %s515
    %p519 = pneg %p513
    %p520 = scmp.eq.s32.totalorder %s28, 3
    %p521 = por %p519, %p520
    %p522 = scmp.ne.s32.totalorder %s514, %s517
    %p523 = scmp.eq.s32.totalorder %s28, 0
    %p524 = por %p522, %p523
    %p525 = scmp.ne.s32.totalorder %s514, %s517
    %p526 = scmp.eq.s32.totalorder %s33, 3
    %p527 = por %p525, %p526
    %p528 = scmp.ne.s32.totalorder %s517, %s518
    %p529 = scmp.eq.s32.totalorder %s33, 0
    %p530 = por %p528, %p529
    %p531 = scmp.ne.s32.totalorder %s517, %s518
    %p532 = scmp.eq.s32.totalorder %s34, 3
    %p533 = por %p531, %p532
    %p535 = scmp.ne.s32.totalorder %s518, %s534
    %p536 = scmp.eq.s32.totalorder %s34, 0
    %p537 = por %p535, %p536
    %p538 = scmp.le.s32.totalorder 1, %s28
    %p539 = scmp.lt.s32.totalorder %s28, 5
    %p540 = pnand %p538, %p539
    %p541 = pneg %p540
    // Predicated region
    $region9: #{_forward.1} parent=5 // pred_check
      _
    $region10: #{_forward.1} parent=5 // pred_check_branch
      %543 = sbr.rel (%p540) target = $region12
    $region11: #{_forward.1} parent=5 // pred_region
      %s544 = ssub.s32 %s28, 1
      // Predicated region
      $region13: #{_forward.1} parent=11 // pred_check
        %p545 = pneg %p87
      $region14: #{_forward.1} parent=11 // pred_check_branch
        %547 = sbr.rel (%p545) target = $region16
      $region15: #{_forward.1} parent=11 // pred_region
        _
      $region16: #{_forward.1} parent=11 // pred_fallthru
        _
      // Predicated region
      $region17: #{_forward.1} parent=11 // pred_check
        %p548 = pneg %p108
      $region18: #{_forward.1} parent=11 // pred_check_branch
        %550 = sbr.rel (%p548) target = $region20
      $region19: #{_forward.1} parent=11 // pred_region
        _
      $region20: #{_forward.1} parent=11 // pred_fallthru
        _
      // Predicated region
      $region21: #{_forward.1} parent=11 // pred_check
        %p551 = pneg %p441
      $region22: #{_forward.1} parent=11 // pred_check_branch
        %553 = sbr.rel (%p551) target = $region24
      $region23: #{_forward.1} parent=11 // pred_region
        _
      $region24: #{_forward.1} parent=11 // pred_fallthru
        _
      // Predicated region
      $region25: #{_forward.1} parent=11 // pred_check
        %p554 = pneg %p462
      $region26: #{_forward.1} parent=11 // pred_check_branch
        %556 = sbr.rel (%p554) target = $region28
      $region27: #{_forward.1} parent=11 // pred_region
        _
      $region28: #{_forward.1} parent=11 // pred_fallthru
        _
      // Predicated region
      $region29: #{_forward.1} parent=11 // pred_check
        %p557 = pneg %p483
      $region30: #{_forward.1} parent=11 // pred_check_branch
        %559 = sbr.rel (%p557) target = $region32
      $region31: #{_forward.1} parent=11 // pred_region
        _
      $region32: #{_forward.1} parent=11 // pred_fallthru
        _
      // Predicated region
      $region33: #{_forward.1} parent=11 // pred_check
        %p560 = pneg %p504
      $region34: #{_forward.1} parent=11 // pred_check_branch
        %562 = sbr.rel (%p560) target = $region36
      $region35: #{_forward.1} parent=11 // pred_region
        _
      $region36: #{_forward.1} parent=11 // pred_fallthru
        _
    $region12: #{_forward.1} parent=5 // pred_fallthru
      _
    %p563 = scmp.lt.s32.totalorder %s28, 4
    // Predicated region
    $region37: #{_forward.1} parent=5 // pred_check
      %p564 = pneg %p563
    $region38: #{_forward.1} parent=5 // pred_check_branch
      %566 = sbr.rel (%p564) target = $region40
    $region39: #{_forward.1} parent=5 // pred_region
      // Predicated region
      $region41: #{_forward.1} parent=39 // pred_check
        %p567 = pneg %p60
      $region42: #{_forward.1} parent=39 // pred_check_branch
        %569 = sbr.rel (%p567) target = $region44
      $region43: #{_forward.1} parent=39 // pred_region
        %s570 = smul.u32 8, %s35
        %p571 = scmp.lt.s32.totalorder %s570, 15
        %s572 = scalar_select %p571, %s570, 15
        %s573 = scalar_lea.vmem %s1, %s572
        %s574 = smul.u32 8, %s35
      $region44: #{_forward.1} parent=39 // pred_fallthru
        _
      // Predicated region
      $region45: #{_forward.1} parent=39 // pred_check
        %p575 = pneg %p128
      $region46: #{_forward.1} parent=39 // pred_check_branch
        %577 = sbr.rel (%p575) target = $region48
      $region47: #{_forward.1} parent=39 // pred_region
        %p578 = scmp.lt.s32.totalorder %s36, 1
        %s579 = scalar_select %p578, %s36, 1
        %s580 = smul.addr %s579, 48
        %s581 = smul.addr %s580, 4
        %s582 = scalar_lea.vmem %s4, %s581
      $region48: #{_forward.1} parent=39 // pred_fallthru
        _
      // Predicated region
      $region49: #{_forward.1} parent=39 // pred_check
        %p583 = pneg %p154
      $region50: #{_forward.1} parent=39 // pred_check_branch
        %585 = sbr.rel (%p583) target = $region52
      $region51: #{_forward.1} parent=39 // pred_region
        %p586 = scmp.lt.s32.totalorder %s36, 1
        %s587 = scalar_select %p586, %s36, 1
        %s588 = smul.addr %s587, 3
        %s589 = scalar_lea.vmem %s5, %s588
      $region52: #{_forward.1} parent=39 // pred_fallthru
        _
      // Predicated region
      $region53: #{_forward.1} parent=39 // pred_check
        %p590 = pneg %p180
      $region54: #{_forward.1} parent=39 // pred_check_branch
        %592 = sbr.rel (%p590) target = $region56
      $region55: #{_forward.1} parent=39 // pred_region
        %p593 = scmp.lt.s32.totalorder %s36, 1
        %s594 = scalar_select %p593, %s36, 1
        %s595 = smul.addr %s594, 16
        %s596 = smul.addr %s595, 4
        %s597 = scalar_lea.vmem %s6, %s596
      $region56: #{_forward.1} parent=39 // pred_fallthru
        _
      // Predicated region
      $region57: #{_forward.1} parent=39 // pred_check
        %p598 = pneg %p206
      $region58: #{_forward.1} parent=39 // pred_check_branch
        %600 = sbr.rel (%p598) target = $region60
      $region59: #{_forward.1} parent=39 // pred_region
        %p601 = scmp.lt.s32.totalorder %s36, 1
        %s602 = scalar_select %p601, %s36, 1
        %s603 = scalar_lea.vmem %s7, %s602
      $region60: #{_forward.1} parent=39 // pred_fallthru
        _
      // Predicated region
      $region61: #{_forward.1} parent=39 // pred_check
        %p604 = pneg %p232
      $region62: #{_forward.1} parent=39 // pred_check_branch
        %606 = sbr.rel (%p604) target = $region64
      $region63: #{_forward.1} parent=39 // pred_region
        %p607 = scmp.lt.s32.totalorder %s36, 1
        %s608 = scalar_select %p607, %s36, 1
        %s609 = scalar_lea.vmem %s8, %s608
      $region64: #{_forward.1} parent=39 // pred_fallthru
        _
      // Predicated region
      $region65: #{_forward.1} parent=39 // pred_check
        %p610 = pneg %p258
      $region66: #{_forward.1} parent=39 // pred_check_branch
        %612 = sbr.rel (%p610) target = $region68
      $region67: #{_forward.1} parent=39 // pred_region
        %p613 = scmp.lt.s32.totalorder %s36, 1
        %s614 = scalar_select %p613, %s36, 1
        %s615 = scalar_lea.vmem %s9, %s614
      $region68: #{_forward.1} parent=39 // pred_fallthru
        _
      // Predicated region
      $region69: #{_forward.1} parent=39 // pred_check
        %p616 = pneg %p284
      $region70: #{_forward.1} parent=39 // pred_check_branch
        %618 = sbr.rel (%p616) target = $region72
      $region71: #{_forward.1} parent=39 // pred_region
        %p619 = scmp.lt.s32.totalorder %s36, 1
        %s620 = scalar_select %p619, %s36, 1
        %s621 = smul.addr %s620, 32
        %s622 = smul.addr %s621, 4
        %s623 = scalar_lea.vmem %s10, %s622
      $region72: #{_forward.1} parent=39 // pred_fallthru
        _
      // Predicated region
      $region73: #{_forward.1} parent=39 // pred_check
        %p624 = pneg %p310
      $region74: #{_forward.1} parent=39 // pred_check_branch
        %626 = sbr.rel (%p624) target = $region76
      $region75: #{_forward.1} parent=39 // pred_region
        %p627 = scmp.lt.s32.totalorder %s36, 1
        %s628 = scalar_select %p627, %s36, 1
        %s629 = smul.addr %s628, 2
        %s630 = scalar_lea.vmem %s11, %s629
      $region76: #{_forward.1} parent=39 // pred_fallthru
        _
      // Predicated region
      $region77: #{_forward.1} parent=39 // pred_check
        %p631 = pneg %p336
      $region78: #{_forward.1} parent=39 // pred_check_branch
        %633 = sbr.rel (%p631) target = $region80
      $region79: #{_forward.1} parent=39 // pred_region
        %p634 = scmp.lt.s32.totalorder %s36, 1
        %s635 = scalar_select %p634, %s36, 1
        %s636 = smul.addr %s635, 32
        %s637 = smul.addr %s636, 4
        %s638 = scalar_lea.vmem %s12, %s637
      $region80: #{_forward.1} parent=39 // pred_fallthru
        _
      // Predicated region
      $region81: #{_forward.1} parent=39 // pred_check
        %p639 = pneg %p362
      $region82: #{_forward.1} parent=39 // pred_check_branch
        %641 = sbr.rel (%p639) target = $region84
      $region83: #{_forward.1} parent=39 // pred_region
        %p642 = scmp.lt.s32.totalorder %s36, 1
        %s643 = scalar_select %p642, %s36, 1
        %s644 = scalar_lea.vmem %s13, %s643
      $region84: #{_forward.1} parent=39 // pred_fallthru
        _
      // Predicated region
      $region85: #{_forward.1} parent=39 // pred_check
        %p645 = pneg %p388
      $region86: #{_forward.1} parent=39 // pred_check_branch
        %647 = sbr.rel (%p645) target = $region88
      $region87: #{_forward.1} parent=39 // pred_region
        %p648 = scmp.lt.s32.totalorder %s36, 1
        %s649 = scalar_select %p648, %s36, 1
        %s650 = scalar_lea.vmem %s14, %s649
      $region88: #{_forward.1} parent=39 // pred_fallthru
        _
      // Predicated region
      $region89: #{_forward.1} parent=39 // pred_check
        %p651 = pneg %p414
      $region90: #{_forward.1} parent=39 // pred_check_branch
        %653 = sbr.rel (%p651) target = $region92
      $region91: #{_forward.1} parent=39 // pred_region
        %p654 = scmp.lt.s32.totalorder %s36, 1
        %s655 = scalar_select %p654, %s36, 1
        %s656 = scalar_lea.vmem %s15, %s655
      $region92: #{_forward.1} parent=39 // pred_fallthru
        _
    $region40: #{_forward.1} parent=5 // pred_fallthru
      _
    %p657 = scmp.le.s32.totalorder 1, %s28
    %p658 = scmp.lt.s32.totalorder %s28, 5
    %p659 = pnand %p657, %p658
    %p660 = pneg %p659
    // Predicated region
    $region93: #{_forward.1} parent=5 // pred_check
      _
    $region94: #{_forward.1} parent=5 // pred_check_branch
      %662 = sbr.rel (%p659) target = $region96
    $region95: #{_forward.1} parent=5 // pred_region
      %s663 = ssub.s32 %s28, 1
      %s664 = smul.u32 8, %s37
      %p665 = scmp.lt.s32.totalorder %s664, 15
      %s666 = scalar_select %p665, %s664, 15
      %s667 = scalar_lea.vmem %s1, %s666
      %p668 = pneg %p66
      %p669 = pneg %p63
      %p670 = pneg %p87
      %p671 = pneg %p84
      %p672 = pneg %p108
      %p673 = pneg %p105
      %p674 = scmp.lt.s32.totalorder %s38, 1
      %s675 = scalar_select %p674, %s38, 1
      %s676 = smul.addr %s675, 48
      %s677 = smul.addr %s676, 4
      %s678 = scalar_lea.vmem %s4, %s677
      %p679 = pneg %p134
      %p680 = pneg %p131
      %p681 = scmp.lt.s32.totalorder %s38, 1
      %s682 = scalar_select %p681, %s38, 1
      %s683 = smul.addr %s682, 3
      %s684 = scalar_lea.vmem %s5, %s683
      %p685 = pneg %p160
      %p686 = pneg %p157
      %p687 = scmp.lt.s32.totalorder %s38, 1
      %s688 = scalar_select %p687, %s38, 1
      %s689 = smul.addr %s688, 16
      %s690 = smul.addr %s689, 4
      %s691 = scalar_lea.vmem %s6, %s690
      %p692 = pneg %p186
      %p693 = pneg %p183
      %p694 = scmp.lt.s32.totalorder %s38, 1
      %s695 = scalar_select %p694, %s38, 1
      %s696 = scalar_lea.vmem %s7, %s695
      %p697 = pneg %p212
      %p698 = pneg %p209
      %p699 = scmp.lt.s32.totalorder %s38, 1
      %s700 = scalar_select %p699, %s38, 1
      %s701 = scalar_lea.vmem %s8, %s700
      %p702 = pneg %p238
      %p703 = pneg %p235
      %p704 = scmp.lt.s32.totalorder %s38, 1
      %s705 = scalar_select %p704, %s38, 1
      %s706 = scalar_lea.vmem %s9, %s705
      %p707 = pneg %p264
      %p708 = pneg %p261
      %p709 = scmp.lt.s32.totalorder %s38, 1
      %s710 = scalar_select %p709, %s38, 1
      %s711 = smul.addr %s710, 32
      %s712 = smul.addr %s711, 4
      %s713 = scalar_lea.vmem %s10, %s712
      %p714 = pneg %p290
      %p715 = pneg %p287
      %p716 = scmp.lt.s32.totalorder %s38, 1
      %s717 = scalar_select %p716, %s38, 1
      %s718 = smul.addr %s717, 2
      %s719 = scalar_lea.vmem %s11, %s718
      %p720 = pneg %p316
      %p721 = pneg %p313
      %p722 = scmp.lt.s32.totalorder %s38, 1
      %s723 = scalar_select %p722, %s38, 1
      %s724 = smul.addr %s723, 32
      %s725 = smul.addr %s724, 4
      %s726 = scalar_lea.vmem %s12, %s725
      %p727 = pneg %p342
      %p728 = pneg %p339
      %p729 = scmp.lt.s32.totalorder %s38, 1
      %s730 = scalar_select %p729, %s38, 1
      %s731 = scalar_lea.vmem %s13, %s730
      %p732 = pneg %p368
      %p733 = pneg %p365
      %p734 = scmp.lt.s32.totalorder %s38, 1
      %s735 = scalar_select %p734, %s38, 1
      %s736 = scalar_lea.vmem %s14, %s735
      %p737 = pneg %p394
      %p738 = pneg %p391
      %p739 = scmp.lt.s32.totalorder %s38, 1
      %s740 = scalar_select %p739, %s38, 1
      %s741 = scalar_lea.vmem %s15, %s740
      %p742 = pneg %p420
      %p743 = pneg %p417
      %p744 = pneg %p441
      %p745 = pneg %p438
      %p746 = pneg %p462
      %p747 = pneg %p459
      %p748 = pneg %p483
      %p749 = pneg %p480
      %p750 = pneg %p504
      %p751 = pneg %p501
      %p752 = pneg %p530
      %p753 = pneg %p527
      %p754 = scmp.lt.s32.totalorder %s37, 1
      %s755 = scalar_select %p754, %s37, 1
      %s756 = smul.addr %s755, 8
      %s757 = scalar_lea.vmem %s20, %s756
      %s758 = smul.u32 8, %s37
      %p759 = scmp.lt.s32.totalorder %s758, 15
      %s760 = scalar_select %p759, %s758, 15
      %s761 = scalar_lea.vmem %s1, %s760
      %s762 = smul.u32 8, %s37
      %p763 = scmp.lt.s32.totalorder %s38, 1
      %s764 = scalar_select %p763, %s38, 1
      %s765 = smul.addr %s764, 48
      %s766 = smul.addr %s765, 4
      %s767 = scalar_lea.vmem %s4, %s766
      %p768 = scmp.lt.s32.totalorder %s38, 1
      %s769 = scalar_select %p768, %s38, 1
      %s770 = smul.addr %s769, 3
      %s771 = scalar_lea.vmem %s5, %s770
      %p772 = scmp.lt.s32.totalorder %s38, 1
      %s773 = scalar_select %p772, %s38, 1
      %s774 = smul.addr %s773, 16
      %s775 = smul.addr %s774, 4
      %s776 = scalar_lea.vmem %s6, %s775
      %p777 = scmp.lt.s32.totalorder %s38, 1
      %s778 = scalar_select %p777, %s38, 1
      %s779 = scalar_lea.vmem %s7, %s778
      %p780 = scmp.lt.s32.totalorder %s38, 1
      %s781 = scalar_select %p780, %s38, 1
      %s782 = scalar_lea.vmem %s8, %s781
      %p783 = scmp.lt.s32.totalorder %s38, 1
      %s784 = scalar_select %p783, %s38, 1
      %s785 = scalar_lea.vmem %s9, %s784
      %p786 = scmp.lt.s32.totalorder %s38, 1
      %s787 = scalar_select %p786, %s38, 1
      %s788 = smul.addr %s787, 32
      %s789 = smul.addr %s788, 4
      %s790 = scalar_lea.vmem %s10, %s789
      %p791 = scmp.lt.s32.totalorder %s38, 1
      %s792 = scalar_select %p791, %s38, 1
      %s793 = smul.addr %s792, 2
      %s794 = scalar_lea.vmem %s11, %s793
      %p795 = scmp.lt.s32.totalorder %s38, 1
      %s796 = scalar_select %p795, %s38, 1
      %s797 = smul.addr %s796, 32
      %s798 = smul.addr %s797, 4
      %s799 = scalar_lea.vmem %s12, %s798
      %p800 = scmp.lt.s32.totalorder %s38, 1
      %s801 = scalar_select %p800, %s38, 1
      %s802 = scalar_lea.vmem %s13, %s801
      %p803 = scmp.lt.s32.totalorder %s38, 1
      %s804 = scalar_select %p803, %s38, 1
      %s805 = scalar_lea.vmem %s14, %s804
      %p806 = scmp.lt.s32.totalorder %s38, 1
      %s807 = scalar_select %p806, %s38, 1
      %s808 = scalar_lea.vmem %s15, %s807
      %p809 = scmp.lt.s32.totalorder %s37, 1
      %s810 = scalar_select %p809, %s37, 1
      %s811 = smul.addr %s810, 8
      %s812 = scalar_lea.vmem %s20, %s811
      %p814 = scmp.eq.s32.totalorder %s38, 0
      // Predicated region
      $region97: #{_forward.1} parent=95 // pred_check
        %p815 = pneg %p814
      $region98: #{_forward.1} parent=95 // pred_check_branch
        %817 = sbr.rel (%p815) target = $region100
      $region99: #{_forward.1} parent=95 // pred_region
        %s818 = smul.u32 %s37, 128
        %s819 = sshra.s32 %s818, 3
        %s820 = sand.u32 %s818, 7
        %s821 = smul.addr %s819, 4
        %s822 = scalar_lea.vmem %s0, %s821
        %p824 = scmp.lt.u32.totalorder 64, 8
        %p825 = pneg %p824
        // Predicated region
        $region101: #{_forward.1} parent=99 // pred_check
          _
        $region102: #{_forward.1} parent=99 // pred_check_branch
          %827 = sbr.rel (%p824) target = $region104
        $region103: #{_forward.1} parent=99 // pred_region
          %s843 = sand.u32 64, 7
          %p844 = scmp.eq.s32.totalorder %s843, 0
          // Predicated region
          $region116: #{_forward.1} parent=103 // pred_check
            %p845 = pneg %p844
          $region117: #{_forward.1} parent=103 // pred_check_branch
            %847 = sbr.rel (%p845) target = $region119
          $region118: #{_forward.1} parent=103 // pred_region
            loop: start=0, step=1, limit=1
            $region120: #{_forward.1} parent=118 // loop_pre_header
              _
            $region121: #{_forward.1} parent=118 // loop_header
              %s849 = sphi 0, %s853
              %p850 = scmp.ge.s32.totalorder %s849, 1
              %s854 = sphi %s822, %s822
              %s855 = sphi [#allocation2], [#allocation2]
            $region122: #{_forward.1} parent=118 // loop_header_branch
              %852 = sbr.rel (%p850) target = $region126
            $region123: #{_forward.1} parent=118 // loop_body
              %v856 = vld [vmem:[%s854] sm:$0xff]
              %857 = vst [vmem:[%s855] sm:$0xff] %v856
              %v858 = vld [vmem:[%s854 + $0x8] sm:$0xff]
              %859 = vst [vmem:[%s855 + $0x8] sm:$0xff] %v858
              %v860 = vld [vmem:[%s854 + $0x10] sm:$0xff]
              %861 = vst [vmem:[%s855 + $0x10] sm:$0xff] %v860
              %v862 = vld [vmem:[%s854 + $0x18] sm:$0xff]
              %863 = vst [vmem:[%s855 + $0x18] sm:$0xff] %v862
              %v864 = vld [vmem:[%s854 + $0x20] sm:$0xff]
              %865 = vst [vmem:[%s855 + $0x20] sm:$0xff] %v864
              %v866 = vld [vmem:[%s854 + $0x28] sm:$0xff]
              %867 = vst [vmem:[%s855 + $0x28] sm:$0xff] %v866
              %v868 = vld [vmem:[%s854 + $0x30] sm:$0xff]
              %869 = vst [vmem:[%s855 + $0x30] sm:$0xff] %v868
              %v870 = vld [vmem:[%s854 + $0x38] sm:$0xff]
              %871 = vst [vmem:[%s855 + $0x38] sm:$0xff] %v870
            $region124: #{_forward.1} parent=118 // loop_footer
              %s853 = sadd.s32 1, %s849
            $region125: #{_forward.1} parent=118 // loop_footer_branch
              %848 = sbr.rel target = $region121
            $region126: #{_forward.1} parent=118 // loop_exit
              _
          $region119: #{_forward.1} parent=103 // pred_fallthru
            _
          %p872 = pneg %p844
          // Predicated region
          $region127: #{_forward.1} parent=103 // pred_check
            _
          $region128: #{_forward.1} parent=103 // pred_check_branch
            %874 = sbr.rel (%p844) target = $region130
          $region129: #{_forward.1} parent=103 // pred_region
            %s875 = sand.u32 64, 7
          $region130: #{_forward.1} parent=103 // pred_fallthru
            _
        $region104: #{_forward.1} parent=99 // pred_fallthru
          _
        // Predicated region
        $region105: #{_forward.1} parent=99 // pred_check
          %p828 = pneg %p824
        $region106: #{_forward.1} parent=99 // pred_check_branch
          %830 = sbr.rel (%p828) target = $region108
        $region107: #{_forward.1} parent=99 // pred_region
          %s831 = sshll.u32 1, 64
          %s832 = ssub.s32 %s831, 1
          loop: start=0, step=1, limit=1
          $region109: #{_forward.1} parent=107 // loop_pre_header
            _
          $region110: #{_forward.1} parent=107 // loop_header
            %s834 = sphi 0, %s838
            %p835 = scmp.ge.s32.totalorder %s834, 1
            %s839 = sphi %s822, %s822
            %s840 = sphi [#allocation2], [#allocation2]
          $region111: #{_forward.1} parent=107 // loop_header_branch
            %837 = sbr.rel (%p835) target = $region115
          $region112: #{_forward.1} parent=107 // loop_body
            %v841 = vld [vmem:[%s839] sm:%s832]
            %842 = vst [vmem:[%s840] sm:%s832] %v841
          $region113: #{_forward.1} parent=107 // loop_footer
            %s838 = sadd.s32 1, %s834
          $region114: #{_forward.1} parent=107 // loop_footer_branch
            %833 = sbr.rel target = $region110
          $region115: #{_forward.1} parent=107 // loop_exit
            _
        $region108: #{_forward.1} parent=99 // pred_fallthru
          _
        // Predicated region
        $region131: #{_forward.1} parent=99 // pred_check
          _
        $region132: #{_forward.1} parent=99 // pred_check_branch
          %878 = sbr.rel (0) target = $region134
        $region133: #{_forward.1} parent=99 // pred_region
          %879 = vsyncadd [#allocation3], 1024
        $region134: #{_forward.1} parent=99 // pred_fallthru
          _
        %s880 = smul.u32 4, 16
        %s881 = smul.u32 %s880, 1
        %s882 = sshll.u32 %s881, 4
        %883 = dma.done [#allocation3], %s882
        %v884 = vld [vmem:[#allocation2] sm:$0xf]
        %v885 = vld [vmem:[#allocation2 + $0x4] sm:$0xf]
        %v886 = vld [vmem:[#allocation2 + $0x8] sm:$0xf]
        %v887 = vld [vmem:[#allocation2 + $0xc] sm:$0xf]
        %v888 = vld [vmem:[#allocation2 + $0x10] sm:$0xf]
        %v889 = vld [vmem:[#allocation2 + $0x14] sm:$0xf]
        %v890 = vld [vmem:[#allocation2 + $0x18] sm:$0xf]
        %v891 = vld [vmem:[#allocation2 + $0x1c] sm:$0xf]
        %v892 = vld [vmem:[#allocation2 + $0x20] sm:$0xf]
        %v893 = vld [vmem:[#allocation2 + $0x24] sm:$0xf]
        %v894 = vld [vmem:[#allocation2 + $0x28] sm:$0xf]
        %v895 = vld [vmem:[#allocation2 + $0x2c] sm:$0xf]
        %v896 = vld [vmem:[#allocation2 + $0x30] sm:$0xf]
        %v897 = vld [vmem:[#allocation2 + $0x34] sm:$0xf]
        %v898 = vld [vmem:[#allocation2 + $0x38] sm:$0xf]
        %v899 = vld [vmem:[#allocation2 + $0x3c] sm:$0xf]
        %v900 = vunpack.c.l.bf16 %v884
        %v901 = vunpack.c.l.bf16 %v885
        %v902 = vunpack.c.l.bf16 %v886
        %v903 = vunpack.c.l.bf16 %v887
        %v904 = vunpack.c.l.bf16 %v888
        %v905 = vunpack.c.l.bf16 %v889
        %v906 = vunpack.c.l.bf16 %v890
        %v907 = vunpack.c.l.bf16 %v891
        %v908 = vunpack.c.l.bf16 %v892
        %v909 = vunpack.c.l.bf16 %v893
        %v910 = vunpack.c.l.bf16 %v894
        %v911 = vunpack.c.l.bf16 %v895
        %v912 = vunpack.c.l.bf16 %v896
        %v913 = vunpack.c.l.bf16 %v897
        %v914 = vunpack.c.l.bf16 %v898
        %v915 = vunpack.c.l.bf16 %v899
        %v916 = vld [vmem:[%s2] sm:$0x1]
        %v917 = vld [vmem:[%s3] sm:$0x1]
        %918 = vadd.xlane.f32.xlu0 %v900
        %v919 = vpop.xlane.xlu0 %918
        %920 = vadd.xlane.f32.xlu0 %v901
        %v921 = vpop.xlane.xlu0 %920
        %922 = vadd.xlane.f32.xlu0 %v902
        %v923 = vpop.xlane.xlu0 %922
        %924 = vadd.xlane.f32.xlu0 %v903
        %v925 = vpop.xlane.xlu0 %924
        %926 = vadd.xlane.f32.xlu0 %v904
        %v927 = vpop.xlane.xlu0 %926
        %928 = vadd.xlane.f32.xlu0 %v905
        %v929 = vpop.xlane.xlu0 %928
        %930 = vadd.xlane.f32.xlu0 %v906
        %v931 = vpop.xlane.xlu0 %930
        %932 = vadd.xlane.f32.xlu0 %v907
        %v933 = vpop.xlane.xlu0 %932
        %934 = vadd.xlane.f32.xlu0 %v908
        %v935 = vpop.xlane.xlu0 %934
        %936 = vadd.xlane.f32.xlu0 %v909
        %v937 = vpop.xlane.xlu0 %936
        %938 = vadd.xlane.f32.xlu0 %v910
        %v939 = vpop.xlane.xlu0 %938
        %940 = vadd.xlane.f32.xlu0 %v911
        %v941 = vpop.xlane.xlu0 %940
        %942 = vadd.xlane.f32.xlu0 %v912
        %v943 = vpop.xlane.xlu0 %942
        %944 = vadd.xlane.f32.xlu0 %v913
        %v945 = vpop.xlane.xlu0 %944
        %946 = vadd.xlane.f32.xlu0 %v914
        %v947 = vpop.xlane.xlu0 %946
        %948 = vadd.xlane.f32.xlu0 %v915
        %v949 = vpop.xlane.xlu0 %948
        %v950 = vrcp.pop 128.0
        %v951 = vmul.f32 %v919, %v950
        %v952 = vmul.f32 %v921, %v950
        %v953 = vmul.f32 %v923, %v950
        %v954 = vmul.f32 %v925, %v950
        %v955 = vmul.f32 %v927, %v950
        %v956 = vmul.f32 %v929, %v950
        %v957 = vmul.f32 %v931, %v950
        %v958 = vmul.f32 %v933, %v950
        %v959 = vmul.f32 %v935, %v950
        %v960 = vmul.f32 %v937, %v950
        %v961 = vmul.f32 %v939, %v950
        %v962 = vmul.f32 %v941, %v950
        %v963 = vmul.f32 %v943, %v950
        %v964 = vmul.f32 %v945, %v950
        %v965 = vmul.f32 %v947, %v950
        %v966 = vmul.f32 %v949, %v950
        %v967 = vsub.f32 %v900, %v951
        %v968 = vsub.f32 %v901, %v952
        %v969 = vsub.f32 %v902, %v953
        %v970 = vsub.f32 %v903, %v954
        %v971 = vsub.f32 %v904, %v955
        %v972 = vsub.f32 %v905, %v956
        %v973 = vsub.f32 %v906, %v957
        %v974 = vsub.f32 %v907, %v958
        %v975 = vsub.f32 %v908, %v959
        %v976 = vsub.f32 %v909, %v960
        %v977 = vsub.f32 %v910, %v961
        %v978 = vsub.f32 %v911, %v962
        %v979 = vsub.f32 %v912, %v963
        %v980 = vsub.f32 %v913, %v964
        %v981 = vsub.f32 %v914, %v965
        %v982 = vsub.f32 %v915, %v966
        %v983 = vmul.f32 %v967, %v967
        %v984 = vmul.f32 %v968, %v968
        %v985 = vmul.f32 %v969, %v969
        %v986 = vmul.f32 %v970, %v970
        %v987 = vmul.f32 %v971, %v971
        %v988 = vmul.f32 %v972, %v972
        %v989 = vmul.f32 %v973, %v973
        %v990 = vmul.f32 %v974, %v974
        %v991 = vmul.f32 %v975, %v975
        %v992 = vmul.f32 %v976, %v976
        %v993 = vmul.f32 %v977, %v977
        %v994 = vmul.f32 %v978, %v978
        %v995 = vmul.f32 %v979, %v979
        %v996 = vmul.f32 %v980, %v980
        %v997 = vmul.f32 %v981, %v981
        %v998 = vmul.f32 %v982, %v982
        %999 = vadd.xlane.f32.xlu0 %v983
        %v1000 = vpop.xlane.xlu0 %999
        %1001 = vadd.xlane.f32.xlu0 %v984
        %v1002 = vpop.xlane.xlu0 %1001
        %1003 = vadd.xlane.f32.xlu0 %v985
        %v1004 = vpop.xlane.xlu0 %1003
        %1005 = vadd.xlane.f32.xlu0 %v986
        %v1006 = vpop.xlane.xlu0 %1005
        %1007 = vadd.xlane.f32.xlu0 %v987
        %v1008 = vpop.xlane.xlu0 %1007
        %1009 = vadd.xlane.f32.xlu0 %v988
        %v1010 = vpop.xlane.xlu0 %1009
        %1011 = vadd.xlane.f32.xlu0 %v989
        %v1012 = vpop.xlane.xlu0 %1011
        %1013 = vadd.xlane.f32.xlu0 %v990
        %v1014 = vpop.xlane.xlu0 %1013
        %1015 = vadd.xlane.f32.xlu0 %v991
        %v1016 = vpop.xlane.xlu0 %1015
        %1017 = vadd.xlane.f32.xlu0 %v992
        %v1018 = vpop.xlane.xlu0 %1017
        %1019 = vadd.xlane.f32.xlu0 %v993
        %v1020 = vpop.xlane.xlu0 %1019
        %1021 = vadd.xlane.f32.xlu0 %v994
        %v1022 = vpop.xlane.xlu0 %1021
        %1023 = vadd.xlane.f32.xlu0 %v995
        %v1024 = vpop.xlane.xlu0 %1023
        %1025 = vadd.xlane.f32.xlu0 %v996
        %v1026 = vpop.xlane.xlu0 %1025
        %1027 = vadd.xlane.f32.xlu0 %v997
        %v1028 = vpop.xlane.xlu0 %1027
        %1029 = vadd.xlane.f32.xlu0 %v998
        %v1030 = vpop.xlane.xlu0 %1029
        %v1031 = vmul.f32 %v1000, %v950
        %v1032 = vmul.f32 %v1002, %v950
        %v1033 = vmul.f32 %v1004, %v950
        %v1034 = vmul.f32 %v1006, %v950
        %v1035 = vmul.f32 %v1008, %v950
        %v1036 = vmul.f32 %v1010, %v950
        %v1037 = vmul.f32 %v1012, %v950
        %v1038 = vmul.f32 %v1014, %v950
        %v1039 = vmul.f32 %v1016, %v950
        %v1040 = vmul.f32 %v1018, %v950
        %v1041 = vmul.f32 %v1020, %v950
        %v1042 = vmul.f32 %v1022, %v950
        %v1043 = vmul.f32 %v1024, %v950
        %v1044 = vmul.f32 %v1026, %v950
        %v1045 = vmul.f32 %v1028, %v950
        %v1046 = vmul.f32 %v1030, %v950
        %v1047 = vadd.f32 %v1031, 1e-12
        %v1048 = vadd.f32 %v1032, 1e-12
        %v1049 = vadd.f32 %v1033, 1e-12
        %v1050 = vadd.f32 %v1034, 1e-12
        %v1051 = vadd.f32 %v1035, 1e-12
        %v1052 = vadd.f32 %v1036, 1e-12
        %v1053 = vadd.f32 %v1037, 1e-12
        %v1054 = vadd.f32 %v1038, 1e-12
        %v1055 = vadd.f32 %v1039, 1e-12
        %v1056 = vadd.f32 %v1040, 1e-12
        %v1057 = vadd.f32 %v1041, 1e-12
        %v1058 = vadd.f32 %v1042, 1e-12
        %v1059 = vadd.f32 %v1043, 1e-12
        %v1060 = vadd.f32 %v1044, 1e-12
        %v1061 = vadd.f32 %v1045, 1e-12
        %v1062 = vadd.f32 %v1046, 1e-12
        %v1063 = vrsqrt.pop %v1047
        %v1064 = vrsqrt.pop %v1048
        %v1065 = vrsqrt.pop %v1049
        %v1066 = vrsqrt.pop %v1050
        %v1067 = vrsqrt.pop %v1051
        %v1068 = vrsqrt.pop %v1052
        %v1069 = vrsqrt.pop %v1053
        %v1070 = vrsqrt.pop %v1054
        %v1071 = vrsqrt.pop %v1055
        %v1072 = vrsqrt.pop %v1056
        %v1073 = vrsqrt.pop %v1057
        %v1074 = vrsqrt.pop %v1058
        %v1075 = vrsqrt.pop %v1059
        %v1076 = vrsqrt.pop %v1060
        %v1077 = vrsqrt.pop %v1061
        %v1078 = vrsqrt.pop %v1062
        %v1079 = vmul.f32 %v967, %v1063
        %v1080 = vmul.f32 %v968, %v1064
        %v1081 = vmul.f32 %v969, %v1065
        %v1082 = vmul.f32 %v970, %v1066
        %v1083 = vmul.f32 %v971, %v1067
        %v1084 = vmul.f32 %v972, %v1068
        %v1085 = vmul.f32 %v973, %v1069
        %v1086 = vmul.f32 %v974, %v1070
        %v1087 = vmul.f32 %v975, %v1071
        %v1088 = vmul.f32 %v976, %v1072
        %v1089 = vmul.f32 %v977, %v1073
        %v1090 = vmul.f32 %v978, %v1074
        %v1091 = vmul.f32 %v979, %v1075
        %v1092 = vmul.f32 %v980, %v1076
        %v1093 = vmul.f32 %v981, %v1077
        %v1094 = vmul.f32 %v982, %v1078
        %v1096 = vlaneseq
        %v1097 = vshrl.u32 %v1096, 7
        %v1098 = vsub.s32 0, %v1097
        %v1099 = vrot.slane %v916, %v1098
        %v1101 = vmul.f32 %v1079, %v1099
        %v1102 = vmul.f32 %v1080, %v1099
        %v1103 = vmul.f32 %v1081, %v1099
        %v1104 = vmul.f32 %v1082, %v1099
        %v1105 = vmul.f32 %v1083, %v1099
        %v1106 = vmul.f32 %v1084, %v1099
        %v1107 = vmul.f32 %v1085, %v1099
        %v1108 = vmul.f32 %v1086, %v1099
        %v1109 = vmul.f32 %v1087, %v1099
        %v1110 = vmul.f32 %v1088, %v1099
        %v1111 = vmul.f32 %v1089, %v1099
        %v1112 = vmul.f32 %v1090, %v1099
        %v1113 = vmul.f32 %v1091, %v1099
        %v1114 = vmul.f32 %v1092, %v1099
        %v1115 = vmul.f32 %v1093, %v1099
        %v1116 = vmul.f32 %v1094, %v1099
        %v1118 = vlaneseq
        %v1119 = vshrl.u32 %v1118, 7
        %v1120 = vsub.s32 0, %v1119
        %v1121 = vrot.slane %v917, %v1120
        %v1123 = vadd.f32 %v1101, %v1121
        %v1124 = vadd.f32 %v1102, %v1121
        %v1125 = vadd.f32 %v1103, %v1121
        %v1126 = vadd.f32 %v1104, %v1121
        %v1127 = vadd.f32 %v1105, %v1121
        %v1128 = vadd.f32 %v1106, %v1121
        %v1129 = vadd.f32 %v1107, %v1121
        %v1130 = vadd.f32 %v1108, %v1121
        %v1131 = vadd.f32 %v1109, %v1121
        %v1132 = vadd.f32 %v1110, %v1121
        %v1133 = vadd.f32 %v1111, %v1121
        %v1134 = vadd.f32 %v1112, %v1121
        %v1135 = vadd.f32 %v1113, %v1121
        %v1136 = vadd.f32 %v1114, %v1121
        %v1137 = vadd.f32 %v1115, %v1121
        %v1138 = vadd.f32 %v1116, %v1121
        %v1139 = vpack.c.bf16 %v1124, %v1123
        %v1140 = vpack.c.bf16 %v1126, %v1125
        %v1141 = vpack.c.bf16 %v1128, %v1127
        %v1142 = vpack.c.bf16 %v1130, %v1129
        %v1143 = vpack.c.bf16 %v1132, %v1131
        %v1144 = vpack.c.bf16 %v1134, %v1133
        %v1145 = vpack.c.bf16 %v1136, %v1135
        %v1146 = vpack.c.bf16 %v1138, %v1137
        %v1155 = vunpack.c.l.b16 %v1139
        %v1156 = vunpack.c.h.b16 %v1139
        %v1157 = vunpack.c.l.b16 %v1140
        %v1158 = vunpack.c.h.b16 %v1140
        %v1159 = vunpack.c.l.b16 %v1141
        %v1160 = vunpack.c.h.b16 %v1141
        %v1161 = vunpack.c.l.b16 %v1142
        %v1162 = vunpack.c.h.b16 %v1142
        %v1163 = vunpack.c.l.b16 %v1143
        %v1164 = vunpack.c.h.b16 %v1143
        %v1165 = vunpack.c.l.b16 %v1144
        %v1166 = vunpack.c.h.b16 %v1144
        %v1167 = vunpack.c.l.b16 %v1145
        %v1168 = vunpack.c.h.b16 %v1145
        %v1169 = vunpack.c.l.b16 %v1146
        %v1170 = vunpack.c.h.b16 %v1146
        %v1171 = vpack.c.b16 %v1155, %v1155
        %v1172 = vpack.c.b16 %v1156, %v1156
        %v1173 = vpack.c.b16 %v1157, %v1157
        %v1174 = vpack.c.b16 %v1158, %v1158
        %v1175 = vpack.c.b16 %v1159, %v1159
        %v1176 = vpack.c.b16 %v1160, %v1160
        %v1177 = vpack.c.b16 %v1161, %v1161
        %v1178 = vpack.c.b16 %v1162, %v1162
        %v1179 = vpack.c.b16 %v1163, %v1163
        %v1180 = vpack.c.b16 %v1164, %v1164
        %v1181 = vpack.c.b16 %v1165, %v1165
        %v1182 = vpack.c.b16 %v1166, %v1166
        %v1183 = vpack.c.b16 %v1167, %v1167
        %v1184 = vpack.c.b16 %v1168, %v1168
        %v1185 = vpack.c.b16 %v1169, %v1169
        %v1186 = vpack.c.b16 %v1170, %v1170
        %1203 = vst [vmem:[#allocation2] sm:$0xf] %v1171
        %1204 = vst [vmem:[#allocation2 + $0x4] sm:$0xf] %v1172
        %1205 = vst [vmem:[#allocation2 + $0x8] sm:$0xf] %v1173
        %1206 = vst [vmem:[#allocation2 + $0xc] sm:$0xf] %v1174
        %1207 = vst [vmem:[#allocation2 + $0x10] sm:$0xf] %v1175
        %1208 = vst [vmem:[#allocation2 + $0x14] sm:$0xf] %v1176
        %1209 = vst [vmem:[#allocation2 + $0x18] sm:$0xf] %v1177
        %1210 = vst [vmem:[#allocation2 + $0x1c] sm:$0xf] %v1178
        %1211 = vst [vmem:[#allocation2 + $0x20] sm:$0xf] %v1179
        %1212 = vst [vmem:[#allocation2 + $0x24] sm:$0xf] %v1180
        %1213 = vst [vmem:[#allocation2 + $0x28] sm:$0xf] %v1181
        %1214 = vst [vmem:[#allocation2 + $0x2c] sm:$0xf] %v1182
        %1215 = vst [vmem:[#allocation2 + $0x30] sm:$0xf] %v1183
        %1216 = vst [vmem:[#allocation2 + $0x34] sm:$0xf] %v1184
        %1217 = vst [vmem:[#allocation2 + $0x38] sm:$0xf] %v1185
        %1218 = vst [vmem:[#allocation2 + $0x3c] sm:$0xf] %v1186
      $region100: #{_forward.1} parent=95 // pred_fallthru
        _
      %v1219 = vld [vmem:[#allocation2] sm:$0xf]
      %v1220 = vld [vmem:[#allocation2 + $0x4] sm:$0xf]
      %v1221 = vld [vmem:[#allocation2 + $0x8] sm:$0xf]
      %v1222 = vld [vmem:[#allocation2 + $0xc] sm:$0xf]
      %v1223 = vld [vmem:[#allocation2 + $0x10] sm:$0xf]
      %v1224 = vld [vmem:[#allocation2 + $0x14] sm:$0xf]
      %v1225 = vld [vmem:[#allocation2 + $0x18] sm:$0xf]
      %v1226 = vld [vmem:[#allocation2 + $0x1c] sm:$0xf]
      %v1227 = vld [vmem:[#allocation2 + $0x20] sm:$0xf]
      %v1228 = vld [vmem:[#allocation2 + $0x24] sm:$0xf]
      %v1229 = vld [vmem:[#allocation2 + $0x28] sm:$0xf]
      %v1230 = vld [vmem:[#allocation2 + $0x2c] sm:$0xf]
      %v1231 = vld [vmem:[#allocation2 + $0x30] sm:$0xf]
      %v1232 = vld [vmem:[#allocation2 + $0x34] sm:$0xf]
      %v1233 = vld [vmem:[#allocation2 + $0x38] sm:$0xf]
      %v1234 = vld [vmem:[#allocation2 + $0x3c] sm:$0xf]
      %v1235 = vunpack.c.l.bf16 %v1219
      %v1236 = vunpack.c.l.bf16 %v1220
      %v1237 = vunpack.c.l.bf16 %v1221
      %v1238 = vunpack.c.l.bf16 %v1222
      %v1239 = vunpack.c.l.bf16 %v1223
      %v1240 = vunpack.c.l.bf16 %v1224
      %v1241 = vunpack.c.l.bf16 %v1225
      %v1242 = vunpack.c.l.bf16 %v1226
      %v1243 = vunpack.c.l.bf16 %v1227
      %v1244 = vunpack.c.l.bf16 %v1228
      %v1245 = vunpack.c.l.bf16 %v1229
      %v1246 = vunpack.c.l.bf16 %v1230
      %v1247 = vunpack.c.l.bf16 %v1231
      %v1248 = vunpack.c.l.bf16 %v1232
      %v1249 = vunpack.c.l.bf16 %v1233
      %v1250 = vunpack.c.l.bf16 %v1234
      %v1251 = vld [vmem:[%s767] sm:$0xff]
      %v1252 = vld [vmem:[%s767 + $0x8] sm:$0xf]
      %v1253 = vld [vmem:[%s767 + $0xc] sm:$0xff]
      %v1254 = vld [vmem:[%s767 + $0x14] sm:$0xf]
      %v1255 = vld [vmem:[%s767 + $0x18] sm:$0xff]
      %v1256 = vld [vmem:[%s767 + $0x20] sm:$0xf]
      %v1257 = vld [vmem:[%s767 + $0x24] sm:$0xff]
      %v1258 = vld [vmem:[%s767 + $0x2c] sm:$0xf]
      %v1259 = vld [vmem:[%s767 + $0x30] sm:$0xff]
      %v1260 = vld [vmem:[%s767 + $0x38] sm:$0xf]
      %v1261 = vld [vmem:[%s767 + $0x3c] sm:$0xff]
      %v1262 = vld [vmem:[%s767 + $0x44] sm:$0xf]
      %v1263 = vld [vmem:[%s767 + $0x48] sm:$0xff]
      %v1264 = vld [vmem:[%s767 + $0x50] sm:$0xf]
      %v1265 = vld [vmem:[%s767 + $0x54] sm:$0xff]
      %v1266 = vld [vmem:[%s767 + $0x5c] sm:$0xf]
      %v1267 = vld [vmem:[%s767 + $0x60] sm:$0xff]
      %v1268 = vld [vmem:[%s767 + $0x68] sm:$0xf]
      %v1269 = vld [vmem:[%s767 + $0x6c] sm:$0xff]
      %v1270 = vld [vmem:[%s767 + $0x74] sm:$0xf]
      %v1271 = vld [vmem:[%s767 + $0x78] sm:$0xff]
      %v1272 = vld [vmem:[%s767 + $0x80] sm:$0xf]
      %v1273 = vld [vmem:[%s767 + $0x84] sm:$0xff]
      %v1274 = vld [vmem:[%s767 + $0x8c] sm:$0xf]
      %v1275 = vld [vmem:[%s767 + $0x90] sm:$0xff]
      %v1276 = vld [vmem:[%s767 + $0x98] sm:$0xf]
      %v1277 = vld [vmem:[%s767 + $0x9c] sm:$0xff]
      %v1278 = vld [vmem:[%s767 + $0xa4] sm:$0xf]
      %v1279 = vld [vmem:[%s767 + $0xa8] sm:$0xff]
      %v1280 = vld [vmem:[%s767 + $0xb0] sm:$0xf]
      %v1281 = vld [vmem:[%s767 + $0xb4] sm:$0xff]
      %v1282 = vld [vmem:[%s767 + $0xbc] sm:$0xf]
      %v1283 = vld [vmem:[%s771] sm:$0x7]
      %v1285 = vlaneseq
      %v1286 = vshrl.u32 %v1285, 7
      %v1287 = vsub.s32 0, %v1286
      %v1288 = vrot.slane %v1283, %v1287
      %v1289 = vlaneseq
      %v1290 = vshrl.u32 %v1289, 7
      %v1291 = vsub.s32 1, %v1290
      %v1292 = vrot.slane %v1283, %v1291
      %v1293 = vlaneseq
      %v1294 = vshrl.u32 %v1293, 7
      %v1295 = vsub.s32 2, %v1294
      %v1296 = vrot.slane %v1283, %v1295
      %v1316 = vunpack.c.l.b16 %v1219
      %v1317 = vunpack.c.l.b16 %v1220
      %v1318 = vunpack.c.l.b16 %v1221
      %v1319 = vunpack.c.l.b16 %v1222
      %v1320 = vunpack.c.l.b16 %v1223
      %v1321 = vunpack.c.l.b16 %v1224
      %v1322 = vunpack.c.l.b16 %v1225
      %v1323 = vunpack.c.l.b16 %v1226
      %v1324 = vunpack.c.l.b16 %v1227
      %v1325 = vunpack.c.l.b16 %v1228
      %v1326 = vunpack.c.l.b16 %v1229
      %v1327 = vunpack.c.l.b16 %v1230
      %v1328 = vunpack.c.l.b16 %v1231
      %v1329 = vunpack.c.l.b16 %v1232
      %v1330 = vunpack.c.l.b16 %v1233
      %v1331 = vunpack.c.l.b16 %v1234
      %v1332 = vpack.c.b16 %v1317, %v1316
      %v1333 = vpack.c.b16 %v1319, %v1318
      %v1334 = vpack.c.b16 %v1321, %v1320
      %v1335 = vpack.c.b16 %v1323, %v1322
      %v1336 = vpack.c.b16 %v1325, %v1324
      %v1337 = vpack.c.b16 %v1327, %v1326
      %v1338 = vpack.c.b16 %v1329, %v1328
      %v1339 = vpack.c.b16 %v1331, %v1330
      %v1380 = vunpack.c.l.b16 %v1251
      %v1381 = vunpack.c.h.b16 %v1251
      %v1382 = vunpack.c.l.b16 %v1252
      %v1383 = vunpack.c.l.b16 %v1253
      %v1384 = vunpack.c.h.b16 %v1253
      %v1385 = vunpack.c.l.b16 %v1254
      %v1386 = vunpack.c.l.b16 %v1255
      %v1387 = vunpack.c.h.b16 %v1255
      %v1388 = vunpack.c.l.b16 %v1256
      %v1389 = vunpack.c.l.b16 %v1257
      %v1390 = vunpack.c.h.b16 %v1257
      %v1391 = vunpack.c.l.b16 %v1258
      %v1392 = vunpack.c.l.b16 %v1259
      %v1393 = vunpack.c.h.b16 %v1259
      %v1394 = vunpack.c.l.b16 %v1260
      %v1395 = vunpack.c.l.b16 %v1261
      %v1396 = vunpack.c.h.b16 %v1261
      %v1397 = vunpack.c.l.b16 %v1262
      %v1398 = vunpack.c.l.b16 %v1263
      %v1399 = vunpack.c.h.b16 %v1263
      %v1400 = vunpack.c.l.b16 %v1264
      %v1401 = vunpack.c.l.b16 %v1265
      %v1402 = vunpack.c.h.b16 %v1265
      %v1403 = vunpack.c.l.b16 %v1266
      %v1404 = vunpack.c.l.b16 %v1267
      %v1405 = vunpack.c.h.b16 %v1267
      %v1406 = vunpack.c.l.b16 %v1268
      %v1407 = vunpack.c.l.b16 %v1269
      %v1408 = vunpack.c.h.b16 %v1269
      %v1409 = vunpack.c.l.b16 %v1270
      %v1410 = vunpack.c.l.b16 %v1271
      %v1411 = vunpack.c.h.b16 %v1271
      %v1412 = vunpack.c.l.b16 %v1272
      %v1413 = vunpack.c.l.b16 %v1273
      %v1414 = vunpack.c.h.b16 %v1273
      %v1415 = vunpack.c.l.b16 %v1274
      %v1416 = vunpack.c.l.b16 %v1275
      %v1417 = vunpack.c.h.b16 %v1275
      %v1418 = vunpack.c.l.b16 %v1276
      %v1419 = vunpack.c.l.b16 %v1277
      %v1420 = vunpack.c.h.b16 %v1277
      %v1421 = vunpack.c.l.b16 %v1278
      %v1422 = vunpack.c.l.b16 %v1279
      %v1423 = vunpack.c.h.b16 %v1279
      %v1424 = vunpack.c.l.b16 %v1280
      %v1425 = vunpack.c.l.b16 %v1281
      %v1426 = vunpack.c.h.b16 %v1281
      %v1427 = vunpack.c.l.b16 %v1282
      %v1428 = vpack.c.b16 %v1383, %v1380
      %v1429 = vpack.c.b16 %v1384, %v1381
      %v1430 = vpack.c.b16 %v1385, %v1382
      %v1431 = vpack.c.b16 %v1389, %v1386
      %v1432 = vpack.c.b16 %v1390, %v1387
      %v1433 = vpack.c.b16 %v1391, %v1388
      %v1434 = vpack.c.b16 %v1395, %v1392
      %v1435 = vpack.c.b16 %v1396, %v1393
      %v1436 = vpack.c.b16 %v1397, %v1394
      %v1437 = vpack.c.b16 %v1401, %v1398
      %v1438 = vpack.c.b16 %v1402, %v1399
      %v1439 = vpack.c.b16 %v1403, %v1400
      %v1440 = vpack.c.b16 %v1407, %v1404
      %v1441 = vpack.c.b16 %v1408, %v1405
      %v1442 = vpack.c.b16 %v1409, %v1406
      %v1443 = vpack.c.b16 %v1413, %v1410
      %v1444 = vpack.c.b16 %v1414, %v1411
      %v1445 = vpack.c.b16 %v1415, %v1412
      %v1446 = vpack.c.b16 %v1419, %v1416
      %v1447 = vpack.c.b16 %v1420, %v1417
      %v1448 = vpack.c.b16 %v1421, %v1418
      %v1449 = vpack.c.b16 %v1425, %v1422
      %v1450 = vpack.c.b16 %v1426, %v1423
      %v1451 = vpack.c.b16 %v1427, %v1424
      %1476 = vmatprep.subr.bf16.mxu0 %v1450
      %1477 = vmatpush1.bf16.msra.mxu0 %v1449
      %1478 = vmatprep.subr.bf16.mxu0 %v1447
      %1479 = vmatpush1.bf16.msra.mxu0 %v1446
      %1480 = vmatprep.subr.bf16.mxu0 %v1444
      %1481 = vmatpush1.bf16.msra.mxu0 %v1443
      %1482 = vmatprep.subr.bf16.mxu0 %v1441
      %1483 = vmatpush1.bf16.msra.mxu0 %v1440
      %1484 = vmatprep.subr.bf16.mxu0 %v1438
      %1485 = vmatpush1.bf16.msra.mxu0 %v1437
      %1486 = vmatprep.subr.bf16.mxu0 %v1435
      %1487 = vmatpush1.bf16.msra.mxu0 %v1434
      %1488 = vmatprep.subr.bf16.mxu0 %v1432
      %1489 = vmatpush1.bf16.msra.mxu0 %v1431
      %1490 = vmatprep.subr.bf16.mxu0 %v1429
      %1491 = vmatpush1.bf16.msra.mxu0 %v1428
      %1492 = vmatprep.subr.bf16.mxu0 0
      %1493 = vmatpush2.bf16.msra.mxu0 0
      %1494 = vmatprep.subr.bf16.mxu0 0
      %1495 = vmatpush2.bf16.msra.mxu0 0
      %1496 = vmatprep.subr.bf16.mxu0 0
      %1497 = vmatpush2.bf16.msra.mxu0 0
      %1498 = vmatprep.subr.bf16.mxu0 0
      %1499 = vmatpush2.bf16.msra.mxu0 0
      %1500 = vmatprep.subr.bf16.mxu0 0
      %1501 = vmatpush2.bf16.msra.mxu0 0
      %1502 = vmatprep.subr.bf16.mxu0 0
      %1503 = vmatpush2.bf16.msra.mxu0 0
      %1504 = vmatprep.subr.bf16.mxu0 0
      %1505 = vmatpush2.bf16.msra.mxu0 0
      %1506 = vmatprep.subr.bf16.mxu0 0
      %1507 = vmatpush2.bf16.msra.mxu0 0
      %1508 = vmatprep.mubr.bf16.mxu0 0
      %1509 = vmatmul.mubr.bf16.gmra.mxu0 %v1332
      %v1510 = vpop.f32.mrf.mxu0
      %v1511 = vadd.f32 %v1288, %v1510
      %v1512 = vpop.f32.mrf.mxu0
      %v1513 = vadd.f32 %v1292, %v1512
      %v1514 = vpop.f32.mrf.mxu0
      %v1515 = vadd.f32 %v1288, %v1514
      %v1516 = vpop.f32.mrf.mxu0
      %v1517 = vadd.f32 %v1292, %v1516
      %1518 = vmatprep.mubr.bf16.mxu0 0
      %1519 = vmatmul.mubr.bf16.gmra.mxu0 %v1333
      %v1520 = vpop.f32.mrf.mxu0
      %v1521 = vadd.f32 %v1288, %v1520
      %v1522 = vpop.f32.mrf.mxu0
      %v1523 = vadd.f32 %v1292, %v1522
      %v1524 = vpop.f32.mrf.mxu0
      %v1525 = vadd.f32 %v1288, %v1524
      %v1526 = vpop.f32.mrf.mxu0
      %v1527 = vadd.f32 %v1292, %v1526
      %1528 = vmatprep.mubr.bf16.mxu0 0
      %1529 = vmatmul.mubr.bf16.gmra.mxu0 %v1334
      %v1530 = vpop.f32.mrf.mxu0
      %v1531 = vadd.f32 %v1288, %v1530
      %v1532 = vpop.f32.mrf.mxu0
      %v1533 = vadd.f32 %v1292, %v1532
      %v1534 = vpop.f32.mrf.mxu0
      %v1535 = vadd.f32 %v1288, %v1534
      %v1536 = vpop.f32.mrf.mxu0
      %v1537 = vadd.f32 %v1292, %v1536
      %1538 = vmatprep.mubr.bf16.mxu0 0
      %1539 = vmatmul.mubr.bf16.gmra.mxu0 %v1335
      %v1540 = vpop.f32.mrf.mxu0
      %v1541 = vadd.f32 %v1288, %v1540
      %v1542 = vpop.f32.mrf.mxu0
      %v1543 = vadd.f32 %v1292, %v1542
      %v1544 = vpop.f32.mrf.mxu0
      %v1545 = vadd.f32 %v1288, %v1544
      %v1546 = vpop.f32.mrf.mxu0
      %v1547 = vadd.f32 %v1292, %v1546
      %1548 = vmatprep.mubr.bf16.mxu0 0
      %1549 = vmatmul.mubr.bf16.gmra.mxu0 %v1336
      %v1550 = vpop.f32.mrf.mxu0
      %v1551 = vadd.f32 %v1288, %v1550
      %v1552 = vpop.f32.mrf.mxu0
      %v1553 = vadd.f32 %v1292, %v1552
      %v1554 = vpop.f32.mrf.mxu0
      %v1555 = vadd.f32 %v1288, %v1554
      %v1556 = vpop.f32.mrf.mxu0
      %v1557 = vadd.f32 %v1292, %v1556
      %1558 = vmatprep.mubr.bf16.mxu0 0
      %1559 = vmatmul.mubr.bf16.gmra.mxu0 %v1337
      %v1560 = vpop.f32.mrf.mxu0
      %v1561 = vadd.f32 %v1288, %v1560
      %v1562 = vpop.f32.mrf.mxu0
      %v1563 = vadd.f32 %v1292, %v1562
      %v1564 = vpop.f32.mrf.mxu0
      %v1565 = vadd.f32 %v1288, %v1564
      %v1566 = vpop.f32.mrf.mxu0
      %v1567 = vadd.f32 %v1292, %v1566
      %1568 = vmatprep.mubr.bf16.mxu0 0
      %1569 = vmatmul.mubr.bf16.gmra.mxu0 %v1338
      %v1570 = vpop.f32.mrf.mxu0
      %v1571 = vadd.f32 %v1288, %v1570
      %v1572 = vpop.f32.mrf.mxu0
      %v1573 = vadd.f32 %v1292, %v1572
      %v1574 = vpop.f32.mrf.mxu0
      %v1575 = vadd.f32 %v1288, %v1574
      %v1576 = vpop.f32.mrf.mxu0
      %v1577 = vadd.f32 %v1292, %v1576
      %1578 = vmatprep.mubr.bf16.mxu0 0
      %1579 = vmatmul.mubr.bf16.gmra.mxu0 %v1339
      %v1580 = vpop.f32.mrf.mxu0
      %v1581 = vadd.f32 %v1288, %v1580
      %v1582 = vpop.f32.mrf.mxu0
      %v1583 = vadd.f32 %v1292, %v1582
      %v1584 = vpop.f32.mrf.mxu0
      %v1585 = vadd.f32 %v1288, %v1584
      %v1586 = vpop.f32.mrf.mxu0
      %v1587 = vadd.f32 %v1292, %v1586
      %1588 = vdwg.mxu0
      %1589 = vmatprep.subr.bf16.mxu0 0
      %1590 = vmatpush1.bf16.msra.mxu0 %v1451
      %1591 = vmatprep.subr.bf16.mxu0 0
      %1592 = vmatpush1.bf16.msra.mxu0 %v1448
      %1593 = vmatprep.subr.bf16.mxu0 0
      %1594 = vmatpush1.bf16.msra.mxu0 %v1445
      %1595 = vmatprep.subr.bf16.mxu0 0
      %1596 = vmatpush1.bf16.msra.mxu0 %v1442
      %1597 = vmatprep.subr.bf16.mxu0 0
      %1598 = vmatpush1.bf16.msra.mxu0 %v1439
      %1599 = vmatprep.subr.bf16.mxu0 0
      %1600 = vmatpush1.bf16.msra.mxu0 %v1436
      %1601 = vmatprep.subr.bf16.mxu0 0
      %1602 = vmatpush1.bf16.msra.mxu0 %v1433
      %1603 = vmatprep.subr.bf16.mxu0 0
      %1604 = vmatpush1.bf16.msra.mxu0 %v1430
      %1605 = vmatprep.subr.bf16.mxu0 0
      %1606 = vmatpush2.bf16.msra.mxu0 0
      %1607 = vmatprep.subr.bf16.mxu0 0
      %1608 = vmatpush2.bf16.msra.mxu0 0
      %1609 = vmatprep.subr.bf16.mxu0 0
      %1610 = vmatpush2.bf16.msra.mxu0 0
      %1611 = vmatprep.subr.bf16.mxu0 0
      %1612 = vmatpush2.bf16.msra.mxu0 0
      %1613 = vmatprep.subr.bf16.mxu0 0
      %1614 = vmatpush2.bf16.msra.mxu0 0
      %1615 = vmatprep.subr.bf16.mxu0 0
      %1616 = vmatpush2.bf16.msra.mxu0 0
      %1617 = vmatprep.subr.bf16.mxu0 0
      %1618 = vmatpush2.bf16.msra.mxu0 0
      %1619 = vmatprep.subr.bf16.mxu0 0
      %1620 = vmatpush2.bf16.msra.mxu0 0
      %1621 = vmatprep.mubr.bf16.mxu0 0
      %1622 = vmatmul.mubr.bf16.gmra.mxu0 %v1332
      %v1623 = vpop.f32.mrf.mxu0
      %v1624 = vadd.f32 %v1296, %v1623
      %v1625 = vpop.f32.mrf.mxu0
      %v1626 = vpop.f32.mrf.mxu0
      %v1627 = vadd.f32 %v1296, %v1626
      %v1628 = vpop.f32.mrf.mxu0
      %1629 = vmatprep.mubr.bf16.mxu0 0
      %1630 = vmatmul.mubr.bf16.gmra.mxu0 %v1333
      %v1631 = vpop.f32.mrf.mxu0
      %v1632 = vadd.f32 %v1296, %v1631
      %v1633 = vpop.f32.mrf.mxu0
      %v1634 = vpop.f32.mrf.mxu0
      %v1635 = vadd.f32 %v1296, %v1634
      %v1636 = vpop.f32.mrf.mxu0
      %1637 = vmatprep.mubr.bf16.mxu0 0
      %1638 = vmatmul.mubr.bf16.gmra.mxu0 %v1334
      %v1639 = vpop.f32.mrf.mxu0
      %v1640 = vadd.f32 %v1296, %v1639
      %v1641 = vpop.f32.mrf.mxu0
      %v1642 = vpop.f32.mrf.mxu0
      %v1643 = vadd.f32 %v1296, %v1642
      %v1644 = vpop.f32.mrf.mxu0
      %1645 = vmatprep.mubr.bf16.mxu0 0
      %1646 = vmatmul.mubr.bf16.gmra.mxu0 %v1335
      %v1647 = vpop.f32.mrf.mxu0
      %v1648 = vadd.f32 %v1296, %v1647
      %v1649 = vpop.f32.mrf.mxu0
      %v1650 = vpop.f32.mrf.mxu0
      %v1651 = vadd.f32 %v1296, %v1650
      %v1652 = vpop.f32.mrf.mxu0
      %1653 = vmatprep.mubr.bf16.mxu0 0
      %1654 = vmatmul.mubr.bf16.gmra.mxu0 %v1336
      %v1655 = vpop.f32.mrf.mxu0
      %v1656 = vadd.f32 %v1296, %v1655
      %v1657 = vpop.f32.mrf.mxu0
      %v1658 = vpop.f32.mrf.mxu0
      %v1659 = vadd.f32 %v1296, %v1658
      %v1660 = vpop.f32.mrf.mxu0
      %1661 = vmatprep.mubr.bf16.mxu0 0
      %1662 = vmatmul.mubr.bf16.gmra.mxu0 %v1337
      %v1663 = vpop.f32.mrf.mxu0
      %v1664 = vadd.f32 %v1296, %v1663
      %v1665 = vpop.f32.mrf.mxu0
      %v1666 = vpop.f32.mrf.mxu0
      %v1667 = vadd.f32 %v1296, %v1666
      %v1668 = vpop.f32.mrf.mxu0
      %1669 = vmatprep.mubr.bf16.mxu0 0
      %1670 = vmatmul.mubr.bf16.gmra.mxu0 %v1338
      %v1671 = vpop.f32.mrf.mxu0
      %v1672 = vadd.f32 %v1296, %v1671
      %v1673 = vpop.f32.mrf.mxu0
      %v1674 = vpop.f32.mrf.mxu0
      %v1675 = vadd.f32 %v1296, %v1674
      %v1676 = vpop.f32.mrf.mxu0
      %1677 = vmatprep.mubr.bf16.mxu0 0
      %1678 = vmatmul.mubr.bf16.gmra.mxu0 %v1339
      %v1679 = vpop.f32.mrf.mxu0
      %v1680 = vadd.f32 %v1296, %v1679
      %v1681 = vpop.f32.mrf.mxu0
      %v1682 = vpop.f32.mrf.mxu0
      %v1683 = vadd.f32 %v1296, %v1682
      %v1684 = vpop.f32.mrf.mxu0
      %1685 = vdwg.mxu0
      %v1686 = vpack.c.bf16 %v1515, %v1511
      %v1687 = vpack.c.bf16 %v1517, %v1513
      %v1688 = vpack.c.bf16 %v1627, %v1624
      %v1689 = vpack.c.bf16 %v1525, %v1521
      %v1690 = vpack.c.bf16 %v1527, %v1523
      %v1691 = vpack.c.bf16 %v1635, %v1632
      %v1692 = vpack.c.bf16 %v1535, %v1531
      %v1693 = vpack.c.bf16 %v1537, %v1533
      %v1694 = vpack.c.bf16 %v1643, %v1640
      %v1695 = vpack.c.bf16 %v1545, %v1541
      %v1696 = vpack.c.bf16 %v1547, %v1543
      %v1697 = vpack.c.bf16 %v1651, %v1648
      %v1698 = vpack.c.bf16 %v1555, %v1551
      %v1699 = vpack.c.bf16 %v1557, %v1553
      %v1700 = vpack.c.bf16 %v1659, %v1656
      %v1701 = vpack.c.bf16 %v1565, %v1561
      %v1702 = vpack.c.bf16 %v1567, %v1563
      %v1703 = vpack.c.bf16 %v1667, %v1664
      %v1704 = vpack.c.bf16 %v1575, %v1571
      %v1705 = vpack.c.bf16 %v1577, %v1573
      %v1706 = vpack.c.bf16 %v1675, %v1672
      %v1707 = vpack.c.bf16 %v1585, %v1581
      %v1708 = vpack.c.bf16 %v1587, %v1583
      %v1709 = vpack.c.bf16 %v1683, %v1680
      %1718 = vrot.lane.b32.xlu0 %v1686, 96
      %v1719 = vpop.permute.xlu0 %1718
      %1720 = vrot.lane.b32.xlu0 %v1689, 96
      %v1721 = vpop.permute.xlu0 %1720
      %1722 = vrot.lane.b32.xlu0 %v1692, 96
      %v1723 = vpop.permute.xlu0 %1722
      %1724 = vrot.lane.b32.xlu0 %v1695, 96
      %v1725 = vpop.permute.xlu0 %1724
      %1726 = vrot.lane.b32.xlu0 %v1698, 96
      %v1727 = vpop.permute.xlu0 %1726
      %1728 = vrot.lane.b32.xlu0 %v1701, 96
      %v1729 = vpop.permute.xlu0 %1728
      %1730 = vrot.lane.b32.xlu0 %v1704, 96
      %v1731 = vpop.permute.xlu0 %1730
      %1732 = vrot.lane.b32.xlu0 %v1707, 96
      %v1733 = vpop.permute.xlu0 %1732
      %1734 = vrot.lane.b32.xlu0 %v1686, 64
      %v1735 = vpop.permute.xlu0 %1734
      %1736 = vrot.lane.b32.xlu0 %v1689, 64
      %v1737 = vpop.permute.xlu0 %1736
      %1738 = vrot.lane.b32.xlu0 %v1692, 64
      %v1739 = vpop.permute.xlu0 %1738
      %1740 = vrot.lane.b32.xlu0 %v1695, 64
      %v1741 = vpop.permute.xlu0 %1740
      %1742 = vrot.lane.b32.xlu0 %v1698, 64
      %v1743 = vpop.permute.xlu0 %1742
      %1744 = vrot.lane.b32.xlu0 %v1701, 64
      %v1745 = vpop.permute.xlu0 %1744
      %1746 = vrot.lane.b32.xlu0 %v1704, 64
      %v1747 = vpop.permute.xlu0 %1746
      %1748 = vrot.lane.b32.xlu0 %v1707, 64
      %v1749 = vpop.permute.xlu0 %1748
      %1750 = vrot.lane.b32.xlu0 %v1686, 32
      %v1751 = vpop.permute.xlu0 %1750
      %1752 = vrot.lane.b32.xlu0 %v1689, 32
      %v1753 = vpop.permute.xlu0 %1752
      %1754 = vrot.lane.b32.xlu0 %v1692, 32
      %v1755 = vpop.permute.xlu0 %1754
      %1756 = vrot.lane.b32.xlu0 %v1695, 32
      %v1757 = vpop.permute.xlu0 %1756
      %1758 = vrot.lane.b32.xlu0 %v1698, 32
      %v1759 = vpop.permute.xlu0 %1758
      %1760 = vrot.lane.b32.xlu0 %v1701, 32
      %v1761 = vpop.permute.xlu0 %1760
      %1762 = vrot.lane.b32.xlu0 %v1704, 32
      %v1763 = vpop.permute.xlu0 %1762
      %1764 = vrot.lane.b32.xlu0 %v1707, 32
      %v1765 = vpop.permute.xlu0 %1764
      %1774 = vrot.lane.b32.xlu0 %v1687, 96
      %v1775 = vpop.permute.xlu0 %1774
      %1776 = vrot.lane.b32.xlu0 %v1690, 96
      %v1777 = vpop.permute.xlu0 %1776
      %1778 = vrot.lane.b32.xlu0 %v1693, 96
      %v1779 = vpop.permute.xlu0 %1778
      %1780 = vrot.lane.b32.xlu0 %v1696, 96
      %v1781 = vpop.permute.xlu0 %1780
      %1782 = vrot.lane.b32.xlu0 %v1699, 96
      %v1783 = vpop.permute.xlu0 %1782
      %1784 = vrot.lane.b32.xlu0 %v1702, 96
      %v1785 = vpop.permute.xlu0 %1784
      %1786 = vrot.lane.b32.xlu0 %v1705, 96
      %v1787 = vpop.permute.xlu0 %1786
      %1788 = vrot.lane.b32.xlu0 %v1708, 96
      %v1789 = vpop.permute.xlu0 %1788
      %1790 = vrot.lane.b32.xlu0 %v1687, 64
      %v1791 = vpop.permute.xlu0 %1790
      %1792 = vrot.lane.b32.xlu0 %v1690, 64
      %v1793 = vpop.permute.xlu0 %1792
      %1794 = vrot.lane.b32.xlu0 %v1693, 64
      %v1795 = vpop.permute.xlu0 %1794
      %1796 = vrot.lane.b32.xlu0 %v1696, 64
      %v1797 = vpop.permute.xlu0 %1796
      %1798 = vrot.lane.b32.xlu0 %v1699, 64
      %v1799 = vpop.permute.xlu0 %1798
      %1800 = vrot.lane.b32.xlu0 %v1702, 64
      %v1801 = vpop.permute.xlu0 %1800
      %1802 = vrot.lane.b32.xlu0 %v1705, 64
      %v1803 = vpop.permute.xlu0 %1802
      %1804 = vrot.lane.b32.xlu0 %v1708, 64
      %v1805 = vpop.permute.xlu0 %1804
      %1806 = vrot.lane.b32.xlu0 %v1687, 32
      %v1807 = vpop.permute.xlu0 %1806
      %1808 = vrot.lane.b32.xlu0 %v1690, 32
      %v1809 = vpop.permute.xlu0 %1808
      %1810 = vrot.lane.b32.xlu0 %v1693, 32
      %v1811 = vpop.permute.xlu0 %1810
      %1812 = vrot.lane.b32.xlu0 %v1696, 32
      %v1813 = vpop.permute.xlu0 %1812
      %1814 = vrot.lane.b32.xlu0 %v1699, 32
      %v1815 = vpop.permute.xlu0 %1814
      %1816 = vrot.lane.b32.xlu0 %v1702, 32
      %v1817 = vpop.permute.xlu0 %1816
      %1818 = vrot.lane.b32.xlu0 %v1705, 32
      %v1819 = vpop.permute.xlu0 %1818
      %1820 = vrot.lane.b32.xlu0 %v1708, 32
      %v1821 = vpop.permute.xlu0 %1820
      %1830 = vrot.lane.b32.xlu0 %v1688, 96
      %v1831 = vpop.permute.xlu0 %1830
      %1832 = vrot.lane.b32.xlu0 %v1691, 96
      %v1833 = vpop.permute.xlu0 %1832
      %1834 = vrot.lane.b32.xlu0 %v1694, 96
      %v1835 = vpop.permute.xlu0 %1834
      %1836 = vrot.lane.b32.xlu0 %v1697, 96
      %v1837 = vpop.permute.xlu0 %1836
      %1838 = vrot.lane.b32.xlu0 %v1700, 96
      %v1839 = vpop.permute.xlu0 %1838
      %1840 = vrot.lane.b32.xlu0 %v1703, 96
      %v1841 = vpop.permute.xlu0 %1840
      %1842 = vrot.lane.b32.xlu0 %v1706, 96
      %v1843 = vpop.permute.xlu0 %1842
      %1844 = vrot.lane.b32.xlu0 %v1709, 96
      %v1845 = vpop.permute.xlu0 %1844
      %1854 = vrot.lane.b32.xlu0 %v1688, 64
      %v1855 = vpop.permute.xlu0 %1854
      %1856 = vrot.lane.b32.xlu0 %v1691, 64
      %v1857 = vpop.permute.xlu0 %1856
      %1858 = vrot.lane.b32.xlu0 %v1694, 64
      %v1859 = vpop.permute.xlu0 %1858
      %1860 = vrot.lane.b32.xlu0 %v1697, 64
      %v1861 = vpop.permute.xlu0 %1860
      %1862 = vrot.lane.b32.xlu0 %v1700, 64
      %v1863 = vpop.permute.xlu0 %1862
      %1864 = vrot.lane.b32.xlu0 %v1703, 64
      %v1865 = vpop.permute.xlu0 %1864
      %1866 = vrot.lane.b32.xlu0 %v1706, 64
      %v1867 = vpop.permute.xlu0 %1866
      %1868 = vrot.lane.b32.xlu0 %v1709, 64
      %v1869 = vpop.permute.xlu0 %1868
      %1878 = vrot.lane.b32.xlu0 %v1688, 32
      %v1879 = vpop.permute.xlu0 %1878
      %1880 = vrot.lane.b32.xlu0 %v1691, 32
      %v1881 = vpop.permute.xlu0 %1880
      %1882 = vrot.lane.b32.xlu0 %v1694, 32
      %v1883 = vpop.permute.xlu0 %1882
      %1884 = vrot.lane.b32.xlu0 %v1697, 32
      %v1885 = vpop.permute.xlu0 %1884
      %1886 = vrot.lane.b32.xlu0 %v1700, 32
      %v1887 = vpop.permute.xlu0 %1886
      %1888 = vrot.lane.b32.xlu0 %v1703, 32
      %v1889 = vpop.permute.xlu0 %1888
      %1890 = vrot.lane.b32.xlu0 %v1706, 32
      %v1891 = vpop.permute.xlu0 %1890
      %1892 = vrot.lane.b32.xlu0 %v1709, 32
      %v1893 = vpop.permute.xlu0 %1892
      %vm1902 = vcmask 261120
      %v1904 = vsel %vm1902, %v1686, 0
      %v1907 = vsel %vm1902, %v1687, 0
      %1909 = vmatprep.subr.bf16.mxu0 0
      %1910 = vmatpush1.bf16.xpose.msra.mxu0 0
      %1911 = vmatprep.subr.bf16.mxu0 0
      %1912 = vmatpush1.bf16.xpose.msra.mxu0 0
      %1913 = vmatprep.subr.bf16.mxu0 0
      %1914 = vmatpush1.bf16.xpose.msra.mxu0 0
      %1915 = vmatprep.subr.bf16.mxu0 0
      %1916 = vmatpush1.bf16.xpose.msra.mxu0 0
      %1917 = vmatprep.subr.bf16.mxu0 0
      %1918 = vmatpush1.bf16.xpose.msra.mxu0 0
      %1919 = vmatprep.subr.bf16.mxu0 0
      %1920 = vmatpush1.bf16.xpose.msra.mxu0 0
      %1921 = vmatprep.subr.bf16.mxu0 0
      %1922 = vmatpush1.bf16.xpose.msra.mxu0 0
      %1923 = vmatprep.subr.bf16.mxu0 0
      %1924 = vmatpush1.bf16.xpose.msra.mxu0 %v1907
      %1925 = vmatprep.subr.bf16.mxu0 0
      %1926 = vmatpush2.bf16.xpose.msra.mxu0 0
      %1927 = vmatprep.subr.bf16.mxu0 0
      %1928 = vmatpush2.bf16.xpose.msra.mxu0 0
      %1929 = vmatprep.subr.bf16.mxu0 0
      %1930 = vmatpush2.bf16.xpose.msra.mxu0 0
      %1931 = vmatprep.subr.bf16.mxu0 0
      %1932 = vmatpush2.bf16.xpose.msra.mxu0 0
      %1933 = vmatprep.subr.bf16.mxu0 0
      %1934 = vmatpush2.bf16.xpose.msra.mxu0 0
      %1935 = vmatprep.subr.bf16.mxu0 0
      %1936 = vmatpush2.bf16.xpose.msra.mxu0 0
      %1937 = vmatprep.subr.bf16.mxu0 0
      %1938 = vmatpush2.bf16.xpose.msra.mxu0 0
      %1939 = vmatprep.subr.bf16.mxu0 0
      %1940 = vmatpush2.bf16.xpose.msra.mxu0 0
      %1941 = vmatprep.mubr.bf16.mxu0 0
      %1942 = vmatmul.mubr.bf16.gmra.mxu0 %v1904
      %v1943 = vpop.f32.mrf.mxu0
      %v1944 = vadd.f32 0.0, %v1943
      %v1945 = vpop.f32.mrf.mxu0
      %v1946 = vpop.f32.mrf.mxu0
      %v1947 = vadd.f32 0.0, %v1946
      %v1948 = vpop.f32.mrf.mxu0
      %1949 = vdwg.mxu0
      %v1951 = vsel %vm1902, %v1689, 0
      %v1954 = vsel %vm1902, %v1690, 0
      %1956 = vmatprep.subr.bf16.mxu0 0
      %1957 = vmatpush1.bf16.xpose.msra.mxu0 0
      %1958 = vmatprep.subr.bf16.mxu0 0
      %1959 = vmatpush1.bf16.xpose.msra.mxu0 0
      %1960 = vmatprep.subr.bf16.mxu0 0
      %1961 = vmatpush1.bf16.xpose.msra.mxu0 0
      %1962 = vmatprep.subr.bf16.mxu0 0
      %1963 = vmatpush1.bf16.xpose.msra.mxu0 0
      %1964 = vmatprep.subr.bf16.mxu0 0
      %1965 = vmatpush1.bf16.xpose.msra.mxu0 0
      %1966 = vmatprep.subr.bf16.mxu0 0
      %1967 = vmatpush1.bf16.xpose.msra.mxu0 0
      %1968 = vmatprep.subr.bf16.mxu0 0
      %1969 = vmatpush1.bf16.xpose.msra.mxu0 0
      %1970 = vmatprep.subr.bf16.mxu0 0
      %1971 = vmatpush1.bf16.xpose.msra.mxu0 %v1954
      %1972 = vmatprep.subr.bf16.mxu0 0
      %1973 = vmatpush2.bf16.xpose.msra.mxu0 0
      %1974 = vmatprep.subr.bf16.mxu0 0
      %1975 = vmatpush2.bf16.xpose.msra.mxu0 0
      %1976 = vmatprep.subr.bf16.mxu0 0
      %1977 = vmatpush2.bf16.xpose.msra.mxu0 0
      %1978 = vmatprep.subr.bf16.mxu0 0
      %1979 = vmatpush2.bf16.xpose.msra.mxu0 0
      %1980 = vmatprep.subr.bf16.mxu0 0
      %1981 = vmatpush2.bf16.xpose.msra.mxu0 0
      %1982 = vmatprep.subr.bf16.mxu0 0
      %1983 = vmatpush2.bf16.xpose.msra.mxu0 0
      %1984 = vmatprep.subr.bf16.mxu0 0
      %1985 = vmatpush2.bf16.xpose.msra.mxu0 0
      %1986 = vmatprep.subr.bf16.mxu0 0
      %1987 = vmatpush2.bf16.xpose.msra.mxu0 0
      %1988 = vmatprep.mubr.bf16.mxu0 0
      %1989 = vmatmul.mubr.bf16.gmra.mxu0 %v1951
      %v1990 = vpop.f32.mrf.mxu0
      %v1991 = vadd.f32 0.0, %v1990
      %v1992 = vpop.f32.mrf.mxu0
      %v1993 = vpop.f32.mrf.mxu0
      %v1994 = vadd.f32 0.0, %v1993
      %v1995 = vpop.f32.mrf.mxu0
      %1996 = vdwg.mxu0
      %v1998 = vsel %vm1902, %v1692, 0
      %v2001 = vsel %vm1902, %v1693, 0
      %2003 = vmatprep.subr.bf16.mxu0 0
      %2004 = vmatpush1.bf16.xpose.msra.mxu0 0
      %2005 = vmatprep.subr.bf16.mxu0 0
      %2006 = vmatpush1.bf16.xpose.msra.mxu0 0
      %2007 = vmatprep.subr.bf16.mxu0 0
      %2008 = vmatpush1.bf16.xpose.msra.mxu0 0
      %2009 = vmatprep.subr.bf16.mxu0 0
      %2010 = vmatpush1.bf16.xpose.msra.mxu0 0
      %2011 = vmatprep.subr.bf16.mxu0 0
      %2012 = vmatpush1.bf16.xpose.msra.mxu0 0
      %2013 = vmatprep.subr.bf16.mxu0 0
      %2014 = vmatpush1.bf16.xpose.msra.mxu0 0
      %2015 = vmatprep.subr.bf16.mxu0 0
      %2016 = vmatpush1.bf16.xpose.msra.mxu0 0
      %2017 = vmatprep.subr.bf16.mxu0 0
      %2018 = vmatpush1.bf16.xpose.msra.mxu0 %v2001
      %2019 = vmatprep.subr.bf16.mxu0 0
      %2020 = vmatpush2.bf16.xpose.msra.mxu0 0
      %2021 = vmatprep.subr.bf16.mxu0 0
      %2022 = vmatpush2.bf16.xpose.msra.mxu0 0
      %2023 = vmatprep.subr.bf16.mxu0 0
      %2024 = vmatpush2.bf16.xpose.msra.mxu0 0
      %2025 = vmatprep.subr.bf16.mxu0 0
      %2026 = vmatpush2.bf16.xpose.msra.mxu0 0
      %2027 = vmatprep.subr.bf16.mxu0 0
      %2028 = vmatpush2.bf16.xpose.msra.mxu0 0
      %2029 = vmatprep.subr.bf16.mxu0 0
      %2030 = vmatpush2.bf16.xpose.msra.mxu0 0
      %2031 = vmatprep.subr.bf16.mxu0 0
      %2032 = vmatpush2.bf16.xpose.msra.mxu0 0
      %2033 = vmatprep.subr.bf16.mxu0 0
      %2034 = vmatpush2.bf16.xpose.msra.mxu0 0
      %2035 = vmatprep.mubr.bf16.mxu0 0
      %2036 = vmatmul.mubr.bf16.gmra.mxu0 %v1998
      %v2037 = vpop.f32.mrf.mxu0
      %v2038 = vadd.f32 0.0, %v2037
      %v2039 = vpop.f32.mrf.mxu0
      %v2040 = vpop.f32.mrf.mxu0
      %v2041 = vadd.f32 0.0, %v2040
      %v2042 = vpop.f32.mrf.mxu0
      %2043 = vdwg.mxu0
      %v2045 = vsel %vm1902, %v1695, 0
      %v2048 = vsel %vm1902, %v1696, 0
      %2050 = vmatprep.subr.bf16.mxu0 0
      %2051 = vmatpush1.bf16.xpose.msra.mxu0 0
      %2052 = vmatprep.subr.bf16.mxu0 0
      %2053 = vmatpush1.bf16.xpose.msra.mxu0 0
      %2054 = vmatprep.subr.bf16.mxu0 0
      %2055 = vmatpush1.bf16.xpose.msra.mxu0 0
      %2056 = vmatprep.subr.bf16.mxu0 0
      %2057 = vmatpush1.bf16.xpose.msra.mxu0 0
      %2058 = vmatprep.subr.bf16.mxu0 0
      %2059 = vmatpush1.bf16.xpose.msra.mxu0 0
      %2060 = vmatprep.subr.bf16.mxu0 0
      %2061 = vmatpush1.bf16.xpose.msra.mxu0 0
      %2062 = vmatprep.subr.bf16.mxu0 0
      %2063 = vmatpush1.bf16.xpose.msra.mxu0 0
      %2064 = vmatprep.subr.bf16.mxu0 0
      %2065 = vmatpush1.bf16.xpose.msra.mxu0 %v2048
      %2066 = vmatprep.subr.bf16.mxu0 0
      %2067 = vmatpush2.bf16.xpose.msra.mxu0 0
      %2068 = vmatprep.subr.bf16.mxu0 0
      %2069 = vmatpush2.bf16.xpose.msra.mxu0 0
      %2070 = vmatprep.subr.bf16.mxu0 0
      %2071 = vmatpush2.bf16.xpose.msra.mxu0 0
      %2072 = vmatprep.subr.bf16.mxu0 0
      %2073 = vmatpush2.bf16.xpose.msra.mxu0 0
      %2074 = vmatprep.subr.bf16.mxu0 0
      %2075 = vmatpush2.bf16.xpose.msra.mxu0 0
      %2076 = vmatprep.subr.bf16.mxu0 0
      %2077 = vmatpush2.bf16.xpose.msra.mxu0 0
      %2078 = vmatprep.subr.bf16.mxu0 0
      %2079 = vmatpush2.bf16.xpose.msra.mxu0 0
      %2080 = vmatprep.subr.bf16.mxu0 0
      %2081 = vmatpush2.bf16.xpose.msra.mxu0 0
      %2082 = vmatprep.mubr.bf16.mxu0 0
      %2083 = vmatmul.mubr.bf16.gmra.mxu0 %v2045
      %v2084 = vpop.f32.mrf.mxu0
      %v2085 = vadd.f32 0.0, %v2084
      %v2086 = vpop.f32.mrf.mxu0
      %v2087 = vpop.f32.mrf.mxu0
      %v2088 = vadd.f32 0.0, %v2087
      %v2089 = vpop.f32.mrf.mxu0
      %2090 = vdwg.mxu0
      %v2092 = vsel %vm1902, %v1698, 0
      %v2095 = vsel %vm1902, %v1699, 0
      %2097 = vmatprep.subr.bf16.mxu0 0
      %2098 = vmatpush1.bf16.xpose.msra.mxu0 0
      %2099 = vmatprep.subr.bf16.mxu0 0
      %2100 = vmatpush1.bf16.xpose.msra.mxu0 0
      %2101 = vmatprep.subr.bf16.mxu0 0
      %2102 = vmatpush1.bf16.xpose.msra.mxu0 0
      %2103 = vmatprep.subr.bf16.mxu0 0
      %2104 = vmatpush1.bf16.xpose.msra.mxu0 0
      %2105 = vmatprep.subr.bf16.mxu0 0
      %2106 = vmatpush1.bf16.xpose.msra.mxu0 0
      %2107 = vmatprep.subr.bf16.mxu0 0
      %2108 = vmatpush1.bf16.xpose.msra.mxu0 0
      %2109 = vmatprep.subr.bf16.mxu0 0
      %2110 = vmatpush1.bf16.xpose.msra.mxu0 0
      %2111 = vmatprep.subr.bf16.mxu0 0
      %2112 = vmatpush1.bf16.xpose.msra.mxu0 %v2095
      %2113 = vmatprep.subr.bf16.mxu0 0
      %2114 = vmatpush2.bf16.xpose.msra.mxu0 0
      %2115 = vmatprep.subr.bf16.mxu0 0
      %2116 = vmatpush2.bf16.xpose.msra.mxu0 0
      %2117 = vmatprep.subr.bf16.mxu0 0
      %2118 = vmatpush2.bf16.xpose.msra.mxu0 0
      %2119 = vmatprep.subr.bf16.mxu0 0
      %2120 = vmatpush2.bf16.xpose.msra.mxu0 0
      %2121 = vmatprep.subr.bf16.mxu0 0
      %2122 = vmatpush2.bf16.xpose.msra.mxu0 0
      %2123 = vmatprep.subr.bf16.mxu0 0
      %2124 = vmatpush2.bf16.xpose.msra.mxu0 0
      %2125 = vmatprep.subr.bf16.mxu0 0
      %2126 = vmatpush2.bf16.xpose.msra.mxu0 0
      %2127 = vmatprep.subr.bf16.mxu0 0
      %2128 = vmatpush2.bf16.xpose.msra.mxu0 0
      %2129 = vmatprep.mubr.bf16.mxu0 0
      %2130 = vmatmul.mubr.bf16.gmra.mxu0 %v2092
      %v2131 = vpop.f32.mrf.mxu0
      %v2132 = vadd.f32 0.0, %v2131
      %v2133 = vpop.f32.mrf.mxu0
      %v2134 = vpop.f32.mrf.mxu0
      %v2135 = vadd.f32 0.0, %v2134
      %v2136 = vpop.f32.mrf.mxu0
      %2137 = vdwg.mxu0
      %v2139 = vsel %vm1902, %v1701, 0
      %v2142 = vsel %vm1902, %v1702, 0
      %2144 = vmatprep.subr.bf16.mxu0 0
      %2145 = vmatpush1.bf16.xpose.msra.mxu0 0
      %2146 = vmatprep.subr.bf16.mxu0 0
      %2147 = vmatpush1.bf16.xpose.msra.mxu0 0
      %2148 = vmatprep.subr.bf16.mxu0 0
      %2149 = vmatpush1.bf16.xpose.msra.mxu0 0
      %2150 = vmatprep.subr.bf16.mxu0 0
      %2151 = vmatpush1.bf16.xpose.msra.mxu0 0
      %2152 = vmatprep.subr.bf16.mxu0 0
      %2153 = vmatpush1.bf16.xpose.msra.mxu0 0
      %2154 = vmatprep.subr.bf16.mxu0 0
      %2155 = vmatpush1.bf16.xpose.msra.mxu0 0
      %2156 = vmatprep.subr.bf16.mxu0 0
      %2157 = vmatpush1.bf16.xpose.msra.mxu0 0
      %2158 = vmatprep.subr.bf16.mxu0 0
      %2159 = vmatpush1.bf16.xpose.msra.mxu0 %v2142
      %2160 = vmatprep.subr.bf16.mxu0 0
      %2161 = vmatpush2.bf16.xpose.msra.mxu0 0
      %2162 = vmatprep.subr.bf16.mxu0 0
      %2163 = vmatpush2.bf16.xpose.msra.mxu0 0
      %2164 = vmatprep.subr.bf16.mxu0 0
      %2165 = vmatpush2.bf16.xpose.msra.mxu0 0
      %2166 = vmatprep.subr.bf16.mxu0 0
      %2167 = vmatpush2.bf16.xpose.msra.mxu0 0
      %2168 = vmatprep.subr.bf16.mxu0 0
      %2169 = vmatpush2.bf16.xpose.msra.mxu0 0
      %2170 = vmatprep.subr.bf16.mxu0 0
      %2171 = vmatpush2.bf16.xpose.msra.mxu0 0
      %2172 = vmatprep.subr.bf16.mxu0 0
      %2173 = vmatpush2.bf16.xpose.msra.mxu0 0
      %2174 = vmatprep.subr.bf16.mxu0 0
      %2175 = vmatpush2.bf16.xpose.msra.mxu0 0
      %2176 = vmatprep.mubr.bf16.mxu0 0
      %2177 = vmatmul.mubr.bf16.gmra.mxu0 %v2139
      %v2178 = vpop.f32.mrf.mxu0
      %v2179 = vadd.f32 0.0, %v2178
      %v2180 = vpop.f32.mrf.mxu0
      %v2181 = vpop.f32.mrf.mxu0
      %v2182 = vadd.f32 0.0, %v2181
      %v2183 = vpop.f32.mrf.mxu0
      %2184 = vdwg.mxu0
      %v2186 = vsel %vm1902, %v1704, 0
      %v2189 = vsel %vm1902, %v1705, 0
      %2191 = vmatprep.subr.bf16.mxu0 0
      %2192 = vmatpush1.bf16.xpose.msra.mxu0 0
      %2193 = vmatprep.subr.bf16.mxu0 0
      %2194 = vmatpush1.bf16.xpose.msra.mxu0 0
      %2195 = vmatprep.subr.bf16.mxu0 0
      %2196 = vmatpush1.bf16.xpose.msra.mxu0 0
      %2197 = vmatprep.subr.bf16.mxu0 0
      %2198 = vmatpush1.bf16.xpose.msra.mxu0 0
      %2199 = vmatprep.subr.bf16.mxu0 0
      %2200 = vmatpush1.bf16.xpose.msra.mxu0 0
      %2201 = vmatprep.subr.bf16.mxu0 0
      %2202 = vmatpush1.bf16.xpose.msra.mxu0 0
      %2203 = vmatprep.subr.bf16.mxu0 0
      %2204 = vmatpush1.bf16.xpose.msra.mxu0 0
      %2205 = vmatprep.subr.bf16.mxu0 0
      %2206 = vmatpush1.bf16.xpose.msra.mxu0 %v2189
      %2207 = vmatprep.subr.bf16.mxu0 0
      %2208 = vmatpush2.bf16.xpose.msra.mxu0 0
      %2209 = vmatprep.subr.bf16.mxu0 0
      %2210 = vmatpush2.bf16.xpose.msra.mxu0 0
      %2211 = vmatprep.subr.bf16.mxu0 0
      %2212 = vmatpush2.bf16.xpose.msra.mxu0 0
      %2213 = vmatprep.subr.bf16.mxu0 0
      %2214 = vmatpush2.bf16.xpose.msra.mxu0 0
      %2215 = vmatprep.subr.bf16.mxu0 0
      %2216 = vmatpush2.bf16.xpose.msra.mxu0 0
      %2217 = vmatprep.subr.bf16.mxu0 0
      %2218 = vmatpush2.bf16.xpose.msra.mxu0 0
      %2219 = vmatprep.subr.bf16.mxu0 0
      %2220 = vmatpush2.bf16.xpose.msra.mxu0 0
      %2221 = vmatprep.subr.bf16.mxu0 0
      %2222 = vmatpush2.bf16.xpose.msra.mxu0 0
      %2223 = vmatprep.mubr.bf16.mxu0 0
      %2224 = vmatmul.mubr.bf16.gmra.mxu0 %v2186
      %v2225 = vpop.f32.mrf.mxu0
      %v2226 = vadd.f32 0.0, %v2225
      %v2227 = vpop.f32.mrf.mxu0
      %v2228 = vpop.f32.mrf.mxu0
      %v2229 = vadd.f32 0.0, %v2228
      %v2230 = vpop.f32.mrf.mxu0
      %2231 = vdwg.mxu0
      %v2233 = vsel %vm1902, %v1707, 0
      %v2236 = vsel %vm1902, %v1708, 0
      %2238 = vmatprep.subr.bf16.mxu0 0
      %2239 = vmatpush1.bf16.xpose.msra.mxu0 0
      %2240 = vmatprep.subr.bf16.mxu0 0
      %2241 = vmatpush1.bf16.xpose.msra.mxu0 0
      %2242 = vmatprep.subr.bf16.mxu0 0
      %2243 = vmatpush1.bf16.xpose.msra.mxu0 0
      %2244 = vmatprep.subr.bf16.mxu0 0
      %2245 = vmatpush1.bf16.xpose.msra.mxu0 0
      %2246 = vmatprep.subr.bf16.mxu0 0
      %2247 = vmatpush1.bf16.xpose.msra.mxu0 0
      %2248 = vmatprep.subr.bf16.mxu0 0
      %2249 = vmatpush1.bf16.xpose.msra.mxu0 0
      %2250 = vmatprep.subr.bf16.mxu0 0
      %2251 = vmatpush1.bf16.xpose.msra.mxu0 0
      %2252 = vmatprep.subr.bf16.mxu0 0
      %2253 = vmatpush1.bf16.xpose.msra.mxu0 %v2236
      %2254 = vmatprep.subr.bf16.mxu0 0
      %2255 = vmatpush2.bf16.xpose.msra.mxu0 0
      %2256 = vmatprep.subr.bf16.mxu0 0
      %2257 = vmatpush2.bf16.xpose.msra.mxu0 0
      %2258 = vmatprep.subr.bf16.mxu0 0
      %2259 = vmatpush2.bf16.xpose.msra.mxu0 0
      %2260 = vmatprep.subr.bf16.mxu0 0
      %2261 = vmatpush2.bf16.xpose.msra.mxu0 0
      %2262 = vmatprep.subr.bf16.mxu0 0
      %2263 = vmatpush2.bf16.xpose.msra.mxu0 0
      %2264 = vmatprep.subr.bf16.mxu0 0
      %2265 = vmatpush2.bf16.xpose.msra.mxu0 0
      %2266 = vmatprep.subr.bf16.mxu0 0
      %2267 = vmatpush2.bf16.xpose.msra.mxu0 0
      %2268 = vmatprep.subr.bf16.mxu0 0
      %2269 = vmatpush2.bf16.xpose.msra.mxu0 0
      %2270 = vmatprep.mubr.bf16.mxu0 0
      %2271 = vmatmul.mubr.bf16.gmra.mxu0 %v2233
      %v2272 = vpop.f32.mrf.mxu0
      %v2273 = vadd.f32 0.0, %v2272
      %v2274 = vpop.f32.mrf.mxu0
      %v2275 = vpop.f32.mrf.mxu0
      %v2276 = vadd.f32 0.0, %v2275
      %v2277 = vpop.f32.mrf.mxu0
      %2278 = vdwg.mxu0
      %v2280 = vsel %vm1902, %v1719, 0
      %v2283 = vsel %vm1902, %v1775, 0
      %2285 = vmatprep.subr.bf16.mxu0 0
      %2286 = vmatpush1.bf16.xpose.msra.mxu0 0
      %2287 = vmatprep.subr.bf16.mxu0 0
      %2288 = vmatpush1.bf16.xpose.msra.mxu0 0
      %2289 = vmatprep.subr.bf16.mxu0 0
      %2290 = vmatpush1.bf16.xpose.msra.mxu0 0
      %2291 = vmatprep.subr.bf16.mxu0 0
      %2292 = vmatpush1.bf16.xpose.msra.mxu0 0
      %2293 = vmatprep.subr.bf16.mxu0 0
      %2294 = vmatpush1.bf16.xpose.msra.mxu0 0
      %2295 = vmatprep.subr.bf16.mxu0 0
      %2296 = vmatpush1.bf16.xpose.msra.mxu0 0
      %2297 = vmatprep.subr.bf16.mxu0 0
      %2298 = vmatpush1.bf16.xpose.msra.mxu0 0
      %2299 = vmatprep.subr.bf16.mxu0 0
      %2300 = vmatpush1.bf16.xpose.msra.mxu0 %v2283
      %2301 = vmatprep.subr.bf16.mxu0 0
      %2302 = vmatpush2.bf16.xpose.msra.mxu0 0
      %2303 = vmatprep.subr.bf16.mxu0 0
      %2304 = vmatpush2.bf16.xpose.msra.mxu0 0
      %2305 = vmatprep.subr.bf16.mxu0 0
      %2306 = vmatpush2.bf16.xpose.msra.mxu0 0
      %2307 = vmatprep.subr.bf16.mxu0 0
      %2308 = vmatpush2.bf16.xpose.msra.mxu0 0
      %2309 = vmatprep.subr.bf16.mxu0 0
      %2310 = vmatpush2.bf16.xpose.msra.mxu0 0
      %2311 = vmatprep.subr.bf16.mxu0 0
      %2312 = vmatpush2.bf16.xpose.msra.mxu0 0
      %2313 = vmatprep.subr.bf16.mxu0 0
      %2314 = vmatpush2.bf16.xpose.msra.mxu0 0
      %2315 = vmatprep.subr.bf16.mxu0 0
      %2316 = vmatpush2.bf16.xpose.msra.mxu0 0
      %2317 = vmatprep.mubr.bf16.mxu0 0
      %2318 = vmatmul.mubr.bf16.gmra.mxu0 %v2280
      %v2319 = vpop.f32.mrf.mxu0
      %v2320 = vadd.f32 0.0, %v2319
      %v2321 = vpop.f32.mrf.mxu0
      %v2322 = vpop.f32.mrf.mxu0
      %v2323 = vadd.f32 0.0, %v2322
      %v2324 = vpop.f32.mrf.mxu0
      %2325 = vdwg.mxu0
      %v2327 = vsel %vm1902, %v1721, 0
      %v2330 = vsel %vm1902, %v1777, 0
      %2332 = vmatprep.subr.bf16.mxu0 0
      %2333 = vmatpush1.bf16.xpose.msra.mxu0 0
      %2334 = vmatprep.subr.bf16.mxu0 0
      %2335 = vmatpush1.bf16.xpose.msra.mxu0 0
      %2336 = vmatprep.subr.bf16.mxu0 0
      %2337 = vmatpush1.bf16.xpose.msra.mxu0 0
      %2338 = vmatprep.subr.bf16.mxu0 0
      %2339 = vmatpush1.bf16.xpose.msra.mxu0 0
      %2340 = vmatprep.subr.bf16.mxu0 0
      %2341 = vmatpush1.bf16.xpose.msra.mxu0 0
      %2342 = vmatprep.subr.bf16.mxu0 0
      %2343 = vmatpush1.bf16.xpose.msra.mxu0 0
      %2344 = vmatprep.subr.bf16.mxu0 0
      %2345 = vmatpush1.bf16.xpose.msra.mxu0 0
      %2346 = vmatprep.subr.bf16.mxu0 0
      %2347 = vmatpush1.bf16.xpose.msra.mxu0 %v2330
      %2348 = vmatprep.subr.bf16.mxu0 0
      %2349 = vmatpush2.bf16.xpose.msra.mxu0 0
      %2350 = vmatprep.subr.bf16.mxu0 0
      %2351 = vmatpush2.bf16.xpose.msra.mxu0 0
      %2352 = vmatprep.subr.bf16.mxu0 0
      %2353 = vmatpush2.bf16.xpose.msra.mxu0 0
      %2354 = vmatprep.subr.bf16.mxu0 0
      %2355 = vmatpush2.bf16.xpose.msra.mxu0 0
      %2356 = vmatprep.subr.bf16.mxu0 0
      %2357 = vmatpush2.bf16.xpose.msra.mxu0 0
      %2358 = vmatprep.subr.bf16.mxu0 0
      %2359 = vmatpush2.bf16.xpose.msra.mxu0 0
      %2360 = vmatprep.subr.bf16.mxu0 0
      %2361 = vmatpush2.bf16.xpose.msra.mxu0 0
      %2362 = vmatprep.subr.bf16.mxu0 0
      %2363 = vmatpush2.bf16.xpose.msra.mxu0 0
      %2364 = vmatprep.mubr.bf16.mxu0 0
      %2365 = vmatmul.mubr.bf16.gmra.mxu0 %v2327
      %v2366 = vpop.f32.mrf.mxu0
      %v2367 = vadd.f32 0.0, %v2366
      %v2368 = vpop.f32.mrf.mxu0
      %v2369 = vpop.f32.mrf.mxu0
      %v2370 = vadd.f32 0.0, %v2369
      %v2371 = vpop.f32.mrf.mxu0
      %2372 = vdwg.mxu0
      %v2374 = vsel %vm1902, %v1723, 0
      %v2377 = vsel %vm1902, %v1779, 0
      %2379 = vmatprep.subr.bf16.mxu0 0
      %2380 = vmatpush1.bf16.xpose.msra.mxu0 0
      %2381 = vmatprep.subr.bf16.mxu0 0
      %2382 = vmatpush1.bf16.xpose.msra.mxu0 0
      %2383 = vmatprep.subr.bf16.mxu0 0
      %2384 = vmatpush1.bf16.xpose.msra.mxu0 0
      %2385 = vmatprep.subr.bf16.mxu0 0
      %2386 = vmatpush1.bf16.xpose.msra.mxu0 0
      %2387 = vmatprep.subr.bf16.mxu0 0
      %2388 = vmatpush1.bf16.xpose.msra.mxu0 0
      %2389 = vmatprep.subr.bf16.mxu0 0
      %2390 = vmatpush1.bf16.xpose.msra.mxu0 0
      %2391 = vmatprep.subr.bf16.mxu0 0
      %2392 = vmatpush1.bf16.xpose.msra.mxu0 0
      %2393 = vmatprep.subr.bf16.mxu0 0
      %2394 = vmatpush1.bf16.xpose.msra.mxu0 %v2377
      %2395 = vmatprep.subr.bf16.mxu0 0
      %2396 = vmatpush2.bf16.xpose.msra.mxu0 0
      %2397 = vmatprep.subr.bf16.mxu0 0
      %2398 = vmatpush2.bf16.xpose.msra.mxu0 0
      %2399 = vmatprep.subr.bf16.mxu0 0
      %2400 = vmatpush2.bf16.xpose.msra.mxu0 0
      %2401 = vmatprep.subr.bf16.mxu0 0
      %2402 = vmatpush2.bf16.xpose.msra.mxu0 0
      %2403 = vmatprep.subr.bf16.mxu0 0
      %2404 = vmatpush2.bf16.xpose.msra.mxu0 0
      %2405 = vmatprep.subr.bf16.mxu0 0
      %2406 = vmatpush2.bf16.xpose.msra.mxu0 0
      %2407 = vmatprep.subr.bf16.mxu0 0
      %2408 = vmatpush2.bf16.xpose.msra.mxu0 0
      %2409 = vmatprep.subr.bf16.mxu0 0
      %2410 = vmatpush2.bf16.xpose.msra.mxu0 0
      %2411 = vmatprep.mubr.bf16.mxu0 0
      %2412 = vmatmul.mubr.bf16.gmra.mxu0 %v2374
      %v2413 = vpop.f32.mrf.mxu0
      %v2414 = vadd.f32 0.0, %v2413
      %v2415 = vpop.f32.mrf.mxu0
      %v2416 = vpop.f32.mrf.mxu0
      %v2417 = vadd.f32 0.0, %v2416
      %v2418 = vpop.f32.mrf.mxu0
      %2419 = vdwg.mxu0
      %v2421 = vsel %vm1902, %v1725, 0
      %v2424 = vsel %vm1902, %v1781, 0
      %2426 = vmatprep.subr.bf16.mxu0 0
      %2427 = vmatpush1.bf16.xpose.msra.mxu0 0
      %2428 = vmatprep.subr.bf16.mxu0 0
      %2429 = vmatpush1.bf16.xpose.msra.mxu0 0
      %2430 = vmatprep.subr.bf16.mxu0 0
      %2431 = vmatpush1.bf16.xpose.msra.mxu0 0
      %2432 = vmatprep.subr.bf16.mxu0 0
      %2433 = vmatpush1.bf16.xpose.msra.mxu0 0
      %2434 = vmatprep.subr.bf16.mxu0 0
      %2435 = vmatpush1.bf16.xpose.msra.mxu0 0
      %2436 = vmatprep.subr.bf16.mxu0 0
      %2437 = vmatpush1.bf16.xpose.msra.mxu0 0
      %2438 = vmatprep.subr.bf16.mxu0 0
      %2439 = vmatpush1.bf16.xpose.msra.mxu0 0
      %2440 = vmatprep.subr.bf16.mxu0 0
      %2441 = vmatpush1.bf16.xpose.msra.mxu0 %v2424
      %2442 = vmatprep.subr.bf16.mxu0 0
      %2443 = vmatpush2.bf16.xpose.msra.mxu0 0
      %2444 = vmatprep.subr.bf16.mxu0 0
      %2445 = vmatpush2.bf16.xpose.msra.mxu0 0
      %2446 = vmatprep.subr.bf16.mxu0 0
      %2447 = vmatpush2.bf16.xpose.msra.mxu0 0
      %2448 = vmatprep.subr.bf16.mxu0 0
      %2449 = vmatpush2.bf16.xpose.msra.mxu0 0
      %2450 = vmatprep.subr.bf16.mxu0 0
      %2451 = vmatpush2.bf16.xpose.msra.mxu0 0
      %2452 = vmatprep.subr.bf16.mxu0 0
      %2453 = vmatpush2.bf16.xpose.msra.mxu0 0
      %2454 = vmatprep.subr.bf16.mxu0 0
      %2455 = vmatpush2.bf16.xpose.msra.mxu0 0
      %2456 = vmatprep.subr.bf16.mxu0 0
      %2457 = vmatpush2.bf16.xpose.msra.mxu0 0
      %2458 = vmatprep.mubr.bf16.mxu0 0
      %2459 = vmatmul.mubr.bf16.gmra.mxu0 %v2421
      %v2460 = vpop.f32.mrf.mxu0
      %v2461 = vadd.f32 0.0, %v2460
      %v2462 = vpop.f32.mrf.mxu0
      %v2463 = vpop.f32.mrf.mxu0
      %v2464 = vadd.f32 0.0, %v2463
      %v2465 = vpop.f32.mrf.mxu0
      %2466 = vdwg.mxu0
      %v2468 = vsel %vm1902, %v1727, 0
      %v2471 = vsel %vm1902, %v1783, 0
      %2473 = vmatprep.subr.bf16.mxu0 0
      %2474 = vmatpush1.bf16.xpose.msra.mxu0 0
      %2475 = vmatprep.subr.bf16.mxu0 0
      %2476 = vmatpush1.bf16.xpose.msra.mxu0 0
      %2477 = vmatprep.subr.bf16.mxu0 0
      %2478 = vmatpush1.bf16.xpose.msra.mxu0 0
      %2479 = vmatprep.subr.bf16.mxu0 0
      %2480 = vmatpush1.bf16.xpose.msra.mxu0 0
      %2481 = vmatprep.subr.bf16.mxu0 0
      %2482 = vmatpush1.bf16.xpose.msra.mxu0 0
      %2483 = vmatprep.subr.bf16.mxu0 0
      %2484 = vmatpush1.bf16.xpose.msra.mxu0 0
      %2485 = vmatprep.subr.bf16.mxu0 0
      %2486 = vmatpush1.bf16.xpose.msra.mxu0 0
      %2487 = vmatprep.subr.bf16.mxu0 0
      %2488 = vmatpush1.bf16.xpose.msra.mxu0 %v2471
      %2489 = vmatprep.subr.bf16.mxu0 0
      %2490 = vmatpush2.bf16.xpose.msra.mxu0 0
      %2491 = vmatprep.subr.bf16.mxu0 0
      %2492 = vmatpush2.bf16.xpose.msra.mxu0 0
      %2493 = vmatprep.subr.bf16.mxu0 0
      %2494 = vmatpush2.bf16.xpose.msra.mxu0 0
      %2495 = vmatprep.subr.bf16.mxu0 0
      %2496 = vmatpush2.bf16.xpose.msra.mxu0 0
      %2497 = vmatprep.subr.bf16.mxu0 0
      %2498 = vmatpush2.bf16.xpose.msra.mxu0 0
      %2499 = vmatprep.subr.bf16.mxu0 0
      %2500 = vmatpush2.bf16.xpose.msra.mxu0 0
      %2501 = vmatprep.subr.bf16.mxu0 0
      %2502 = vmatpush2.bf16.xpose.msra.mxu0 0
      %2503 = vmatprep.subr.bf16.mxu0 0
      %2504 = vmatpush2.bf16.xpose.msra.mxu0 0
      %2505 = vmatprep.mubr.bf16.mxu0 0
      %2506 = vmatmul.mubr.bf16.gmra.mxu0 %v2468
      %v2507 = vpop.f32.mrf.mxu0
      %v2508 = vadd.f32 0.0, %v2507
      %v2509 = vpop.f32.mrf.mxu0
      %v2510 = vpop.f32.mrf.mxu0
      %v2511 = vadd.f32 0.0, %v2510
      %v2512 = vpop.f32.mrf.mxu0
      %2513 = vdwg.mxu0
      %v2515 = vsel %vm1902, %v1729, 0
      %v2518 = vsel %vm1902, %v1785, 0
      %2520 = vmatprep.subr.bf16.mxu0 0
      %2521 = vmatpush1.bf16.xpose.msra.mxu0 0
      %2522 = vmatprep.subr.bf16.mxu0 0
      %2523 = vmatpush1.bf16.xpose.msra.mxu0 0
      %2524 = vmatprep.subr.bf16.mxu0 0
      %2525 = vmatpush1.bf16.xpose.msra.mxu0 0
      %2526 = vmatprep.subr.bf16.mxu0 0
      %2527 = vmatpush1.bf16.xpose.msra.mxu0 0
      %2528 = vmatprep.subr.bf16.mxu0 0
      %2529 = vmatpush1.bf16.xpose.msra.mxu0 0
      %2530 = vmatprep.subr.bf16.mxu0 0
      %2531 = vmatpush1.bf16.xpose.msra.mxu0 0
      %2532 = vmatprep.subr.bf16.mxu0 0
      %2533 = vmatpush1.bf16.xpose.msra.mxu0 0
      %2534 = vmatprep.subr.bf16.mxu0 0
      %2535 = vmatpush1.bf16.xpose.msra.mxu0 %v2518
      %2536 = vmatprep.subr.bf16.mxu0 0
      %2537 = vmatpush2.bf16.xpose.msra.mxu0 0
      %2538 = vmatprep.subr.bf16.mxu0 0
      %2539 = vmatpush2.bf16.xpose.msra.mxu0 0
      %2540 = vmatprep.subr.bf16.mxu0 0
      %2541 = vmatpush2.bf16.xpose.msra.mxu0 0
      %2542 = vmatprep.subr.bf16.mxu0 0
      %2543 = vmatpush2.bf16.xpose.msra.mxu0 0
      %2544 = vmatprep.subr.bf16.mxu0 0
      %2545 = vmatpush2.bf16.xpose.msra.mxu0 0
      %2546 = vmatprep.subr.bf16.mxu0 0
      %2547 = vmatpush2.bf16.xpose.msra.mxu0 0
      %2548 = vmatprep.subr.bf16.mxu0 0
      %2549 = vmatpush2.bf16.xpose.msra.mxu0 0
      %2550 = vmatprep.subr.bf16.mxu0 0
      %2551 = vmatpush2.bf16.xpose.msra.mxu0 0
      %2552 = vmatprep.mubr.bf16.mxu0 0
      %2553 = vmatmul.mubr.bf16.gmra.mxu0 %v2515
      %v2554 = vpop.f32.mrf.mxu0
      %v2555 = vadd.f32 0.0, %v2554
      %v2556 = vpop.f32.mrf.mxu0
      %v2557 = vpop.f32.mrf.mxu0
      %v2558 = vadd.f32 0.0, %v2557
      %v2559 = vpop.f32.mrf.mxu0
      %2560 = vdwg.mxu0
      %v2562 = vsel %vm1902, %v1731, 0
      %v2565 = vsel %vm1902, %v1787, 0
      %2567 = vmatprep.subr.bf16.mxu0 0
      %2568 = vmatpush1.bf16.xpose.msra.mxu0 0
      %2569 = vmatprep.subr.bf16.mxu0 0
      %2570 = vmatpush1.bf16.xpose.msra.mxu0 0
      %2571 = vmatprep.subr.bf16.mxu0 0
      %2572 = vmatpush1.bf16.xpose.msra.mxu0 0
      %2573 = vmatprep.subr.bf16.mxu0 0
      %2574 = vmatpush1.bf16.xpose.msra.mxu0 0
      %2575 = vmatprep.subr.bf16.mxu0 0
      %2576 = vmatpush1.bf16.xpose.msra.mxu0 0
      %2577 = vmatprep.subr.bf16.mxu0 0
      %2578 = vmatpush1.bf16.xpose.msra.mxu0 0
      %2579 = vmatprep.subr.bf16.mxu0 0
      %2580 = vmatpush1.bf16.xpose.msra.mxu0 0
      %2581 = vmatprep.subr.bf16.mxu0 0
      %2582 = vmatpush1.bf16.xpose.msra.mxu0 %v2565
      %2583 = vmatprep.subr.bf16.mxu0 0
      %2584 = vmatpush2.bf16.xpose.msra.mxu0 0
      %2585 = vmatprep.subr.bf16.mxu0 0
      %2586 = vmatpush2.bf16.xpose.msra.mxu0 0
      %2587 = vmatprep.subr.bf16.mxu0 0
      %2588 = vmatpush2.bf16.xpose.msra.mxu0 0
      %2589 = vmatprep.subr.bf16.mxu0 0
      %2590 = vmatpush2.bf16.xpose.msra.mxu0 0
      %2591 = vmatprep.subr.bf16.mxu0 0
      %2592 = vmatpush2.bf16.xpose.msra.mxu0 0
      %2593 = vmatprep.subr.bf16.mxu0 0
      %2594 = vmatpush2.bf16.xpose.msra.mxu0 0
      %2595 = vmatprep.subr.bf16.mxu0 0
      %2596 = vmatpush2.bf16.xpose.msra.mxu0 0
      %2597 = vmatprep.subr.bf16.mxu0 0
      %2598 = vmatpush2.bf16.xpose.msra.mxu0 0
      %2599 = vmatprep.mubr.bf16.mxu0 0
      %2600 = vmatmul.mubr.bf16.gmra.mxu0 %v2562
      %v2601 = vpop.f32.mrf.mxu0
      %v2602 = vadd.f32 0.0, %v2601
      %v2603 = vpop.f32.mrf.mxu0
      %v2604 = vpop.f32.mrf.mxu0
      %v2605 = vadd.f32 0.0, %v2604
      %v2606 = vpop.f32.mrf.mxu0
      %2607 = vdwg.mxu0
      %v2609 = vsel %vm1902, %v1733, 0
      %v2612 = vsel %vm1902, %v1789, 0
      %2614 = vmatprep.subr.bf16.mxu0 0
      %2615 = vmatpush1.bf16.xpose.msra.mxu0 0
      %2616 = vmatprep.subr.bf16.mxu0 0
      %2617 = vmatpush1.bf16.xpose.msra.mxu0 0
      %2618 = vmatprep.subr.bf16.mxu0 0
      %2619 = vmatpush1.bf16.xpose.msra.mxu0 0
      %2620 = vmatprep.subr.bf16.mxu0 0
      %2621 = vmatpush1.bf16.xpose.msra.mxu0 0
      %2622 = vmatprep.subr.bf16.mxu0 0
      %2623 = vmatpush1.bf16.xpose.msra.mxu0 0
      %2624 = vmatprep.subr.bf16.mxu0 0
      %2625 = vmatpush1.bf16.xpose.msra.mxu0 0
      %2626 = vmatprep.subr.bf16.mxu0 0
      %2627 = vmatpush1.bf16.xpose.msra.mxu0 0
      %2628 = vmatprep.subr.bf16.mxu0 0
      %2629 = vmatpush1.bf16.xpose.msra.mxu0 %v2612
      %2630 = vmatprep.subr.bf16.mxu0 0
      %2631 = vmatpush2.bf16.xpose.msra.mxu0 0
      %2632 = vmatprep.subr.bf16.mxu0 0
      %2633 = vmatpush2.bf16.xpose.msra.mxu0 0
      %2634 = vmatprep.subr.bf16.mxu0 0
      %2635 = vmatpush2.bf16.xpose.msra.mxu0 0
      %2636 = vmatprep.subr.bf16.mxu0 0
      %2637 = vmatpush2.bf16.xpose.msra.mxu0 0
      %2638 = vmatprep.subr.bf16.mxu0 0
      %2639 = vmatpush2.bf16.xpose.msra.mxu0 0
      %2640 = vmatprep.subr.bf16.mxu0 0
      %2641 = vmatpush2.bf16.xpose.msra.mxu0 0
      %2642 = vmatprep.subr.bf16.mxu0 0
      %2643 = vmatpush2.bf16.xpose.msra.mxu0 0
      %2644 = vmatprep.subr.bf16.mxu0 0
      %2645 = vmatpush2.bf16.xpose.msra.mxu0 0
      %2646 = vmatprep.mubr.bf16.mxu0 0
      %2647 = vmatmul.mubr.bf16.gmra.mxu0 %v2609
      %v2648 = vpop.f32.mrf.mxu0
      %v2649 = vadd.f32 0.0, %v2648
      %v2650 = vpop.f32.mrf.mxu0
      %v2651 = vpop.f32.mrf.mxu0
      %v2652 = vadd.f32 0.0, %v2651
      %v2653 = vpop.f32.mrf.mxu0
      %2654 = vdwg.mxu0
      %v2656 = vsel %vm1902, %v1735, 0
      %v2659 = vsel %vm1902, %v1791, 0
      %2661 = vmatprep.subr.bf16.mxu0 0
      %2662 = vmatpush1.bf16.xpose.msra.mxu0 0
      %2663 = vmatprep.subr.bf16.mxu0 0
      %2664 = vmatpush1.bf16.xpose.msra.mxu0 0
      %2665 = vmatprep.subr.bf16.mxu0 0
      %2666 = vmatpush1.bf16.xpose.msra.mxu0 0
      %2667 = vmatprep.subr.bf16.mxu0 0
      %2668 = vmatpush1.bf16.xpose.msra.mxu0 0
      %2669 = vmatprep.subr.bf16.mxu0 0
      %2670 = vmatpush1.bf16.xpose.msra.mxu0 0
      %2671 = vmatprep.subr.bf16.mxu0 0
      %2672 = vmatpush1.bf16.xpose.msra.mxu0 0
      %2673 = vmatprep.subr.bf16.mxu0 0
      %2674 = vmatpush1.bf16.xpose.msra.mxu0 0
      %2675 = vmatprep.subr.bf16.mxu0 0
      %2676 = vmatpush1.bf16.xpose.msra.mxu0 %v2659
      %2677 = vmatprep.subr.bf16.mxu0 0
      %2678 = vmatpush2.bf16.xpose.msra.mxu0 0
      %2679 = vmatprep.subr.bf16.mxu0 0
      %2680 = vmatpush2.bf16.xpose.msra.mxu0 0
      %2681 = vmatprep.subr.bf16.mxu0 0
      %2682 = vmatpush2.bf16.xpose.msra.mxu0 0
      %2683 = vmatprep.subr.bf16.mxu0 0
      %2684 = vmatpush2.bf16.xpose.msra.mxu0 0
      %2685 = vmatprep.subr.bf16.mxu0 0
      %2686 = vmatpush2.bf16.xpose.msra.mxu0 0
      %2687 = vmatprep.subr.bf16.mxu0 0
      %2688 = vmatpush2.bf16.xpose.msra.mxu0 0
      %2689 = vmatprep.subr.bf16.mxu0 0
      %2690 = vmatpush2.bf16.xpose.msra.mxu0 0
      %2691 = vmatprep.subr.bf16.mxu0 0
      %2692 = vmatpush2.bf16.xpose.msra.mxu0 0
      %2693 = vmatprep.mubr.bf16.mxu0 0
      %2694 = vmatmul.mubr.bf16.gmra.mxu0 %v2656
      %v2695 = vpop.f32.mrf.mxu0
      %v2696 = vadd.f32 0.0, %v2695
      %v2697 = vpop.f32.mrf.mxu0
      %v2698 = vpop.f32.mrf.mxu0
      %v2699 = vadd.f32 0.0, %v2698
      %v2700 = vpop.f32.mrf.mxu0
      %2701 = vdwg.mxu0
      %v2703 = vsel %vm1902, %v1737, 0
      %v2706 = vsel %vm1902, %v1793, 0
      %2708 = vmatprep.subr.bf16.mxu0 0
      %2709 = vmatpush1.bf16.xpose.msra.mxu0 0
      %2710 = vmatprep.subr.bf16.mxu0 0
      %2711 = vmatpush1.bf16.xpose.msra.mxu0 0
      %2712 = vmatprep.subr.bf16.mxu0 0
      %2713 = vmatpush1.bf16.xpose.msra.mxu0 0
      %2714 = vmatprep.subr.bf16.mxu0 0
      %2715 = vmatpush1.bf16.xpose.msra.mxu0 0
      %2716 = vmatprep.subr.bf16.mxu0 0
      %2717 = vmatpush1.bf16.xpose.msra.mxu0 0
      %2718 = vmatprep.subr.bf16.mxu0 0
      %2719 = vmatpush1.bf16.xpose.msra.mxu0 0
      %2720 = vmatprep.subr.bf16.mxu0 0
      %2721 = vmatpush1.bf16.xpose.msra.mxu0 0
      %2722 = vmatprep.subr.bf16.mxu0 0
      %2723 = vmatpush1.bf16.xpose.msra.mxu0 %v2706
      %2724 = vmatprep.subr.bf16.mxu0 0
      %2725 = vmatpush2.bf16.xpose.msra.mxu0 0
      %2726 = vmatprep.subr.bf16.mxu0 0
      %2727 = vmatpush2.bf16.xpose.msra.mxu0 0
      %2728 = vmatprep.subr.bf16.mxu0 0
      %2729 = vmatpush2.bf16.xpose.msra.mxu0 0
      %2730 = vmatprep.subr.bf16.mxu0 0
      %2731 = vmatpush2.bf16.xpose.msra.mxu0 0
      %2732 = vmatprep.subr.bf16.mxu0 0
      %2733 = vmatpush2.bf16.xpose.msra.mxu0 0
      %2734 = vmatprep.subr.bf16.mxu0 0
      %2735 = vmatpush2.bf16.xpose.msra.mxu0 0
      %2736 = vmatprep.subr.bf16.mxu0 0
      %2737 = vmatpush2.bf16.xpose.msra.mxu0 0
      %2738 = vmatprep.subr.bf16.mxu0 0
      %2739 = vmatpush2.bf16.xpose.msra.mxu0 0
      %2740 = vmatprep.mubr.bf16.mxu0 0
      %2741 = vmatmul.mubr.bf16.gmra.mxu0 %v2703
      %v2742 = vpop.f32.mrf.mxu0
      %v2743 = vadd.f32 0.0, %v2742
      %v2744 = vpop.f32.mrf.mxu0
      %v2745 = vpop.f32.mrf.mxu0
      %v2746 = vadd.f32 0.0, %v2745
      %v2747 = vpop.f32.mrf.mxu0
      %2748 = vdwg.mxu0
      %v2750 = vsel %vm1902, %v1739, 0
      %v2753 = vsel %vm1902, %v1795, 0
      %2755 = vmatprep.subr.bf16.mxu0 0
      %2756 = vmatpush1.bf16.xpose.msra.mxu0 0
      %2757 = vmatprep.subr.bf16.mxu0 0
      %2758 = vmatpush1.bf16.xpose.msra.mxu0 0
      %2759 = vmatprep.subr.bf16.mxu0 0
      %2760 = vmatpush1.bf16.xpose.msra.mxu0 0
      %2761 = vmatprep.subr.bf16.mxu0 0
      %2762 = vmatpush1.bf16.xpose.msra.mxu0 0
      %2763 = vmatprep.subr.bf16.mxu0 0
      %2764 = vmatpush1.bf16.xpose.msra.mxu0 0
      %2765 = vmatprep.subr.bf16.mxu0 0
      %2766 = vmatpush1.bf16.xpose.msra.mxu0 0
      %2767 = vmatprep.subr.bf16.mxu0 0
      %2768 = vmatpush1.bf16.xpose.msra.mxu0 0
      %2769 = vmatprep.subr.bf16.mxu0 0
      %2770 = vmatpush1.bf16.xpose.msra.mxu0 %v2753
      %2771 = vmatprep.subr.bf16.mxu0 0
      %2772 = vmatpush2.bf16.xpose.msra.mxu0 0
      %2773 = vmatprep.subr.bf16.mxu0 0
      %2774 = vmatpush2.bf16.xpose.msra.mxu0 0
      %2775 = vmatprep.subr.bf16.mxu0 0
      %2776 = vmatpush2.bf16.xpose.msra.mxu0 0
      %2777 = vmatprep.subr.bf16.mxu0 0
      %2778 = vmatpush2.bf16.xpose.msra.mxu0 0
      %2779 = vmatprep.subr.bf16.mxu0 0
      %2780 = vmatpush2.bf16.xpose.msra.mxu0 0
      %2781 = vmatprep.subr.bf16.mxu0 0
      %2782 = vmatpush2.bf16.xpose.msra.mxu0 0
      %2783 = vmatprep.subr.bf16.mxu0 0
      %2784 = vmatpush2.bf16.xpose.msra.mxu0 0
      %2785 = vmatprep.subr.bf16.mxu0 0
      %2786 = vmatpush2.bf16.xpose.msra.mxu0 0
      %2787 = vmatprep.mubr.bf16.mxu0 0
      %2788 = vmatmul.mubr.bf16.gmra.mxu0 %v2750
      %v2789 = vpop.f32.mrf.mxu0
      %v2790 = vadd.f32 0.0, %v2789
      %v2791 = vpop.f32.mrf.mxu0
      %v2792 = vpop.f32.mrf.mxu0
      %v2793 = vadd.f32 0.0, %v2792
      %v2794 = vpop.f32.mrf.mxu0
      %2795 = vdwg.mxu0
      %v2797 = vsel %vm1902, %v1741, 0
      %v2800 = vsel %vm1902, %v1797, 0
      %2802 = vmatprep.subr.bf16.mxu0 0
      %2803 = vmatpush1.bf16.xpose.msra.mxu0 0
      %2804 = vmatprep.subr.bf16.mxu0 0
      %2805 = vmatpush1.bf16.xpose.msra.mxu0 0
      %2806 = vmatprep.subr.bf16.mxu0 0
      %2807 = vmatpush1.bf16.xpose.msra.mxu0 0
      %2808 = vmatprep.subr.bf16.mxu0 0
      %2809 = vmatpush1.bf16.xpose.msra.mxu0 0
      %2810 = vmatprep.subr.bf16.mxu0 0
      %2811 = vmatpush1.bf16.xpose.msra.mxu0 0
      %2812 = vmatprep.subr.bf16.mxu0 0
      %2813 = vmatpush1.bf16.xpose.msra.mxu0 0
      %2814 = vmatprep.subr.bf16.mxu0 0
      %2815 = vmatpush1.bf16.xpose.msra.mxu0 0
      %2816 = vmatprep.subr.bf16.mxu0 0
      %2817 = vmatpush1.bf16.xpose.msra.mxu0 %v2800
      %2818 = vmatprep.subr.bf16.mxu0 0
      %2819 = vmatpush2.bf16.xpose.msra.mxu0 0
      %2820 = vmatprep.subr.bf16.mxu0 0
      %2821 = vmatpush2.bf16.xpose.msra.mxu0 0
      %2822 = vmatprep.subr.bf16.mxu0 0
      %2823 = vmatpush2.bf16.xpose.msra.mxu0 0
      %2824 = vmatprep.subr.bf16.mxu0 0
      %2825 = vmatpush2.bf16.xpose.msra.mxu0 0
      %2826 = vmatprep.subr.bf16.mxu0 0
      %2827 = vmatpush2.bf16.xpose.msra.mxu0 0
      %2828 = vmatprep.subr.bf16.mxu0 0
      %2829 = vmatpush2.bf16.xpose.msra.mxu0 0
      %2830 = vmatprep.subr.bf16.mxu0 0
      %2831 = vmatpush2.bf16.xpose.msra.mxu0 0
      %2832 = vmatprep.subr.bf16.mxu0 0
      %2833 = vmatpush2.bf16.xpose.msra.mxu0 0
      %2834 = vmatprep.mubr.bf16.mxu0 0
      %2835 = vmatmul.mubr.bf16.gmra.mxu0 %v2797
      %v2836 = vpop.f32.mrf.mxu0
      %v2837 = vadd.f32 0.0, %v2836
      %v2838 = vpop.f32.mrf.mxu0
      %v2839 = vpop.f32.mrf.mxu0
      %v2840 = vadd.f32 0.0, %v2839
      %v2841 = vpop.f32.mrf.mxu0
      %2842 = vdwg.mxu0
      %v2844 = vsel %vm1902, %v1743, 0
      %v2847 = vsel %vm1902, %v1799, 0
      %2849 = vmatprep.subr.bf16.mxu0 0
      %2850 = vmatpush1.bf16.xpose.msra.mxu0 0
      %2851 = vmatprep.subr.bf16.mxu0 0
      %2852 = vmatpush1.bf16.xpose.msra.mxu0 0
      %2853 = vmatprep.subr.bf16.mxu0 0
      %2854 = vmatpush1.bf16.xpose.msra.mxu0 0
      %2855 = vmatprep.subr.bf16.mxu0 0
      %2856 = vmatpush1.bf16.xpose.msra.mxu0 0
      %2857 = vmatprep.subr.bf16.mxu0 0
      %2858 = vmatpush1.bf16.xpose.msra.mxu0 0
      %2859 = vmatprep.subr.bf16.mxu0 0
      %2860 = vmatpush1.bf16.xpose.msra.mxu0 0
      %2861 = vmatprep.subr.bf16.mxu0 0
      %2862 = vmatpush1.bf16.xpose.msra.mxu0 0
      %2863 = vmatprep.subr.bf16.mxu0 0
      %2864 = vmatpush1.bf16.xpose.msra.mxu0 %v2847
      %2865 = vmatprep.subr.bf16.mxu0 0
      %2866 = vmatpush2.bf16.xpose.msra.mxu0 0
      %2867 = vmatprep.subr.bf16.mxu0 0
      %2868 = vmatpush2.bf16.xpose.msra.mxu0 0
      %2869 = vmatprep.subr.bf16.mxu0 0
      %2870 = vmatpush2.bf16.xpose.msra.mxu0 0
      %2871 = vmatprep.subr.bf16.mxu0 0
      %2872 = vmatpush2.bf16.xpose.msra.mxu0 0
      %2873 = vmatprep.subr.bf16.mxu0 0
      %2874 = vmatpush2.bf16.xpose.msra.mxu0 0
      %2875 = vmatprep.subr.bf16.mxu0 0
      %2876 = vmatpush2.bf16.xpose.msra.mxu0 0
      %2877 = vmatprep.subr.bf16.mxu0 0
      %2878 = vmatpush2.bf16.xpose.msra.mxu0 0
      %2879 = vmatprep.subr.bf16.mxu0 0
      %2880 = vmatpush2.bf16.xpose.msra.mxu0 0
      %2881 = vmatprep.mubr.bf16.mxu0 0
      %2882 = vmatmul.mubr.bf16.gmra.mxu0 %v2844
      %v2883 = vpop.f32.mrf.mxu0
      %v2884 = vadd.f32 0.0, %v2883
      %v2885 = vpop.f32.mrf.mxu0
      %v2886 = vpop.f32.mrf.mxu0
      %v2887 = vadd.f32 0.0, %v2886
      %v2888 = vpop.f32.mrf.mxu0
      %2889 = vdwg.mxu0
      %v2891 = vsel %vm1902, %v1745, 0
      %v2894 = vsel %vm1902, %v1801, 0
      %2896 = vmatprep.subr.bf16.mxu0 0
      %2897 = vmatpush1.bf16.xpose.msra.mxu0 0
      %2898 = vmatprep.subr.bf16.mxu0 0
      %2899 = vmatpush1.bf16.xpose.msra.mxu0 0
      %2900 = vmatprep.subr.bf16.mxu0 0
      %2901 = vmatpush1.bf16.xpose.msra.mxu0 0
      %2902 = vmatprep.subr.bf16.mxu0 0
      %2903 = vmatpush1.bf16.xpose.msra.mxu0 0
      %2904 = vmatprep.subr.bf16.mxu0 0
      %2905 = vmatpush1.bf16.xpose.msra.mxu0 0
      %2906 = vmatprep.subr.bf16.mxu0 0
      %2907 = vmatpush1.bf16.xpose.msra.mxu0 0
      %2908 = vmatprep.subr.bf16.mxu0 0
      %2909 = vmatpush1.bf16.xpose.msra.mxu0 0
      %2910 = vmatprep.subr.bf16.mxu0 0
      %2911 = vmatpush1.bf16.xpose.msra.mxu0 %v2894
      %2912 = vmatprep.subr.bf16.mxu0 0
      %2913 = vmatpush2.bf16.xpose.msra.mxu0 0
      %2914 = vmatprep.subr.bf16.mxu0 0
      %2915 = vmatpush2.bf16.xpose.msra.mxu0 0
      %2916 = vmatprep.subr.bf16.mxu0 0
      %2917 = vmatpush2.bf16.xpose.msra.mxu0 0
      %2918 = vmatprep.subr.bf16.mxu0 0
      %2919 = vmatpush2.bf16.xpose.msra.mxu0 0
      %2920 = vmatprep.subr.bf16.mxu0 0
      %2921 = vmatpush2.bf16.xpose.msra.mxu0 0
      %2922 = vmatprep.subr.bf16.mxu0 0
      %2923 = vmatpush2.bf16.xpose.msra.mxu0 0
      %2924 = vmatprep.subr.bf16.mxu0 0
      %2925 = vmatpush2.bf16.xpose.msra.mxu0 0
      %2926 = vmatprep.subr.bf16.mxu0 0
      %2927 = vmatpush2.bf16.xpose.msra.mxu0 0
      %2928 = vmatprep.mubr.bf16.mxu0 0
      %2929 = vmatmul.mubr.bf16.gmra.mxu0 %v2891
      %v2930 = vpop.f32.mrf.mxu0
      %v2931 = vadd.f32 0.0, %v2930
      %v2932 = vpop.f32.mrf.mxu0
      %v2933 = vpop.f32.mrf.mxu0
      %v2934 = vadd.f32 0.0, %v2933
      %v2935 = vpop.f32.mrf.mxu0
      %2936 = vdwg.mxu0
      %v2938 = vsel %vm1902, %v1747, 0
      %v2941 = vsel %vm1902, %v1803, 0
      %2943 = vmatprep.subr.bf16.mxu0 0
      %2944 = vmatpush1.bf16.xpose.msra.mxu0 0
      %2945 = vmatprep.subr.bf16.mxu0 0
      %2946 = vmatpush1.bf16.xpose.msra.mxu0 0
      %2947 = vmatprep.subr.bf16.mxu0 0
      %2948 = vmatpush1.bf16.xpose.msra.mxu0 0
      %2949 = vmatprep.subr.bf16.mxu0 0
      %2950 = vmatpush1.bf16.xpose.msra.mxu0 0
      %2951 = vmatprep.subr.bf16.mxu0 0
      %2952 = vmatpush1.bf16.xpose.msra.mxu0 0
      %2953 = vmatprep.subr.bf16.mxu0 0
      %2954 = vmatpush1.bf16.xpose.msra.mxu0 0
      %2955 = vmatprep.subr.bf16.mxu0 0
      %2956 = vmatpush1.bf16.xpose.msra.mxu0 0
      %2957 = vmatprep.subr.bf16.mxu0 0
      %2958 = vmatpush1.bf16.xpose.msra.mxu0 %v2941
      %2959 = vmatprep.subr.bf16.mxu0 0
      %2960 = vmatpush2.bf16.xpose.msra.mxu0 0
      %2961 = vmatprep.subr.bf16.mxu0 0
      %2962 = vmatpush2.bf16.xpose.msra.mxu0 0
      %2963 = vmatprep.subr.bf16.mxu0 0
      %2964 = vmatpush2.bf16.xpose.msra.mxu0 0
      %2965 = vmatprep.subr.bf16.mxu0 0
      %2966 = vmatpush2.bf16.xpose.msra.mxu0 0
      %2967 = vmatprep.subr.bf16.mxu0 0
      %2968 = vmatpush2.bf16.xpose.msra.mxu0 0
      %2969 = vmatprep.subr.bf16.mxu0 0
      %2970 = vmatpush2.bf16.xpose.msra.mxu0 0
      %2971 = vmatprep.subr.bf16.mxu0 0
      %2972 = vmatpush2.bf16.xpose.msra.mxu0 0
      %2973 = vmatprep.subr.bf16.mxu0 0
      %2974 = vmatpush2.bf16.xpose.msra.mxu0 0
      %2975 = vmatprep.mubr.bf16.mxu0 0
      %2976 = vmatmul.mubr.bf16.gmra.mxu0 %v2938
      %v2977 = vpop.f32.mrf.mxu0
      %v2978 = vadd.f32 0.0, %v2977
      %v2979 = vpop.f32.mrf.mxu0
      %v2980 = vpop.f32.mrf.mxu0
      %v2981 = vadd.f32 0.0, %v2980
      %v2982 = vpop.f32.mrf.mxu0
      %2983 = vdwg.mxu0
      %v2985 = vsel %vm1902, %v1749, 0
      %v2988 = vsel %vm1902, %v1805, 0
      %2990 = vmatprep.subr.bf16.mxu0 0
      %2991 = vmatpush1.bf16.xpose.msra.mxu0 0
      %2992 = vmatprep.subr.bf16.mxu0 0
      %2993 = vmatpush1.bf16.xpose.msra.mxu0 0
      %2994 = vmatprep.subr.bf16.mxu0 0
      %2995 = vmatpush1.bf16.xpose.msra.mxu0 0
      %2996 = vmatprep.subr.bf16.mxu0 0
      %2997 = vmatpush1.bf16.xpose.msra.mxu0 0
      %2998 = vmatprep.subr.bf16.mxu0 0
      %2999 = vmatpush1.bf16.xpose.msra.mxu0 0
      %3000 = vmatprep.subr.bf16.mxu0 0
      %3001 = vmatpush1.bf16.xpose.msra.mxu0 0
      %3002 = vmatprep.subr.bf16.mxu0 0
      %3003 = vmatpush1.bf16.xpose.msra.mxu0 0
      %3004 = vmatprep.subr.bf16.mxu0 0
      %3005 = vmatpush1.bf16.xpose.msra.mxu0 %v2988
      %3006 = vmatprep.subr.bf16.mxu0 0
      %3007 = vmatpush2.bf16.xpose.msra.mxu0 0
      %3008 = vmatprep.subr.bf16.mxu0 0
      %3009 = vmatpush2.bf16.xpose.msra.mxu0 0
      %3010 = vmatprep.subr.bf16.mxu0 0
      %3011 = vmatpush2.bf16.xpose.msra.mxu0 0
      %3012 = vmatprep.subr.bf16.mxu0 0
      %3013 = vmatpush2.bf16.xpose.msra.mxu0 0
      %3014 = vmatprep.subr.bf16.mxu0 0
      %3015 = vmatpush2.bf16.xpose.msra.mxu0 0
      %3016 = vmatprep.subr.bf16.mxu0 0
      %3017 = vmatpush2.bf16.xpose.msra.mxu0 0
      %3018 = vmatprep.subr.bf16.mxu0 0
      %3019 = vmatpush2.bf16.xpose.msra.mxu0 0
      %3020 = vmatprep.subr.bf16.mxu0 0
      %3021 = vmatpush2.bf16.xpose.msra.mxu0 0
      %3022 = vmatprep.mubr.bf16.mxu0 0
      %3023 = vmatmul.mubr.bf16.gmra.mxu0 %v2985
      %v3024 = vpop.f32.mrf.mxu0
      %v3025 = vadd.f32 0.0, %v3024
      %v3026 = vpop.f32.mrf.mxu0
      %v3027 = vpop.f32.mrf.mxu0
      %v3028 = vadd.f32 0.0, %v3027
      %v3029 = vpop.f32.mrf.mxu0
      %3030 = vdwg.mxu0
      %v3032 = vsel %vm1902, %v1751, 0
      %v3035 = vsel %vm1902, %v1807, 0
      %3037 = vmatprep.subr.bf16.mxu0 0
      %3038 = vmatpush1.bf16.xpose.msra.mxu0 0
      %3039 = vmatprep.subr.bf16.mxu0 0
      %3040 = vmatpush1.bf16.xpose.msra.mxu0 0
      %3041 = vmatprep.subr.bf16.mxu0 0
      %3042 = vmatpush1.bf16.xpose.msra.mxu0 0
      %3043 = vmatprep.subr.bf16.mxu0 0
      %3044 = vmatpush1.bf16.xpose.msra.mxu0 0
      %3045 = vmatprep.subr.bf16.mxu0 0
      %3046 = vmatpush1.bf16.xpose.msra.mxu0 0
      %3047 = vmatprep.subr.bf16.mxu0 0
      %3048 = vmatpush1.bf16.xpose.msra.mxu0 0
      %3049 = vmatprep.subr.bf16.mxu0 0
      %3050 = vmatpush1.bf16.xpose.msra.mxu0 0
      %3051 = vmatprep.subr.bf16.mxu0 0
      %3052 = vmatpush1.bf16.xpose.msra.mxu0 %v3035
      %3053 = vmatprep.subr.bf16.mxu0 0
      %3054 = vmatpush2.bf16.xpose.msra.mxu0 0
      %3055 = vmatprep.subr.bf16.mxu0 0
      %3056 = vmatpush2.bf16.xpose.msra.mxu0 0
      %3057 = vmatprep.subr.bf16.mxu0 0
      %3058 = vmatpush2.bf16.xpose.msra.mxu0 0
      %3059 = vmatprep.subr.bf16.mxu0 0
      %3060 = vmatpush2.bf16.xpose.msra.mxu0 0
      %3061 = vmatprep.subr.bf16.mxu0 0
      %3062 = vmatpush2.bf16.xpose.msra.mxu0 0
      %3063 = vmatprep.subr.bf16.mxu0 0
      %3064 = vmatpush2.bf16.xpose.msra.mxu0 0
      %3065 = vmatprep.subr.bf16.mxu0 0
      %3066 = vmatpush2.bf16.xpose.msra.mxu0 0
      %3067 = vmatprep.subr.bf16.mxu0 0
      %3068 = vmatpush2.bf16.xpose.msra.mxu0 0
      %3069 = vmatprep.mubr.bf16.mxu0 0
      %3070 = vmatmul.mubr.bf16.gmra.mxu0 %v3032
      %v3071 = vpop.f32.mrf.mxu0
      %v3072 = vadd.f32 0.0, %v3071
      %v3073 = vpop.f32.mrf.mxu0
      %v3074 = vpop.f32.mrf.mxu0
      %v3075 = vadd.f32 0.0, %v3074
      %v3076 = vpop.f32.mrf.mxu0
      %3077 = vdwg.mxu0
      %v3079 = vsel %vm1902, %v1753, 0
      %v3082 = vsel %vm1902, %v1809, 0
      %3084 = vmatprep.subr.bf16.mxu0 0
      %3085 = vmatpush1.bf16.xpose.msra.mxu0 0
      %3086 = vmatprep.subr.bf16.mxu0 0
      %3087 = vmatpush1.bf16.xpose.msra.mxu0 0
      %3088 = vmatprep.subr.bf16.mxu0 0
      %3089 = vmatpush1.bf16.xpose.msra.mxu0 0
      %3090 = vmatprep.subr.bf16.mxu0 0
      %3091 = vmatpush1.bf16.xpose.msra.mxu0 0
      %3092 = vmatprep.subr.bf16.mxu0 0
      %3093 = vmatpush1.bf16.xpose.msra.mxu0 0
      %3094 = vmatprep.subr.bf16.mxu0 0
      %3095 = vmatpush1.bf16.xpose.msra.mxu0 0
      %3096 = vmatprep.subr.bf16.mxu0 0
      %3097 = vmatpush1.bf16.xpose.msra.mxu0 0
      %3098 = vmatprep.subr.bf16.mxu0 0
      %3099 = vmatpush1.bf16.xpose.msra.mxu0 %v3082
      %3100 = vmatprep.subr.bf16.mxu0 0
      %3101 = vmatpush2.bf16.xpose.msra.mxu0 0
      %3102 = vmatprep.subr.bf16.mxu0 0
      %3103 = vmatpush2.bf16.xpose.msra.mxu0 0
      %3104 = vmatprep.subr.bf16.mxu0 0
      %3105 = vmatpush2.bf16.xpose.msra.mxu0 0
      %3106 = vmatprep.subr.bf16.mxu0 0
      %3107 = vmatpush2.bf16.xpose.msra.mxu0 0
      %3108 = vmatprep.subr.bf16.mxu0 0
      %3109 = vmatpush2.bf16.xpose.msra.mxu0 0
      %3110 = vmatprep.subr.bf16.mxu0 0
      %3111 = vmatpush2.bf16.xpose.msra.mxu0 0
      %3112 = vmatprep.subr.bf16.mxu0 0
      %3113 = vmatpush2.bf16.xpose.msra.mxu0 0
      %3114 = vmatprep.subr.bf16.mxu0 0
      %3115 = vmatpush2.bf16.xpose.msra.mxu0 0
      %3116 = vmatprep.mubr.bf16.mxu0 0
      %3117 = vmatmul.mubr.bf16.gmra.mxu0 %v3079
      %v3118 = vpop.f32.mrf.mxu0
      %v3119 = vadd.f32 0.0, %v3118
      %v3120 = vpop.f32.mrf.mxu0
      %v3121 = vpop.f32.mrf.mxu0
      %v3122 = vadd.f32 0.0, %v3121
      %v3123 = vpop.f32.mrf.mxu0
      %3124 = vdwg.mxu0
      %v3126 = vsel %vm1902, %v1755, 0
      %v3129 = vsel %vm1902, %v1811, 0
      %3131 = vmatprep.subr.bf16.mxu0 0
      %3132 = vmatpush1.bf16.xpose.msra.mxu0 0
      %3133 = vmatprep.subr.bf16.mxu0 0
      %3134 = vmatpush1.bf16.xpose.msra.mxu0 0
      %3135 = vmatprep.subr.bf16.mxu0 0
      %3136 = vmatpush1.bf16.xpose.msra.mxu0 0
      %3137 = vmatprep.subr.bf16.mxu0 0
      %3138 = vmatpush1.bf16.xpose.msra.mxu0 0
      %3139 = vmatprep.subr.bf16.mxu0 0
      %3140 = vmatpush1.bf16.xpose.msra.mxu0 0
      %3141 = vmatprep.subr.bf16.mxu0 0
      %3142 = vmatpush1.bf16.xpose.msra.mxu0 0
      %3143 = vmatprep.subr.bf16.mxu0 0
      %3144 = vmatpush1.bf16.xpose.msra.mxu0 0
      %3145 = vmatprep.subr.bf16.mxu0 0
      %3146 = vmatpush1.bf16.xpose.msra.mxu0 %v3129
      %3147 = vmatprep.subr.bf16.mxu0 0
      %3148 = vmatpush2.bf16.xpose.msra.mxu0 0
      %3149 = vmatprep.subr.bf16.mxu0 0
      %3150 = vmatpush2.bf16.xpose.msra.mxu0 0
      %3151 = vmatprep.subr.bf16.mxu0 0
      %3152 = vmatpush2.bf16.xpose.msra.mxu0 0
      %3153 = vmatprep.subr.bf16.mxu0 0
      %3154 = vmatpush2.bf16.xpose.msra.mxu0 0
      %3155 = vmatprep.subr.bf16.mxu0 0
      %3156 = vmatpush2.bf16.xpose.msra.mxu0 0
      %3157 = vmatprep.subr.bf16.mxu0 0
      %3158 = vmatpush2.bf16.xpose.msra.mxu0 0
      %3159 = vmatprep.subr.bf16.mxu0 0
      %3160 = vmatpush2.bf16.xpose.msra.mxu0 0
      %3161 = vmatprep.subr.bf16.mxu0 0
      %3162 = vmatpush2.bf16.xpose.msra.mxu0 0
      %3163 = vmatprep.mubr.bf16.mxu0 0
      %3164 = vmatmul.mubr.bf16.gmra.mxu0 %v3126
      %v3165 = vpop.f32.mrf.mxu0
      %v3166 = vadd.f32 0.0, %v3165
      %v3167 = vpop.f32.mrf.mxu0
      %v3168 = vpop.f32.mrf.mxu0
      %v3169 = vadd.f32 0.0, %v3168
      %v3170 = vpop.f32.mrf.mxu0
      %3171 = vdwg.mxu0
      %v3173 = vsel %vm1902, %v1757, 0
      %v3176 = vsel %vm1902, %v1813, 0
      %3178 = vmatprep.subr.bf16.mxu0 0
      %3179 = vmatpush1.bf16.xpose.msra.mxu0 0
      %3180 = vmatprep.subr.bf16.mxu0 0
      %3181 = vmatpush1.bf16.xpose.msra.mxu0 0
      %3182 = vmatprep.subr.bf16.mxu0 0
      %3183 = vmatpush1.bf16.xpose.msra.mxu0 0
      %3184 = vmatprep.subr.bf16.mxu0 0
      %3185 = vmatpush1.bf16.xpose.msra.mxu0 0
      %3186 = vmatprep.subr.bf16.mxu0 0
      %3187 = vmatpush1.bf16.xpose.msra.mxu0 0
      %3188 = vmatprep.subr.bf16.mxu0 0
      %3189 = vmatpush1.bf16.xpose.msra.mxu0 0
      %3190 = vmatprep.subr.bf16.mxu0 0
      %3191 = vmatpush1.bf16.xpose.msra.mxu0 0
      %3192 = vmatprep.subr.bf16.mxu0 0
      %3193 = vmatpush1.bf16.xpose.msra.mxu0 %v3176
      %3194 = vmatprep.subr.bf16.mxu0 0
      %3195 = vmatpush2.bf16.xpose.msra.mxu0 0
      %3196 = vmatprep.subr.bf16.mxu0 0
      %3197 = vmatpush2.bf16.xpose.msra.mxu0 0
      %3198 = vmatprep.subr.bf16.mxu0 0
      %3199 = vmatpush2.bf16.xpose.msra.mxu0 0
      %3200 = vmatprep.subr.bf16.mxu0 0
      %3201 = vmatpush2.bf16.xpose.msra.mxu0 0
      %3202 = vmatprep.subr.bf16.mxu0 0
      %3203 = vmatpush2.bf16.xpose.msra.mxu0 0
      %3204 = vmatprep.subr.bf16.mxu0 0
      %3205 = vmatpush2.bf16.xpose.msra.mxu0 0
      %3206 = vmatprep.subr.bf16.mxu0 0
      %3207 = vmatpush2.bf16.xpose.msra.mxu0 0
      %3208 = vmatprep.subr.bf16.mxu0 0
      %3209 = vmatpush2.bf16.xpose.msra.mxu0 0
      %3210 = vmatprep.mubr.bf16.mxu0 0
      %3211 = vmatmul.mubr.bf16.gmra.mxu0 %v3173
      %v3212 = vpop.f32.mrf.mxu0
      %v3213 = vadd.f32 0.0, %v3212
      %v3214 = vpop.f32.mrf.mxu0
      %v3215 = vpop.f32.mrf.mxu0
      %v3216 = vadd.f32 0.0, %v3215
      %v3217 = vpop.f32.mrf.mxu0
      %3218 = vdwg.mxu0
      %v3220 = vsel %vm1902, %v1759, 0
      %v3223 = vsel %vm1902, %v1815, 0
      %3225 = vmatprep.subr.bf16.mxu0 0
      %3226 = vmatpush1.bf16.xpose.msra.mxu0 0
      %3227 = vmatprep.subr.bf16.mxu0 0
      %3228 = vmatpush1.bf16.xpose.msra.mxu0 0
      %3229 = vmatprep.subr.bf16.mxu0 0
      %3230 = vmatpush1.bf16.xpose.msra.mxu0 0
      %3231 = vmatprep.subr.bf16.mxu0 0
      %3232 = vmatpush1.bf16.xpose.msra.mxu0 0
      %3233 = vmatprep.subr.bf16.mxu0 0
      %3234 = vmatpush1.bf16.xpose.msra.mxu0 0
      %3235 = vmatprep.subr.bf16.mxu0 0
      %3236 = vmatpush1.bf16.xpose.msra.mxu0 0
      %3237 = vmatprep.subr.bf16.mxu0 0
      %3238 = vmatpush1.bf16.xpose.msra.mxu0 0
      %3239 = vmatprep.subr.bf16.mxu0 0
      %3240 = vmatpush1.bf16.xpose.msra.mxu0 %v3223
      %3241 = vmatprep.subr.bf16.mxu0 0
      %3242 = vmatpush2.bf16.xpose.msra.mxu0 0
      %3243 = vmatprep.subr.bf16.mxu0 0
      %3244 = vmatpush2.bf16.xpose.msra.mxu0 0
      %3245 = vmatprep.subr.bf16.mxu0 0
      %3246 = vmatpush2.bf16.xpose.msra.mxu0 0
      %3247 = vmatprep.subr.bf16.mxu0 0
      %3248 = vmatpush2.bf16.xpose.msra.mxu0 0
      %3249 = vmatprep.subr.bf16.mxu0 0
      %3250 = vmatpush2.bf16.xpose.msra.mxu0 0
      %3251 = vmatprep.subr.bf16.mxu0 0
      %3252 = vmatpush2.bf16.xpose.msra.mxu0 0
      %3253 = vmatprep.subr.bf16.mxu0 0
      %3254 = vmatpush2.bf16.xpose.msra.mxu0 0
      %3255 = vmatprep.subr.bf16.mxu0 0
      %3256 = vmatpush2.bf16.xpose.msra.mxu0 0
      %3257 = vmatprep.mubr.bf16.mxu0 0
      %3258 = vmatmul.mubr.bf16.gmra.mxu0 %v3220
      %v3259 = vpop.f32.mrf.mxu0
      %v3260 = vadd.f32 0.0, %v3259
      %v3261 = vpop.f32.mrf.mxu0
      %v3262 = vpop.f32.mrf.mxu0
      %v3263 = vadd.f32 0.0, %v3262
      %v3264 = vpop.f32.mrf.mxu0
      %3265 = vdwg.mxu0
      %v3267 = vsel %vm1902, %v1761, 0
      %v3270 = vsel %vm1902, %v1817, 0
      %3272 = vmatprep.subr.bf16.mxu0 0
      %3273 = vmatpush1.bf16.xpose.msra.mxu0 0
      %3274 = vmatprep.subr.bf16.mxu0 0
      %3275 = vmatpush1.bf16.xpose.msra.mxu0 0
      %3276 = vmatprep.subr.bf16.mxu0 0
      %3277 = vmatpush1.bf16.xpose.msra.mxu0 0
      %3278 = vmatprep.subr.bf16.mxu0 0
      %3279 = vmatpush1.bf16.xpose.msra.mxu0 0
      %3280 = vmatprep.subr.bf16.mxu0 0
      %3281 = vmatpush1.bf16.xpose.msra.mxu0 0
      %3282 = vmatprep.subr.bf16.mxu0 0
      %3283 = vmatpush1.bf16.xpose.msra.mxu0 0
      %3284 = vmatprep.subr.bf16.mxu0 0
      %3285 = vmatpush1.bf16.xpose.msra.mxu0 0
      %3286 = vmatprep.subr.bf16.mxu0 0
      %3287 = vmatpush1.bf16.xpose.msra.mxu0 %v3270
      %3288 = vmatprep.subr.bf16.mxu0 0
      %3289 = vmatpush2.bf16.xpose.msra.mxu0 0
      %3290 = vmatprep.subr.bf16.mxu0 0
      %3291 = vmatpush2.bf16.xpose.msra.mxu0 0
      %3292 = vmatprep.subr.bf16.mxu0 0
      %3293 = vmatpush2.bf16.xpose.msra.mxu0 0
      %3294 = vmatprep.subr.bf16.mxu0 0
      %3295 = vmatpush2.bf16.xpose.msra.mxu0 0
      %3296 = vmatprep.subr.bf16.mxu0 0
      %3297 = vmatpush2.bf16.xpose.msra.mxu0 0
      %3298 = vmatprep.subr.bf16.mxu0 0
      %3299 = vmatpush2.bf16.xpose.msra.mxu0 0
      %3300 = vmatprep.subr.bf16.mxu0 0
      %3301 = vmatpush2.bf16.xpose.msra.mxu0 0
      %3302 = vmatprep.subr.bf16.mxu0 0
      %3303 = vmatpush2.bf16.xpose.msra.mxu0 0
      %3304 = vmatprep.mubr.bf16.mxu0 0
      %3305 = vmatmul.mubr.bf16.gmra.mxu0 %v3267
      %v3306 = vpop.f32.mrf.mxu0
      %v3307 = vadd.f32 0.0, %v3306
      %v3308 = vpop.f32.mrf.mxu0
      %v3309 = vpop.f32.mrf.mxu0
      %v3310 = vadd.f32 0.0, %v3309
      %v3311 = vpop.f32.mrf.mxu0
      %3312 = vdwg.mxu0
      %v3314 = vsel %vm1902, %v1763, 0
      %v3317 = vsel %vm1902, %v1819, 0
      %3319 = vmatprep.subr.bf16.mxu0 0
      %3320 = vmatpush1.bf16.xpose.msra.mxu0 0
      %3321 = vmatprep.subr.bf16.mxu0 0
      %3322 = vmatpush1.bf16.xpose.msra.mxu0 0
      %3323 = vmatprep.subr.bf16.mxu0 0
      %3324 = vmatpush1.bf16.xpose.msra.mxu0 0
      %3325 = vmatprep.subr.bf16.mxu0 0
      %3326 = vmatpush1.bf16.xpose.msra.mxu0 0
      %3327 = vmatprep.subr.bf16.mxu0 0
      %3328 = vmatpush1.bf16.xpose.msra.mxu0 0
      %3329 = vmatprep.subr.bf16.mxu0 0
      %3330 = vmatpush1.bf16.xpose.msra.mxu0 0
      %3331 = vmatprep.subr.bf16.mxu0 0
      %3332 = vmatpush1.bf16.xpose.msra.mxu0 0
      %3333 = vmatprep.subr.bf16.mxu0 0
      %3334 = vmatpush1.bf16.xpose.msra.mxu0 %v3317
      %3335 = vmatprep.subr.bf16.mxu0 0
      %3336 = vmatpush2.bf16.xpose.msra.mxu0 0
      %3337 = vmatprep.subr.bf16.mxu0 0
      %3338 = vmatpush2.bf16.xpose.msra.mxu0 0
      %3339 = vmatprep.subr.bf16.mxu0 0
      %3340 = vmatpush2.bf16.xpose.msra.mxu0 0
      %3341 = vmatprep.subr.bf16.mxu0 0
      %3342 = vmatpush2.bf16.xpose.msra.mxu0 0
      %3343 = vmatprep.subr.bf16.mxu0 0
      %3344 = vmatpush2.bf16.xpose.msra.mxu0 0
      %3345 = vmatprep.subr.bf16.mxu0 0
      %3346 = vmatpush2.bf16.xpose.msra.mxu0 0
      %3347 = vmatprep.subr.bf16.mxu0 0
      %3348 = vmatpush2.bf16.xpose.msra.mxu0 0
      %3349 = vmatprep.subr.bf16.mxu0 0
      %3350 = vmatpush2.bf16.xpose.msra.mxu0 0
      %3351 = vmatprep.mubr.bf16.mxu0 0
      %3352 = vmatmul.mubr.bf16.gmra.mxu0 %v3314
      %v3353 = vpop.f32.mrf.mxu0
      %v3354 = vadd.f32 0.0, %v3353
      %v3355 = vpop.f32.mrf.mxu0
      %v3356 = vpop.f32.mrf.mxu0
      %v3357 = vadd.f32 0.0, %v3356
      %v3358 = vpop.f32.mrf.mxu0
      %3359 = vdwg.mxu0
      %v3361 = vsel %vm1902, %v1765, 0
      %v3364 = vsel %vm1902, %v1821, 0
      %3366 = vmatprep.subr.bf16.mxu0 0
      %3367 = vmatpush1.bf16.xpose.msra.mxu0 0
      %3368 = vmatprep.subr.bf16.mxu0 0
      %3369 = vmatpush1.bf16.xpose.msra.mxu0 0
      %3370 = vmatprep.subr.bf16.mxu0 0
      %3371 = vmatpush1.bf16.xpose.msra.mxu0 0
      %3372 = vmatprep.subr.bf16.mxu0 0
      %3373 = vmatpush1.bf16.xpose.msra.mxu0 0
      %3374 = vmatprep.subr.bf16.mxu0 0
      %3375 = vmatpush1.bf16.xpose.msra.mxu0 0
      %3376 = vmatprep.subr.bf16.mxu0 0
      %3377 = vmatpush1.bf16.xpose.msra.mxu0 0
      %3378 = vmatprep.subr.bf16.mxu0 0
      %3379 = vmatpush1.bf16.xpose.msra.mxu0 0
      %3380 = vmatprep.subr.bf16.mxu0 0
      %3381 = vmatpush1.bf16.xpose.msra.mxu0 %v3364
      %3382 = vmatprep.subr.bf16.mxu0 0
      %3383 = vmatpush2.bf16.xpose.msra.mxu0 0
      %3384 = vmatprep.subr.bf16.mxu0 0
      %3385 = vmatpush2.bf16.xpose.msra.mxu0 0
      %3386 = vmatprep.subr.bf16.mxu0 0
      %3387 = vmatpush2.bf16.xpose.msra.mxu0 0
      %3388 = vmatprep.subr.bf16.mxu0 0
      %3389 = vmatpush2.bf16.xpose.msra.mxu0 0
      %3390 = vmatprep.subr.bf16.mxu0 0
      %3391 = vmatpush2.bf16.xpose.msra.mxu0 0
      %3392 = vmatprep.subr.bf16.mxu0 0
      %3393 = vmatpush2.bf16.xpose.msra.mxu0 0
      %3394 = vmatprep.subr.bf16.mxu0 0
      %3395 = vmatpush2.bf16.xpose.msra.mxu0 0
      %3396 = vmatprep.subr.bf16.mxu0 0
      %3397 = vmatpush2.bf16.xpose.msra.mxu0 0
      %3398 = vmatprep.mubr.bf16.mxu0 0
      %3399 = vmatmul.mubr.bf16.gmra.mxu0 %v3361
      %v3400 = vpop.f32.mrf.mxu0
      %v3401 = vadd.f32 0.0, %v3400
      %v3402 = vpop.f32.mrf.mxu0
      %v3403 = vpop.f32.mrf.mxu0
      %v3404 = vadd.f32 0.0, %v3403
      %v3405 = vpop.f32.mrf.mxu0
      %3406 = vdwg.mxu0
      %v3407 = vld [vmem:[%s761] sm:$0x1]
      %v3408 = vld [vmem:[%s761 + $0x1] sm:$0x1]
      %v3409 = vld [vmem:[%s761 + $0x2] sm:$0x1]
      %v3410 = vld [vmem:[%s761 + $0x3] sm:$0x1]
      %v3411 = vld [vmem:[%s761 + $0x4] sm:$0x1]
      %v3412 = vld [vmem:[%s761 + $0x5] sm:$0x1]
      %v3413 = vld [vmem:[%s761 + $0x6] sm:$0x1]
      %v3414 = vld [vmem:[%s761 + $0x7] sm:$0x1]
      %v3415 = vmul.f32 %v1944, 0.17677669
      %v3416 = vmul.f32 %v1947, 0.17677669
      %v3417 = vmul.f32 %v1991, 0.17677669
      %v3418 = vmul.f32 %v1994, 0.17677669
      %v3419 = vmul.f32 %v2038, 0.17677669
      %v3420 = vmul.f32 %v2041, 0.17677669
      %v3421 = vmul.f32 %v2085, 0.17677669
      %v3422 = vmul.f32 %v2088, 0.17677669
      %v3423 = vmul.f32 %v2132, 0.17677669
      %v3424 = vmul.f32 %v2135, 0.17677669
      %v3425 = vmul.f32 %v2179, 0.17677669
      %v3426 = vmul.f32 %v2182, 0.17677669
      %v3427 = vmul.f32 %v2226, 0.17677669
      %v3428 = vmul.f32 %v2229, 0.17677669
      %v3429 = vmul.f32 %v2273, 0.17677669
      %v3430 = vmul.f32 %v2276, 0.17677669
      %v3431 = vmul.f32 %v2320, 0.17677669
      %v3432 = vmul.f32 %v2323, 0.17677669
      %v3433 = vmul.f32 %v2367, 0.17677669
      %v3434 = vmul.f32 %v2370, 0.17677669
      %v3435 = vmul.f32 %v2414, 0.17677669
      %v3436 = vmul.f32 %v2417, 0.17677669
      %v3437 = vmul.f32 %v2461, 0.17677669
      %v3438 = vmul.f32 %v2464, 0.17677669
      %v3439 = vmul.f32 %v2508, 0.17677669
      %v3440 = vmul.f32 %v2511, 0.17677669
      %v3441 = vmul.f32 %v2555, 0.17677669
      %v3442 = vmul.f32 %v2558, 0.17677669
      %v3443 = vmul.f32 %v2602, 0.17677669
      %v3444 = vmul.f32 %v2605, 0.17677669
      %v3445 = vmul.f32 %v2649, 0.17677669
      %v3446 = vmul.f32 %v2652, 0.17677669
      %v3447 = vmul.f32 %v2696, 0.17677669
      %v3448 = vmul.f32 %v2699, 0.17677669
      %v3449 = vmul.f32 %v2743, 0.17677669
      %v3450 = vmul.f32 %v2746, 0.17677669
      %v3451 = vmul.f32 %v2790, 0.17677669
      %v3452 = vmul.f32 %v2793, 0.17677669
      %v3453 = vmul.f32 %v2837, 0.17677669
      %v3454 = vmul.f32 %v2840, 0.17677669
      %v3455 = vmul.f32 %v2884, 0.17677669
      %v3456 = vmul.f32 %v2887, 0.17677669
      %v3457 = vmul.f32 %v2931, 0.17677669
      %v3458 = vmul.f32 %v2934, 0.17677669
      %v3459 = vmul.f32 %v2978, 0.17677669
      %v3460 = vmul.f32 %v2981, 0.17677669
      %v3461 = vmul.f32 %v3025, 0.17677669
      %v3462 = vmul.f32 %v3028, 0.17677669
      %v3463 = vmul.f32 %v3072, 0.17677669
      %v3464 = vmul.f32 %v3075, 0.17677669
      %v3465 = vmul.f32 %v3119, 0.17677669
      %v3466 = vmul.f32 %v3122, 0.17677669
      %v3467 = vmul.f32 %v3166, 0.17677669
      %v3468 = vmul.f32 %v3169, 0.17677669
      %v3469 = vmul.f32 %v3213, 0.17677669
      %v3470 = vmul.f32 %v3216, 0.17677669
      %v3471 = vmul.f32 %v3260, 0.17677669
      %v3472 = vmul.f32 %v3263, 0.17677669
      %v3473 = vmul.f32 %v3307, 0.17677669
      %v3474 = vmul.f32 %v3310, 0.17677669
      %v3475 = vmul.f32 %v3354, 0.17677669
      %v3476 = vmul.f32 %v3357, 0.17677669
      %v3477 = vmul.f32 %v3401, 0.17677669
      %v3478 = vmul.f32 %v3404, 0.17677669
      %v3487 = vlaneseq
      %v3488 = vshrl.u32 %v3487, 7
      %v3489 = vsub.s32 0, %v3488
      %v3490 = vrot.slane %v3407, %v3489
      %v3491 = vlaneseq
      %v3492 = vshrl.u32 %v3491, 7
      %v3493 = vsub.s32 0, %v3492
      %v3494 = vrot.slane %v3408, %v3493
      %v3495 = vlaneseq
      %v3496 = vshrl.u32 %v3495, 7
      %v3497 = vsub.s32 0, %v3496
      %v3498 = vrot.slane %v3409, %v3497
      %v3499 = vlaneseq
      %v3500 = vshrl.u32 %v3499, 7
      %v3501 = vsub.s32 0, %v3500
      %v3502 = vrot.slane %v3410, %v3501
      %v3503 = vlaneseq
      %v3504 = vshrl.u32 %v3503, 7
      %v3505 = vsub.s32 0, %v3504
      %v3506 = vrot.slane %v3411, %v3505
      %v3507 = vlaneseq
      %v3508 = vshrl.u32 %v3507, 7
      %v3509 = vsub.s32 0, %v3508
      %v3510 = vrot.slane %v3412, %v3509
      %v3511 = vlaneseq
      %v3512 = vshrl.u32 %v3511, 7
      %v3513 = vsub.s32 0, %v3512
      %v3514 = vrot.slane %v3413, %v3513
      %v3515 = vlaneseq
      %v3516 = vshrl.u32 %v3515, 7
      %v3517 = vsub.s32 0, %v3516
      %v3518 = vrot.slane %v3414, %v3517
      %v3527 = vadd.f32 %v3415, %v3490
      %v3528 = vadd.f32 %v3416, %v3490
      %v3529 = vadd.f32 %v3417, %v3494
      %v3530 = vadd.f32 %v3418, %v3494
      %v3531 = vadd.f32 %v3419, %v3498
      %v3532 = vadd.f32 %v3420, %v3498
      %v3533 = vadd.f32 %v3421, %v3502
      %v3534 = vadd.f32 %v3422, %v3502
      %v3535 = vadd.f32 %v3423, %v3506
      %v3536 = vadd.f32 %v3424, %v3506
      %v3537 = vadd.f32 %v3425, %v3510
      %v3538 = vadd.f32 %v3426, %v3510
      %v3539 = vadd.f32 %v3427, %v3514
      %v3540 = vadd.f32 %v3428, %v3514
      %v3541 = vadd.f32 %v3429, %v3518
      %v3542 = vadd.f32 %v3430, %v3518
      %v3543 = vadd.f32 %v3431, %v3490
      %v3544 = vadd.f32 %v3432, %v3490
      %v3545 = vadd.f32 %v3433, %v3494
      %v3546 = vadd.f32 %v3434, %v3494
      %v3547 = vadd.f32 %v3435, %v3498
      %v3548 = vadd.f32 %v3436, %v3498
      %v3549 = vadd.f32 %v3437, %v3502
      %v3550 = vadd.f32 %v3438, %v3502
      %v3551 = vadd.f32 %v3439, %v3506
      %v3552 = vadd.f32 %v3440, %v3506
      %v3553 = vadd.f32 %v3441, %v3510
      %v3554 = vadd.f32 %v3442, %v3510
      %v3555 = vadd.f32 %v3443, %v3514
      %v3556 = vadd.f32 %v3444, %v3514
      %v3557 = vadd.f32 %v3445, %v3518
      %v3558 = vadd.f32 %v3446, %v3518
      %v3559 = vadd.f32 %v3447, %v3490
      %v3560 = vadd.f32 %v3448, %v3490
      %v3561 = vadd.f32 %v3449, %v3494
      %v3562 = vadd.f32 %v3450, %v3494
      %v3563 = vadd.f32 %v3451, %v3498
      %v3564 = vadd.f32 %v3452, %v3498
      %v3565 = vadd.f32 %v3453, %v3502
      %v3566 = vadd.f32 %v3454, %v3502
      %v3567 = vadd.f32 %v3455, %v3506
      %v3568 = vadd.f32 %v3456, %v3506
      %v3569 = vadd.f32 %v3457, %v3510
      %v3570 = vadd.f32 %v3458, %v3510
      %v3571 = vadd.f32 %v3459, %v3514
      %v3572 = vadd.f32 %v3460, %v3514
      %v3573 = vadd.f32 %v3461, %v3518
      %v3574 = vadd.f32 %v3462, %v3518
      %v3575 = vadd.f32 %v3463, %v3490
      %v3576 = vadd.f32 %v3464, %v3490
      %v3577 = vadd.f32 %v3465, %v3494
      %v3578 = vadd.f32 %v3466, %v3494
      %v3579 = vadd.f32 %v3467, %v3498
      %v3580 = vadd.f32 %v3468, %v3498
      %v3581 = vadd.f32 %v3469, %v3502
      %v3582 = vadd.f32 %v3470, %v3502
      %v3583 = vadd.f32 %v3471, %v3506
      %v3584 = vadd.f32 %v3472, %v3506
      %v3585 = vadd.f32 %v3473, %v3510
      %v3586 = vadd.f32 %v3474, %v3510
      %v3587 = vadd.f32 %v3475, %v3514
      %v3588 = vadd.f32 %v3476, %v3514
      %v3589 = vadd.f32 %v3477, %v3518
      %v3590 = vadd.f32 %v3478, %v3518
      %vm3591 = vcmask 130048
      %v3592 = vsel %vm3591, %v3527, -inf
      %3593 = vmax.xlane.f32.xlu0 %v3592
      %v3594 = vpop.xlane.xlu0 %3593
      %v3595 = vsel %vm3591, %v3528, -inf
      %3596 = vmax.xlane.f32.xlu0 %v3595
      %v3597 = vpop.xlane.xlu0 %3596
      %v3598 = vsel %vm3591, %v3529, -inf
      %3599 = vmax.xlane.f32.xlu0 %v3598
      %v3600 = vpop.xlane.xlu0 %3599
      %v3601 = vsel %vm3591, %v3530, -inf
      %3602 = vmax.xlane.f32.xlu0 %v3601
      %v3603 = vpop.xlane.xlu0 %3602
      %v3604 = vsel %vm3591, %v3531, -inf
      %3605 = vmax.xlane.f32.xlu0 %v3604
      %v3606 = vpop.xlane.xlu0 %3605
      %v3607 = vsel %vm3591, %v3532, -inf
      %3608 = vmax.xlane.f32.xlu0 %v3607
      %v3609 = vpop.xlane.xlu0 %3608
      %v3610 = vsel %vm3591, %v3533, -inf
      %3611 = vmax.xlane.f32.xlu0 %v3610
      %v3612 = vpop.xlane.xlu0 %3611
      %v3613 = vsel %vm3591, %v3534, -inf
      %3614 = vmax.xlane.f32.xlu0 %v3613
      %v3615 = vpop.xlane.xlu0 %3614
      %v3616 = vsel %vm3591, %v3535, -inf
      %3617 = vmax.xlane.f32.xlu0 %v3616
      %v3618 = vpop.xlane.xlu0 %3617
      %v3619 = vsel %vm3591, %v3536, -inf
      %3620 = vmax.xlane.f32.xlu0 %v3619
      %v3621 = vpop.xlane.xlu0 %3620
      %v3622 = vsel %vm3591, %v3537, -inf
      %3623 = vmax.xlane.f32.xlu0 %v3622
      %v3624 = vpop.xlane.xlu0 %3623
      %v3625 = vsel %vm3591, %v3538, -inf
      %3626 = vmax.xlane.f32.xlu0 %v3625
      %v3627 = vpop.xlane.xlu0 %3626
      %v3628 = vsel %vm3591, %v3539, -inf
      %3629 = vmax.xlane.f32.xlu0 %v3628
      %v3630 = vpop.xlane.xlu0 %3629
      %v3631 = vsel %vm3591, %v3540, -inf
      %3632 = vmax.xlane.f32.xlu0 %v3631
      %v3633 = vpop.xlane.xlu0 %3632
      %v3634 = vsel %vm3591, %v3541, -inf
      %3635 = vmax.xlane.f32.xlu0 %v3634
      %v3636 = vpop.xlane.xlu0 %3635
      %v3637 = vsel %vm3591, %v3542, -inf
      %3638 = vmax.xlane.f32.xlu0 %v3637
      %v3639 = vpop.xlane.xlu0 %3638
      %v3640 = vsel %vm3591, %v3543, -inf
      %3641 = vmax.xlane.f32.xlu0 %v3640
      %v3642 = vpop.xlane.xlu0 %3641
      %v3643 = vsel %vm3591, %v3544, -inf
      %3644 = vmax.xlane.f32.xlu0 %v3643
      %v3645 = vpop.xlane.xlu0 %3644
      %v3646 = vsel %vm3591, %v3545, -inf
      %3647 = vmax.xlane.f32.xlu0 %v3646
      %v3648 = vpop.xlane.xlu0 %3647
      %v3649 = vsel %vm3591, %v3546, -inf
      %3650 = vmax.xlane.f32.xlu0 %v3649
      %v3651 = vpop.xlane.xlu0 %3650
      %v3652 = vsel %vm3591, %v3547, -inf
      %3653 = vmax.xlane.f32.xlu0 %v3652
      %v3654 = vpop.xlane.xlu0 %3653
      %v3655 = vsel %vm3591, %v3548, -inf
      %3656 = vmax.xlane.f32.xlu0 %v3655
      %v3657 = vpop.xlane.xlu0 %3656
      %v3658 = vsel %vm3591, %v3549, -inf
      %3659 = vmax.xlane.f32.xlu0 %v3658
      %v3660 = vpop.xlane.xlu0 %3659
      %v3661 = vsel %vm3591, %v3550, -inf
      %3662 = vmax.xlane.f32.xlu0 %v3661
      %v3663 = vpop.xlane.xlu0 %3662
      %v3664 = vsel %vm3591, %v3551, -inf
      %3665 = vmax.xlane.f32.xlu0 %v3664
      %v3666 = vpop.xlane.xlu0 %3665
      %v3667 = vsel %vm3591, %v3552, -inf
      %3668 = vmax.xlane.f32.xlu0 %v3667
      %v3669 = vpop.xlane.xlu0 %3668
      %v3670 = vsel %vm3591, %v3553, -inf
      %3671 = vmax.xlane.f32.xlu0 %v3670
      %v3672 = vpop.xlane.xlu0 %3671
      %v3673 = vsel %vm3591, %v3554, -inf
      %3674 = vmax.xlane.f32.xlu0 %v3673
      %v3675 = vpop.xlane.xlu0 %3674
      %v3676 = vsel %vm3591, %v3555, -inf
      %3677 = vmax.xlane.f32.xlu0 %v3676
      %v3678 = vpop.xlane.xlu0 %3677
      %v3679 = vsel %vm3591, %v3556, -inf
      %3680 = vmax.xlane.f32.xlu0 %v3679
      %v3681 = vpop.xlane.xlu0 %3680
      %v3682 = vsel %vm3591, %v3557, -inf
      %3683 = vmax.xlane.f32.xlu0 %v3682
      %v3684 = vpop.xlane.xlu0 %3683
      %v3685 = vsel %vm3591, %v3558, -inf
      %3686 = vmax.xlane.f32.xlu0 %v3685
      %v3687 = vpop.xlane.xlu0 %3686
      %v3688 = vsel %vm3591, %v3559, -inf
      %3689 = vmax.xlane.f32.xlu0 %v3688
      %v3690 = vpop.xlane.xlu0 %3689
      %v3691 = vsel %vm3591, %v3560, -inf
      %3692 = vmax.xlane.f32.xlu0 %v3691
      %v3693 = vpop.xlane.xlu0 %3692
      %v3694 = vsel %vm3591, %v3561, -inf
      %3695 = vmax.xlane.f32.xlu0 %v3694
      %v3696 = vpop.xlane.xlu0 %3695
      %v3697 = vsel %vm3591, %v3562, -inf
      %3698 = vmax.xlane.f32.xlu0 %v3697
      %v3699 = vpop.xlane.xlu0 %3698
      %v3700 = vsel %vm3591, %v3563, -inf
      %3701 = vmax.xlane.f32.xlu0 %v3700
      %v3702 = vpop.xlane.xlu0 %3701
      %v3703 = vsel %vm3591, %v3564, -inf
      %3704 = vmax.xlane.f32.xlu0 %v3703
      %v3705 = vpop.xlane.xlu0 %3704
      %v3706 = vsel %vm3591, %v3565, -inf
      %3707 = vmax.xlane.f32.xlu0 %v3706
      %v3708 = vpop.xlane.xlu0 %3707
      %v3709 = vsel %vm3591, %v3566, -inf
      %3710 = vmax.xlane.f32.xlu0 %v3709
      %v3711 = vpop.xlane.xlu0 %3710
      %v3712 = vsel %vm3591, %v3567, -inf
      %3713 = vmax.xlane.f32.xlu0 %v3712
      %v3714 = vpop.xlane.xlu0 %3713
      %v3715 = vsel %vm3591, %v3568, -inf
      %3716 = vmax.xlane.f32.xlu0 %v3715
      %v3717 = vpop.xlane.xlu0 %3716
      %v3718 = vsel %vm3591, %v3569, -inf
      %3719 = vmax.xlane.f32.xlu0 %v3718
      %v3720 = vpop.xlane.xlu0 %3719
      %v3721 = vsel %vm3591, %v3570, -inf
      %3722 = vmax.xlane.f32.xlu0 %v3721
      %v3723 = vpop.xlane.xlu0 %3722
      %v3724 = vsel %vm3591, %v3571, -inf
      %3725 = vmax.xlane.f32.xlu0 %v3724
      %v3726 = vpop.xlane.xlu0 %3725
      %v3727 = vsel %vm3591, %v3572, -inf
      %3728 = vmax.xlane.f32.xlu0 %v3727
      %v3729 = vpop.xlane.xlu0 %3728
      %v3730 = vsel %vm3591, %v3573, -inf
      %3731 = vmax.xlane.f32.xlu0 %v3730
      %v3732 = vpop.xlane.xlu0 %3731
      %v3733 = vsel %vm3591, %v3574, -inf
      %3734 = vmax.xlane.f32.xlu0 %v3733
      %v3735 = vpop.xlane.xlu0 %3734
      %v3736 = vsel %vm3591, %v3575, -inf
      %3737 = vmax.xlane.f32.xlu0 %v3736
      %v3738 = vpop.xlane.xlu0 %3737
      %v3739 = vsel %vm3591, %v3576, -inf
      %3740 = vmax.xlane.f32.xlu0 %v3739
      %v3741 = vpop.xlane.xlu0 %3740
      %v3742 = vsel %vm3591, %v3577, -inf
      %3743 = vmax.xlane.f32.xlu0 %v3742
      %v3744 = vpop.xlane.xlu0 %3743
      %v3745 = vsel %vm3591, %v3578, -inf
      %3746 = vmax.xlane.f32.xlu0 %v3745
      %v3747 = vpop.xlane.xlu0 %3746
      %v3748 = vsel %vm3591, %v3579, -inf
      %3749 = vmax.xlane.f32.xlu0 %v3748
      %v3750 = vpop.xlane.xlu0 %3749
      %v3751 = vsel %vm3591, %v3580, -inf
      %3752 = vmax.xlane.f32.xlu0 %v3751
      %v3753 = vpop.xlane.xlu0 %3752
      %v3754 = vsel %vm3591, %v3581, -inf
      %3755 = vmax.xlane.f32.xlu0 %v3754
      %v3756 = vpop.xlane.xlu0 %3755
      %v3757 = vsel %vm3591, %v3582, -inf
      %3758 = vmax.xlane.f32.xlu0 %v3757
      %v3759 = vpop.xlane.xlu0 %3758
      %v3760 = vsel %vm3591, %v3583, -inf
      %3761 = vmax.xlane.f32.xlu0 %v3760
      %v3762 = vpop.xlane.xlu0 %3761
      %v3763 = vsel %vm3591, %v3584, -inf
      %3764 = vmax.xlane.f32.xlu0 %v3763
      %v3765 = vpop.xlane.xlu0 %3764
      %v3766 = vsel %vm3591, %v3585, -inf
      %3767 = vmax.xlane.f32.xlu0 %v3766
      %v3768 = vpop.xlane.xlu0 %3767
      %v3769 = vsel %vm3591, %v3586, -inf
      %3770 = vmax.xlane.f32.xlu0 %v3769
      %v3771 = vpop.xlane.xlu0 %3770
      %v3772 = vsel %vm3591, %v3587, -inf
      %3773 = vmax.xlane.f32.xlu0 %v3772
      %v3774 = vpop.xlane.xlu0 %3773
      %v3775 = vsel %vm3591, %v3588, -inf
      %3776 = vmax.xlane.f32.xlu0 %v3775
      %v3777 = vpop.xlane.xlu0 %3776
      %v3778 = vsel %vm3591, %v3589, -inf
      %3779 = vmax.xlane.f32.xlu0 %v3778
      %v3780 = vpop.xlane.xlu0 %3779
      %v3781 = vsel %vm3591, %v3590, -inf
      %3782 = vmax.xlane.f32.xlu0 %v3781
      %v3783 = vpop.xlane.xlu0 %3782
      %v3784 = vsub.f32 %v3527, %v3594
      %v3785 = vsub.f32 %v3528, %v3597
      %v3786 = vsub.f32 %v3529, %v3600
      %v3787 = vsub.f32 %v3530, %v3603
      %v3788 = vsub.f32 %v3531, %v3606
      %v3789 = vsub.f32 %v3532, %v3609
      %v3790 = vsub.f32 %v3533, %v3612
      %v3791 = vsub.f32 %v3534, %v3615
      %v3792 = vsub.f32 %v3535, %v3618
      %v3793 = vsub.f32 %v3536, %v3621
      %v3794 = vsub.f32 %v3537, %v3624
      %v3795 = vsub.f32 %v3538, %v3627
      %v3796 = vsub.f32 %v3539, %v3630
      %v3797 = vsub.f32 %v3540, %v3633
      %v3798 = vsub.f32 %v3541, %v3636
      %v3799 = vsub.f32 %v3542, %v3639
      %v3800 = vsub.f32 %v3543, %v3642
      %v3801 = vsub.f32 %v3544, %v3645
      %v3802 = vsub.f32 %v3545, %v3648
      %v3803 = vsub.f32 %v3546, %v3651
      %v3804 = vsub.f32 %v3547, %v3654
      %v3805 = vsub.f32 %v3548, %v3657
      %v3806 = vsub.f32 %v3549, %v3660
      %v3807 = vsub.f32 %v3550, %v3663
      %v3808 = vsub.f32 %v3551, %v3666
      %v3809 = vsub.f32 %v3552, %v3669
      %v3810 = vsub.f32 %v3553, %v3672
      %v3811 = vsub.f32 %v3554, %v3675
      %v3812 = vsub.f32 %v3555, %v3678
      %v3813 = vsub.f32 %v3556, %v3681
      %v3814 = vsub.f32 %v3557, %v3684
      %v3815 = vsub.f32 %v3558, %v3687
      %v3816 = vsub.f32 %v3559, %v3690
      %v3817 = vsub.f32 %v3560, %v3693
      %v3818 = vsub.f32 %v3561, %v3696
      %v3819 = vsub.f32 %v3562, %v3699
      %v3820 = vsub.f32 %v3563, %v3702
      %v3821 = vsub.f32 %v3564, %v3705
      %v3822 = vsub.f32 %v3565, %v3708
      %v3823 = vsub.f32 %v3566, %v3711
      %v3824 = vsub.f32 %v3567, %v3714
      %v3825 = vsub.f32 %v3568, %v3717
      %v3826 = vsub.f32 %v3569, %v3720
      %v3827 = vsub.f32 %v3570, %v3723
      %v3828 = vsub.f32 %v3571, %v3726
      %v3829 = vsub.f32 %v3572, %v3729
      %v3830 = vsub.f32 %v3573, %v3732
      %v3831 = vsub.f32 %v3574, %v3735
      %v3832 = vsub.f32 %v3575, %v3738
      %v3833 = vsub.f32 %v3576, %v3741
      %v3834 = vsub.f32 %v3577, %v3744
      %v3835 = vsub.f32 %v3578, %v3747
      %v3836 = vsub.f32 %v3579, %v3750
      %v3837 = vsub.f32 %v3580, %v3753
      %v3838 = vsub.f32 %v3581, %v3756
      %v3839 = vsub.f32 %v3582, %v3759
      %v3840 = vsub.f32 %v3583, %v3762
      %v3841 = vsub.f32 %v3584, %v3765
      %v3842 = vsub.f32 %v3585, %v3768
      %v3843 = vsub.f32 %v3586, %v3771
      %v3844 = vsub.f32 %v3587, %v3774
      %v3845 = vsub.f32 %v3588, %v3777
      %v3846 = vsub.f32 %v3589, %v3780
      %v3847 = vsub.f32 %v3590, %v3783
      %v3848 = vmul.f32 %v3784, 1.442695
      %v3849 = vpow.pop %v3848
      %v3850 = vmul.f32 %v3785, 1.442695
      %v3851 = vpow.pop %v3850
      %v3852 = vmul.f32 %v3786, 1.442695
      %v3853 = vpow.pop %v3852
      %v3854 = vmul.f32 %v3787, 1.442695
      %v3855 = vpow.pop %v3854
      %v3856 = vmul.f32 %v3788, 1.442695
      %v3857 = vpow.pop %v3856
      %v3858 = vmul.f32 %v3789, 1.442695
      %v3859 = vpow.pop %v3858
      %v3860 = vmul.f32 %v3790, 1.442695
      %v3861 = vpow.pop %v3860
      %v3862 = vmul.f32 %v3791, 1.442695
      %v3863 = vpow.pop %v3862
      %v3864 = vmul.f32 %v3792, 1.442695
      %v3865 = vpow.pop %v3864
      %v3866 = vmul.f32 %v3793, 1.442695
      %v3867 = vpow.pop %v3866
      %v3868 = vmul.f32 %v3794, 1.442695
      %v3869 = vpow.pop %v3868
      %v3870 = vmul.f32 %v3795, 1.442695
      %v3871 = vpow.pop %v3870
      %v3872 = vmul.f32 %v3796, 1.442695
      %v3873 = vpow.pop %v3872
      %v3874 = vmul.f32 %v3797, 1.442695
      %v3875 = vpow.pop %v3874
      %v3876 = vmul.f32 %v3798, 1.442695
      %v3877 = vpow.pop %v3876
      %v3878 = vmul.f32 %v3799, 1.442695
      %v3879 = vpow.pop %v3878
      %v3880 = vmul.f32 %v3800, 1.442695
      %v3881 = vpow.pop %v3880
      %v3882 = vmul.f32 %v3801, 1.442695
      %v3883 = vpow.pop %v3882
      %v3884 = vmul.f32 %v3802, 1.442695
      %v3885 = vpow.pop %v3884
      %v3886 = vmul.f32 %v3803, 1.442695
      %v3887 = vpow.pop %v3886
      %v3888 = vmul.f32 %v3804, 1.442695
      %v3889 = vpow.pop %v3888
      %v3890 = vmul.f32 %v3805, 1.442695
      %v3891 = vpow.pop %v3890
      %v3892 = vmul.f32 %v3806, 1.442695
      %v3893 = vpow.pop %v3892
      %v3894 = vmul.f32 %v3807, 1.442695
      %v3895 = vpow.pop %v3894
      %v3896 = vmul.f32 %v3808, 1.442695
      %v3897 = vpow.pop %v3896
      %v3898 = vmul.f32 %v3809, 1.442695
      %v3899 = vpow.pop %v3898
      %v3900 = vmul.f32 %v3810, 1.442695
      %v3901 = vpow.pop %v3900
      %v3902 = vmul.f32 %v3811, 1.442695
      %v3903 = vpow.pop %v3902
      %v3904 = vmul.f32 %v3812, 1.442695
      %v3905 = vpow.pop %v3904
      %v3906 = vmul.f32 %v3813, 1.442695
      %v3907 = vpow.pop %v3906
      %v3908 = vmul.f32 %v3814, 1.442695
      %v3909 = vpow.pop %v3908
      %v3910 = vmul.f32 %v3815, 1.442695
      %v3911 = vpow.pop %v3910
      %v3912 = vmul.f32 %v3816, 1.442695
      %v3913 = vpow.pop %v3912
      %v3914 = vmul.f32 %v3817, 1.442695
      %v3915 = vpow.pop %v3914
      %v3916 = vmul.f32 %v3818, 1.442695
      %v3917 = vpow.pop %v3916
      %v3918 = vmul.f32 %v3819, 1.442695
      %v3919 = vpow.pop %v3918
      %v3920 = vmul.f32 %v3820, 1.442695
      %v3921 = vpow.pop %v3920
      %v3922 = vmul.f32 %v3821, 1.442695
      %v3923 = vpow.pop %v3922
      %v3924 = vmul.f32 %v3822, 1.442695
      %v3925 = vpow.pop %v3924
      %v3926 = vmul.f32 %v3823, 1.442695
      %v3927 = vpow.pop %v3926
      %v3928 = vmul.f32 %v3824, 1.442695
      %v3929 = vpow.pop %v3928
      %v3930 = vmul.f32 %v3825, 1.442695
      %v3931 = vpow.pop %v3930
      %v3932 = vmul.f32 %v3826, 1.442695
      %v3933 = vpow.pop %v3932
      %v3934 = vmul.f32 %v3827, 1.442695
      %v3935 = vpow.pop %v3934
      %v3936 = vmul.f32 %v3828, 1.442695
      %v3937 = vpow.pop %v3936
      %v3938 = vmul.f32 %v3829, 1.442695
      %v3939 = vpow.pop %v3938
      %v3940 = vmul.f32 %v3830, 1.442695
      %v3941 = vpow.pop %v3940
      %v3942 = vmul.f32 %v3831, 1.442695
      %v3943 = vpow.pop %v3942
      %v3944 = vmul.f32 %v3832, 1.442695
      %v3945 = vpow.pop %v3944
      %v3946 = vmul.f32 %v3833, 1.442695
      %v3947 = vpow.pop %v3946
      %v3948 = vmul.f32 %v3834, 1.442695
      %v3949 = vpow.pop %v3948
      %v3950 = vmul.f32 %v3835, 1.442695
      %v3951 = vpow.pop %v3950
      %v3952 = vmul.f32 %v3836, 1.442695
      %v3953 = vpow.pop %v3952
      %v3954 = vmul.f32 %v3837, 1.442695
      %v3955 = vpow.pop %v3954
      %v3956 = vmul.f32 %v3838, 1.442695
      %v3957 = vpow.pop %v3956
      %v3958 = vmul.f32 %v3839, 1.442695
      %v3959 = vpow.pop %v3958
      %v3960 = vmul.f32 %v3840, 1.442695
      %v3961 = vpow.pop %v3960
      %v3962 = vmul.f32 %v3841, 1.442695
      %v3963 = vpow.pop %v3962
      %v3964 = vmul.f32 %v3842, 1.442695
      %v3965 = vpow.pop %v3964
      %v3966 = vmul.f32 %v3843, 1.442695
      %v3967 = vpow.pop %v3966
      %v3968 = vmul.f32 %v3844, 1.442695
      %v3969 = vpow.pop %v3968
      %v3970 = vmul.f32 %v3845, 1.442695
      %v3971 = vpow.pop %v3970
      %v3972 = vmul.f32 %v3846, 1.442695
      %v3973 = vpow.pop %v3972
      %v3974 = vmul.f32 %v3847, 1.442695
      %v3975 = vpow.pop %v3974
      %v3976 = vsel %vm3591, %v3849, 0.0
      %3977 = vadd.xlane.f32.xlu0 %v3976
      %v3978 = vpop.xlane.xlu0 %3977
      %v3979 = vsel %vm3591, %v3851, 0.0
      %3980 = vadd.xlane.f32.xlu0 %v3979
      %v3981 = vpop.xlane.xlu0 %3980
      %v3982 = vsel %vm3591, %v3853, 0.0
      %3983 = vadd.xlane.f32.xlu0 %v3982
      %v3984 = vpop.xlane.xlu0 %3983
      %v3985 = vsel %vm3591, %v3855, 0.0
      %3986 = vadd.xlane.f32.xlu0 %v3985
      %v3987 = vpop.xlane.xlu0 %3986
      %v3988 = vsel %vm3591, %v3857, 0.0
      %3989 = vadd.xlane.f32.xlu0 %v3988
      %v3990 = vpop.xlane.xlu0 %3989
      %v3991 = vsel %vm3591, %v3859, 0.0
      %3992 = vadd.xlane.f32.xlu0 %v3991
      %v3993 = vpop.xlane.xlu0 %3992
      %v3994 = vsel %vm3591, %v3861, 0.0
      %3995 = vadd.xlane.f32.xlu0 %v3994
      %v3996 = vpop.xlane.xlu0 %3995
      %v3997 = vsel %vm3591, %v3863, 0.0
      %3998 = vadd.xlane.f32.xlu0 %v3997
      %v3999 = vpop.xlane.xlu0 %3998
      %v4000 = vsel %vm3591, %v3865, 0.0
      %4001 = vadd.xlane.f32.xlu0 %v4000
      %v4002 = vpop.xlane.xlu0 %4001
      %v4003 = vsel %vm3591, %v3867, 0.0
      %4004 = vadd.xlane.f32.xlu0 %v4003
      %v4005 = vpop.xlane.xlu0 %4004
      %v4006 = vsel %vm3591, %v3869, 0.0
      %4007 = vadd.xlane.f32.xlu0 %v4006
      %v4008 = vpop.xlane.xlu0 %4007
      %v4009 = vsel %vm3591, %v3871, 0.0
      %4010 = vadd.xlane.f32.xlu0 %v4009
      %v4011 = vpop.xlane.xlu0 %4010
      %v4012 = vsel %vm3591, %v3873, 0.0
      %4013 = vadd.xlane.f32.xlu0 %v4012
      %v4014 = vpop.xlane.xlu0 %4013
      %v4015 = vsel %vm3591, %v3875, 0.0
      %4016 = vadd.xlane.f32.xlu0 %v4015
      %v4017 = vpop.xlane.xlu0 %4016
      %v4018 = vsel %vm3591, %v3877, 0.0
      %4019 = vadd.xlane.f32.xlu0 %v4018
      %v4020 = vpop.xlane.xlu0 %4019
      %v4021 = vsel %vm3591, %v3879, 0.0
      %4022 = vadd.xlane.f32.xlu0 %v4021
      %v4023 = vpop.xlane.xlu0 %4022
      %v4024 = vsel %vm3591, %v3881, 0.0
      %4025 = vadd.xlane.f32.xlu0 %v4024
      %v4026 = vpop.xlane.xlu0 %4025
      %v4027 = vsel %vm3591, %v3883, 0.0
      %4028 = vadd.xlane.f32.xlu0 %v4027
      %v4029 = vpop.xlane.xlu0 %4028
      %v4030 = vsel %vm3591, %v3885, 0.0
      %4031 = vadd.xlane.f32.xlu0 %v4030
      %v4032 = vpop.xlane.xlu0 %4031
      %v4033 = vsel %vm3591, %v3887, 0.0
      %4034 = vadd.xlane.f32.xlu0 %v4033
      %v4035 = vpop.xlane.xlu0 %4034
      %v4036 = vsel %vm3591, %v3889, 0.0
      %4037 = vadd.xlane.f32.xlu0 %v4036
      %v4038 = vpop.xlane.xlu0 %4037
      %v4039 = vsel %vm3591, %v3891, 0.0
      %4040 = vadd.xlane.f32.xlu0 %v4039
      %v4041 = vpop.xlane.xlu0 %4040
      %v4042 = vsel %vm3591, %v3893, 0.0
      %4043 = vadd.xlane.f32.xlu0 %v4042
      %v4044 = vpop.xlane.xlu0 %4043
      %v4045 = vsel %vm3591, %v3895, 0.0
      %4046 = vadd.xlane.f32.xlu0 %v4045
      %v4047 = vpop.xlane.xlu0 %4046
      %v4048 = vsel %vm3591, %v3897, 0.0
      %4049 = vadd.xlane.f32.xlu0 %v4048
      %v4050 = vpop.xlane.xlu0 %4049
      %v4051 = vsel %vm3591, %v3899, 0.0
      %4052 = vadd.xlane.f32.xlu0 %v4051
      %v4053 = vpop.xlane.xlu0 %4052
      %v4054 = vsel %vm3591, %v3901, 0.0
      %4055 = vadd.xlane.f32.xlu0 %v4054
      %v4056 = vpop.xlane.xlu0 %4055
      %v4057 = vsel %vm3591, %v3903, 0.0
      %4058 = vadd.xlane.f32.xlu0 %v4057
      %v4059 = vpop.xlane.xlu0 %4058
      %v4060 = vsel %vm3591, %v3905, 0.0
      %4061 = vadd.xlane.f32.xlu0 %v4060
      %v4062 = vpop.xlane.xlu0 %4061
      %v4063 = vsel %vm3591, %v3907, 0.0
      %4064 = vadd.xlane.f32.xlu0 %v4063
      %v4065 = vpop.xlane.xlu0 %4064
      %v4066 = vsel %vm3591, %v3909, 0.0
      %4067 = vadd.xlane.f32.xlu0 %v4066
      %v4068 = vpop.xlane.xlu0 %4067
      %v4069 = vsel %vm3591, %v3911, 0.0
      %4070 = vadd.xlane.f32.xlu0 %v4069
      %v4071 = vpop.xlane.xlu0 %4070
      %v4072 = vsel %vm3591, %v3913, 0.0
      %4073 = vadd.xlane.f32.xlu0 %v4072
      %v4074 = vpop.xlane.xlu0 %4073
      %v4075 = vsel %vm3591, %v3915, 0.0
      %4076 = vadd.xlane.f32.xlu0 %v4075
      %v4077 = vpop.xlane.xlu0 %4076
      %v4078 = vsel %vm3591, %v3917, 0.0
      %4079 = vadd.xlane.f32.xlu0 %v4078
      %v4080 = vpop.xlane.xlu0 %4079
      %v4081 = vsel %vm3591, %v3919, 0.0
      %4082 = vadd.xlane.f32.xlu0 %v4081
      %v4083 = vpop.xlane.xlu0 %4082
      %v4084 = vsel %vm3591, %v3921, 0.0
      %4085 = vadd.xlane.f32.xlu0 %v4084
      %v4086 = vpop.xlane.xlu0 %4085
      %v4087 = vsel %vm3591, %v3923, 0.0
      %4088 = vadd.xlane.f32.xlu0 %v4087
      %v4089 = vpop.xlane.xlu0 %4088
      %v4090 = vsel %vm3591, %v3925, 0.0
      %4091 = vadd.xlane.f32.xlu0 %v4090
      %v4092 = vpop.xlane.xlu0 %4091
      %v4093 = vsel %vm3591, %v3927, 0.0
      %4094 = vadd.xlane.f32.xlu0 %v4093
      %v4095 = vpop.xlane.xlu0 %4094
      %v4096 = vsel %vm3591, %v3929, 0.0
      %4097 = vadd.xlane.f32.xlu0 %v4096
      %v4098 = vpop.xlane.xlu0 %4097
      %v4099 = vsel %vm3591, %v3931, 0.0
      %4100 = vadd.xlane.f32.xlu0 %v4099
      %v4101 = vpop.xlane.xlu0 %4100
      %v4102 = vsel %vm3591, %v3933, 0.0
      %4103 = vadd.xlane.f32.xlu0 %v4102
      %v4104 = vpop.xlane.xlu0 %4103
      %v4105 = vsel %vm3591, %v3935, 0.0
      %4106 = vadd.xlane.f32.xlu0 %v4105
      %v4107 = vpop.xlane.xlu0 %4106
      %v4108 = vsel %vm3591, %v3937, 0.0
      %4109 = vadd.xlane.f32.xlu0 %v4108
      %v4110 = vpop.xlane.xlu0 %4109
      %v4111 = vsel %vm3591, %v3939, 0.0
      %4112 = vadd.xlane.f32.xlu0 %v4111
      %v4113 = vpop.xlane.xlu0 %4112
      %v4114 = vsel %vm3591, %v3941, 0.0
      %4115 = vadd.xlane.f32.xlu0 %v4114
      %v4116 = vpop.xlane.xlu0 %4115
      %v4117 = vsel %vm3591, %v3943, 0.0
      %4118 = vadd.xlane.f32.xlu0 %v4117
      %v4119 = vpop.xlane.xlu0 %4118
      %v4120 = vsel %vm3591, %v3945, 0.0
      %4121 = vadd.xlane.f32.xlu0 %v4120
      %v4122 = vpop.xlane.xlu0 %4121
      %v4123 = vsel %vm3591, %v3947, 0.0
      %4124 = vadd.xlane.f32.xlu0 %v4123
      %v4125 = vpop.xlane.xlu0 %4124
      %v4126 = vsel %vm3591, %v3949, 0.0
      %4127 = vadd.xlane.f32.xlu0 %v4126
      %v4128 = vpop.xlane.xlu0 %4127
      %v4129 = vsel %vm3591, %v3951, 0.0
      %4130 = vadd.xlane.f32.xlu0 %v4129
      %v4131 = vpop.xlane.xlu0 %4130
      %v4132 = vsel %vm3591, %v3953, 0.0
      %4133 = vadd.xlane.f32.xlu0 %v4132
      %v4134 = vpop.xlane.xlu0 %4133
      %v4135 = vsel %vm3591, %v3955, 0.0
      %4136 = vadd.xlane.f32.xlu0 %v4135
      %v4137 = vpop.xlane.xlu0 %4136
      %v4138 = vsel %vm3591, %v3957, 0.0
      %4139 = vadd.xlane.f32.xlu0 %v4138
      %v4140 = vpop.xlane.xlu0 %4139
      %v4141 = vsel %vm3591, %v3959, 0.0
      %4142 = vadd.xlane.f32.xlu0 %v4141
      %v4143 = vpop.xlane.xlu0 %4142
      %v4144 = vsel %vm3591, %v3961, 0.0
      %4145 = vadd.xlane.f32.xlu0 %v4144
      %v4146 = vpop.xlane.xlu0 %4145
      %v4147 = vsel %vm3591, %v3963, 0.0
      %4148 = vadd.xlane.f32.xlu0 %v4147
      %v4149 = vpop.xlane.xlu0 %4148
      %v4150 = vsel %vm3591, %v3965, 0.0
      %4151 = vadd.xlane.f32.xlu0 %v4150
      %v4152 = vpop.xlane.xlu0 %4151
      %v4153 = vsel %vm3591, %v3967, 0.0
      %4154 = vadd.xlane.f32.xlu0 %v4153
      %v4155 = vpop.xlane.xlu0 %4154
      %v4156 = vsel %vm3591, %v3969, 0.0
      %4157 = vadd.xlane.f32.xlu0 %v4156
      %v4158 = vpop.xlane.xlu0 %4157
      %v4159 = vsel %vm3591, %v3971, 0.0
      %4160 = vadd.xlane.f32.xlu0 %v4159
      %v4161 = vpop.xlane.xlu0 %4160
      %v4162 = vsel %vm3591, %v3973, 0.0
      %4163 = vadd.xlane.f32.xlu0 %v4162
      %v4164 = vpop.xlane.xlu0 %4163
      %v4165 = vsel %vm3591, %v3975, 0.0
      %4166 = vadd.xlane.f32.xlu0 %v4165
      %v4167 = vpop.xlane.xlu0 %4166
      %v4168 = vrcp.pop %v3978
      %v4169 = vrcp.pop %v3981
      %v4170 = vrcp.pop %v3984
      %v4171 = vrcp.pop %v3987
      %v4172 = vrcp.pop %v3990
      %v4173 = vrcp.pop %v3993
      %v4174 = vrcp.pop %v3996
      %v4175 = vrcp.pop %v3999
      %v4176 = vrcp.pop %v4002
      %v4177 = vrcp.pop %v4005
      %v4178 = vrcp.pop %v4008
      %v4179 = vrcp.pop %v4011
      %v4180 = vrcp.pop %v4014
      %v4181 = vrcp.pop %v4017
      %v4182 = vrcp.pop %v4020
      %v4183 = vrcp.pop %v4023
      %v4184 = vrcp.pop %v4026
      %v4185 = vrcp.pop %v4029
      %v4186 = vrcp.pop %v4032
      %v4187 = vrcp.pop %v4035
      %v4188 = vrcp.pop %v4038
      %v4189 = vrcp.pop %v4041
      %v4190 = vrcp.pop %v4044
      %v4191 = vrcp.pop %v4047
      %v4192 = vrcp.pop %v4050
      %v4193 = vrcp.pop %v4053
      %v4194 = vrcp.pop %v4056
      %v4195 = vrcp.pop %v4059
      %v4196 = vrcp.pop %v4062
      %v4197 = vrcp.pop %v4065
      %v4198 = vrcp.pop %v4068
      %v4199 = vrcp.pop %v4071
      %v4200 = vrcp.pop %v4074
      %v4201 = vrcp.pop %v4077
      %v4202 = vrcp.pop %v4080
      %v4203 = vrcp.pop %v4083
      %v4204 = vrcp.pop %v4086
      %v4205 = vrcp.pop %v4089
      %v4206 = vrcp.pop %v4092
      %v4207 = vrcp.pop %v4095
      %v4208 = vrcp.pop %v4098
      %v4209 = vrcp.pop %v4101
      %v4210 = vrcp.pop %v4104
      %v4211 = vrcp.pop %v4107
      %v4212 = vrcp.pop %v4110
      %v4213 = vrcp.pop %v4113
      %v4214 = vrcp.pop %v4116
      %v4215 = vrcp.pop %v4119
      %v4216 = vrcp.pop %v4122
      %v4217 = vrcp.pop %v4125
      %v4218 = vrcp.pop %v4128
      %v4219 = vrcp.pop %v4131
      %v4220 = vrcp.pop %v4134
      %v4221 = vrcp.pop %v4137
      %v4222 = vrcp.pop %v4140
      %v4223 = vrcp.pop %v4143
      %v4224 = vrcp.pop %v4146
      %v4225 = vrcp.pop %v4149
      %v4226 = vrcp.pop %v4152
      %v4227 = vrcp.pop %v4155
      %v4228 = vrcp.pop %v4158
      %v4229 = vrcp.pop %v4161
      %v4230 = vrcp.pop %v4164
      %v4231 = vrcp.pop %v4167
      %v4232 = vmul.f32 %v3849, %v4168
      %v4233 = vmul.f32 %v3851, %v4169
      %v4234 = vmul.f32 %v3853, %v4170
      %v4235 = vmul.f32 %v3855, %v4171
      %v4236 = vmul.f32 %v3857, %v4172
      %v4237 = vmul.f32 %v3859, %v4173
      %v4238 = vmul.f32 %v3861, %v4174
      %v4239 = vmul.f32 %v3863, %v4175
      %v4240 = vmul.f32 %v3865, %v4176
      %v4241 = vmul.f32 %v3867, %v4177
      %v4242 = vmul.f32 %v3869, %v4178
      %v4243 = vmul.f32 %v3871, %v4179
      %v4244 = vmul.f32 %v3873, %v4180
      %v4245 = vmul.f32 %v3875, %v4181
      %v4246 = vmul.f32 %v3877, %v4182
      %v4247 = vmul.f32 %v3879, %v4183
      %v4248 = vmul.f32 %v3881, %v4184
      %v4249 = vmul.f32 %v3883, %v4185
      %v4250 = vmul.f32 %v3885, %v4186
      %v4251 = vmul.f32 %v3887, %v4187
      %v4252 = vmul.f32 %v3889, %v4188
      %v4253 = vmul.f32 %v3891, %v4189
      %v4254 = vmul.f32 %v3893, %v4190
      %v4255 = vmul.f32 %v3895, %v4191
      %v4256 = vmul.f32 %v3897, %v4192
      %v4257 = vmul.f32 %v3899, %v4193
      %v4258 = vmul.f32 %v3901, %v4194
      %v4259 = vmul.f32 %v3903, %v4195
      %v4260 = vmul.f32 %v3905, %v4196
      %v4261 = vmul.f32 %v3907, %v4197
      %v4262 = vmul.f32 %v3909, %v4198
      %v4263 = vmul.f32 %v3911, %v4199
      %v4264 = vmul.f32 %v3913, %v4200
      %v4265 = vmul.f32 %v3915, %v4201
      %v4266 = vmul.f32 %v3917, %v4202
      %v4267 = vmul.f32 %v3919, %v4203
      %v4268 = vmul.f32 %v3921, %v4204
      %v4269 = vmul.f32 %v3923, %v4205
      %v4270 = vmul.f32 %v3925, %v4206
      %v4271 = vmul.f32 %v3927, %v4207
      %v4272 = vmul.f32 %v3929, %v4208
      %v4273 = vmul.f32 %v3931, %v4209
      %v4274 = vmul.f32 %v3933, %v4210
      %v4275 = vmul.f32 %v3935, %v4211
      %v4276 = vmul.f32 %v3937, %v4212
      %v4277 = vmul.f32 %v3939, %v4213
      %v4278 = vmul.f32 %v3941, %v4214
      %v4279 = vmul.f32 %v3943, %v4215
      %v4280 = vmul.f32 %v3945, %v4216
      %v4281 = vmul.f32 %v3947, %v4217
      %v4282 = vmul.f32 %v3949, %v4218
      %v4283 = vmul.f32 %v3951, %v4219
      %v4284 = vmul.f32 %v3953, %v4220
      %v4285 = vmul.f32 %v3955, %v4221
      %v4286 = vmul.f32 %v3957, %v4222
      %v4287 = vmul.f32 %v3959, %v4223
      %v4288 = vmul.f32 %v3961, %v4224
      %v4289 = vmul.f32 %v3963, %v4225
      %v4290 = vmul.f32 %v3965, %v4226
      %v4291 = vmul.f32 %v3967, %v4227
      %v4292 = vmul.f32 %v3969, %v4228
      %v4293 = vmul.f32 %v3971, %v4229
      %v4294 = vmul.f32 %v3973, %v4230
      %v4295 = vmul.f32 %v3975, %v4231
      %v4296 = vpack.c.bf16 %v4233, %v4232
      %v4297 = vpack.c.bf16 %v4235, %v4234
      %v4298 = vpack.c.bf16 %v4237, %v4236
      %v4299 = vpack.c.bf16 %v4239, %v4238
      %v4300 = vpack.c.bf16 %v4241, %v4240
      %v4301 = vpack.c.bf16 %v4243, %v4242
      %v4302 = vpack.c.bf16 %v4245, %v4244
      %v4303 = vpack.c.bf16 %v4247, %v4246
      %v4304 = vpack.c.bf16 %v4249, %v4248
      %v4305 = vpack.c.bf16 %v4251, %v4250
      %v4306 = vpack.c.bf16 %v4253, %v4252
      %v4307 = vpack.c.bf16 %v4255, %v4254
      %v4308 = vpack.c.bf16 %v4257, %v4256
      %v4309 = vpack.c.bf16 %v4259, %v4258
      %v4310 = vpack.c.bf16 %v4261, %v4260
      %v4311 = vpack.c.bf16 %v4263, %v4262
      %v4312 = vpack.c.bf16 %v4265, %v4264
      %v4313 = vpack.c.bf16 %v4267, %v4266
      %v4314 = vpack.c.bf16 %v4269, %v4268
      %v4315 = vpack.c.bf16 %v4271, %v4270
      %v4316 = vpack.c.bf16 %v4273, %v4272
      %v4317 = vpack.c.bf16 %v4275, %v4274
      %v4318 = vpack.c.bf16 %v4277, %v4276
      %v4319 = vpack.c.bf16 %v4279, %v4278
      %v4320 = vpack.c.bf16 %v4281, %v4280
      %v4321 = vpack.c.bf16 %v4283, %v4282
      %v4322 = vpack.c.bf16 %v4285, %v4284
      %v4323 = vpack.c.bf16 %v4287, %v4286
      %v4324 = vpack.c.bf16 %v4289, %v4288
      %v4325 = vpack.c.bf16 %v4291, %v4290
      %v4326 = vpack.c.bf16 %v4293, %v4292
      %v4327 = vpack.c.bf16 %v4295, %v4294
      %v4329 = vsel %vm3591, %v4296, 0
      %4331 = vmatprep.subr.bf16.mxu0 0
      %4332 = vmatpush1.bf16.msra.mxu0 0
      %4333 = vmatprep.subr.bf16.mxu0 0
      %4334 = vmatpush1.bf16.msra.mxu0 0
      %4335 = vmatprep.subr.bf16.mxu0 0
      %4336 = vmatpush1.bf16.msra.mxu0 0
      %4337 = vmatprep.subr.bf16.mxu0 0
      %4338 = vmatpush1.bf16.msra.mxu0 0
      %4339 = vmatprep.subr.bf16.mxu0 0
      %4340 = vmatpush1.bf16.msra.mxu0 0
      %4341 = vmatprep.subr.bf16.mxu0 0
      %4342 = vmatpush1.bf16.msra.mxu0 0
      %4343 = vmatprep.subr.bf16.mxu0 0
      %4344 = vmatpush1.bf16.msra.mxu0 0
      %4345 = vmatprep.subr.bf16.mxu0 0
      %4346 = vmatpush1.bf16.msra.mxu0 %v1688
      %4347 = vmatprep.subr.bf16.mxu0 0
      %4348 = vmatpush2.bf16.msra.mxu0 0
      %4349 = vmatprep.subr.bf16.mxu0 0
      %4350 = vmatpush2.bf16.msra.mxu0 0
      %4351 = vmatprep.subr.bf16.mxu0 0
      %4352 = vmatpush2.bf16.msra.mxu0 0
      %4353 = vmatprep.subr.bf16.mxu0 0
      %4354 = vmatpush2.bf16.msra.mxu0 0
      %4355 = vmatprep.subr.bf16.mxu0 0
      %4356 = vmatpush2.bf16.msra.mxu0 0
      %4357 = vmatprep.subr.bf16.mxu0 0
      %4358 = vmatpush2.bf16.msra.mxu0 0
      %4359 = vmatprep.subr.bf16.mxu0 0
      %4360 = vmatpush2.bf16.msra.mxu0 0
      %4361 = vmatprep.subr.bf16.mxu0 0
      %4362 = vmatpush2.bf16.msra.mxu0 0
      %4363 = vmatprep.mubr.bf16.mxu0 0
      %4364 = vmatmul.mubr.bf16.gmra.mxu0 %v4329
      %v4365 = vpop.f32.mrf.mxu0
      %v4366 = vadd.f32 0.0, %v4365
      %v4367 = vpop.f32.mrf.mxu0
      %v4368 = vpop.f32.mrf.mxu0
      %v4369 = vadd.f32 0.0, %v4368
      %v4370 = vpop.f32.mrf.mxu0
      %4371 = vdwg.mxu0
      %v4373 = vsel %vm3591, %v4297, 0
      %4375 = vmatprep.subr.bf16.mxu0 0
      %4376 = vmatpush1.bf16.msra.mxu0 0
      %4377 = vmatprep.subr.bf16.mxu0 0
      %4378 = vmatpush1.bf16.msra.mxu0 0
      %4379 = vmatprep.subr.bf16.mxu0 0
      %4380 = vmatpush1.bf16.msra.mxu0 0
      %4381 = vmatprep.subr.bf16.mxu0 0
      %4382 = vmatpush1.bf16.msra.mxu0 0
      %4383 = vmatprep.subr.bf16.mxu0 0
      %4384 = vmatpush1.bf16.msra.mxu0 0
      %4385 = vmatprep.subr.bf16.mxu0 0
      %4386 = vmatpush1.bf16.msra.mxu0 0
      %4387 = vmatprep.subr.bf16.mxu0 0
      %4388 = vmatpush1.bf16.msra.mxu0 0
      %4389 = vmatprep.subr.bf16.mxu0 0
      %4390 = vmatpush1.bf16.msra.mxu0 %v1691
      %4391 = vmatprep.subr.bf16.mxu0 0
      %4392 = vmatpush2.bf16.msra.mxu0 0
      %4393 = vmatprep.subr.bf16.mxu0 0
      %4394 = vmatpush2.bf16.msra.mxu0 0
      %4395 = vmatprep.subr.bf16.mxu0 0
      %4396 = vmatpush2.bf16.msra.mxu0 0
      %4397 = vmatprep.subr.bf16.mxu0 0
      %4398 = vmatpush2.bf16.msra.mxu0 0
      %4399 = vmatprep.subr.bf16.mxu0 0
      %4400 = vmatpush2.bf16.msra.mxu0 0
      %4401 = vmatprep.subr.bf16.mxu0 0
      %4402 = vmatpush2.bf16.msra.mxu0 0
      %4403 = vmatprep.subr.bf16.mxu0 0
      %4404 = vmatpush2.bf16.msra.mxu0 0
      %4405 = vmatprep.subr.bf16.mxu0 0
      %4406 = vmatpush2.bf16.msra.mxu0 0
      %4407 = vmatprep.mubr.bf16.mxu0 0
      %4408 = vmatmul.mubr.bf16.gmra.mxu0 %v4373
      %v4409 = vpop.f32.mrf.mxu0
      %v4410 = vadd.f32 0.0, %v4409
      %v4411 = vpop.f32.mrf.mxu0
      %v4412 = vpop.f32.mrf.mxu0
      %v4413 = vadd.f32 0.0, %v4412
      %v4414 = vpop.f32.mrf.mxu0
      %4415 = vdwg.mxu0
      %v4417 = vsel %vm3591, %v4298, 0
      %4419 = vmatprep.subr.bf16.mxu0 0
      %4420 = vmatpush1.bf16.msra.mxu0 0
      %4421 = vmatprep.subr.bf16.mxu0 0
      %4422 = vmatpush1.bf16.msra.mxu0 0
      %4423 = vmatprep.subr.bf16.mxu0 0
      %4424 = vmatpush1.bf16.msra.mxu0 0
      %4425 = vmatprep.subr.bf16.mxu0 0
      %4426 = vmatpush1.bf16.msra.mxu0 0
      %4427 = vmatprep.subr.bf16.mxu0 0
      %4428 = vmatpush1.bf16.msra.mxu0 0
      %4429 = vmatprep.subr.bf16.mxu0 0
      %4430 = vmatpush1.bf16.msra.mxu0 0
      %4431 = vmatprep.subr.bf16.mxu0 0
      %4432 = vmatpush1.bf16.msra.mxu0 0
      %4433 = vmatprep.subr.bf16.mxu0 0
      %4434 = vmatpush1.bf16.msra.mxu0 %v1694
      %4435 = vmatprep.subr.bf16.mxu0 0
      %4436 = vmatpush2.bf16.msra.mxu0 0
      %4437 = vmatprep.subr.bf16.mxu0 0
      %4438 = vmatpush2.bf16.msra.mxu0 0
      %4439 = vmatprep.subr.bf16.mxu0 0
      %4440 = vmatpush2.bf16.msra.mxu0 0
      %4441 = vmatprep.subr.bf16.mxu0 0
      %4442 = vmatpush2.bf16.msra.mxu0 0
      %4443 = vmatprep.subr.bf16.mxu0 0
      %4444 = vmatpush2.bf16.msra.mxu0 0
      %4445 = vmatprep.subr.bf16.mxu0 0
      %4446 = vmatpush2.bf16.msra.mxu0 0
      %4447 = vmatprep.subr.bf16.mxu0 0
      %4448 = vmatpush2.bf16.msra.mxu0 0
      %4449 = vmatprep.subr.bf16.mxu0 0
      %4450 = vmatpush2.bf16.msra.mxu0 0
      %4451 = vmatprep.mubr.bf16.mxu0 0
      %4452 = vmatmul.mubr.bf16.gmra.mxu0 %v4417
      %v4453 = vpop.f32.mrf.mxu0
      %v4454 = vadd.f32 0.0, %v4453
      %v4455 = vpop.f32.mrf.mxu0
      %v4456 = vpop.f32.mrf.mxu0
      %v4457 = vadd.f32 0.0, %v4456
      %v4458 = vpop.f32.mrf.mxu0
      %4459 = vdwg.mxu0
      %v4461 = vsel %vm3591, %v4299, 0
      %4463 = vmatprep.subr.bf16.mxu0 0
      %4464 = vmatpush1.bf16.msra.mxu0 0
      %4465 = vmatprep.subr.bf16.mxu0 0
      %4466 = vmatpush1.bf16.msra.mxu0 0
      %4467 = vmatprep.subr.bf16.mxu0 0
      %4468 = vmatpush1.bf16.msra.mxu0 0
      %4469 = vmatprep.subr.bf16.mxu0 0
      %4470 = vmatpush1.bf16.msra.mxu0 0
      %4471 = vmatprep.subr.bf16.mxu0 0
      %4472 = vmatpush1.bf16.msra.mxu0 0
      %4473 = vmatprep.subr.bf16.mxu0 0
      %4474 = vmatpush1.bf16.msra.mxu0 0
      %4475 = vmatprep.subr.bf16.mxu0 0
      %4476 = vmatpush1.bf16.msra.mxu0 0
      %4477 = vmatprep.subr.bf16.mxu0 0
      %4478 = vmatpush1.bf16.msra.mxu0 %v1697
      %4479 = vmatprep.subr.bf16.mxu0 0
      %4480 = vmatpush2.bf16.msra.mxu0 0
      %4481 = vmatprep.subr.bf16.mxu0 0
      %4482 = vmatpush2.bf16.msra.mxu0 0
      %4483 = vmatprep.subr.bf16.mxu0 0
      %4484 = vmatpush2.bf16.msra.mxu0 0
      %4485 = vmatprep.subr.bf16.mxu0 0
      %4486 = vmatpush2.bf16.msra.mxu0 0
      %4487 = vmatprep.subr.bf16.mxu0 0
      %4488 = vmatpush2.bf16.msra.mxu0 0
      %4489 = vmatprep.subr.bf16.mxu0 0
      %4490 = vmatpush2.bf16.msra.mxu0 0
      %4491 = vmatprep.subr.bf16.mxu0 0
      %4492 = vmatpush2.bf16.msra.mxu0 0
      %4493 = vmatprep.subr.bf16.mxu0 0
      %4494 = vmatpush2.bf16.msra.mxu0 0
      %4495 = vmatprep.mubr.bf16.mxu0 0
      %4496 = vmatmul.mubr.bf16.gmra.mxu0 %v4461
      %v4497 = vpop.f32.mrf.mxu0
      %v4498 = vadd.f32 0.0, %v4497
      %v4499 = vpop.f32.mrf.mxu0
      %v4500 = vpop.f32.mrf.mxu0
      %v4501 = vadd.f32 0.0, %v4500
      %v4502 = vpop.f32.mrf.mxu0
      %4503 = vdwg.mxu0
      %v4505 = vsel %vm3591, %v4300, 0
      %4507 = vmatprep.subr.bf16.mxu0 0
      %4508 = vmatpush1.bf16.msra.mxu0 0
      %4509 = vmatprep.subr.bf16.mxu0 0
      %4510 = vmatpush1.bf16.msra.mxu0 0
      %4511 = vmatprep.subr.bf16.mxu0 0
      %4512 = vmatpush1.bf16.msra.mxu0 0
      %4513 = vmatprep.subr.bf16.mxu0 0
      %4514 = vmatpush1.bf16.msra.mxu0 0
      %4515 = vmatprep.subr.bf16.mxu0 0
      %4516 = vmatpush1.bf16.msra.mxu0 0
      %4517 = vmatprep.subr.bf16.mxu0 0
      %4518 = vmatpush1.bf16.msra.mxu0 0
      %4519 = vmatprep.subr.bf16.mxu0 0
      %4520 = vmatpush1.bf16.msra.mxu0 0
      %4521 = vmatprep.subr.bf16.mxu0 0
      %4522 = vmatpush1.bf16.msra.mxu0 %v1700
      %4523 = vmatprep.subr.bf16.mxu0 0
      %4524 = vmatpush2.bf16.msra.mxu0 0
      %4525 = vmatprep.subr.bf16.mxu0 0
      %4526 = vmatpush2.bf16.msra.mxu0 0
      %4527 = vmatprep.subr.bf16.mxu0 0
      %4528 = vmatpush2.bf16.msra.mxu0 0
      %4529 = vmatprep.subr.bf16.mxu0 0
      %4530 = vmatpush2.bf16.msra.mxu0 0
      %4531 = vmatprep.subr.bf16.mxu0 0
      %4532 = vmatpush2.bf16.msra.mxu0 0
      %4533 = vmatprep.subr.bf16.mxu0 0
      %4534 = vmatpush2.bf16.msra.mxu0 0
      %4535 = vmatprep.subr.bf16.mxu0 0
      %4536 = vmatpush2.bf16.msra.mxu0 0
      %4537 = vmatprep.subr.bf16.mxu0 0
      %4538 = vmatpush2.bf16.msra.mxu0 0
      %4539 = vmatprep.mubr.bf16.mxu0 0
      %4540 = vmatmul.mubr.bf16.gmra.mxu0 %v4505
      %v4541 = vpop.f32.mrf.mxu0
      %v4542 = vadd.f32 0.0, %v4541
      %v4543 = vpop.f32.mrf.mxu0
      %v4544 = vpop.f32.mrf.mxu0
      %v4545 = vadd.f32 0.0, %v4544
      %v4546 = vpop.f32.mrf.mxu0
      %4547 = vdwg.mxu0
      %v4549 = vsel %vm3591, %v4301, 0
      %4551 = vmatprep.subr.bf16.mxu0 0
      %4552 = vmatpush1.bf16.msra.mxu0 0
      %4553 = vmatprep.subr.bf16.mxu0 0
      %4554 = vmatpush1.bf16.msra.mxu0 0
      %4555 = vmatprep.subr.bf16.mxu0 0
      %4556 = vmatpush1.bf16.msra.mxu0 0
      %4557 = vmatprep.subr.bf16.mxu0 0
      %4558 = vmatpush1.bf16.msra.mxu0 0
      %4559 = vmatprep.subr.bf16.mxu0 0
      %4560 = vmatpush1.bf16.msra.mxu0 0
      %4561 = vmatprep.subr.bf16.mxu0 0
      %4562 = vmatpush1.bf16.msra.mxu0 0
      %4563 = vmatprep.subr.bf16.mxu0 0
      %4564 = vmatpush1.bf16.msra.mxu0 0
      %4565 = vmatprep.subr.bf16.mxu0 0
      %4566 = vmatpush1.bf16.msra.mxu0 %v1703
      %4567 = vmatprep.subr.bf16.mxu0 0
      %4568 = vmatpush2.bf16.msra.mxu0 0
      %4569 = vmatprep.subr.bf16.mxu0 0
      %4570 = vmatpush2.bf16.msra.mxu0 0
      %4571 = vmatprep.subr.bf16.mxu0 0
      %4572 = vmatpush2.bf16.msra.mxu0 0
      %4573 = vmatprep.subr.bf16.mxu0 0
      %4574 = vmatpush2.bf16.msra.mxu0 0
      %4575 = vmatprep.subr.bf16.mxu0 0
      %4576 = vmatpush2.bf16.msra.mxu0 0
      %4577 = vmatprep.subr.bf16.mxu0 0
      %4578 = vmatpush2.bf16.msra.mxu0 0
      %4579 = vmatprep.subr.bf16.mxu0 0
      %4580 = vmatpush2.bf16.msra.mxu0 0
      %4581 = vmatprep.subr.bf16.mxu0 0
      %4582 = vmatpush2.bf16.msra.mxu0 0
      %4583 = vmatprep.mubr.bf16.mxu0 0
      %4584 = vmatmul.mubr.bf16.gmra.mxu0 %v4549
      %v4585 = vpop.f32.mrf.mxu0
      %v4586 = vadd.f32 0.0, %v4585
      %v4587 = vpop.f32.mrf.mxu0
      %v4588 = vpop.f32.mrf.mxu0
      %v4589 = vadd.f32 0.0, %v4588
      %v4590 = vpop.f32.mrf.mxu0
      %4591 = vdwg.mxu0
      %v4593 = vsel %vm3591, %v4302, 0
      %4595 = vmatprep.subr.bf16.mxu0 0
      %4596 = vmatpush1.bf16.msra.mxu0 0
      %4597 = vmatprep.subr.bf16.mxu0 0
      %4598 = vmatpush1.bf16.msra.mxu0 0
      %4599 = vmatprep.subr.bf16.mxu0 0
      %4600 = vmatpush1.bf16.msra.mxu0 0
      %4601 = vmatprep.subr.bf16.mxu0 0
      %4602 = vmatpush1.bf16.msra.mxu0 0
      %4603 = vmatprep.subr.bf16.mxu0 0
      %4604 = vmatpush1.bf16.msra.mxu0 0
      %4605 = vmatprep.subr.bf16.mxu0 0
      %4606 = vmatpush1.bf16.msra.mxu0 0
      %4607 = vmatprep.subr.bf16.mxu0 0
      %4608 = vmatpush1.bf16.msra.mxu0 0
      %4609 = vmatprep.subr.bf16.mxu0 0
      %4610 = vmatpush1.bf16.msra.mxu0 %v1706
      %4611 = vmatprep.subr.bf16.mxu0 0
      %4612 = vmatpush2.bf16.msra.mxu0 0
      %4613 = vmatprep.subr.bf16.mxu0 0
      %4614 = vmatpush2.bf16.msra.mxu0 0
      %4615 = vmatprep.subr.bf16.mxu0 0
      %4616 = vmatpush2.bf16.msra.mxu0 0
      %4617 = vmatprep.subr.bf16.mxu0 0
      %4618 = vmatpush2.bf16.msra.mxu0 0
      %4619 = vmatprep.subr.bf16.mxu0 0
      %4620 = vmatpush2.bf16.msra.mxu0 0
      %4621 = vmatprep.subr.bf16.mxu0 0
      %4622 = vmatpush2.bf16.msra.mxu0 0
      %4623 = vmatprep.subr.bf16.mxu0 0
      %4624 = vmatpush2.bf16.msra.mxu0 0
      %4625 = vmatprep.subr.bf16.mxu0 0
      %4626 = vmatpush2.bf16.msra.mxu0 0
      %4627 = vmatprep.mubr.bf16.mxu0 0
      %4628 = vmatmul.mubr.bf16.gmra.mxu0 %v4593
      %v4629 = vpop.f32.mrf.mxu0
      %v4630 = vadd.f32 0.0, %v4629
      %v4631 = vpop.f32.mrf.mxu0
      %v4632 = vpop.f32.mrf.mxu0
      %v4633 = vadd.f32 0.0, %v4632
      %v4634 = vpop.f32.mrf.mxu0
      %4635 = vdwg.mxu0
      %v4637 = vsel %vm3591, %v4303, 0
      %4639 = vmatprep.subr.bf16.mxu0 0
      %4640 = vmatpush1.bf16.msra.mxu0 0
      %4641 = vmatprep.subr.bf16.mxu0 0
      %4642 = vmatpush1.bf16.msra.mxu0 0
      %4643 = vmatprep.subr.bf16.mxu0 0
      %4644 = vmatpush1.bf16.msra.mxu0 0
      %4645 = vmatprep.subr.bf16.mxu0 0
      %4646 = vmatpush1.bf16.msra.mxu0 0
      %4647 = vmatprep.subr.bf16.mxu0 0
      %4648 = vmatpush1.bf16.msra.mxu0 0
      %4649 = vmatprep.subr.bf16.mxu0 0
      %4650 = vmatpush1.bf16.msra.mxu0 0
      %4651 = vmatprep.subr.bf16.mxu0 0
      %4652 = vmatpush1.bf16.msra.mxu0 0
      %4653 = vmatprep.subr.bf16.mxu0 0
      %4654 = vmatpush1.bf16.msra.mxu0 %v1709
      %4655 = vmatprep.subr.bf16.mxu0 0
      %4656 = vmatpush2.bf16.msra.mxu0 0
      %4657 = vmatprep.subr.bf16.mxu0 0
      %4658 = vmatpush2.bf16.msra.mxu0 0
      %4659 = vmatprep.subr.bf16.mxu0 0
      %4660 = vmatpush2.bf16.msra.mxu0 0
      %4661 = vmatprep.subr.bf16.mxu0 0
      %4662 = vmatpush2.bf16.msra.mxu0 0
      %4663 = vmatprep.subr.bf16.mxu0 0
      %4664 = vmatpush2.bf16.msra.mxu0 0
      %4665 = vmatprep.subr.bf16.mxu0 0
      %4666 = vmatpush2.bf16.msra.mxu0 0
      %4667 = vmatprep.subr.bf16.mxu0 0
      %4668 = vmatpush2.bf16.msra.mxu0 0
      %4669 = vmatprep.subr.bf16.mxu0 0
      %4670 = vmatpush2.bf16.msra.mxu0 0
      %4671 = vmatprep.mubr.bf16.mxu0 0
      %4672 = vmatmul.mubr.bf16.gmra.mxu0 %v4637
      %v4673 = vpop.f32.mrf.mxu0
      %v4674 = vadd.f32 0.0, %v4673
      %v4675 = vpop.f32.mrf.mxu0
      %v4676 = vpop.f32.mrf.mxu0
      %v4677 = vadd.f32 0.0, %v4676
      %v4678 = vpop.f32.mrf.mxu0
      %4679 = vdwg.mxu0
      %v4681 = vsel %vm3591, %v4304, 0
      %4683 = vmatprep.subr.bf16.mxu0 0
      %4684 = vmatpush1.bf16.msra.mxu0 0
      %4685 = vmatprep.subr.bf16.mxu0 0
      %4686 = vmatpush1.bf16.msra.mxu0 0
      %4687 = vmatprep.subr.bf16.mxu0 0
      %4688 = vmatpush1.bf16.msra.mxu0 0
      %4689 = vmatprep.subr.bf16.mxu0 0
      %4690 = vmatpush1.bf16.msra.mxu0 0
      %4691 = vmatprep.subr.bf16.mxu0 0
      %4692 = vmatpush1.bf16.msra.mxu0 0
      %4693 = vmatprep.subr.bf16.mxu0 0
      %4694 = vmatpush1.bf16.msra.mxu0 0
      %4695 = vmatprep.subr.bf16.mxu0 0
      %4696 = vmatpush1.bf16.msra.mxu0 0
      %4697 = vmatprep.subr.bf16.mxu0 0
      %4698 = vmatpush1.bf16.msra.mxu0 %v1831
      %4699 = vmatprep.subr.bf16.mxu0 0
      %4700 = vmatpush2.bf16.msra.mxu0 0
      %4701 = vmatprep.subr.bf16.mxu0 0
      %4702 = vmatpush2.bf16.msra.mxu0 0
      %4703 = vmatprep.subr.bf16.mxu0 0
      %4704 = vmatpush2.bf16.msra.mxu0 0
      %4705 = vmatprep.subr.bf16.mxu0 0
      %4706 = vmatpush2.bf16.msra.mxu0 0
      %4707 = vmatprep.subr.bf16.mxu0 0
      %4708 = vmatpush2.bf16.msra.mxu0 0
      %4709 = vmatprep.subr.bf16.mxu0 0
      %4710 = vmatpush2.bf16.msra.mxu0 0
      %4711 = vmatprep.subr.bf16.mxu0 0
      %4712 = vmatpush2.bf16.msra.mxu0 0
      %4713 = vmatprep.subr.bf16.mxu0 0
      %4714 = vmatpush2.bf16.msra.mxu0 0
      %4715 = vmatprep.mubr.bf16.mxu0 0
      %4716 = vmatmul.mubr.bf16.gmra.mxu0 %v4681
      %v4717 = vpop.f32.mrf.mxu0
      %v4718 = vadd.f32 0.0, %v4717
      %v4719 = vpop.f32.mrf.mxu0
      %v4720 = vpop.f32.mrf.mxu0
      %v4721 = vadd.f32 0.0, %v4720
      %v4722 = vpop.f32.mrf.mxu0
      %4723 = vdwg.mxu0
      %v4725 = vsel %vm3591, %v4305, 0
      %4727 = vmatprep.subr.bf16.mxu0 0
      %4728 = vmatpush1.bf16.msra.mxu0 0
      %4729 = vmatprep.subr.bf16.mxu0 0
      %4730 = vmatpush1.bf16.msra.mxu0 0
      %4731 = vmatprep.subr.bf16.mxu0 0
      %4732 = vmatpush1.bf16.msra.mxu0 0
      %4733 = vmatprep.subr.bf16.mxu0 0
      %4734 = vmatpush1.bf16.msra.mxu0 0
      %4735 = vmatprep.subr.bf16.mxu0 0
      %4736 = vmatpush1.bf16.msra.mxu0 0
      %4737 = vmatprep.subr.bf16.mxu0 0
      %4738 = vmatpush1.bf16.msra.mxu0 0
      %4739 = vmatprep.subr.bf16.mxu0 0
      %4740 = vmatpush1.bf16.msra.mxu0 0
      %4741 = vmatprep.subr.bf16.mxu0 0
      %4742 = vmatpush1.bf16.msra.mxu0 %v1833
      %4743 = vmatprep.subr.bf16.mxu0 0
      %4744 = vmatpush2.bf16.msra.mxu0 0
      %4745 = vmatprep.subr.bf16.mxu0 0
      %4746 = vmatpush2.bf16.msra.mxu0 0
      %4747 = vmatprep.subr.bf16.mxu0 0
      %4748 = vmatpush2.bf16.msra.mxu0 0
      %4749 = vmatprep.subr.bf16.mxu0 0
      %4750 = vmatpush2.bf16.msra.mxu0 0
      %4751 = vmatprep.subr.bf16.mxu0 0
      %4752 = vmatpush2.bf16.msra.mxu0 0
      %4753 = vmatprep.subr.bf16.mxu0 0
      %4754 = vmatpush2.bf16.msra.mxu0 0
      %4755 = vmatprep.subr.bf16.mxu0 0
      %4756 = vmatpush2.bf16.msra.mxu0 0
      %4757 = vmatprep.subr.bf16.mxu0 0
      %4758 = vmatpush2.bf16.msra.mxu0 0
      %4759 = vmatprep.mubr.bf16.mxu0 0
      %4760 = vmatmul.mubr.bf16.gmra.mxu0 %v4725
      %v4761 = vpop.f32.mrf.mxu0
      %v4762 = vadd.f32 0.0, %v4761
      %v4763 = vpop.f32.mrf.mxu0
      %v4764 = vpop.f32.mrf.mxu0
      %v4765 = vadd.f32 0.0, %v4764
      %v4766 = vpop.f32.mrf.mxu0
      %4767 = vdwg.mxu0
      %v4769 = vsel %vm3591, %v4306, 0
      %4771 = vmatprep.subr.bf16.mxu0 0
      %4772 = vmatpush1.bf16.msra.mxu0 0
      %4773 = vmatprep.subr.bf16.mxu0 0
      %4774 = vmatpush1.bf16.msra.mxu0 0
      %4775 = vmatprep.subr.bf16.mxu0 0
      %4776 = vmatpush1.bf16.msra.mxu0 0
      %4777 = vmatprep.subr.bf16.mxu0 0
      %4778 = vmatpush1.bf16.msra.mxu0 0
      %4779 = vmatprep.subr.bf16.mxu0 0
      %4780 = vmatpush1.bf16.msra.mxu0 0
      %4781 = vmatprep.subr.bf16.mxu0 0
      %4782 = vmatpush1.bf16.msra.mxu0 0
      %4783 = vmatprep.subr.bf16.mxu0 0
      %4784 = vmatpush1.bf16.msra.mxu0 0
      %4785 = vmatprep.subr.bf16.mxu0 0
      %4786 = vmatpush1.bf16.msra.mxu0 %v1835
      %4787 = vmatprep.subr.bf16.mxu0 0
      %4788 = vmatpush2.bf16.msra.mxu0 0
      %4789 = vmatprep.subr.bf16.mxu0 0
      %4790 = vmatpush2.bf16.msra.mxu0 0
      %4791 = vmatprep.subr.bf16.mxu0 0
      %4792 = vmatpush2.bf16.msra.mxu0 0
      %4793 = vmatprep.subr.bf16.mxu0 0
      %4794 = vmatpush2.bf16.msra.mxu0 0
      %4795 = vmatprep.subr.bf16.mxu0 0
      %4796 = vmatpush2.bf16.msra.mxu0 0
      %4797 = vmatprep.subr.bf16.mxu0 0
      %4798 = vmatpush2.bf16.msra.mxu0 0
      %4799 = vmatprep.subr.bf16.mxu0 0
      %4800 = vmatpush2.bf16.msra.mxu0 0
      %4801 = vmatprep.subr.bf16.mxu0 0
      %4802 = vmatpush2.bf16.msra.mxu0 0
      %4803 = vmatprep.mubr.bf16.mxu0 0
      %4804 = vmatmul.mubr.bf16.gmra.mxu0 %v4769
      %v4805 = vpop.f32.mrf.mxu0
      %v4806 = vadd.f32 0.0, %v4805
      %v4807 = vpop.f32.mrf.mxu0
      %v4808 = vpop.f32.mrf.mxu0
      %v4809 = vadd.f32 0.0, %v4808
      %v4810 = vpop.f32.mrf.mxu0
      %4811 = vdwg.mxu0
      %v4813 = vsel %vm3591, %v4307, 0
      %4815 = vmatprep.subr.bf16.mxu0 0
      %4816 = vmatpush1.bf16.msra.mxu0 0
      %4817 = vmatprep.subr.bf16.mxu0 0
      %4818 = vmatpush1.bf16.msra.mxu0 0
      %4819 = vmatprep.subr.bf16.mxu0 0
      %4820 = vmatpush1.bf16.msra.mxu0 0
      %4821 = vmatprep.subr.bf16.mxu0 0
      %4822 = vmatpush1.bf16.msra.mxu0 0
      %4823 = vmatprep.subr.bf16.mxu0 0
      %4824 = vmatpush1.bf16.msra.mxu0 0
      %4825 = vmatprep.subr.bf16.mxu0 0
      %4826 = vmatpush1.bf16.msra.mxu0 0
      %4827 = vmatprep.subr.bf16.mxu0 0
      %4828 = vmatpush1.bf16.msra.mxu0 0
      %4829 = vmatprep.subr.bf16.mxu0 0
      %4830 = vmatpush1.bf16.msra.mxu0 %v1837
      %4831 = vmatprep.subr.bf16.mxu0 0
      %4832 = vmatpush2.bf16.msra.mxu0 0
      %4833 = vmatprep.subr.bf16.mxu0 0
      %4834 = vmatpush2.bf16.msra.mxu0 0
      %4835 = vmatprep.subr.bf16.mxu0 0
      %4836 = vmatpush2.bf16.msra.mxu0 0
      %4837 = vmatprep.subr.bf16.mxu0 0
      %4838 = vmatpush2.bf16.msra.mxu0 0
      %4839 = vmatprep.subr.bf16.mxu0 0
      %4840 = vmatpush2.bf16.msra.mxu0 0
      %4841 = vmatprep.subr.bf16.mxu0 0
      %4842 = vmatpush2.bf16.msra.mxu0 0
      %4843 = vmatprep.subr.bf16.mxu0 0
      %4844 = vmatpush2.bf16.msra.mxu0 0
      %4845 = vmatprep.subr.bf16.mxu0 0
      %4846 = vmatpush2.bf16.msra.mxu0 0
      %4847 = vmatprep.mubr.bf16.mxu0 0
      %4848 = vmatmul.mubr.bf16.gmra.mxu0 %v4813
      %v4849 = vpop.f32.mrf.mxu0
      %v4850 = vadd.f32 0.0, %v4849
      %v4851 = vpop.f32.mrf.mxu0
      %v4852 = vpop.f32.mrf.mxu0
      %v4853 = vadd.f32 0.0, %v4852
      %v4854 = vpop.f32.mrf.mxu0
      %4855 = vdwg.mxu0
      %v4857 = vsel %vm3591, %v4308, 0
      %4859 = vmatprep.subr.bf16.mxu0 0
      %4860 = vmatpush1.bf16.msra.mxu0 0
      %4861 = vmatprep.subr.bf16.mxu0 0
      %4862 = vmatpush1.bf16.msra.mxu0 0
      %4863 = vmatprep.subr.bf16.mxu0 0
      %4864 = vmatpush1.bf16.msra.mxu0 0
      %4865 = vmatprep.subr.bf16.mxu0 0
      %4866 = vmatpush1.bf16.msra.mxu0 0
      %4867 = vmatprep.subr.bf16.mxu0 0
      %4868 = vmatpush1.bf16.msra.mxu0 0
      %4869 = vmatprep.subr.bf16.mxu0 0
      %4870 = vmatpush1.bf16.msra.mxu0 0
      %4871 = vmatprep.subr.bf16.mxu0 0
      %4872 = vmatpush1.bf16.msra.mxu0 0
      %4873 = vmatprep.subr.bf16.mxu0 0
      %4874 = vmatpush1.bf16.msra.mxu0 %v1839
      %4875 = vmatprep.subr.bf16.mxu0 0
      %4876 = vmatpush2.bf16.msra.mxu0 0
      %4877 = vmatprep.subr.bf16.mxu0 0
      %4878 = vmatpush2.bf16.msra.mxu0 0
      %4879 = vmatprep.subr.bf16.mxu0 0
      %4880 = vmatpush2.bf16.msra.mxu0 0
      %4881 = vmatprep.subr.bf16.mxu0 0
      %4882 = vmatpush2.bf16.msra.mxu0 0
      %4883 = vmatprep.subr.bf16.mxu0 0
      %4884 = vmatpush2.bf16.msra.mxu0 0
      %4885 = vmatprep.subr.bf16.mxu0 0
      %4886 = vmatpush2.bf16.msra.mxu0 0
      %4887 = vmatprep.subr.bf16.mxu0 0
      %4888 = vmatpush2.bf16.msra.mxu0 0
      %4889 = vmatprep.subr.bf16.mxu0 0
      %4890 = vmatpush2.bf16.msra.mxu0 0
      %4891 = vmatprep.mubr.bf16.mxu0 0
      %4892 = vmatmul.mubr.bf16.gmra.mxu0 %v4857
      %v4893 = vpop.f32.mrf.mxu0
      %v4894 = vadd.f32 0.0, %v4893
      %v4895 = vpop.f32.mrf.mxu0
      %v4896 = vpop.f32.mrf.mxu0
      %v4897 = vadd.f32 0.0, %v4896
      %v4898 = vpop.f32.mrf.mxu0
      %4899 = vdwg.mxu0
      %v4901 = vsel %vm3591, %v4309, 0
      %4903 = vmatprep.subr.bf16.mxu0 0
      %4904 = vmatpush1.bf16.msra.mxu0 0
      %4905 = vmatprep.subr.bf16.mxu0 0
      %4906 = vmatpush1.bf16.msra.mxu0 0
      %4907 = vmatprep.subr.bf16.mxu0 0
      %4908 = vmatpush1.bf16.msra.mxu0 0
      %4909 = vmatprep.subr.bf16.mxu0 0
      %4910 = vmatpush1.bf16.msra.mxu0 0
      %4911 = vmatprep.subr.bf16.mxu0 0
      %4912 = vmatpush1.bf16.msra.mxu0 0
      %4913 = vmatprep.subr.bf16.mxu0 0
      %4914 = vmatpush1.bf16.msra.mxu0 0
      %4915 = vmatprep.subr.bf16.mxu0 0
      %4916 = vmatpush1.bf16.msra.mxu0 0
      %4917 = vmatprep.subr.bf16.mxu0 0
      %4918 = vmatpush1.bf16.msra.mxu0 %v1841
      %4919 = vmatprep.subr.bf16.mxu0 0
      %4920 = vmatpush2.bf16.msra.mxu0 0
      %4921 = vmatprep.subr.bf16.mxu0 0
      %4922 = vmatpush2.bf16.msra.mxu0 0
      %4923 = vmatprep.subr.bf16.mxu0 0
      %4924 = vmatpush2.bf16.msra.mxu0 0
      %4925 = vmatprep.subr.bf16.mxu0 0
      %4926 = vmatpush2.bf16.msra.mxu0 0
      %4927 = vmatprep.subr.bf16.mxu0 0
      %4928 = vmatpush2.bf16.msra.mxu0 0
      %4929 = vmatprep.subr.bf16.mxu0 0
      %4930 = vmatpush2.bf16.msra.mxu0 0
      %4931 = vmatprep.subr.bf16.mxu0 0
      %4932 = vmatpush2.bf16.msra.mxu0 0
      %4933 = vmatprep.subr.bf16.mxu0 0
      %4934 = vmatpush2.bf16.msra.mxu0 0
      %4935 = vmatprep.mubr.bf16.mxu0 0
      %4936 = vmatmul.mubr.bf16.gmra.mxu0 %v4901
      %v4937 = vpop.f32.mrf.mxu0
      %v4938 = vadd.f32 0.0, %v4937
      %v4939 = vpop.f32.mrf.mxu0
      %v4940 = vpop.f32.mrf.mxu0
      %v4941 = vadd.f32 0.0, %v4940
      %v4942 = vpop.f32.mrf.mxu0
      %4943 = vdwg.mxu0
      %v4945 = vsel %vm3591, %v4310, 0
      %4947 = vmatprep.subr.bf16.mxu0 0
      %4948 = vmatpush1.bf16.msra.mxu0 0
      %4949 = vmatprep.subr.bf16.mxu0 0
      %4950 = vmatpush1.bf16.msra.mxu0 0
      %4951 = vmatprep.subr.bf16.mxu0 0
      %4952 = vmatpush1.bf16.msra.mxu0 0
      %4953 = vmatprep.subr.bf16.mxu0 0
      %4954 = vmatpush1.bf16.msra.mxu0 0
      %4955 = vmatprep.subr.bf16.mxu0 0
      %4956 = vmatpush1.bf16.msra.mxu0 0
      %4957 = vmatprep.subr.bf16.mxu0 0
      %4958 = vmatpush1.bf16.msra.mxu0 0
      %4959 = vmatprep.subr.bf16.mxu0 0
      %4960 = vmatpush1.bf16.msra.mxu0 0
      %4961 = vmatprep.subr.bf16.mxu0 0
      %4962 = vmatpush1.bf16.msra.mxu0 %v1843
      %4963 = vmatprep.subr.bf16.mxu0 0
      %4964 = vmatpush2.bf16.msra.mxu0 0
      %4965 = vmatprep.subr.bf16.mxu0 0
      %4966 = vmatpush2.bf16.msra.mxu0 0
      %4967 = vmatprep.subr.bf16.mxu0 0
      %4968 = vmatpush2.bf16.msra.mxu0 0
      %4969 = vmatprep.subr.bf16.mxu0 0
      %4970 = vmatpush2.bf16.msra.mxu0 0
      %4971 = vmatprep.subr.bf16.mxu0 0
      %4972 = vmatpush2.bf16.msra.mxu0 0
      %4973 = vmatprep.subr.bf16.mxu0 0
      %4974 = vmatpush2.bf16.msra.mxu0 0
      %4975 = vmatprep.subr.bf16.mxu0 0
      %4976 = vmatpush2.bf16.msra.mxu0 0
      %4977 = vmatprep.subr.bf16.mxu0 0
      %4978 = vmatpush2.bf16.msra.mxu0 0
      %4979 = vmatprep.mubr.bf16.mxu0 0
      %4980 = vmatmul.mubr.bf16.gmra.mxu0 %v4945
      %v4981 = vpop.f32.mrf.mxu0
      %v4982 = vadd.f32 0.0, %v4981
      %v4983 = vpop.f32.mrf.mxu0
      %v4984 = vpop.f32.mrf.mxu0
      %v4985 = vadd.f32 0.0, %v4984
      %v4986 = vpop.f32.mrf.mxu0
      %4987 = vdwg.mxu0
      %v4989 = vsel %vm3591, %v4311, 0
      %4991 = vmatprep.subr.bf16.mxu0 0
      %4992 = vmatpush1.bf16.msra.mxu0 0
      %4993 = vmatprep.subr.bf16.mxu0 0
      %4994 = vmatpush1.bf16.msra.mxu0 0
      %4995 = vmatprep.subr.bf16.mxu0 0
      %4996 = vmatpush1.bf16.msra.mxu0 0
      %4997 = vmatprep.subr.bf16.mxu0 0
      %4998 = vmatpush1.bf16.msra.mxu0 0
      %4999 = vmatprep.subr.bf16.mxu0 0
      %5000 = vmatpush1.bf16.msra.mxu0 0
      %5001 = vmatprep.subr.bf16.mxu0 0
      %5002 = vmatpush1.bf16.msra.mxu0 0
      %5003 = vmatprep.subr.bf16.mxu0 0
      %5004 = vmatpush1.bf16.msra.mxu0 0
      %5005 = vmatprep.subr.bf16.mxu0 0
      %5006 = vmatpush1.bf16.msra.mxu0 %v1845
      %5007 = vmatprep.subr.bf16.mxu0 0
      %5008 = vmatpush2.bf16.msra.mxu0 0
      %5009 = vmatprep.subr.bf16.mxu0 0
      %5010 = vmatpush2.bf16.msra.mxu0 0
      %5011 = vmatprep.subr.bf16.mxu0 0
      %5012 = vmatpush2.bf16.msra.mxu0 0
      %5013 = vmatprep.subr.bf16.mxu0 0
      %5014 = vmatpush2.bf16.msra.mxu0 0
      %5015 = vmatprep.subr.bf16.mxu0 0
      %5016 = vmatpush2.bf16.msra.mxu0 0
      %5017 = vmatprep.subr.bf16.mxu0 0
      %5018 = vmatpush2.bf16.msra.mxu0 0
      %5019 = vmatprep.subr.bf16.mxu0 0
      %5020 = vmatpush2.bf16.msra.mxu0 0
      %5021 = vmatprep.subr.bf16.mxu0 0
      %5022 = vmatpush2.bf16.msra.mxu0 0
      %5023 = vmatprep.mubr.bf16.mxu0 0
      %5024 = vmatmul.mubr.bf16.gmra.mxu0 %v4989
      %v5025 = vpop.f32.mrf.mxu0
      %v5026 = vadd.f32 0.0, %v5025
      %v5027 = vpop.f32.mrf.mxu0
      %v5028 = vpop.f32.mrf.mxu0
      %v5029 = vadd.f32 0.0, %v5028
      %v5030 = vpop.f32.mrf.mxu0
      %5031 = vdwg.mxu0
      %v5033 = vsel %vm3591, %v4312, 0
      %5035 = vmatprep.subr.bf16.mxu0 0
      %5036 = vmatpush1.bf16.msra.mxu0 0
      %5037 = vmatprep.subr.bf16.mxu0 0
      %5038 = vmatpush1.bf16.msra.mxu0 0
      %5039 = vmatprep.subr.bf16.mxu0 0
      %5040 = vmatpush1.bf16.msra.mxu0 0
      %5041 = vmatprep.subr.bf16.mxu0 0
      %5042 = vmatpush1.bf16.msra.mxu0 0
      %5043 = vmatprep.subr.bf16.mxu0 0
      %5044 = vmatpush1.bf16.msra.mxu0 0
      %5045 = vmatprep.subr.bf16.mxu0 0
      %5046 = vmatpush1.bf16.msra.mxu0 0
      %5047 = vmatprep.subr.bf16.mxu0 0
      %5048 = vmatpush1.bf16.msra.mxu0 0
      %5049 = vmatprep.subr.bf16.mxu0 0
      %5050 = vmatpush1.bf16.msra.mxu0 %v1855
      %5051 = vmatprep.subr.bf16.mxu0 0
      %5052 = vmatpush2.bf16.msra.mxu0 0
      %5053 = vmatprep.subr.bf16.mxu0 0
      %5054 = vmatpush2.bf16.msra.mxu0 0
      %5055 = vmatprep.subr.bf16.mxu0 0
      %5056 = vmatpush2.bf16.msra.mxu0 0
      %5057 = vmatprep.subr.bf16.mxu0 0
      %5058 = vmatpush2.bf16.msra.mxu0 0
      %5059 = vmatprep.subr.bf16.mxu0 0
      %5060 = vmatpush2.bf16.msra.mxu0 0
      %5061 = vmatprep.subr.bf16.mxu0 0
      %5062 = vmatpush2.bf16.msra.mxu0 0
      %5063 = vmatprep.subr.bf16.mxu0 0
      %5064 = vmatpush2.bf16.msra.mxu0 0
      %5065 = vmatprep.subr.bf16.mxu0 0
      %5066 = vmatpush2.bf16.msra.mxu0 0
      %5067 = vmatprep.mubr.bf16.mxu0 0
      %5068 = vmatmul.mubr.bf16.gmra.mxu0 %v5033
      %v5069 = vpop.f32.mrf.mxu0
      %v5070 = vadd.f32 0.0, %v5069
      %v5071 = vpop.f32.mrf.mxu0
      %v5072 = vpop.f32.mrf.mxu0
      %v5073 = vadd.f32 0.0, %v5072
      %v5074 = vpop.f32.mrf.mxu0
      %5075 = vdwg.mxu0
      %v5077 = vsel %vm3591, %v4313, 0
      %5079 = vmatprep.subr.bf16.mxu0 0
      %5080 = vmatpush1.bf16.msra.mxu0 0
      %5081 = vmatprep.subr.bf16.mxu0 0
      %5082 = vmatpush1.bf16.msra.mxu0 0
      %5083 = vmatprep.subr.bf16.mxu0 0
      %5084 = vmatpush1.bf16.msra.mxu0 0
      %5085 = vmatprep.subr.bf16.mxu0 0
      %5086 = vmatpush1.bf16.msra.mxu0 0
      %5087 = vmatprep.subr.bf16.mxu0 0
      %5088 = vmatpush1.bf16.msra.mxu0 0
      %5089 = vmatprep.subr.bf16.mxu0 0
      %5090 = vmatpush1.bf16.msra.mxu0 0
      %5091 = vmatprep.subr.bf16.mxu0 0
      %5092 = vmatpush1.bf16.msra.mxu0 0
      %5093 = vmatprep.subr.bf16.mxu0 0
      %5094 = vmatpush1.bf16.msra.mxu0 %v1857
      %5095 = vmatprep.subr.bf16.mxu0 0
      %5096 = vmatpush2.bf16.msra.mxu0 0
      %5097 = vmatprep.subr.bf16.mxu0 0
      %5098 = vmatpush2.bf16.msra.mxu0 0
      %5099 = vmatprep.subr.bf16.mxu0 0
      %5100 = vmatpush2.bf16.msra.mxu0 0
      %5101 = vmatprep.subr.bf16.mxu0 0
      %5102 = vmatpush2.bf16.msra.mxu0 0
      %5103 = vmatprep.subr.bf16.mxu0 0
      %5104 = vmatpush2.bf16.msra.mxu0 0
      %5105 = vmatprep.subr.bf16.mxu0 0
      %5106 = vmatpush2.bf16.msra.mxu0 0
      %5107 = vmatprep.subr.bf16.mxu0 0
      %5108 = vmatpush2.bf16.msra.mxu0 0
      %5109 = vmatprep.subr.bf16.mxu0 0
      %5110 = vmatpush2.bf16.msra.mxu0 0
      %5111 = vmatprep.mubr.bf16.mxu0 0
      %5112 = vmatmul.mubr.bf16.gmra.mxu0 %v5077
      %v5113 = vpop.f32.mrf.mxu0
      %v5114 = vadd.f32 0.0, %v5113
      %v5115 = vpop.f32.mrf.mxu0
      %v5116 = vpop.f32.mrf.mxu0
      %v5117 = vadd.f32 0.0, %v5116
      %v5118 = vpop.f32.mrf.mxu0
      %5119 = vdwg.mxu0
      %v5121 = vsel %vm3591, %v4314, 0
      %5123 = vmatprep.subr.bf16.mxu0 0
      %5124 = vmatpush1.bf16.msra.mxu0 0
      %5125 = vmatprep.subr.bf16.mxu0 0
      %5126 = vmatpush1.bf16.msra.mxu0 0
      %5127 = vmatprep.subr.bf16.mxu0 0
      %5128 = vmatpush1.bf16.msra.mxu0 0
      %5129 = vmatprep.subr.bf16.mxu0 0
      %5130 = vmatpush1.bf16.msra.mxu0 0
      %5131 = vmatprep.subr.bf16.mxu0 0
      %5132 = vmatpush1.bf16.msra.mxu0 0
      %5133 = vmatprep.subr.bf16.mxu0 0
      %5134 = vmatpush1.bf16.msra.mxu0 0
      %5135 = vmatprep.subr.bf16.mxu0 0
      %5136 = vmatpush1.bf16.msra.mxu0 0
      %5137 = vmatprep.subr.bf16.mxu0 0
      %5138 = vmatpush1.bf16.msra.mxu0 %v1859
      %5139 = vmatprep.subr.bf16.mxu0 0
      %5140 = vmatpush2.bf16.msra.mxu0 0
      %5141 = vmatprep.subr.bf16.mxu0 0
      %5142 = vmatpush2.bf16.msra.mxu0 0
      %5143 = vmatprep.subr.bf16.mxu0 0
      %5144 = vmatpush2.bf16.msra.mxu0 0
      %5145 = vmatprep.subr.bf16.mxu0 0
      %5146 = vmatpush2.bf16.msra.mxu0 0
      %5147 = vmatprep.subr.bf16.mxu0 0
      %5148 = vmatpush2.bf16.msra.mxu0 0
      %5149 = vmatprep.subr.bf16.mxu0 0
      %5150 = vmatpush2.bf16.msra.mxu0 0
      %5151 = vmatprep.subr.bf16.mxu0 0
      %5152 = vmatpush2.bf16.msra.mxu0 0
      %5153 = vmatprep.subr.bf16.mxu0 0
      %5154 = vmatpush2.bf16.msra.mxu0 0
      %5155 = vmatprep.mubr.bf16.mxu0 0
      %5156 = vmatmul.mubr.bf16.gmra.mxu0 %v5121
      %v5157 = vpop.f32.mrf.mxu0
      %v5158 = vadd.f32 0.0, %v5157
      %v5159 = vpop.f32.mrf.mxu0
      %v5160 = vpop.f32.mrf.mxu0
      %v5161 = vadd.f32 0.0, %v5160
      %v5162 = vpop.f32.mrf.mxu0
      %5163 = vdwg.mxu0
      %v5165 = vsel %vm3591, %v4315, 0
      %5167 = vmatprep.subr.bf16.mxu0 0
      %5168 = vmatpush1.bf16.msra.mxu0 0
      %5169 = vmatprep.subr.bf16.mxu0 0
      %5170 = vmatpush1.bf16.msra.mxu0 0
      %5171 = vmatprep.subr.bf16.mxu0 0
      %5172 = vmatpush1.bf16.msra.mxu0 0
      %5173 = vmatprep.subr.bf16.mxu0 0
      %5174 = vmatpush1.bf16.msra.mxu0 0
      %5175 = vmatprep.subr.bf16.mxu0 0
      %5176 = vmatpush1.bf16.msra.mxu0 0
      %5177 = vmatprep.subr.bf16.mxu0 0
      %5178 = vmatpush1.bf16.msra.mxu0 0
      %5179 = vmatprep.subr.bf16.mxu0 0
      %5180 = vmatpush1.bf16.msra.mxu0 0
      %5181 = vmatprep.subr.bf16.mxu0 0
      %5182 = vmatpush1.bf16.msra.mxu0 %v1861
      %5183 = vmatprep.subr.bf16.mxu0 0
      %5184 = vmatpush2.bf16.msra.mxu0 0
      %5185 = vmatprep.subr.bf16.mxu0 0
      %5186 = vmatpush2.bf16.msra.mxu0 0
      %5187 = vmatprep.subr.bf16.mxu0 0
      %5188 = vmatpush2.bf16.msra.mxu0 0
      %5189 = vmatprep.subr.bf16.mxu0 0
      %5190 = vmatpush2.bf16.msra.mxu0 0
      %5191 = vmatprep.subr.bf16.mxu0 0
      %5192 = vmatpush2.bf16.msra.mxu0 0
      %5193 = vmatprep.subr.bf16.mxu0 0
      %5194 = vmatpush2.bf16.msra.mxu0 0
      %5195 = vmatprep.subr.bf16.mxu0 0
      %5196 = vmatpush2.bf16.msra.mxu0 0
      %5197 = vmatprep.subr.bf16.mxu0 0
      %5198 = vmatpush2.bf16.msra.mxu0 0
      %5199 = vmatprep.mubr.bf16.mxu0 0
      %5200 = vmatmul.mubr.bf16.gmra.mxu0 %v5165
      %v5201 = vpop.f32.mrf.mxu0
      %v5202 = vadd.f32 0.0, %v5201
      %v5203 = vpop.f32.mrf.mxu0
      %v5204 = vpop.f32.mrf.mxu0
      %v5205 = vadd.f32 0.0, %v5204
      %v5206 = vpop.f32.mrf.mxu0
      %5207 = vdwg.mxu0
      %v5209 = vsel %vm3591, %v4316, 0
      %5211 = vmatprep.subr.bf16.mxu0 0
      %5212 = vmatpush1.bf16.msra.mxu0 0
      %5213 = vmatprep.subr.bf16.mxu0 0
      %5214 = vmatpush1.bf16.msra.mxu0 0
      %5215 = vmatprep.subr.bf16.mxu0 0
      %5216 = vmatpush1.bf16.msra.mxu0 0
      %5217 = vmatprep.subr.bf16.mxu0 0
      %5218 = vmatpush1.bf16.msra.mxu0 0
      %5219 = vmatprep.subr.bf16.mxu0 0
      %5220 = vmatpush1.bf16.msra.mxu0 0
      %5221 = vmatprep.subr.bf16.mxu0 0
      %5222 = vmatpush1.bf16.msra.mxu0 0
      %5223 = vmatprep.subr.bf16.mxu0 0
      %5224 = vmatpush1.bf16.msra.mxu0 0
      %5225 = vmatprep.subr.bf16.mxu0 0
      %5226 = vmatpush1.bf16.msra.mxu0 %v1863
      %5227 = vmatprep.subr.bf16.mxu0 0
      %5228 = vmatpush2.bf16.msra.mxu0 0
      %5229 = vmatprep.subr.bf16.mxu0 0
      %5230 = vmatpush2.bf16.msra.mxu0 0
      %5231 = vmatprep.subr.bf16.mxu0 0
      %5232 = vmatpush2.bf16.msra.mxu0 0
      %5233 = vmatprep.subr.bf16.mxu0 0
      %5234 = vmatpush2.bf16.msra.mxu0 0
      %5235 = vmatprep.subr.bf16.mxu0 0
      %5236 = vmatpush2.bf16.msra.mxu0 0
      %5237 = vmatprep.subr.bf16.mxu0 0
      %5238 = vmatpush2.bf16.msra.mxu0 0
      %5239 = vmatprep.subr.bf16.mxu0 0
      %5240 = vmatpush2.bf16.msra.mxu0 0
      %5241 = vmatprep.subr.bf16.mxu0 0
      %5242 = vmatpush2.bf16.msra.mxu0 0
      %5243 = vmatprep.mubr.bf16.mxu0 0
      %5244 = vmatmul.mubr.bf16.gmra.mxu0 %v5209
      %v5245 = vpop.f32.mrf.mxu0
      %v5246 = vadd.f32 0.0, %v5245
      %v5247 = vpop.f32.mrf.mxu0
      %v5248 = vpop.f32.mrf.mxu0
      %v5249 = vadd.f32 0.0, %v5248
      %v5250 = vpop.f32.mrf.mxu0
      %5251 = vdwg.mxu0
      %v5253 = vsel %vm3591, %v4317, 0
      %5255 = vmatprep.subr.bf16.mxu0 0
      %5256 = vmatpush1.bf16.msra.mxu0 0
      %5257 = vmatprep.subr.bf16.mxu0 0
      %5258 = vmatpush1.bf16.msra.mxu0 0
      %5259 = vmatprep.subr.bf16.mxu0 0
      %5260 = vmatpush1.bf16.msra.mxu0 0
      %5261 = vmatprep.subr.bf16.mxu0 0
      %5262 = vmatpush1.bf16.msra.mxu0 0
      %5263 = vmatprep.subr.bf16.mxu0 0
      %5264 = vmatpush1.bf16.msra.mxu0 0
      %5265 = vmatprep.subr.bf16.mxu0 0
      %5266 = vmatpush1.bf16.msra.mxu0 0
      %5267 = vmatprep.subr.bf16.mxu0 0
      %5268 = vmatpush1.bf16.msra.mxu0 0
      %5269 = vmatprep.subr.bf16.mxu0 0
      %5270 = vmatpush1.bf16.msra.mxu0 %v1865
      %5271 = vmatprep.subr.bf16.mxu0 0
      %5272 = vmatpush2.bf16.msra.mxu0 0
      %5273 = vmatprep.subr.bf16.mxu0 0
      %5274 = vmatpush2.bf16.msra.mxu0 0
      %5275 = vmatprep.subr.bf16.mxu0 0
      %5276 = vmatpush2.bf16.msra.mxu0 0
      %5277 = vmatprep.subr.bf16.mxu0 0
      %5278 = vmatpush2.bf16.msra.mxu0 0
      %5279 = vmatprep.subr.bf16.mxu0 0
      %5280 = vmatpush2.bf16.msra.mxu0 0
      %5281 = vmatprep.subr.bf16.mxu0 0
      %5282 = vmatpush2.bf16.msra.mxu0 0
      %5283 = vmatprep.subr.bf16.mxu0 0
      %5284 = vmatpush2.bf16.msra.mxu0 0
      %5285 = vmatprep.subr.bf16.mxu0 0
      %5286 = vmatpush2.bf16.msra.mxu0 0
      %5287 = vmatprep.mubr.bf16.mxu0 0
      %5288 = vmatmul.mubr.bf16.gmra.mxu0 %v5253
      %v5289 = vpop.f32.mrf.mxu0
      %v5290 = vadd.f32 0.0, %v5289
      %v5291 = vpop.f32.mrf.mxu0
      %v5292 = vpop.f32.mrf.mxu0
      %v5293 = vadd.f32 0.0, %v5292
      %v5294 = vpop.f32.mrf.mxu0
      %5295 = vdwg.mxu0
      %v5297 = vsel %vm3591, %v4318, 0
      %5299 = vmatprep.subr.bf16.mxu0 0
      %5300 = vmatpush1.bf16.msra.mxu0 0
      %5301 = vmatprep.subr.bf16.mxu0 0
      %5302 = vmatpush1.bf16.msra.mxu0 0
      %5303 = vmatprep.subr.bf16.mxu0 0
      %5304 = vmatpush1.bf16.msra.mxu0 0
      %5305 = vmatprep.subr.bf16.mxu0 0
      %5306 = vmatpush1.bf16.msra.mxu0 0
      %5307 = vmatprep.subr.bf16.mxu0 0
      %5308 = vmatpush1.bf16.msra.mxu0 0
      %5309 = vmatprep.subr.bf16.mxu0 0
      %5310 = vmatpush1.bf16.msra.mxu0 0
      %5311 = vmatprep.subr.bf16.mxu0 0
      %5312 = vmatpush1.bf16.msra.mxu0 0
      %5313 = vmatprep.subr.bf16.mxu0 0
      %5314 = vmatpush1.bf16.msra.mxu0 %v1867
      %5315 = vmatprep.subr.bf16.mxu0 0
      %5316 = vmatpush2.bf16.msra.mxu0 0
      %5317 = vmatprep.subr.bf16.mxu0 0
      %5318 = vmatpush2.bf16.msra.mxu0 0
      %5319 = vmatprep.subr.bf16.mxu0 0
      %5320 = vmatpush2.bf16.msra.mxu0 0
      %5321 = vmatprep.subr.bf16.mxu0 0
      %5322 = vmatpush2.bf16.msra.mxu0 0
      %5323 = vmatprep.subr.bf16.mxu0 0
      %5324 = vmatpush2.bf16.msra.mxu0 0
      %5325 = vmatprep.subr.bf16.mxu0 0
      %5326 = vmatpush2.bf16.msra.mxu0 0
      %5327 = vmatprep.subr.bf16.mxu0 0
      %5328 = vmatpush2.bf16.msra.mxu0 0
      %5329 = vmatprep.subr.bf16.mxu0 0
      %5330 = vmatpush2.bf16.msra.mxu0 0
      %5331 = vmatprep.mubr.bf16.mxu0 0
      %5332 = vmatmul.mubr.bf16.gmra.mxu0 %v5297
      %v5333 = vpop.f32.mrf.mxu0
      %v5334 = vadd.f32 0.0, %v5333
      %v5335 = vpop.f32.mrf.mxu0
      %v5336 = vpop.f32.mrf.mxu0
      %v5337 = vadd.f32 0.0, %v5336
      %v5338 = vpop.f32.mrf.mxu0
      %5339 = vdwg.mxu0
      %v5341 = vsel %vm3591, %v4319, 0
      %5343 = vmatprep.subr.bf16.mxu0 0
      %5344 = vmatpush1.bf16.msra.mxu0 0
      %5345 = vmatprep.subr.bf16.mxu0 0
      %5346 = vmatpush1.bf16.msra.mxu0 0
      %5347 = vmatprep.subr.bf16.mxu0 0
      %5348 = vmatpush1.bf16.msra.mxu0 0
      %5349 = vmatprep.subr.bf16.mxu0 0
      %5350 = vmatpush1.bf16.msra.mxu0 0
      %5351 = vmatprep.subr.bf16.mxu0 0
      %5352 = vmatpush1.bf16.msra.mxu0 0
      %5353 = vmatprep.subr.bf16.mxu0 0
      %5354 = vmatpush1.bf16.msra.mxu0 0
      %5355 = vmatprep.subr.bf16.mxu0 0
      %5356 = vmatpush1.bf16.msra.mxu0 0
      %5357 = vmatprep.subr.bf16.mxu0 0
      %5358 = vmatpush1.bf16.msra.mxu0 %v1869
      %5359 = vmatprep.subr.bf16.mxu0 0
      %5360 = vmatpush2.bf16.msra.mxu0 0
      %5361 = vmatprep.subr.bf16.mxu0 0
      %5362 = vmatpush2.bf16.msra.mxu0 0
      %5363 = vmatprep.subr.bf16.mxu0 0
      %5364 = vmatpush2.bf16.msra.mxu0 0
      %5365 = vmatprep.subr.bf16.mxu0 0
      %5366 = vmatpush2.bf16.msra.mxu0 0
      %5367 = vmatprep.subr.bf16.mxu0 0
      %5368 = vmatpush2.bf16.msra.mxu0 0
      %5369 = vmatprep.subr.bf16.mxu0 0
      %5370 = vmatpush2.bf16.msra.mxu0 0
      %5371 = vmatprep.subr.bf16.mxu0 0
      %5372 = vmatpush2.bf16.msra.mxu0 0
      %5373 = vmatprep.subr.bf16.mxu0 0
      %5374 = vmatpush2.bf16.msra.mxu0 0
      %5375 = vmatprep.mubr.bf16.mxu0 0
      %5376 = vmatmul.mubr.bf16.gmra.mxu0 %v5341
      %v5377 = vpop.f32.mrf.mxu0
      %v5378 = vadd.f32 0.0, %v5377
      %v5379 = vpop.f32.mrf.mxu0
      %v5380 = vpop.f32.mrf.mxu0
      %v5381 = vadd.f32 0.0, %v5380
      %v5382 = vpop.f32.mrf.mxu0
      %5383 = vdwg.mxu0
      %v5385 = vsel %vm3591, %v4320, 0
      %5387 = vmatprep.subr.bf16.mxu0 0
      %5388 = vmatpush1.bf16.msra.mxu0 0
      %5389 = vmatprep.subr.bf16.mxu0 0
      %5390 = vmatpush1.bf16.msra.mxu0 0
      %5391 = vmatprep.subr.bf16.mxu0 0
      %5392 = vmatpush1.bf16.msra.mxu0 0
      %5393 = vmatprep.subr.bf16.mxu0 0
      %5394 = vmatpush1.bf16.msra.mxu0 0
      %5395 = vmatprep.subr.bf16.mxu0 0
      %5396 = vmatpush1.bf16.msra.mxu0 0
      %5397 = vmatprep.subr.bf16.mxu0 0
      %5398 = vmatpush1.bf16.msra.mxu0 0
      %5399 = vmatprep.subr.bf16.mxu0 0
      %5400 = vmatpush1.bf16.msra.mxu0 0
      %5401 = vmatprep.subr.bf16.mxu0 0
      %5402 = vmatpush1.bf16.msra.mxu0 %v1879
      %5403 = vmatprep.subr.bf16.mxu0 0
      %5404 = vmatpush2.bf16.msra.mxu0 0
      %5405 = vmatprep.subr.bf16.mxu0 0
      %5406 = vmatpush2.bf16.msra.mxu0 0
      %5407 = vmatprep.subr.bf16.mxu0 0
      %5408 = vmatpush2.bf16.msra.mxu0 0
      %5409 = vmatprep.subr.bf16.mxu0 0
      %5410 = vmatpush2.bf16.msra.mxu0 0
      %5411 = vmatprep.subr.bf16.mxu0 0
      %5412 = vmatpush2.bf16.msra.mxu0 0
      %5413 = vmatprep.subr.bf16.mxu0 0
      %5414 = vmatpush2.bf16.msra.mxu0 0
      %5415 = vmatprep.subr.bf16.mxu0 0
      %5416 = vmatpush2.bf16.msra.mxu0 0
      %5417 = vmatprep.subr.bf16.mxu0 0
      %5418 = vmatpush2.bf16.msra.mxu0 0
      %5419 = vmatprep.mubr.bf16.mxu0 0
      %5420 = vmatmul.mubr.bf16.gmra.mxu0 %v5385
      %v5421 = vpop.f32.mrf.mxu0
      %v5422 = vadd.f32 0.0, %v5421
      %v5423 = vpop.f32.mrf.mxu0
      %v5424 = vpop.f32.mrf.mxu0
      %v5425 = vadd.f32 0.0, %v5424
      %v5426 = vpop.f32.mrf.mxu0
      %5427 = vdwg.mxu0
      %v5429 = vsel %vm3591, %v4321, 0
      %5431 = vmatprep.subr.bf16.mxu0 0
      %5432 = vmatpush1.bf16.msra.mxu0 0
      %5433 = vmatprep.subr.bf16.mxu0 0
      %5434 = vmatpush1.bf16.msra.mxu0 0
      %5435 = vmatprep.subr.bf16.mxu0 0
      %5436 = vmatpush1.bf16.msra.mxu0 0
      %5437 = vmatprep.subr.bf16.mxu0 0
      %5438 = vmatpush1.bf16.msra.mxu0 0
      %5439 = vmatprep.subr.bf16.mxu0 0
      %5440 = vmatpush1.bf16.msra.mxu0 0
      %5441 = vmatprep.subr.bf16.mxu0 0
      %5442 = vmatpush1.bf16.msra.mxu0 0
      %5443 = vmatprep.subr.bf16.mxu0 0
      %5444 = vmatpush1.bf16.msra.mxu0 0
      %5445 = vmatprep.subr.bf16.mxu0 0
      %5446 = vmatpush1.bf16.msra.mxu0 %v1881
      %5447 = vmatprep.subr.bf16.mxu0 0
      %5448 = vmatpush2.bf16.msra.mxu0 0
      %5449 = vmatprep.subr.bf16.mxu0 0
      %5450 = vmatpush2.bf16.msra.mxu0 0
      %5451 = vmatprep.subr.bf16.mxu0 0
      %5452 = vmatpush2.bf16.msra.mxu0 0
      %5453 = vmatprep.subr.bf16.mxu0 0
      %5454 = vmatpush2.bf16.msra.mxu0 0
      %5455 = vmatprep.subr.bf16.mxu0 0
      %5456 = vmatpush2.bf16.msra.mxu0 0
      %5457 = vmatprep.subr.bf16.mxu0 0
      %5458 = vmatpush2.bf16.msra.mxu0 0
      %5459 = vmatprep.subr.bf16.mxu0 0
      %5460 = vmatpush2.bf16.msra.mxu0 0
      %5461 = vmatprep.subr.bf16.mxu0 0
      %5462 = vmatpush2.bf16.msra.mxu0 0
      %5463 = vmatprep.mubr.bf16.mxu0 0
      %5464 = vmatmul.mubr.bf16.gmra.mxu0 %v5429
      %v5465 = vpop.f32.mrf.mxu0
      %v5466 = vadd.f32 0.0, %v5465
      %v5467 = vpop.f32.mrf.mxu0
      %v5468 = vpop.f32.mrf.mxu0
      %v5469 = vadd.f32 0.0, %v5468
      %v5470 = vpop.f32.mrf.mxu0
      %5471 = vdwg.mxu0
      %v5473 = vsel %vm3591, %v4322, 0
      %5475 = vmatprep.subr.bf16.mxu0 0
      %5476 = vmatpush1.bf16.msra.mxu0 0
      %5477 = vmatprep.subr.bf16.mxu0 0
      %5478 = vmatpush1.bf16.msra.mxu0 0
      %5479 = vmatprep.subr.bf16.mxu0 0
      %5480 = vmatpush1.bf16.msra.mxu0 0
      %5481 = vmatprep.subr.bf16.mxu0 0
      %5482 = vmatpush1.bf16.msra.mxu0 0
      %5483 = vmatprep.subr.bf16.mxu0 0
      %5484 = vmatpush1.bf16.msra.mxu0 0
      %5485 = vmatprep.subr.bf16.mxu0 0
      %5486 = vmatpush1.bf16.msra.mxu0 0
      %5487 = vmatprep.subr.bf16.mxu0 0
      %5488 = vmatpush1.bf16.msra.mxu0 0
      %5489 = vmatprep.subr.bf16.mxu0 0
      %5490 = vmatpush1.bf16.msra.mxu0 %v1883
      %5491 = vmatprep.subr.bf16.mxu0 0
      %5492 = vmatpush2.bf16.msra.mxu0 0
      %5493 = vmatprep.subr.bf16.mxu0 0
      %5494 = vmatpush2.bf16.msra.mxu0 0
      %5495 = vmatprep.subr.bf16.mxu0 0
      %5496 = vmatpush2.bf16.msra.mxu0 0
      %5497 = vmatprep.subr.bf16.mxu0 0
      %5498 = vmatpush2.bf16.msra.mxu0 0
      %5499 = vmatprep.subr.bf16.mxu0 0
      %5500 = vmatpush2.bf16.msra.mxu0 0
      %5501 = vmatprep.subr.bf16.mxu0 0
      %5502 = vmatpush2.bf16.msra.mxu0 0
      %5503 = vmatprep.subr.bf16.mxu0 0
      %5504 = vmatpush2.bf16.msra.mxu0 0
      %5505 = vmatprep.subr.bf16.mxu0 0
      %5506 = vmatpush2.bf16.msra.mxu0 0
      %5507 = vmatprep.mubr.bf16.mxu0 0
      %5508 = vmatmul.mubr.bf16.gmra.mxu0 %v5473
      %v5509 = vpop.f32.mrf.mxu0
      %v5510 = vadd.f32 0.0, %v5509
      %v5511 = vpop.f32.mrf.mxu0
      %v5512 = vpop.f32.mrf.mxu0
      %v5513 = vadd.f32 0.0, %v5512
      %v5514 = vpop.f32.mrf.mxu0
      %5515 = vdwg.mxu0
      %v5517 = vsel %vm3591, %v4323, 0
      %5519 = vmatprep.subr.bf16.mxu0 0
      %5520 = vmatpush1.bf16.msra.mxu0 0
      %5521 = vmatprep.subr.bf16.mxu0 0
      %5522 = vmatpush1.bf16.msra.mxu0 0
      %5523 = vmatprep.subr.bf16.mxu0 0
      %5524 = vmatpush1.bf16.msra.mxu0 0
      %5525 = vmatprep.subr.bf16.mxu0 0
      %5526 = vmatpush1.bf16.msra.mxu0 0
      %5527 = vmatprep.subr.bf16.mxu0 0
      %5528 = vmatpush1.bf16.msra.mxu0 0
      %5529 = vmatprep.subr.bf16.mxu0 0
      %5530 = vmatpush1.bf16.msra.mxu0 0
      %5531 = vmatprep.subr.bf16.mxu0 0
      %5532 = vmatpush1.bf16.msra.mxu0 0
      %5533 = vmatprep.subr.bf16.mxu0 0
      %5534 = vmatpush1.bf16.msra.mxu0 %v1885
      %5535 = vmatprep.subr.bf16.mxu0 0
      %5536 = vmatpush2.bf16.msra.mxu0 0
      %5537 = vmatprep.subr.bf16.mxu0 0
      %5538 = vmatpush2.bf16.msra.mxu0 0
      %5539 = vmatprep.subr.bf16.mxu0 0
      %5540 = vmatpush2.bf16.msra.mxu0 0
      %5541 = vmatprep.subr.bf16.mxu0 0
      %5542 = vmatpush2.bf16.msra.mxu0 0
      %5543 = vmatprep.subr.bf16.mxu0 0
      %5544 = vmatpush2.bf16.msra.mxu0 0
      %5545 = vmatprep.subr.bf16.mxu0 0
      %5546 = vmatpush2.bf16.msra.mxu0 0
      %5547 = vmatprep.subr.bf16.mxu0 0
      %5548 = vmatpush2.bf16.msra.mxu0 0
      %5549 = vmatprep.subr.bf16.mxu0 0
      %5550 = vmatpush2.bf16.msra.mxu0 0
      %5551 = vmatprep.mubr.bf16.mxu0 0
      %5552 = vmatmul.mubr.bf16.gmra.mxu0 %v5517
      %v5553 = vpop.f32.mrf.mxu0
      %v5554 = vadd.f32 0.0, %v5553
      %v5555 = vpop.f32.mrf.mxu0
      %v5556 = vpop.f32.mrf.mxu0
      %v5557 = vadd.f32 0.0, %v5556
      %v5558 = vpop.f32.mrf.mxu0
      %5559 = vdwg.mxu0
      %v5561 = vsel %vm3591, %v4324, 0
      %5563 = vmatprep.subr.bf16.mxu0 0
      %5564 = vmatpush1.bf16.msra.mxu0 0
      %5565 = vmatprep.subr.bf16.mxu0 0
      %5566 = vmatpush1.bf16.msra.mxu0 0
      %5567 = vmatprep.subr.bf16.mxu0 0
      %5568 = vmatpush1.bf16.msra.mxu0 0
      %5569 = vmatprep.subr.bf16.mxu0 0
      %5570 = vmatpush1.bf16.msra.mxu0 0
      %5571 = vmatprep.subr.bf16.mxu0 0
      %5572 = vmatpush1.bf16.msra.mxu0 0
      %5573 = vmatprep.subr.bf16.mxu0 0
      %5574 = vmatpush1.bf16.msra.mxu0 0
      %5575 = vmatprep.subr.bf16.mxu0 0
      %5576 = vmatpush1.bf16.msra.mxu0 0
      %5577 = vmatprep.subr.bf16.mxu0 0
      %5578 = vmatpush1.bf16.msra.mxu0 %v1887
      %5579 = vmatprep.subr.bf16.mxu0 0
      %5580 = vmatpush2.bf16.msra.mxu0 0
      %5581 = vmatprep.subr.bf16.mxu0 0
      %5582 = vmatpush2.bf16.msra.mxu0 0
      %5583 = vmatprep.subr.bf16.mxu0 0
      %5584 = vmatpush2.bf16.msra.mxu0 0
      %5585 = vmatprep.subr.bf16.mxu0 0
      %5586 = vmatpush2.bf16.msra.mxu0 0
      %5587 = vmatprep.subr.bf16.mxu0 0
      %5588 = vmatpush2.bf16.msra.mxu0 0
      %5589 = vmatprep.subr.bf16.mxu0 0
      %5590 = vmatpush2.bf16.msra.mxu0 0
      %5591 = vmatprep.subr.bf16.mxu0 0
      %5592 = vmatpush2.bf16.msra.mxu0 0
      %5593 = vmatprep.subr.bf16.mxu0 0
      %5594 = vmatpush2.bf16.msra.mxu0 0
      %5595 = vmatprep.mubr.bf16.mxu0 0
      %5596 = vmatmul.mubr.bf16.gmra.mxu0 %v5561
      %v5597 = vpop.f32.mrf.mxu0
      %v5598 = vadd.f32 0.0, %v5597
      %v5599 = vpop.f32.mrf.mxu0
      %v5600 = vpop.f32.mrf.mxu0
      %v5601 = vadd.f32 0.0, %v5600
      %v5602 = vpop.f32.mrf.mxu0
      %5603 = vdwg.mxu0
      %v5605 = vsel %vm3591, %v4325, 0
      %5607 = vmatprep.subr.bf16.mxu0 0
      %5608 = vmatpush1.bf16.msra.mxu0 0
      %5609 = vmatprep.subr.bf16.mxu0 0
      %5610 = vmatpush1.bf16.msra.mxu0 0
      %5611 = vmatprep.subr.bf16.mxu0 0
      %5612 = vmatpush1.bf16.msra.mxu0 0
      %5613 = vmatprep.subr.bf16.mxu0 0
      %5614 = vmatpush1.bf16.msra.mxu0 0
      %5615 = vmatprep.subr.bf16.mxu0 0
      %5616 = vmatpush1.bf16.msra.mxu0 0
      %5617 = vmatprep.subr.bf16.mxu0 0
      %5618 = vmatpush1.bf16.msra.mxu0 0
      %5619 = vmatprep.subr.bf16.mxu0 0
      %5620 = vmatpush1.bf16.msra.mxu0 0
      %5621 = vmatprep.subr.bf16.mxu0 0
      %5622 = vmatpush1.bf16.msra.mxu0 %v1889
      %5623 = vmatprep.subr.bf16.mxu0 0
      %5624 = vmatpush2.bf16.msra.mxu0 0
      %5625 = vmatprep.subr.bf16.mxu0 0
      %5626 = vmatpush2.bf16.msra.mxu0 0
      %5627 = vmatprep.subr.bf16.mxu0 0
      %5628 = vmatpush2.bf16.msra.mxu0 0
      %5629 = vmatprep.subr.bf16.mxu0 0
      %5630 = vmatpush2.bf16.msra.mxu0 0
      %5631 = vmatprep.subr.bf16.mxu0 0
      %5632 = vmatpush2.bf16.msra.mxu0 0
      %5633 = vmatprep.subr.bf16.mxu0 0
      %5634 = vmatpush2.bf16.msra.mxu0 0
      %5635 = vmatprep.subr.bf16.mxu0 0
      %5636 = vmatpush2.bf16.msra.mxu0 0
      %5637 = vmatprep.subr.bf16.mxu0 0
      %5638 = vmatpush2.bf16.msra.mxu0 0
      %5639 = vmatprep.mubr.bf16.mxu0 0
      %5640 = vmatmul.mubr.bf16.gmra.mxu0 %v5605
      %v5641 = vpop.f32.mrf.mxu0
      %v5642 = vadd.f32 0.0, %v5641
      %v5643 = vpop.f32.mrf.mxu0
      %v5644 = vpop.f32.mrf.mxu0
      %v5645 = vadd.f32 0.0, %v5644
      %v5646 = vpop.f32.mrf.mxu0
      %5647 = vdwg.mxu0
      %v5649 = vsel %vm3591, %v4326, 0
      %5651 = vmatprep.subr.bf16.mxu0 0
      %5652 = vmatpush1.bf16.msra.mxu0 0
      %5653 = vmatprep.subr.bf16.mxu0 0
      %5654 = vmatpush1.bf16.msra.mxu0 0
      %5655 = vmatprep.subr.bf16.mxu0 0
      %5656 = vmatpush1.bf16.msra.mxu0 0
      %5657 = vmatprep.subr.bf16.mxu0 0
      %5658 = vmatpush1.bf16.msra.mxu0 0
      %5659 = vmatprep.subr.bf16.mxu0 0
      %5660 = vmatpush1.bf16.msra.mxu0 0
      %5661 = vmatprep.subr.bf16.mxu0 0
      %5662 = vmatpush1.bf16.msra.mxu0 0
      %5663 = vmatprep.subr.bf16.mxu0 0
      %5664 = vmatpush1.bf16.msra.mxu0 0
      %5665 = vmatprep.subr.bf16.mxu0 0
      %5666 = vmatpush1.bf16.msra.mxu0 %v1891
      %5667 = vmatprep.subr.bf16.mxu0 0
      %5668 = vmatpush2.bf16.msra.mxu0 0
      %5669 = vmatprep.subr.bf16.mxu0 0
      %5670 = vmatpush2.bf16.msra.mxu0 0
      %5671 = vmatprep.subr.bf16.mxu0 0
      %5672 = vmatpush2.bf16.msra.mxu0 0
      %5673 = vmatprep.subr.bf16.mxu0 0
      %5674 = vmatpush2.bf16.msra.mxu0 0
      %5675 = vmatprep.subr.bf16.mxu0 0
      %5676 = vmatpush2.bf16.msra.mxu0 0
      %5677 = vmatprep.subr.bf16.mxu0 0
      %5678 = vmatpush2.bf16.msra.mxu0 0
      %5679 = vmatprep.subr.bf16.mxu0 0
      %5680 = vmatpush2.bf16.msra.mxu0 0
      %5681 = vmatprep.subr.bf16.mxu0 0
      %5682 = vmatpush2.bf16.msra.mxu0 0
      %5683 = vmatprep.mubr.bf16.mxu0 0
      %5684 = vmatmul.mubr.bf16.gmra.mxu0 %v5649
      %v5685 = vpop.f32.mrf.mxu0
      %v5686 = vadd.f32 0.0, %v5685
      %v5687 = vpop.f32.mrf.mxu0
      %v5688 = vpop.f32.mrf.mxu0
      %v5689 = vadd.f32 0.0, %v5688
      %v5690 = vpop.f32.mrf.mxu0
      %5691 = vdwg.mxu0
      %v5693 = vsel %vm3591, %v4327, 0
      %5695 = vmatprep.subr.bf16.mxu0 0
      %5696 = vmatpush1.bf16.msra.mxu0 0
      %5697 = vmatprep.subr.bf16.mxu0 0
      %5698 = vmatpush1.bf16.msra.mxu0 0
      %5699 = vmatprep.subr.bf16.mxu0 0
      %5700 = vmatpush1.bf16.msra.mxu0 0
      %5701 = vmatprep.subr.bf16.mxu0 0
      %5702 = vmatpush1.bf16.msra.mxu0 0
      %5703 = vmatprep.subr.bf16.mxu0 0
      %5704 = vmatpush1.bf16.msra.mxu0 0
      %5705 = vmatprep.subr.bf16.mxu0 0
      %5706 = vmatpush1.bf16.msra.mxu0 0
      %5707 = vmatprep.subr.bf16.mxu0 0
      %5708 = vmatpush1.bf16.msra.mxu0 0
      %5709 = vmatprep.subr.bf16.mxu0 0
      %5710 = vmatpush1.bf16.msra.mxu0 %v1893
      %5711 = vmatprep.subr.bf16.mxu0 0
      %5712 = vmatpush2.bf16.msra.mxu0 0
      %5713 = vmatprep.subr.bf16.mxu0 0
      %5714 = vmatpush2.bf16.msra.mxu0 0
      %5715 = vmatprep.subr.bf16.mxu0 0
      %5716 = vmatpush2.bf16.msra.mxu0 0
      %5717 = vmatprep.subr.bf16.mxu0 0
      %5718 = vmatpush2.bf16.msra.mxu0 0
      %5719 = vmatprep.subr.bf16.mxu0 0
      %5720 = vmatpush2.bf16.msra.mxu0 0
      %5721 = vmatprep.subr.bf16.mxu0 0
      %5722 = vmatpush2.bf16.msra.mxu0 0
      %5723 = vmatprep.subr.bf16.mxu0 0
      %5724 = vmatpush2.bf16.msra.mxu0 0
      %5725 = vmatprep.subr.bf16.mxu0 0
      %5726 = vmatpush2.bf16.msra.mxu0 0
      %5727 = vmatprep.mubr.bf16.mxu0 0
      %5728 = vmatmul.mubr.bf16.gmra.mxu0 %v5693
      %v5729 = vpop.f32.mrf.mxu0
      %v5730 = vadd.f32 0.0, %v5729
      %v5731 = vpop.f32.mrf.mxu0
      %v5732 = vpop.f32.mrf.mxu0
      %v5733 = vadd.f32 0.0, %v5732
      %v5734 = vpop.f32.mrf.mxu0
      %5735 = vdwg.mxu0
      %5752 = vrot.lane.b32.xlu0 %v4718, 32
      %v5753 = vpop.permute.xlu0 %5752
      %5754 = vrot.lane.b32.xlu0 %v4721, 32
      %v5755 = vpop.permute.xlu0 %5754
      %5756 = vrot.lane.b32.xlu0 %v4762, 32
      %v5757 = vpop.permute.xlu0 %5756
      %5758 = vrot.lane.b32.xlu0 %v4765, 32
      %v5759 = vpop.permute.xlu0 %5758
      %5760 = vrot.lane.b32.xlu0 %v4806, 32
      %v5761 = vpop.permute.xlu0 %5760
      %5762 = vrot.lane.b32.xlu0 %v4809, 32
      %v5763 = vpop.permute.xlu0 %5762
      %5764 = vrot.lane.b32.xlu0 %v4850, 32
      %v5765 = vpop.permute.xlu0 %5764
      %5766 = vrot.lane.b32.xlu0 %v4853, 32
      %v5767 = vpop.permute.xlu0 %5766
      %5768 = vrot.lane.b32.xlu0 %v4894, 32
      %v5769 = vpop.permute.xlu0 %5768
      %5770 = vrot.lane.b32.xlu0 %v4897, 32
      %v5771 = vpop.permute.xlu0 %5770
      %5772 = vrot.lane.b32.xlu0 %v4938, 32
      %v5773 = vpop.permute.xlu0 %5772
      %5774 = vrot.lane.b32.xlu0 %v4941, 32
      %v5775 = vpop.permute.xlu0 %5774
      %5776 = vrot.lane.b32.xlu0 %v4982, 32
      %v5777 = vpop.permute.xlu0 %5776
      %5778 = vrot.lane.b32.xlu0 %v4985, 32
      %v5779 = vpop.permute.xlu0 %5778
      %5780 = vrot.lane.b32.xlu0 %v5026, 32
      %v5781 = vpop.permute.xlu0 %5780
      %5782 = vrot.lane.b32.xlu0 %v5029, 32
      %v5783 = vpop.permute.xlu0 %5782
      %5816 = vrot.lane.b32.xlu0 %v5070, 64
      %v5817 = vpop.permute.xlu0 %5816
      %5818 = vrot.lane.b32.xlu0 %v5073, 64
      %v5819 = vpop.permute.xlu0 %5818
      %5820 = vrot.lane.b32.xlu0 %v5114, 64
      %v5821 = vpop.permute.xlu0 %5820
      %5822 = vrot.lane.b32.xlu0 %v5117, 64
      %v5823 = vpop.permute.xlu0 %5822
      %5824 = vrot.lane.b32.xlu0 %v5158, 64
      %v5825 = vpop.permute.xlu0 %5824
      %5826 = vrot.lane.b32.xlu0 %v5161, 64
      %v5827 = vpop.permute.xlu0 %5826
      %5828 = vrot.lane.b32.xlu0 %v5202, 64
      %v5829 = vpop.permute.xlu0 %5828
      %5830 = vrot.lane.b32.xlu0 %v5205, 64
      %v5831 = vpop.permute.xlu0 %5830
      %5832 = vrot.lane.b32.xlu0 %v5246, 64
      %v5833 = vpop.permute.xlu0 %5832
      %5834 = vrot.lane.b32.xlu0 %v5249, 64
      %v5835 = vpop.permute.xlu0 %5834
      %5836 = vrot.lane.b32.xlu0 %v5290, 64
      %v5837 = vpop.permute.xlu0 %5836
      %5838 = vrot.lane.b32.xlu0 %v5293, 64
      %v5839 = vpop.permute.xlu0 %5838
      %5840 = vrot.lane.b32.xlu0 %v5334, 64
      %v5841 = vpop.permute.xlu0 %5840
      %5842 = vrot.lane.b32.xlu0 %v5337, 64
      %v5843 = vpop.permute.xlu0 %5842
      %5844 = vrot.lane.b32.xlu0 %v5378, 64
      %v5845 = vpop.permute.xlu0 %5844
      %5846 = vrot.lane.b32.xlu0 %v5381, 64
      %v5847 = vpop.permute.xlu0 %5846
      %5880 = vrot.lane.b32.xlu0 %v5422, 96
      %v5881 = vpop.permute.xlu0 %5880
      %5882 = vrot.lane.b32.xlu0 %v5425, 96
      %v5883 = vpop.permute.xlu0 %5882
      %5884 = vrot.lane.b32.xlu0 %v5466, 96
      %v5885 = vpop.permute.xlu0 %5884
      %5886 = vrot.lane.b32.xlu0 %v5469, 96
      %v5887 = vpop.permute.xlu0 %5886
      %5888 = vrot.lane.b32.xlu0 %v5510, 96
      %v5889 = vpop.permute.xlu0 %5888
      %5890 = vrot.lane.b32.xlu0 %v5513, 96
      %v5891 = vpop.permute.xlu0 %5890
      %5892 = vrot.lane.b32.xlu0 %v5554, 96
      %v5893 = vpop.permute.xlu0 %5892
      %5894 = vrot.lane.b32.xlu0 %v5557, 96
      %v5895 = vpop.permute.xlu0 %5894
      %5896 = vrot.lane.b32.xlu0 %v5598, 96
      %v5897 = vpop.permute.xlu0 %5896
      %5898 = vrot.lane.b32.xlu0 %v5601, 96
      %v5899 = vpop.permute.xlu0 %5898
      %5900 = vrot.lane.b32.xlu0 %v5642, 96
      %v5901 = vpop.permute.xlu0 %5900
      %5902 = vrot.lane.b32.xlu0 %v5645, 96
      %v5903 = vpop.permute.xlu0 %5902
      %5904 = vrot.lane.b32.xlu0 %v5686, 96
      %v5905 = vpop.permute.xlu0 %5904
      %5906 = vrot.lane.b32.xlu0 %v5689, 96
      %v5907 = vpop.permute.xlu0 %5906
      %5908 = vrot.lane.b32.xlu0 %v5730, 96
      %v5909 = vpop.permute.xlu0 %5908
      %5910 = vrot.lane.b32.xlu0 %v5733, 96
      %v5911 = vpop.permute.xlu0 %5910
      %v5928 = vsel %vm1902, %v4366, %v5753
      %v5929 = vsel %vm1902, %v4369, %v5755
      %v5930 = vsel %vm1902, %v4410, %v5757
      %v5931 = vsel %vm1902, %v4413, %v5759
      %v5932 = vsel %vm1902, %v4454, %v5761
      %v5933 = vsel %vm1902, %v4457, %v5763
      %v5934 = vsel %vm1902, %v4498, %v5765
      %v5935 = vsel %vm1902, %v4501, %v5767
      %v5936 = vsel %vm1902, %v4542, %v5769
      %v5937 = vsel %vm1902, %v4545, %v5771
      %v5938 = vsel %vm1902, %v4586, %v5773
      %v5939 = vsel %vm1902, %v4589, %v5775
      %v5940 = vsel %vm1902, %v4630, %v5777
      %v5941 = vsel %vm1902, %v4633, %v5779
      %v5942 = vsel %vm1902, %v4674, %v5781
      %v5943 = vsel %vm1902, %v4677, %v5783
      %vm5944 = vcmask 523264
      %v5945 = vsel %vm5944, %v5928, %v5817
      %v5946 = vsel %vm5944, %v5929, %v5819
      %v5947 = vsel %vm5944, %v5930, %v5821
      %v5948 = vsel %vm5944, %v5931, %v5823
      %v5949 = vsel %vm5944, %v5932, %v5825
      %v5950 = vsel %vm5944, %v5933, %v5827
      %v5951 = vsel %vm5944, %v5934, %v5829
      %v5952 = vsel %vm5944, %v5935, %v5831
      %v5953 = vsel %vm5944, %v5936, %v5833
      %v5954 = vsel %vm5944, %v5937, %v5835
      %v5955 = vsel %vm5944, %v5938, %v5837
      %v5956 = vsel %vm5944, %v5939, %v5839
      %v5957 = vsel %vm5944, %v5940, %v5841
      %v5958 = vsel %vm5944, %v5941, %v5843
      %v5959 = vsel %vm5944, %v5942, %v5845
      %v5960 = vsel %vm5944, %v5943, %v5847
      %vm5961 = vcmask 785408
      %v5962 = vsel %vm5961, %v5945, %v5881
      %v5963 = vsel %vm5961, %v5946, %v5883
      %v5964 = vsel %vm5961, %v5947, %v5885
      %v5965 = vsel %vm5961, %v5948, %v5887
      %v5966 = vsel %vm5961, %v5949, %v5889
      %v5967 = vsel %vm5961, %v5950, %v5891
      %v5968 = vsel %vm5961, %v5951, %v5893
      %v5969 = vsel %vm5961, %v5952, %v5895
      %v5970 = vsel %vm5961, %v5953, %v5897
      %v5971 = vsel %vm5961, %v5954, %v5899
      %v5972 = vsel %vm5961, %v5955, %v5901
      %v5973 = vsel %vm5961, %v5956, %v5903
      %v5974 = vsel %vm5961, %v5957, %v5905
      %v5975 = vsel %vm5961, %v5958, %v5907
      %v5976 = vsel %vm5961, %v5959, %v5909
      %v5977 = vsel %vm5961, %v5960, %v5911
      %v5978 = vpack.c.bf16 %v5963, %v5962
      %v5979 = vpack.c.bf16 %v5965, %v5964
      %v5980 = vpack.c.bf16 %v5967, %v5966
      %v5981 = vpack.c.bf16 %v5969, %v5968
      %v5982 = vpack.c.bf16 %v5971, %v5970
      %v5983 = vpack.c.bf16 %v5973, %v5972
      %v5984 = vpack.c.bf16 %v5975, %v5974
      %v5985 = vpack.c.bf16 %v5977, %v5976
      %v5986 = vld [vmem:[%s776] sm:$0xf]
      %v5987 = vld [vmem:[%s776 + $0x4] sm:$0xf]
      %v5988 = vld [vmem:[%s776 + $0x8] sm:$0xf]
      %v5989 = vld [vmem:[%s776 + $0xc] sm:$0xf]
      %v5990 = vld [vmem:[%s776 + $0x10] sm:$0xf]
      %v5991 = vld [vmem:[%s776 + $0x14] sm:$0xf]
      %v5992 = vld [vmem:[%s776 + $0x18] sm:$0xf]
      %v5993 = vld [vmem:[%s776 + $0x1c] sm:$0xf]
      %v5994 = vld [vmem:[%s776 + $0x20] sm:$0xf]
      %v5995 = vld [vmem:[%s776 + $0x24] sm:$0xf]
      %v5996 = vld [vmem:[%s776 + $0x28] sm:$0xf]
      %v5997 = vld [vmem:[%s776 + $0x2c] sm:$0xf]
      %v5998 = vld [vmem:[%s776 + $0x30] sm:$0xf]
      %v5999 = vld [vmem:[%s776 + $0x34] sm:$0xf]
      %v6000 = vld [vmem:[%s776 + $0x38] sm:$0xf]
      %v6001 = vld [vmem:[%s776 + $0x3c] sm:$0xf]
      %v6002 = vld [vmem:[%s779] sm:$0x1]
      %v6004 = vlaneseq
      %v6005 = vshrl.u32 %v6004, 7
      %v6006 = vsub.s32 0, %v6005
      %v6007 = vrot.slane %v6002, %v6006
      %v6025 = vunpack.c.l.b16 %v5986
      %v6026 = vunpack.c.l.b16 %v5987
      %v6027 = vunpack.c.l.b16 %v5988
      %v6028 = vunpack.c.l.b16 %v5989
      %v6029 = vunpack.c.l.b16 %v5990
      %v6030 = vunpack.c.l.b16 %v5991
      %v6031 = vunpack.c.l.b16 %v5992
      %v6032 = vunpack.c.l.b16 %v5993
      %v6033 = vunpack.c.l.b16 %v5994
      %v6034 = vunpack.c.l.b16 %v5995
      %v6035 = vunpack.c.l.b16 %v5996
      %v6036 = vunpack.c.l.b16 %v5997
      %v6037 = vunpack.c.l.b16 %v5998
      %v6038 = vunpack.c.l.b16 %v5999
      %v6039 = vunpack.c.l.b16 %v6000
      %v6040 = vunpack.c.l.b16 %v6001
      %v6041 = vpack.c.b16 %v6026, %v6025
      %v6042 = vpack.c.b16 %v6028, %v6027
      %v6043 = vpack.c.b16 %v6030, %v6029
      %v6044 = vpack.c.b16 %v6032, %v6031
      %v6045 = vpack.c.b16 %v6034, %v6033
      %v6046 = vpack.c.b16 %v6036, %v6035
      %v6047 = vpack.c.b16 %v6038, %v6037
      %v6048 = vpack.c.b16 %v6040, %v6039
      %6057 = vmatprep.subr.bf16.mxu0 0
      %6058 = vmatpush1.bf16.msra.mxu0 %v6048
      %6059 = vmatprep.subr.bf16.mxu0 0
      %6060 = vmatpush1.bf16.msra.mxu0 %v6047
      %6061 = vmatprep.subr.bf16.mxu0 0
      %6062 = vmatpush1.bf16.msra.mxu0 %v6046
      %6063 = vmatprep.subr.bf16.mxu0 0
      %6064 = vmatpush1.bf16.msra.mxu0 %v6045
      %6065 = vmatprep.subr.bf16.mxu0 0
      %6066 = vmatpush1.bf16.msra.mxu0 %v6044
      %6067 = vmatprep.subr.bf16.mxu0 0
      %6068 = vmatpush1.bf16.msra.mxu0 %v6043
      %6069 = vmatprep.subr.bf16.mxu0 0
      %6070 = vmatpush1.bf16.msra.mxu0 %v6042
      %6071 = vmatprep.subr.bf16.mxu0 0
      %6072 = vmatpush1.bf16.msra.mxu0 %v6041
      %6073 = vmatprep.subr.bf16.mxu0 0
      %6074 = vmatpush2.bf16.msra.mxu0 0
      %6075 = vmatprep.subr.bf16.mxu0 0
      %6076 = vmatpush2.bf16.msra.mxu0 0
      %6077 = vmatprep.subr.bf16.mxu0 0
      %6078 = vmatpush2.bf16.msra.mxu0 0
      %6079 = vmatprep.subr.bf16.mxu0 0
      %6080 = vmatpush2.bf16.msra.mxu0 0
      %6081 = vmatprep.subr.bf16.mxu0 0
      %6082 = vmatpush2.bf16.msra.mxu0 0
      %6083 = vmatprep.subr.bf16.mxu0 0
      %6084 = vmatpush2.bf16.msra.mxu0 0
      %6085 = vmatprep.subr.bf16.mxu0 0
      %6086 = vmatpush2.bf16.msra.mxu0 0
      %6087 = vmatprep.subr.bf16.mxu0 0
      %6088 = vmatpush2.bf16.msra.mxu0 0
      %6089 = vmatprep.mubr.bf16.mxu0 0
      %6090 = vmatmul.mubr.bf16.gmra.mxu0 %v5978
      %v6091 = vpop.f32.mrf.mxu0
      %v6092 = vadd.f32 %v6007, %v6091
      %v6093 = vpop.f32.mrf.mxu0
      %v6094 = vpop.f32.mrf.mxu0
      %v6095 = vadd.f32 %v6007, %v6094
      %v6096 = vpop.f32.mrf.mxu0
      %6097 = vmatprep.mubr.bf16.mxu0 0
      %6098 = vmatmul.mubr.bf16.gmra.mxu0 %v5979
      %v6099 = vpop.f32.mrf.mxu0
      %v6100 = vadd.f32 %v6007, %v6099
      %v6101 = vpop.f32.mrf.mxu0
      %v6102 = vpop.f32.mrf.mxu0
      %v6103 = vadd.f32 %v6007, %v6102
      %v6104 = vpop.f32.mrf.mxu0
      %6105 = vmatprep.mubr.bf16.mxu0 0
      %6106 = vmatmul.mubr.bf16.gmra.mxu0 %v5980
      %v6107 = vpop.f32.mrf.mxu0
      %v6108 = vadd.f32 %v6007, %v6107
      %v6109 = vpop.f32.mrf.mxu0
      %v6110 = vpop.f32.mrf.mxu0
      %v6111 = vadd.f32 %v6007, %v6110
      %v6112 = vpop.f32.mrf.mxu0
      %6113 = vmatprep.mubr.bf16.mxu0 0
      %6114 = vmatmul.mubr.bf16.gmra.mxu0 %v5981
      %v6115 = vpop.f32.mrf.mxu0
      %v6116 = vadd.f32 %v6007, %v6115
      %v6117 = vpop.f32.mrf.mxu0
      %v6118 = vpop.f32.mrf.mxu0
      %v6119 = vadd.f32 %v6007, %v6118
      %v6120 = vpop.f32.mrf.mxu0
      %6121 = vmatprep.mubr.bf16.mxu0 0
      %6122 = vmatmul.mubr.bf16.gmra.mxu0 %v5982
      %v6123 = vpop.f32.mrf.mxu0
      %v6124 = vadd.f32 %v6007, %v6123
      %v6125 = vpop.f32.mrf.mxu0
      %v6126 = vpop.f32.mrf.mxu0
      %v6127 = vadd.f32 %v6007, %v6126
      %v6128 = vpop.f32.mrf.mxu0
      %6129 = vmatprep.mubr.bf16.mxu0 0
      %6130 = vmatmul.mubr.bf16.gmra.mxu0 %v5983
      %v6131 = vpop.f32.mrf.mxu0
      %v6132 = vadd.f32 %v6007, %v6131
      %v6133 = vpop.f32.mrf.mxu0
      %v6134 = vpop.f32.mrf.mxu0
      %v6135 = vadd.f32 %v6007, %v6134
      %v6136 = vpop.f32.mrf.mxu0
      %6137 = vmatprep.mubr.bf16.mxu0 0
      %6138 = vmatmul.mubr.bf16.gmra.mxu0 %v5984
      %v6139 = vpop.f32.mrf.mxu0
      %v6140 = vadd.f32 %v6007, %v6139
      %v6141 = vpop.f32.mrf.mxu0
      %v6142 = vpop.f32.mrf.mxu0
      %v6143 = vadd.f32 %v6007, %v6142
      %v6144 = vpop.f32.mrf.mxu0
      %6145 = vmatprep.mubr.bf16.mxu0 0
      %6146 = vmatmul.mubr.bf16.gmra.mxu0 %v5985
      %v6147 = vpop.f32.mrf.mxu0
      %v6148 = vadd.f32 %v6007, %v6147
      %v6149 = vpop.f32.mrf.mxu0
      %v6150 = vpop.f32.mrf.mxu0
      %v6151 = vadd.f32 %v6007, %v6150
      %v6152 = vpop.f32.mrf.mxu0
      %6153 = vdwg.mxu0
      %v6154 = vadd.f32 %v1235, %v6092
      %v6155 = vadd.f32 %v1236, %v6095
      %v6156 = vadd.f32 %v1237, %v6100
      %v6157 = vadd.f32 %v1238, %v6103
      %v6158 = vadd.f32 %v1239, %v6108
      %v6159 = vadd.f32 %v1240, %v6111
      %v6160 = vadd.f32 %v1241, %v6116
      %v6161 = vadd.f32 %v1242, %v6119
      %v6162 = vadd.f32 %v1243, %v6124
      %v6163 = vadd.f32 %v1244, %v6127
      %v6164 = vadd.f32 %v1245, %v6132
      %v6165 = vadd.f32 %v1246, %v6135
      %v6166 = vadd.f32 %v1247, %v6140
      %v6167 = vadd.f32 %v1248, %v6143
      %v6168 = vadd.f32 %v1249, %v6148
      %v6169 = vadd.f32 %v1250, %v6151
      %v6170 = vld [vmem:[%s782] sm:$0x1]
      %v6171 = vld [vmem:[%s785] sm:$0x1]
      %6172 = vadd.xlane.f32.xlu0 %v6154
      %v6173 = vpop.xlane.xlu0 %6172
      %6174 = vadd.xlane.f32.xlu0 %v6155
      %v6175 = vpop.xlane.xlu0 %6174
      %6176 = vadd.xlane.f32.xlu0 %v6156
      %v6177 = vpop.xlane.xlu0 %6176
      %6178 = vadd.xlane.f32.xlu0 %v6157
      %v6179 = vpop.xlane.xlu0 %6178
      %6180 = vadd.xlane.f32.xlu0 %v6158
      %v6181 = vpop.xlane.xlu0 %6180
      %6182 = vadd.xlane.f32.xlu0 %v6159
      %v6183 = vpop.xlane.xlu0 %6182
      %6184 = vadd.xlane.f32.xlu0 %v6160
      %v6185 = vpop.xlane.xlu0 %6184
      %6186 = vadd.xlane.f32.xlu0 %v6161
      %v6187 = vpop.xlane.xlu0 %6186
      %6188 = vadd.xlane.f32.xlu0 %v6162
      %v6189 = vpop.xlane.xlu0 %6188
      %6190 = vadd.xlane.f32.xlu0 %v6163
      %v6191 = vpop.xlane.xlu0 %6190
      %6192 = vadd.xlane.f32.xlu0 %v6164
      %v6193 = vpop.xlane.xlu0 %6192
      %6194 = vadd.xlane.f32.xlu0 %v6165
      %v6195 = vpop.xlane.xlu0 %6194
      %6196 = vadd.xlane.f32.xlu0 %v6166
      %v6197 = vpop.xlane.xlu0 %6196
      %6198 = vadd.xlane.f32.xlu0 %v6167
      %v6199 = vpop.xlane.xlu0 %6198
      %6200 = vadd.xlane.f32.xlu0 %v6168
      %v6201 = vpop.xlane.xlu0 %6200
      %6202 = vadd.xlane.f32.xlu0 %v6169
      %v6203 = vpop.xlane.xlu0 %6202
      %v6204 = vrcp.pop 128.0
      %v6205 = vmul.f32 %v6173, %v6204
      %v6206 = vmul.f32 %v6175, %v6204
      %v6207 = vmul.f32 %v6177, %v6204
      %v6208 = vmul.f32 %v6179, %v6204
      %v6209 = vmul.f32 %v6181, %v6204
      %v6210 = vmul.f32 %v6183, %v6204
      %v6211 = vmul.f32 %v6185, %v6204
      %v6212 = vmul.f32 %v6187, %v6204
      %v6213 = vmul.f32 %v6189, %v6204
      %v6214 = vmul.f32 %v6191, %v6204
      %v6215 = vmul.f32 %v6193, %v6204
      %v6216 = vmul.f32 %v6195, %v6204
      %v6217 = vmul.f32 %v6197, %v6204
      %v6218 = vmul.f32 %v6199, %v6204
      %v6219 = vmul.f32 %v6201, %v6204
      %v6220 = vmul.f32 %v6203, %v6204
      %v6221 = vsub.f32 %v6154, %v6205
      %v6222 = vsub.f32 %v6155, %v6206
      %v6223 = vsub.f32 %v6156, %v6207
      %v6224 = vsub.f32 %v6157, %v6208
      %v6225 = vsub.f32 %v6158, %v6209
      %v6226 = vsub.f32 %v6159, %v6210
      %v6227 = vsub.f32 %v6160, %v6211
      %v6228 = vsub.f32 %v6161, %v6212
      %v6229 = vsub.f32 %v6162, %v6213
      %v6230 = vsub.f32 %v6163, %v6214
      %v6231 = vsub.f32 %v6164, %v6215
      %v6232 = vsub.f32 %v6165, %v6216
      %v6233 = vsub.f32 %v6166, %v6217
      %v6234 = vsub.f32 %v6167, %v6218
      %v6235 = vsub.f32 %v6168, %v6219
      %v6236 = vsub.f32 %v6169, %v6220
      %v6237 = vmul.f32 %v6221, %v6221
      %v6238 = vmul.f32 %v6222, %v6222
      %v6239 = vmul.f32 %v6223, %v6223
      %v6240 = vmul.f32 %v6224, %v6224
      %v6241 = vmul.f32 %v6225, %v6225
      %v6242 = vmul.f32 %v6226, %v6226
      %v6243 = vmul.f32 %v6227, %v6227
      %v6244 = vmul.f32 %v6228, %v6228
      %v6245 = vmul.f32 %v6229, %v6229
      %v6246 = vmul.f32 %v6230, %v6230
      %v6247 = vmul.f32 %v6231, %v6231
      %v6248 = vmul.f32 %v6232, %v6232
      %v6249 = vmul.f32 %v6233, %v6233
      %v6250 = vmul.f32 %v6234, %v6234
      %v6251 = vmul.f32 %v6235, %v6235
      %v6252 = vmul.f32 %v6236, %v6236
      %6253 = vadd.xlane.f32.xlu0 %v6237
      %v6254 = vpop.xlane.xlu0 %6253
      %6255 = vadd.xlane.f32.xlu0 %v6238
      %v6256 = vpop.xlane.xlu0 %6255
      %6257 = vadd.xlane.f32.xlu0 %v6239
      %v6258 = vpop.xlane.xlu0 %6257
      %6259 = vadd.xlane.f32.xlu0 %v6240
      %v6260 = vpop.xlane.xlu0 %6259
      %6261 = vadd.xlane.f32.xlu0 %v6241
      %v6262 = vpop.xlane.xlu0 %6261
      %6263 = vadd.xlane.f32.xlu0 %v6242
      %v6264 = vpop.xlane.xlu0 %6263
      %6265 = vadd.xlane.f32.xlu0 %v6243
      %v6266 = vpop.xlane.xlu0 %6265
      %6267 = vadd.xlane.f32.xlu0 %v6244
      %v6268 = vpop.xlane.xlu0 %6267
      %6269 = vadd.xlane.f32.xlu0 %v6245
      %v6270 = vpop.xlane.xlu0 %6269
      %6271 = vadd.xlane.f32.xlu0 %v6246
      %v6272 = vpop.xlane.xlu0 %6271
      %6273 = vadd.xlane.f32.xlu0 %v6247
      %v6274 = vpop.xlane.xlu0 %6273
      %6275 = vadd.xlane.f32.xlu0 %v6248
      %v6276 = vpop.xlane.xlu0 %6275
      %6277 = vadd.xlane.f32.xlu0 %v6249
      %v6278 = vpop.xlane.xlu0 %6277
      %6279 = vadd.xlane.f32.xlu0 %v6250
      %v6280 = vpop.xlane.xlu0 %6279
      %6281 = vadd.xlane.f32.xlu0 %v6251
      %v6282 = vpop.xlane.xlu0 %6281
      %6283 = vadd.xlane.f32.xlu0 %v6252
      %v6284 = vpop.xlane.xlu0 %6283
      %v6285 = vmul.f32 %v6254, %v6204
      %v6286 = vmul.f32 %v6256, %v6204
      %v6287 = vmul.f32 %v6258, %v6204
      %v6288 = vmul.f32 %v6260, %v6204
      %v6289 = vmul.f32 %v6262, %v6204
      %v6290 = vmul.f32 %v6264, %v6204
      %v6291 = vmul.f32 %v6266, %v6204
      %v6292 = vmul.f32 %v6268, %v6204
      %v6293 = vmul.f32 %v6270, %v6204
      %v6294 = vmul.f32 %v6272, %v6204
      %v6295 = vmul.f32 %v6274, %v6204
      %v6296 = vmul.f32 %v6276, %v6204
      %v6297 = vmul.f32 %v6278, %v6204
      %v6298 = vmul.f32 %v6280, %v6204
      %v6299 = vmul.f32 %v6282, %v6204
      %v6300 = vmul.f32 %v6284, %v6204
      %v6301 = vadd.f32 %v6285, 1e-12
      %v6302 = vadd.f32 %v6286, 1e-12
      %v6303 = vadd.f32 %v6287, 1e-12
      %v6304 = vadd.f32 %v6288, 1e-12
      %v6305 = vadd.f32 %v6289, 1e-12
      %v6306 = vadd.f32 %v6290, 1e-12
      %v6307 = vadd.f32 %v6291, 1e-12
      %v6308 = vadd.f32 %v6292, 1e-12
      %v6309 = vadd.f32 %v6293, 1e-12
      %v6310 = vadd.f32 %v6294, 1e-12
      %v6311 = vadd.f32 %v6295, 1e-12
      %v6312 = vadd.f32 %v6296, 1e-12
      %v6313 = vadd.f32 %v6297, 1e-12
      %v6314 = vadd.f32 %v6298, 1e-12
      %v6315 = vadd.f32 %v6299, 1e-12
      %v6316 = vadd.f32 %v6300, 1e-12
      %v6317 = vrsqrt.pop %v6301
      %v6318 = vrsqrt.pop %v6302
      %v6319 = vrsqrt.pop %v6303
      %v6320 = vrsqrt.pop %v6304
      %v6321 = vrsqrt.pop %v6305
      %v6322 = vrsqrt.pop %v6306
      %v6323 = vrsqrt.pop %v6307
      %v6324 = vrsqrt.pop %v6308
      %v6325 = vrsqrt.pop %v6309
      %v6326 = vrsqrt.pop %v6310
      %v6327 = vrsqrt.pop %v6311
      %v6328 = vrsqrt.pop %v6312
      %v6329 = vrsqrt.pop %v6313
      %v6330 = vrsqrt.pop %v6314
      %v6331 = vrsqrt.pop %v6315
      %v6332 = vrsqrt.pop %v6316
      %v6333 = vmul.f32 %v6221, %v6317
      %v6334 = vmul.f32 %v6222, %v6318
      %v6335 = vmul.f32 %v6223, %v6319
      %v6336 = vmul.f32 %v6224, %v6320
      %v6337 = vmul.f32 %v6225, %v6321
      %v6338 = vmul.f32 %v6226, %v6322
      %v6339 = vmul.f32 %v6227, %v6323
      %v6340 = vmul.f32 %v6228, %v6324
      %v6341 = vmul.f32 %v6229, %v6325
      %v6342 = vmul.f32 %v6230, %v6326
      %v6343 = vmul.f32 %v6231, %v6327
      %v6344 = vmul.f32 %v6232, %v6328
      %v6345 = vmul.f32 %v6233, %v6329
      %v6346 = vmul.f32 %v6234, %v6330
      %v6347 = vmul.f32 %v6235, %v6331
      %v6348 = vmul.f32 %v6236, %v6332
      %v6350 = vlaneseq
      %v6351 = vshrl.u32 %v6350, 7
      %v6352 = vsub.s32 0, %v6351
      %v6353 = vrot.slane %v6170, %v6352
      %v6355 = vmul.f32 %v6333, %v6353
      %v6356 = vmul.f32 %v6334, %v6353
      %v6357 = vmul.f32 %v6335, %v6353
      %v6358 = vmul.f32 %v6336, %v6353
      %v6359 = vmul.f32 %v6337, %v6353
      %v6360 = vmul.f32 %v6338, %v6353
      %v6361 = vmul.f32 %v6339, %v6353
      %v6362 = vmul.f32 %v6340, %v6353
      %v6363 = vmul.f32 %v6341, %v6353
      %v6364 = vmul.f32 %v6342, %v6353
      %v6365 = vmul.f32 %v6343, %v6353
      %v6366 = vmul.f32 %v6344, %v6353
      %v6367 = vmul.f32 %v6345, %v6353
      %v6368 = vmul.f32 %v6346, %v6353
      %v6369 = vmul.f32 %v6347, %v6353
      %v6370 = vmul.f32 %v6348, %v6353
      %v6372 = vlaneseq
      %v6373 = vshrl.u32 %v6372, 7
      %v6374 = vsub.s32 0, %v6373
      %v6375 = vrot.slane %v6171, %v6374
      %v6377 = vadd.f32 %v6355, %v6375
      %v6378 = vadd.f32 %v6356, %v6375
      %v6379 = vadd.f32 %v6357, %v6375
      %v6380 = vadd.f32 %v6358, %v6375
      %v6381 = vadd.f32 %v6359, %v6375
      %v6382 = vadd.f32 %v6360, %v6375
      %v6383 = vadd.f32 %v6361, %v6375
      %v6384 = vadd.f32 %v6362, %v6375
      %v6385 = vadd.f32 %v6363, %v6375
      %v6386 = vadd.f32 %v6364, %v6375
      %v6387 = vadd.f32 %v6365, %v6375
      %v6388 = vadd.f32 %v6366, %v6375
      %v6389 = vadd.f32 %v6367, %v6375
      %v6390 = vadd.f32 %v6368, %v6375
      %v6391 = vadd.f32 %v6369, %v6375
      %v6392 = vadd.f32 %v6370, %v6375
      %v6393 = vpack.c.bf16 %v6378, %v6377
      %v6394 = vpack.c.bf16 %v6380, %v6379
      %v6395 = vpack.c.bf16 %v6382, %v6381
      %v6396 = vpack.c.bf16 %v6384, %v6383
      %v6397 = vpack.c.bf16 %v6386, %v6385
      %v6398 = vpack.c.bf16 %v6388, %v6387
      %v6399 = vpack.c.bf16 %v6390, %v6389
      %v6400 = vpack.c.bf16 %v6392, %v6391
      %v6401 = vld [vmem:[%s790] sm:$0xff]
      %v6402 = vld [vmem:[%s790 + $0x8] sm:$0xff]
      %v6403 = vld [vmem:[%s790 + $0x10] sm:$0xff]
      %v6404 = vld [vmem:[%s790 + $0x18] sm:$0xff]
      %v6405 = vld [vmem:[%s790 + $0x20] sm:$0xff]
      %v6406 = vld [vmem:[%s790 + $0x28] sm:$0xff]
      %v6407 = vld [vmem:[%s790 + $0x30] sm:$0xff]
      %v6408 = vld [vmem:[%s790 + $0x38] sm:$0xff]
      %v6409 = vld [vmem:[%s790 + $0x40] sm:$0xff]
      %v6410 = vld [vmem:[%s790 + $0x48] sm:$0xff]
      %v6411 = vld [vmem:[%s790 + $0x50] sm:$0xff]
      %v6412 = vld [vmem:[%s790 + $0x58] sm:$0xff]
      %v6413 = vld [vmem:[%s790 + $0x60] sm:$0xff]
      %v6414 = vld [vmem:[%s790 + $0x68] sm:$0xff]
      %v6415 = vld [vmem:[%s790 + $0x70] sm:$0xff]
      %v6416 = vld [vmem:[%s790 + $0x78] sm:$0xff]
      %v6417 = vld [vmem:[%s794] sm:$0x3]
      %v6419 = vlaneseq
      %v6420 = vshrl.u32 %v6419, 7
      %v6421 = vsub.s32 0, %v6420
      %v6422 = vrot.slane %v6417, %v6421
      %v6423 = vlaneseq
      %v6424 = vshrl.u32 %v6423, 7
      %v6425 = vsub.s32 1, %v6424
      %v6426 = vrot.slane %v6417, %v6425
      %v6445 = vunpack.c.l.b16 %v6401
      %v6446 = vunpack.c.h.b16 %v6401
      %v6447 = vunpack.c.l.b16 %v6402
      %v6448 = vunpack.c.h.b16 %v6402
      %v6449 = vunpack.c.l.b16 %v6403
      %v6450 = vunpack.c.h.b16 %v6403
      %v6451 = vunpack.c.l.b16 %v6404
      %v6452 = vunpack.c.h.b16 %v6404
      %v6453 = vunpack.c.l.b16 %v6405
      %v6454 = vunpack.c.h.b16 %v6405
      %v6455 = vunpack.c.l.b16 %v6406
      %v6456 = vunpack.c.h.b16 %v6406
      %v6457 = vunpack.c.l.b16 %v6407
      %v6458 = vunpack.c.h.b16 %v6407
      %v6459 = vunpack.c.l.b16 %v6408
      %v6460 = vunpack.c.h.b16 %v6408
      %v6461 = vunpack.c.l.b16 %v6409
      %v6462 = vunpack.c.h.b16 %v6409
      %v6463 = vunpack.c.l.b16 %v6410
      %v6464 = vunpack.c.h.b16 %v6410
      %v6465 = vunpack.c.l.b16 %v6411
      %v6466 = vunpack.c.h.b16 %v6411
      %v6467 = vunpack.c.l.b16 %v6412
      %v6468 = vunpack.c.h.b16 %v6412
      %v6469 = vunpack.c.l.b16 %v6413
      %v6470 = vunpack.c.h.b16 %v6413
      %v6471 = vunpack.c.l.b16 %v6414
      %v6472 = vunpack.c.h.b16 %v6414
      %v6473 = vunpack.c.l.b16 %v6415
      %v6474 = vunpack.c.h.b16 %v6415
      %v6475 = vunpack.c.l.b16 %v6416
      %v6476 = vunpack.c.h.b16 %v6416
      %v6477 = vpack.c.b16 %v6447, %v6445
      %v6478 = vpack.c.b16 %v6448, %v6446
      %v6479 = vpack.c.b16 %v6451, %v6449
      %v6480 = vpack.c.b16 %v6452, %v6450
      %v6481 = vpack.c.b16 %v6455, %v6453
      %v6482 = vpack.c.b16 %v6456, %v6454
      %v6483 = vpack.c.b16 %v6459, %v6457
      %v6484 = vpack.c.b16 %v6460, %v6458
      %v6485 = vpack.c.b16 %v6463, %v6461
      %v6486 = vpack.c.b16 %v6464, %v6462
      %v6487 = vpack.c.b16 %v6467, %v6465
      %v6488 = vpack.c.b16 %v6468, %v6466
      %v6489 = vpack.c.b16 %v6471, %v6469
      %v6490 = vpack.c.b16 %v6472, %v6470
      %v6491 = vpack.c.b16 %v6475, %v6473
      %v6492 = vpack.c.b16 %v6476, %v6474
      %6509 = vmatprep.subr.bf16.mxu0 %v6492
      %6510 = vmatpush1.bf16.msra.mxu0 %v6491
      %6511 = vmatprep.subr.bf16.mxu0 %v6490
      %6512 = vmatpush1.bf16.msra.mxu0 %v6489
      %6513 = vmatprep.subr.bf16.mxu0 %v6488
      %6514 = vmatpush1.bf16.msra.mxu0 %v6487
      %6515 = vmatprep.subr.bf16.mxu0 %v6486
      %6516 = vmatpush1.bf16.msra.mxu0 %v6485
      %6517 = vmatprep.subr.bf16.mxu0 %v6484
      %6518 = vmatpush1.bf16.msra.mxu0 %v6483
      %6519 = vmatprep.subr.bf16.mxu0 %v6482
      %6520 = vmatpush1.bf16.msra.mxu0 %v6481
      %6521 = vmatprep.subr.bf16.mxu0 %v6480
      %6522 = vmatpush1.bf16.msra.mxu0 %v6479
      %6523 = vmatprep.subr.bf16.mxu0 %v6478
      %6524 = vmatpush1.bf16.msra.mxu0 %v6477
      %6525 = vmatprep.subr.bf16.mxu0 0
      %6526 = vmatpush2.bf16.msra.mxu0 0
      %6527 = vmatprep.subr.bf16.mxu0 0
      %6528 = vmatpush2.bf16.msra.mxu0 0
      %6529 = vmatprep.subr.bf16.mxu0 0
      %6530 = vmatpush2.bf16.msra.mxu0 0
      %6531 = vmatprep.subr.bf16.mxu0 0
      %6532 = vmatpush2.bf16.msra.mxu0 0
      %6533 = vmatprep.subr.bf16.mxu0 0
      %6534 = vmatpush2.bf16.msra.mxu0 0
      %6535 = vmatprep.subr.bf16.mxu0 0
      %6536 = vmatpush2.bf16.msra.mxu0 0
      %6537 = vmatprep.subr.bf16.mxu0 0
      %6538 = vmatpush2.bf16.msra.mxu0 0
      %6539 = vmatprep.subr.bf16.mxu0 0
      %6540 = vmatpush2.bf16.msra.mxu0 0
      %6541 = vmatprep.mubr.bf16.mxu0 0
      %6542 = vmatmul.mubr.bf16.gmra.mxu0 %v6393
      %v6543 = vpop.f32.mrf.mxu0
      %v6544 = vadd.f32 %v6422, %v6543
      %v6545 = vpop.f32.mrf.mxu0
      %v6546 = vadd.f32 %v6426, %v6545
      %v6547 = vpop.f32.mrf.mxu0
      %v6548 = vadd.f32 %v6422, %v6547
      %v6549 = vpop.f32.mrf.mxu0
      %v6550 = vadd.f32 %v6426, %v6549
      %6551 = vmatprep.mubr.bf16.mxu0 0
      %6552 = vmatmul.mubr.bf16.gmra.mxu0 %v6394
      %v6553 = vpop.f32.mrf.mxu0
      %v6554 = vadd.f32 %v6422, %v6553
      %v6555 = vpop.f32.mrf.mxu0
      %v6556 = vadd.f32 %v6426, %v6555
      %v6557 = vpop.f32.mrf.mxu0
      %v6558 = vadd.f32 %v6422, %v6557
      %v6559 = vpop.f32.mrf.mxu0
      %v6560 = vadd.f32 %v6426, %v6559
      %6561 = vmatprep.mubr.bf16.mxu0 0
      %6562 = vmatmul.mubr.bf16.gmra.mxu0 %v6395
      %v6563 = vpop.f32.mrf.mxu0
      %v6564 = vadd.f32 %v6422, %v6563
      %v6565 = vpop.f32.mrf.mxu0
      %v6566 = vadd.f32 %v6426, %v6565
      %v6567 = vpop.f32.mrf.mxu0
      %v6568 = vadd.f32 %v6422, %v6567
      %v6569 = vpop.f32.mrf.mxu0
      %v6570 = vadd.f32 %v6426, %v6569
      %6571 = vmatprep.mubr.bf16.mxu0 0
      %6572 = vmatmul.mubr.bf16.gmra.mxu0 %v6396
      %v6573 = vpop.f32.mrf.mxu0
      %v6574 = vadd.f32 %v6422, %v6573
      %v6575 = vpop.f32.mrf.mxu0
      %v6576 = vadd.f32 %v6426, %v6575
      %v6577 = vpop.f32.mrf.mxu0
      %v6578 = vadd.f32 %v6422, %v6577
      %v6579 = vpop.f32.mrf.mxu0
      %v6580 = vadd.f32 %v6426, %v6579
      %6581 = vmatprep.mubr.bf16.mxu0 0
      %6582 = vmatmul.mubr.bf16.gmra.mxu0 %v6397
      %v6583 = vpop.f32.mrf.mxu0
      %v6584 = vadd.f32 %v6422, %v6583
      %v6585 = vpop.f32.mrf.mxu0
      %v6586 = vadd.f32 %v6426, %v6585
      %v6587 = vpop.f32.mrf.mxu0
      %v6588 = vadd.f32 %v6422, %v6587
      %v6589 = vpop.f32.mrf.mxu0
      %v6590 = vadd.f32 %v6426, %v6589
      %6591 = vmatprep.mubr.bf16.mxu0 0
      %6592 = vmatmul.mubr.bf16.gmra.mxu0 %v6398
      %v6593 = vpop.f32.mrf.mxu0
      %v6594 = vadd.f32 %v6422, %v6593
      %v6595 = vpop.f32.mrf.mxu0
      %v6596 = vadd.f32 %v6426, %v6595
      %v6597 = vpop.f32.mrf.mxu0
      %v6598 = vadd.f32 %v6422, %v6597
      %v6599 = vpop.f32.mrf.mxu0
      %v6600 = vadd.f32 %v6426, %v6599
      %6601 = vmatprep.mubr.bf16.mxu0 0
      %6602 = vmatmul.mubr.bf16.gmra.mxu0 %v6399
      %v6603 = vpop.f32.mrf.mxu0
      %v6604 = vadd.f32 %v6422, %v6603
      %v6605 = vpop.f32.mrf.mxu0
      %v6606 = vadd.f32 %v6426, %v6605
      %v6607 = vpop.f32.mrf.mxu0
      %v6608 = vadd.f32 %v6422, %v6607
      %v6609 = vpop.f32.mrf.mxu0
      %v6610 = vadd.f32 %v6426, %v6609
      %6611 = vmatprep.mubr.bf16.mxu0 0
      %6612 = vmatmul.mubr.bf16.gmra.mxu0 %v6400
      %v6613 = vpop.f32.mrf.mxu0
      %v6614 = vadd.f32 %v6422, %v6613
      %v6615 = vpop.f32.mrf.mxu0
      %v6616 = vadd.f32 %v6426, %v6615
      %v6617 = vpop.f32.mrf.mxu0
      %v6618 = vadd.f32 %v6422, %v6617
      %v6619 = vpop.f32.mrf.mxu0
      %v6620 = vadd.f32 %v6426, %v6619
      %6621 = vdwg.mxu0
      %v6622 = vmul.f32 %v6544, 0.5
      %v6623 = vmul.f32 %v6546, 0.5
      %v6624 = vmul.f32 %v6548, 0.5
      %v6625 = vmul.f32 %v6550, 0.5
      %v6626 = vmul.f32 %v6554, 0.5
      %v6627 = vmul.f32 %v6556, 0.5
      %v6628 = vmul.f32 %v6558, 0.5
      %v6629 = vmul.f32 %v6560, 0.5
      %v6630 = vmul.f32 %v6564, 0.5
      %v6631 = vmul.f32 %v6566, 0.5
      %v6632 = vmul.f32 %v6568, 0.5
      %v6633 = vmul.f32 %v6570, 0.5
      %v6634 = vmul.f32 %v6574, 0.5
      %v6635 = vmul.f32 %v6576, 0.5
      %v6636 = vmul.f32 %v6578, 0.5
      %v6637 = vmul.f32 %v6580, 0.5
      %v6638 = vmul.f32 %v6584, 0.5
      %v6639 = vmul.f32 %v6586, 0.5
      %v6640 = vmul.f32 %v6588, 0.5
      %v6641 = vmul.f32 %v6590, 0.5
      %v6642 = vmul.f32 %v6594, 0.5
      %v6643 = vmul.f32 %v6596, 0.5
      %v6644 = vmul.f32 %v6598, 0.5
      %v6645 = vmul.f32 %v6600, 0.5
      %v6646 = vmul.f32 %v6604, 0.5
      %v6647 = vmul.f32 %v6606, 0.5
      %v6648 = vmul.f32 %v6608, 0.5
      %v6649 = vmul.f32 %v6610, 0.5
      %v6650 = vmul.f32 %v6614, 0.5
      %v6651 = vmul.f32 %v6616, 0.5
      %v6652 = vmul.f32 %v6618, 0.5
      %v6653 = vmul.f32 %v6620, 0.5
      %v6654 = vmul.f32 %v6544, 0.044715
      %v6655 = vmul.f32 %v6546, 0.044715
      %v6656 = vmul.f32 %v6548, 0.044715
      %v6657 = vmul.f32 %v6550, 0.044715
      %v6658 = vmul.f32 %v6554, 0.044715
      %v6659 = vmul.f32 %v6556, 0.044715
      %v6660 = vmul.f32 %v6558, 0.044715
      %v6661 = vmul.f32 %v6560, 0.044715
      %v6662 = vmul.f32 %v6564, 0.044715
      %v6663 = vmul.f32 %v6566, 0.044715
      %v6664 = vmul.f32 %v6568, 0.044715
      %v6665 = vmul.f32 %v6570, 0.044715
      %v6666 = vmul.f32 %v6574, 0.044715
      %v6667 = vmul.f32 %v6576, 0.044715
      %v6668 = vmul.f32 %v6578, 0.044715
      %v6669 = vmul.f32 %v6580, 0.044715
      %v6670 = vmul.f32 %v6584, 0.044715
      %v6671 = vmul.f32 %v6586, 0.044715
      %v6672 = vmul.f32 %v6588, 0.044715
      %v6673 = vmul.f32 %v6590, 0.044715
      %v6674 = vmul.f32 %v6594, 0.044715
      %v6675 = vmul.f32 %v6596, 0.044715
      %v6676 = vmul.f32 %v6598, 0.044715
      %v6677 = vmul.f32 %v6600, 0.044715
      %v6678 = vmul.f32 %v6604, 0.044715
      %v6679 = vmul.f32 %v6606, 0.044715
      %v6680 = vmul.f32 %v6608, 0.044715
      %v6681 = vmul.f32 %v6610, 0.044715
      %v6682 = vmul.f32 %v6614, 0.044715
      %v6683 = vmul.f32 %v6616, 0.044715
      %v6684 = vmul.f32 %v6618, 0.044715
      %v6685 = vmul.f32 %v6620, 0.044715
      %v6686 = vmul.f32 %v6654, %v6544
      %v6687 = vmul.f32 %v6655, %v6546
      %v6688 = vmul.f32 %v6656, %v6548
      %v6689 = vmul.f32 %v6657, %v6550
      %v6690 = vmul.f32 %v6658, %v6554
      %v6691 = vmul.f32 %v6659, %v6556
      %v6692 = vmul.f32 %v6660, %v6558
      %v6693 = vmul.f32 %v6661, %v6560
      %v6694 = vmul.f32 %v6662, %v6564
      %v6695 = vmul.f32 %v6663, %v6566
      %v6696 = vmul.f32 %v6664, %v6568
      %v6697 = vmul.f32 %v6665, %v6570
      %v6698 = vmul.f32 %v6666, %v6574
      %v6699 = vmul.f32 %v6667, %v6576
      %v6700 = vmul.f32 %v6668, %v6578
      %v6701 = vmul.f32 %v6669, %v6580
      %v6702 = vmul.f32 %v6670, %v6584
      %v6703 = vmul.f32 %v6671, %v6586
      %v6704 = vmul.f32 %v6672, %v6588
      %v6705 = vmul.f32 %v6673, %v6590
      %v6706 = vmul.f32 %v6674, %v6594
      %v6707 = vmul.f32 %v6675, %v6596
      %v6708 = vmul.f32 %v6676, %v6598
      %v6709 = vmul.f32 %v6677, %v6600
      %v6710 = vmul.f32 %v6678, %v6604
      %v6711 = vmul.f32 %v6679, %v6606
      %v6712 = vmul.f32 %v6680, %v6608
      %v6713 = vmul.f32 %v6681, %v6610
      %v6714 = vmul.f32 %v6682, %v6614
      %v6715 = vmul.f32 %v6683, %v6616
      %v6716 = vmul.f32 %v6684, %v6618
      %v6717 = vmul.f32 %v6685, %v6620
      %v6718 = vmul.f32 %v6686, %v6544
      %v6719 = vmul.f32 %v6687, %v6546
      %v6720 = vmul.f32 %v6688, %v6548
      %v6721 = vmul.f32 %v6689, %v6550
      %v6722 = vmul.f32 %v6690, %v6554
      %v6723 = vmul.f32 %v6691, %v6556
      %v6724 = vmul.f32 %v6692, %v6558
      %v6725 = vmul.f32 %v6693, %v6560
      %v6726 = vmul.f32 %v6694, %v6564
      %v6727 = vmul.f32 %v6695, %v6566
      %v6728 = vmul.f32 %v6696, %v6568
      %v6729 = vmul.f32 %v6697, %v6570
      %v6730 = vmul.f32 %v6698, %v6574
      %v6731 = vmul.f32 %v6699, %v6576
      %v6732 = vmul.f32 %v6700, %v6578
      %v6733 = vmul.f32 %v6701, %v6580
      %v6734 = vmul.f32 %v6702, %v6584
      %v6735 = vmul.f32 %v6703, %v6586
      %v6736 = vmul.f32 %v6704, %v6588
      %v6737 = vmul.f32 %v6705, %v6590
      %v6738 = vmul.f32 %v6706, %v6594
      %v6739 = vmul.f32 %v6707, %v6596
      %v6740 = vmul.f32 %v6708, %v6598
      %v6741 = vmul.f32 %v6709, %v6600
      %v6742 = vmul.f32 %v6710, %v6604
      %v6743 = vmul.f32 %v6711, %v6606
      %v6744 = vmul.f32 %v6712, %v6608
      %v6745 = vmul.f32 %v6713, %v6610
      %v6746 = vmul.f32 %v6714, %v6614
      %v6747 = vmul.f32 %v6715, %v6616
      %v6748 = vmul.f32 %v6716, %v6618
      %v6749 = vmul.f32 %v6717, %v6620
      %v6750 = vadd.f32 %v6544, %v6718
      %v6751 = vadd.f32 %v6546, %v6719
      %v6752 = vadd.f32 %v6548, %v6720
      %v6753 = vadd.f32 %v6550, %v6721
      %v6754 = vadd.f32 %v6554, %v6722
      %v6755 = vadd.f32 %v6556, %v6723
      %v6756 = vadd.f32 %v6558, %v6724
      %v6757 = vadd.f32 %v6560, %v6725
      %v6758 = vadd.f32 %v6564, %v6726
      %v6759 = vadd.f32 %v6566, %v6727
      %v6760 = vadd.f32 %v6568, %v6728
      %v6761 = vadd.f32 %v6570, %v6729
      %v6762 = vadd.f32 %v6574, %v6730
      %v6763 = vadd.f32 %v6576, %v6731
      %v6764 = vadd.f32 %v6578, %v6732
      %v6765 = vadd.f32 %v6580, %v6733
      %v6766 = vadd.f32 %v6584, %v6734
      %v6767 = vadd.f32 %v6586, %v6735
      %v6768 = vadd.f32 %v6588, %v6736
      %v6769 = vadd.f32 %v6590, %v6737
      %v6770 = vadd.f32 %v6594, %v6738
      %v6771 = vadd.f32 %v6596, %v6739
      %v6772 = vadd.f32 %v6598, %v6740
      %v6773 = vadd.f32 %v6600, %v6741
      %v6774 = vadd.f32 %v6604, %v6742
      %v6775 = vadd.f32 %v6606, %v6743
      %v6776 = vadd.f32 %v6608, %v6744
      %v6777 = vadd.f32 %v6610, %v6745
      %v6778 = vadd.f32 %v6614, %v6746
      %v6779 = vadd.f32 %v6616, %v6747
      %v6780 = vadd.f32 %v6618, %v6748
      %v6781 = vadd.f32 %v6620, %v6749
      %v6782 = vmul.f32 %v6750, 0.7978846
      %v6783 = vmul.f32 %v6751, 0.7978846
      %v6784 = vmul.f32 %v6752, 0.7978846
      %v6785 = vmul.f32 %v6753, 0.7978846
      %v6786 = vmul.f32 %v6754, 0.7978846
      %v6787 = vmul.f32 %v6755, 0.7978846
      %v6788 = vmul.f32 %v6756, 0.7978846
      %v6789 = vmul.f32 %v6757, 0.7978846
      %v6790 = vmul.f32 %v6758, 0.7978846
      %v6791 = vmul.f32 %v6759, 0.7978846
      %v6792 = vmul.f32 %v6760, 0.7978846
      %v6793 = vmul.f32 %v6761, 0.7978846
      %v6794 = vmul.f32 %v6762, 0.7978846
      %v6795 = vmul.f32 %v6763, 0.7978846
      %v6796 = vmul.f32 %v6764, 0.7978846
      %v6797 = vmul.f32 %v6765, 0.7978846
      %v6798 = vmul.f32 %v6766, 0.7978846
      %v6799 = vmul.f32 %v6767, 0.7978846
      %v6800 = vmul.f32 %v6768, 0.7978846
      %v6801 = vmul.f32 %v6769, 0.7978846
      %v6802 = vmul.f32 %v6770, 0.7978846
      %v6803 = vmul.f32 %v6771, 0.7978846
      %v6804 = vmul.f32 %v6772, 0.7978846
      %v6805 = vmul.f32 %v6773, 0.7978846
      %v6806 = vmul.f32 %v6774, 0.7978846
      %v6807 = vmul.f32 %v6775, 0.7978846
      %v6808 = vmul.f32 %v6776, 0.7978846
      %v6809 = vmul.f32 %v6777, 0.7978846
      %v6810 = vmul.f32 %v6778, 0.7978846
      %v6811 = vmul.f32 %v6779, 0.7978846
      %v6812 = vmul.f32 %v6780, 0.7978846
      %v6813 = vmul.f32 %v6781, 0.7978846
      %v6814 = vtanh.pop %v6782
      %v6815 = vtanh.pop %v6783
      %v6816 = vtanh.pop %v6784
      %v6817 = vtanh.pop %v6785
      %v6818 = vtanh.pop %v6786
      %v6819 = vtanh.pop %v6787
      %v6820 = vtanh.pop %v6788
      %v6821 = vtanh.pop %v6789
      %v6822 = vtanh.pop %v6790
      %v6823 = vtanh.pop %v6791
      %v6824 = vtanh.pop %v6792
      %v6825 = vtanh.pop %v6793
      %v6826 = vtanh.pop %v6794
      %v6827 = vtanh.pop %v6795
      %v6828 = vtanh.pop %v6796
      %v6829 = vtanh.pop %v6797
      %v6830 = vtanh.pop %v6798
      %v6831 = vtanh.pop %v6799
      %v6832 = vtanh.pop %v6800
      %v6833 = vtanh.pop %v6801
      %v6834 = vtanh.pop %v6802
      %v6835 = vtanh.pop %v6803
      %v6836 = vtanh.pop %v6804
      %v6837 = vtanh.pop %v6805
      %v6838 = vtanh.pop %v6806
      %v6839 = vtanh.pop %v6807
      %v6840 = vtanh.pop %v6808
      %v6841 = vtanh.pop %v6809
      %v6842 = vtanh.pop %v6810
      %v6843 = vtanh.pop %v6811
      %v6844 = vtanh.pop %v6812
      %v6845 = vtanh.pop %v6813
      %v6846 = vadd.f32 %v6814, 1.0
      %v6847 = vadd.f32 %v6815, 1.0
      %v6848 = vadd.f32 %v6816, 1.0
      %v6849 = vadd.f32 %v6817, 1.0
      %v6850 = vadd.f32 %v6818, 1.0
      %v6851 = vadd.f32 %v6819, 1.0
      %v6852 = vadd.f32 %v6820, 1.0
      %v6853 = vadd.f32 %v6821, 1.0
      %v6854 = vadd.f32 %v6822, 1.0
      %v6855 = vadd.f32 %v6823, 1.0
      %v6856 = vadd.f32 %v6824, 1.0
      %v6857 = vadd.f32 %v6825, 1.0
      %v6858 = vadd.f32 %v6826, 1.0
      %v6859 = vadd.f32 %v6827, 1.0
      %v6860 = vadd.f32 %v6828, 1.0
      %v6861 = vadd.f32 %v6829, 1.0
      %v6862 = vadd.f32 %v6830, 1.0
      %v6863 = vadd.f32 %v6831, 1.0
      %v6864 = vadd.f32 %v6832, 1.0
      %v6865 = vadd.f32 %v6833, 1.0
      %v6866 = vadd.f32 %v6834, 1.0
      %v6867 = vadd.f32 %v6835, 1.0
      %v6868 = vadd.f32 %v6836, 1.0
      %v6869 = vadd.f32 %v6837, 1.0
      %v6870 = vadd.f32 %v6838, 1.0
      %v6871 = vadd.f32 %v6839, 1.0
      %v6872 = vadd.f32 %v6840, 1.0
      %v6873 = vadd.f32 %v6841, 1.0
      %v6874 = vadd.f32 %v6842, 1.0
      %v6875 = vadd.f32 %v6843, 1.0
      %v6876 = vadd.f32 %v6844, 1.0
      %v6877 = vadd.f32 %v6845, 1.0
      %v6878 = vmul.f32 %v6622, %v6846
      %v6879 = vmul.f32 %v6623, %v6847
      %v6880 = vmul.f32 %v6624, %v6848
      %v6881 = vmul.f32 %v6625, %v6849
      %v6882 = vmul.f32 %v6626, %v6850
      %v6883 = vmul.f32 %v6627, %v6851
      %v6884 = vmul.f32 %v6628, %v6852
      %v6885 = vmul.f32 %v6629, %v6853
      %v6886 = vmul.f32 %v6630, %v6854
      %v6887 = vmul.f32 %v6631, %v6855
      %v6888 = vmul.f32 %v6632, %v6856
      %v6889 = vmul.f32 %v6633, %v6857
      %v6890 = vmul.f32 %v6634, %v6858
      %v6891 = vmul.f32 %v6635, %v6859
      %v6892 = vmul.f32 %v6636, %v6860
      %v6893 = vmul.f32 %v6637, %v6861
      %v6894 = vmul.f32 %v6638, %v6862
      %v6895 = vmul.f32 %v6639, %v6863
      %v6896 = vmul.f32 %v6640, %v6864
      %v6897 = vmul.f32 %v6641, %v6865
      %v6898 = vmul.f32 %v6642, %v6866
      %v6899 = vmul.f32 %v6643, %v6867
      %v6900 = vmul.f32 %v6644, %v6868
      %v6901 = vmul.f32 %v6645, %v6869
      %v6902 = vmul.f32 %v6646, %v6870
      %v6903 = vmul.f32 %v6647, %v6871
      %v6904 = vmul.f32 %v6648, %v6872
      %v6905 = vmul.f32 %v6649, %v6873
      %v6906 = vmul.f32 %v6650, %v6874
      %v6907 = vmul.f32 %v6651, %v6875
      %v6908 = vmul.f32 %v6652, %v6876
      %v6909 = vmul.f32 %v6653, %v6877
      %v6910 = vpack.c.bf16 %v6880, %v6878
      %v6911 = vpack.c.bf16 %v6881, %v6879
      %v6912 = vpack.c.bf16 %v6884, %v6882
      %v6913 = vpack.c.bf16 %v6885, %v6883
      %v6914 = vpack.c.bf16 %v6888, %v6886
      %v6915 = vpack.c.bf16 %v6889, %v6887
      %v6916 = vpack.c.bf16 %v6892, %v6890
      %v6917 = vpack.c.bf16 %v6893, %v6891
      %v6918 = vpack.c.bf16 %v6896, %v6894
      %v6919 = vpack.c.bf16 %v6897, %v6895
      %v6920 = vpack.c.bf16 %v6900, %v6898
      %v6921 = vpack.c.bf16 %v6901, %v6899
      %v6922 = vpack.c.bf16 %v6904, %v6902
      %v6923 = vpack.c.bf16 %v6905, %v6903
      %v6924 = vpack.c.bf16 %v6908, %v6906
      %v6925 = vpack.c.bf16 %v6909, %v6907
      %v6926 = vld [vmem:[%s799] sm:$0xf]
      %v6927 = vld [vmem:[%s799 + $0x4] sm:$0xf]
      %v6928 = vld [vmem:[%s799 + $0x8] sm:$0xf]
      %v6929 = vld [vmem:[%s799 + $0xc] sm:$0xf]
      %v6930 = vld [vmem:[%s799 + $0x10] sm:$0xf]
      %v6931 = vld [vmem:[%s799 + $0x14] sm:$0xf]
      %v6932 = vld [vmem:[%s799 + $0x18] sm:$0xf]
      %v6933 = vld [vmem:[%s799 + $0x1c] sm:$0xf]
      %v6934 = vld [vmem:[%s799 + $0x20] sm:$0xf]
      %v6935 = vld [vmem:[%s799 + $0x24] sm:$0xf]
      %v6936 = vld [vmem:[%s799 + $0x28] sm:$0xf]
      %v6937 = vld [vmem:[%s799 + $0x2c] sm:$0xf]
      %v6938 = vld [vmem:[%s799 + $0x30] sm:$0xf]
      %v6939 = vld [vmem:[%s799 + $0x34] sm:$0xf]
      %v6940 = vld [vmem:[%s799 + $0x38] sm:$0xf]
      %v6941 = vld [vmem:[%s799 + $0x3c] sm:$0xf]
      %v6942 = vld [vmem:[%s799 + $0x40] sm:$0xf]
      %v6943 = vld [vmem:[%s799 + $0x44] sm:$0xf]
      %v6944 = vld [vmem:[%s799 + $0x48] sm:$0xf]
      %v6945 = vld [vmem:[%s799 + $0x4c] sm:$0xf]
      %v6946 = vld [vmem:[%s799 + $0x50] sm:$0xf]
      %v6947 = vld [vmem:[%s799 + $0x54] sm:$0xf]
      %v6948 = vld [vmem:[%s799 + $0x58] sm:$0xf]
      %v6949 = vld [vmem:[%s799 + $0x5c] sm:$0xf]
      %v6950 = vld [vmem:[%s799 + $0x60] sm:$0xf]
      %v6951 = vld [vmem:[%s799 + $0x64] sm:$0xf]
      %v6952 = vld [vmem:[%s799 + $0x68] sm:$0xf]
      %v6953 = vld [vmem:[%s799 + $0x6c] sm:$0xf]
      %v6954 = vld [vmem:[%s799 + $0x70] sm:$0xf]
      %v6955 = vld [vmem:[%s799 + $0x74] sm:$0xf]
      %v6956 = vld [vmem:[%s799 + $0x78] sm:$0xf]
      %v6957 = vld [vmem:[%s799 + $0x7c] sm:$0xf]
      %v6958 = vld [vmem:[%s802] sm:$0x1]
      %v6960 = vlaneseq
      %v6961 = vshrl.u32 %v6960, 7
      %v6962 = vsub.s32 0, %v6961
      %v6963 = vrot.slane %v6958, %v6962
      %v6997 = vunpack.c.l.b16 %v6926
      %v6998 = vunpack.c.l.b16 %v6927
      %v6999 = vunpack.c.l.b16 %v6928
      %v7000 = vunpack.c.l.b16 %v6929
      %v7001 = vunpack.c.l.b16 %v6930
      %v7002 = vunpack.c.l.b16 %v6931
      %v7003 = vunpack.c.l.b16 %v6932
      %v7004 = vunpack.c.l.b16 %v6933
      %v7005 = vunpack.c.l.b16 %v6934
      %v7006 = vunpack.c.l.b16 %v6935
      %v7007 = vunpack.c.l.b16 %v6936
      %v7008 = vunpack.c.l.b16 %v6937
      %v7009 = vunpack.c.l.b16 %v6938
      %v7010 = vunpack.c.l.b16 %v6939
      %v7011 = vunpack.c.l.b16 %v6940
      %v7012 = vunpack.c.l.b16 %v6941
      %v7013 = vunpack.c.l.b16 %v6942
      %v7014 = vunpack.c.l.b16 %v6943
      %v7015 = vunpack.c.l.b16 %v6944
      %v7016 = vunpack.c.l.b16 %v6945
      %v7017 = vunpack.c.l.b16 %v6946
      %v7018 = vunpack.c.l.b16 %v6947
      %v7019 = vunpack.c.l.b16 %v6948
      %v7020 = vunpack.c.l.b16 %v6949
      %v7021 = vunpack.c.l.b16 %v6950
      %v7022 = vunpack.c.l.b16 %v6951
      %v7023 = vunpack.c.l.b16 %v6952
      %v7024 = vunpack.c.l.b16 %v6953
      %v7025 = vunpack.c.l.b16 %v6954
      %v7026 = vunpack.c.l.b16 %v6955
      %v7027 = vunpack.c.l.b16 %v6956
      %v7028 = vunpack.c.l.b16 %v6957
      %v7029 = vpack.c.b16 %v6998, %v6997
      %v7030 = vpack.c.b16 %v7000, %v6999
      %v7031 = vpack.c.b16 %v7002, %v7001
      %v7032 = vpack.c.b16 %v7004, %v7003
      %v7033 = vpack.c.b16 %v7006, %v7005
      %v7034 = vpack.c.b16 %v7008, %v7007
      %v7035 = vpack.c.b16 %v7010, %v7009
      %v7036 = vpack.c.b16 %v7012, %v7011
      %v7037 = vpack.c.b16 %v7014, %v7013
      %v7038 = vpack.c.b16 %v7016, %v7015
      %v7039 = vpack.c.b16 %v7018, %v7017
      %v7040 = vpack.c.b16 %v7020, %v7019
      %v7041 = vpack.c.b16 %v7022, %v7021
      %v7042 = vpack.c.b16 %v7024, %v7023
      %v7043 = vpack.c.b16 %v7026, %v7025
      %v7044 = vpack.c.b16 %v7028, %v7027
      %7061 = vmatprep.subr.bf16.mxu0 0
      %7062 = vmatpush1.bf16.msra.mxu0 %v7036
      %7063 = vmatprep.subr.bf16.mxu0 0
      %7064 = vmatpush1.bf16.msra.mxu0 %v7035
      %7065 = vmatprep.subr.bf16.mxu0 0
      %7066 = vmatpush1.bf16.msra.mxu0 %v7034
      %7067 = vmatprep.subr.bf16.mxu0 0
      %7068 = vmatpush1.bf16.msra.mxu0 %v7033
      %7069 = vmatprep.subr.bf16.mxu0 0
      %7070 = vmatpush1.bf16.msra.mxu0 %v7032
      %7071 = vmatprep.subr.bf16.mxu0 0
      %7072 = vmatpush1.bf16.msra.mxu0 %v7031
      %7073 = vmatprep.subr.bf16.mxu0 0
      %7074 = vmatpush1.bf16.msra.mxu0 %v7030
      %7075 = vmatprep.subr.bf16.mxu0 0
      %7076 = vmatpush1.bf16.msra.mxu0 %v7029
      %7077 = vmatprep.subr.bf16.mxu0 0
      %7078 = vmatpush2.bf16.msra.mxu0 %v7044
      %7079 = vmatprep.subr.bf16.mxu0 0
      %7080 = vmatpush2.bf16.msra.mxu0 %v7043
      %7081 = vmatprep.subr.bf16.mxu0 0
      %7082 = vmatpush2.bf16.msra.mxu0 %v7042
      %7083 = vmatprep.subr.bf16.mxu0 0
      %7084 = vmatpush2.bf16.msra.mxu0 %v7041
      %7085 = vmatprep.subr.bf16.mxu0 0
      %7086 = vmatpush2.bf16.msra.mxu0 %v7040
      %7087 = vmatprep.subr.bf16.mxu0 0
      %7088 = vmatpush2.bf16.msra.mxu0 %v7039
      %7089 = vmatprep.subr.bf16.mxu0 0
      %7090 = vmatpush2.bf16.msra.mxu0 %v7038
      %7091 = vmatprep.subr.bf16.mxu0 0
      %7092 = vmatpush2.bf16.msra.mxu0 %v7037
      %7093 = vmatprep.mubr.bf16.mxu0 %v6911
      %7094 = vmatmul.mubr.bf16.gmra.mxu0 %v6910
      %v7095 = vpop.f32.mrf.mxu0
      %v7096 = vadd.f32 %v6963, %v7095
      %v7097 = vpop.f32.mrf.mxu0
      %v7098 = vpop.f32.mrf.mxu0
      %v7099 = vadd.f32 %v6963, %v7098
      %v7100 = vpop.f32.mrf.mxu0
      %7101 = vmatprep.mubr.bf16.mxu0 %v6913
      %7102 = vmatmul.mubr.bf16.gmra.mxu0 %v6912
      %v7103 = vpop.f32.mrf.mxu0
      %v7104 = vadd.f32 %v6963, %v7103
      %v7105 = vpop.f32.mrf.mxu0
      %v7106 = vpop.f32.mrf.mxu0
      %v7107 = vadd.f32 %v6963, %v7106
      %v7108 = vpop.f32.mrf.mxu0
      %7109 = vmatprep.mubr.bf16.mxu0 %v6915
      %7110 = vmatmul.mubr.bf16.gmra.mxu0 %v6914
      %v7111 = vpop.f32.mrf.mxu0
      %v7112 = vadd.f32 %v6963, %v7111
      %v7113 = vpop.f32.mrf.mxu0
      %v7114 = vpop.f32.mrf.mxu0
      %v7115 = vadd.f32 %v6963, %v7114
      %v7116 = vpop.f32.mrf.mxu0
      %7117 = vmatprep.mubr.bf16.mxu0 %v6917
      %7118 = vmatmul.mubr.bf16.gmra.mxu0 %v6916
      %v7119 = vpop.f32.mrf.mxu0
      %v7120 = vadd.f32 %v6963, %v7119
      %v7121 = vpop.f32.mrf.mxu0
      %v7122 = vpop.f32.mrf.mxu0
      %v7123 = vadd.f32 %v6963, %v7122
      %v7124 = vpop.f32.mrf.mxu0
      %7125 = vmatprep.mubr.bf16.mxu0 %v6919
      %7126 = vmatmul.mubr.bf16.gmra.mxu0 %v6918
      %v7127 = vpop.f32.mrf.mxu0
      %v7128 = vadd.f32 %v6963, %v7127
      %v7129 = vpop.f32.mrf.mxu0
      %v7130 = vpop.f32.mrf.mxu0
      %v7131 = vadd.f32 %v6963, %v7130
      %v7132 = vpop.f32.mrf.mxu0
      %7133 = vmatprep.mubr.bf16.mxu0 %v6921
      %7134 = vmatmul.mubr.bf16.gmra.mxu0 %v6920
      %v7135 = vpop.f32.mrf.mxu0
      %v7136 = vadd.f32 %v6963, %v7135
      %v7137 = vpop.f32.mrf.mxu0
      %v7138 = vpop.f32.mrf.mxu0
      %v7139 = vadd.f32 %v6963, %v7138
      %v7140 = vpop.f32.mrf.mxu0
      %7141 = vmatprep.mubr.bf16.mxu0 %v6923
      %7142 = vmatmul.mubr.bf16.gmra.mxu0 %v6922
      %v7143 = vpop.f32.mrf.mxu0
      %v7144 = vadd.f32 %v6963, %v7143
      %v7145 = vpop.f32.mrf.mxu0
      %v7146 = vpop.f32.mrf.mxu0
      %v7147 = vadd.f32 %v6963, %v7146
      %v7148 = vpop.f32.mrf.mxu0
      %7149 = vmatprep.mubr.bf16.mxu0 %v6925
      %7150 = vmatmul.mubr.bf16.gmra.mxu0 %v6924
      %v7151 = vpop.f32.mrf.mxu0
      %v7152 = vadd.f32 %v6963, %v7151
      %v7153 = vpop.f32.mrf.mxu0
      %v7154 = vpop.f32.mrf.mxu0
      %v7155 = vadd.f32 %v6963, %v7154
      %v7156 = vpop.f32.mrf.mxu0
      %7157 = vdwg.mxu0
      %v7158 = vadd.f32 %v6377, %v7096
      %v7159 = vadd.f32 %v6378, %v7099
      %v7160 = vadd.f32 %v6379, %v7104
      %v7161 = vadd.f32 %v6380, %v7107
      %v7162 = vadd.f32 %v6381, %v7112
      %v7163 = vadd.f32 %v6382, %v7115
      %v7164 = vadd.f32 %v6383, %v7120
      %v7165 = vadd.f32 %v6384, %v7123
      %v7166 = vadd.f32 %v6385, %v7128
      %v7167 = vadd.f32 %v6386, %v7131
      %v7168 = vadd.f32 %v6387, %v7136
      %v7169 = vadd.f32 %v6388, %v7139
      %v7170 = vadd.f32 %v6389, %v7144
      %v7171 = vadd.f32 %v6390, %v7147
      %v7172 = vadd.f32 %v6391, %v7152
      %v7173 = vadd.f32 %v6392, %v7155
      %v7174 = vld [vmem:[%s805] sm:$0x1]
      %v7175 = vld [vmem:[%s808] sm:$0x1]
      %7176 = vadd.xlane.f32.xlu0 %v7158
      %v7177 = vpop.xlane.xlu0 %7176
      %7178 = vadd.xlane.f32.xlu0 %v7159
      %v7179 = vpop.xlane.xlu0 %7178
      %7180 = vadd.xlane.f32.xlu0 %v7160
      %v7181 = vpop.xlane.xlu0 %7180
      %7182 = vadd.xlane.f32.xlu0 %v7161
      %v7183 = vpop.xlane.xlu0 %7182
      %7184 = vadd.xlane.f32.xlu0 %v7162
      %v7185 = vpop.xlane.xlu0 %7184
      %7186 = vadd.xlane.f32.xlu0 %v7163
      %v7187 = vpop.xlane.xlu0 %7186
      %7188 = vadd.xlane.f32.xlu0 %v7164
      %v7189 = vpop.xlane.xlu0 %7188
      %7190 = vadd.xlane.f32.xlu0 %v7165
      %v7191 = vpop.xlane.xlu0 %7190
      %7192 = vadd.xlane.f32.xlu0 %v7166
      %v7193 = vpop.xlane.xlu0 %7192
      %7194 = vadd.xlane.f32.xlu0 %v7167
      %v7195 = vpop.xlane.xlu0 %7194
      %7196 = vadd.xlane.f32.xlu0 %v7168
      %v7197 = vpop.xlane.xlu0 %7196
      %7198 = vadd.xlane.f32.xlu0 %v7169
      %v7199 = vpop.xlane.xlu0 %7198
      %7200 = vadd.xlane.f32.xlu0 %v7170
      %v7201 = vpop.xlane.xlu0 %7200
      %7202 = vadd.xlane.f32.xlu0 %v7171
      %v7203 = vpop.xlane.xlu0 %7202
      %7204 = vadd.xlane.f32.xlu0 %v7172
      %v7205 = vpop.xlane.xlu0 %7204
      %7206 = vadd.xlane.f32.xlu0 %v7173
      %v7207 = vpop.xlane.xlu0 %7206
      %v7208 = vmul.f32 %v7177, %v6204
      %v7209 = vmul.f32 %v7179, %v6204
      %v7210 = vmul.f32 %v7181, %v6204
      %v7211 = vmul.f32 %v7183, %v6204
      %v7212 = vmul.f32 %v7185, %v6204
      %v7213 = vmul.f32 %v7187, %v6204
      %v7214 = vmul.f32 %v7189, %v6204
      %v7215 = vmul.f32 %v7191, %v6204
      %v7216 = vmul.f32 %v7193, %v6204
      %v7217 = vmul.f32 %v7195, %v6204
      %v7218 = vmul.f32 %v7197, %v6204
      %v7219 = vmul.f32 %v7199, %v6204
      %v7220 = vmul.f32 %v7201, %v6204
      %v7221 = vmul.f32 %v7203, %v6204
      %v7222 = vmul.f32 %v7205, %v6204
      %v7223 = vmul.f32 %v7207, %v6204
      %v7224 = vsub.f32 %v7158, %v7208
      %v7225 = vsub.f32 %v7159, %v7209
      %v7226 = vsub.f32 %v7160, %v7210
      %v7227 = vsub.f32 %v7161, %v7211
      %v7228 = vsub.f32 %v7162, %v7212
      %v7229 = vsub.f32 %v7163, %v7213
      %v7230 = vsub.f32 %v7164, %v7214
      %v7231 = vsub.f32 %v7165, %v7215
      %v7232 = vsub.f32 %v7166, %v7216
      %v7233 = vsub.f32 %v7167, %v7217
      %v7234 = vsub.f32 %v7168, %v7218
      %v7235 = vsub.f32 %v7169, %v7219
      %v7236 = vsub.f32 %v7170, %v7220
      %v7237 = vsub.f32 %v7171, %v7221
      %v7238 = vsub.f32 %v7172, %v7222
      %v7239 = vsub.f32 %v7173, %v7223
      %v7240 = vmul.f32 %v7224, %v7224
      %v7241 = vmul.f32 %v7225, %v7225
      %v7242 = vmul.f32 %v7226, %v7226
      %v7243 = vmul.f32 %v7227, %v7227
      %v7244 = vmul.f32 %v7228, %v7228
      %v7245 = vmul.f32 %v7229, %v7229
      %v7246 = vmul.f32 %v7230, %v7230
      %v7247 = vmul.f32 %v7231, %v7231
      %v7248 = vmul.f32 %v7232, %v7232
      %v7249 = vmul.f32 %v7233, %v7233
      %v7250 = vmul.f32 %v7234, %v7234
      %v7251 = vmul.f32 %v7235, %v7235
      %v7252 = vmul.f32 %v7236, %v7236
      %v7253 = vmul.f32 %v7237, %v7237
      %v7254 = vmul.f32 %v7238, %v7238
      %v7255 = vmul.f32 %v7239, %v7239
      %7256 = vadd.xlane.f32.xlu0 %v7240
      %v7257 = vpop.xlane.xlu0 %7256
      %7258 = vadd.xlane.f32.xlu0 %v7241
      %v7259 = vpop.xlane.xlu0 %7258
      %7260 = vadd.xlane.f32.xlu0 %v7242
      %v7261 = vpop.xlane.xlu0 %7260
      %7262 = vadd.xlane.f32.xlu0 %v7243
      %v7263 = vpop.xlane.xlu0 %7262
      %7264 = vadd.xlane.f32.xlu0 %v7244
      %v7265 = vpop.xlane.xlu0 %7264
      %7266 = vadd.xlane.f32.xlu0 %v7245
      %v7267 = vpop.xlane.xlu0 %7266
      %7268 = vadd.xlane.f32.xlu0 %v7246
      %v7269 = vpop.xlane.xlu0 %7268
      %7270 = vadd.xlane.f32.xlu0 %v7247
      %v7271 = vpop.xlane.xlu0 %7270
      %7272 = vadd.xlane.f32.xlu0 %v7248
      %v7273 = vpop.xlane.xlu0 %7272
      %7274 = vadd.xlane.f32.xlu0 %v7249
      %v7275 = vpop.xlane.xlu0 %7274
      %7276 = vadd.xlane.f32.xlu0 %v7250
      %v7277 = vpop.xlane.xlu0 %7276
      %7278 = vadd.xlane.f32.xlu0 %v7251
      %v7279 = vpop.xlane.xlu0 %7278
      %7280 = vadd.xlane.f32.xlu0 %v7252
      %v7281 = vpop.xlane.xlu0 %7280
      %7282 = vadd.xlane.f32.xlu0 %v7253
      %v7283 = vpop.xlane.xlu0 %7282
      %7284 = vadd.xlane.f32.xlu0 %v7254
      %v7285 = vpop.xlane.xlu0 %7284
      %7286 = vadd.xlane.f32.xlu0 %v7255
      %v7287 = vpop.xlane.xlu0 %7286
      %v7288 = vmul.f32 %v7257, %v6204
      %v7289 = vmul.f32 %v7259, %v6204
      %v7290 = vmul.f32 %v7261, %v6204
      %v7291 = vmul.f32 %v7263, %v6204
      %v7292 = vmul.f32 %v7265, %v6204
      %v7293 = vmul.f32 %v7267, %v6204
      %v7294 = vmul.f32 %v7269, %v6204
      %v7295 = vmul.f32 %v7271, %v6204
      %v7296 = vmul.f32 %v7273, %v6204
      %v7297 = vmul.f32 %v7275, %v6204
      %v7298 = vmul.f32 %v7277, %v6204
      %v7299 = vmul.f32 %v7279, %v6204
      %v7300 = vmul.f32 %v7281, %v6204
      %v7301 = vmul.f32 %v7283, %v6204
      %v7302 = vmul.f32 %v7285, %v6204
      %v7303 = vmul.f32 %v7287, %v6204
      %v7304 = vadd.f32 %v7288, 1e-12
      %v7305 = vadd.f32 %v7289, 1e-12
      %v7306 = vadd.f32 %v7290, 1e-12
      %v7307 = vadd.f32 %v7291, 1e-12
      %v7308 = vadd.f32 %v7292, 1e-12
      %v7309 = vadd.f32 %v7293, 1e-12
      %v7310 = vadd.f32 %v7294, 1e-12
      %v7311 = vadd.f32 %v7295, 1e-12
      %v7312 = vadd.f32 %v7296, 1e-12
      %v7313 = vadd.f32 %v7297, 1e-12
      %v7314 = vadd.f32 %v7298, 1e-12
      %v7315 = vadd.f32 %v7299, 1e-12
      %v7316 = vadd.f32 %v7300, 1e-12
      %v7317 = vadd.f32 %v7301, 1e-12
      %v7318 = vadd.f32 %v7302, 1e-12
      %v7319 = vadd.f32 %v7303, 1e-12
      %v7320 = vrsqrt.pop %v7304
      %v7321 = vrsqrt.pop %v7305
      %v7322 = vrsqrt.pop %v7306
      %v7323 = vrsqrt.pop %v7307
      %v7324 = vrsqrt.pop %v7308
      %v7325 = vrsqrt.pop %v7309
      %v7326 = vrsqrt.pop %v7310
      %v7327 = vrsqrt.pop %v7311
      %v7328 = vrsqrt.pop %v7312
      %v7329 = vrsqrt.pop %v7313
      %v7330 = vrsqrt.pop %v7314
      %v7331 = vrsqrt.pop %v7315
      %v7332 = vrsqrt.pop %v7316
      %v7333 = vrsqrt.pop %v7317
      %v7334 = vrsqrt.pop %v7318
      %v7335 = vrsqrt.pop %v7319
      %v7336 = vmul.f32 %v7224, %v7320
      %v7337 = vmul.f32 %v7225, %v7321
      %v7338 = vmul.f32 %v7226, %v7322
      %v7339 = vmul.f32 %v7227, %v7323
      %v7340 = vmul.f32 %v7228, %v7324
      %v7341 = vmul.f32 %v7229, %v7325
      %v7342 = vmul.f32 %v7230, %v7326
      %v7343 = vmul.f32 %v7231, %v7327
      %v7344 = vmul.f32 %v7232, %v7328
      %v7345 = vmul.f32 %v7233, %v7329
      %v7346 = vmul.f32 %v7234, %v7330
      %v7347 = vmul.f32 %v7235, %v7331
      %v7348 = vmul.f32 %v7236, %v7332
      %v7349 = vmul.f32 %v7237, %v7333
      %v7350 = vmul.f32 %v7238, %v7334
      %v7351 = vmul.f32 %v7239, %v7335
      %v7353 = vlaneseq
      %v7354 = vshrl.u32 %v7353, 7
      %v7355 = vsub.s32 0, %v7354
      %v7356 = vrot.slane %v7174, %v7355
      %v7358 = vmul.f32 %v7336, %v7356
      %v7359 = vmul.f32 %v7337, %v7356
      %v7360 = vmul.f32 %v7338, %v7356
      %v7361 = vmul.f32 %v7339, %v7356
      %v7362 = vmul.f32 %v7340, %v7356
      %v7363 = vmul.f32 %v7341, %v7356
      %v7364 = vmul.f32 %v7342, %v7356
      %v7365 = vmul.f32 %v7343, %v7356
      %v7366 = vmul.f32 %v7344, %v7356
      %v7367 = vmul.f32 %v7345, %v7356
      %v7368 = vmul.f32 %v7346, %v7356
      %v7369 = vmul.f32 %v7347, %v7356
      %v7370 = vmul.f32 %v7348, %v7356
      %v7371 = vmul.f32 %v7349, %v7356
      %v7372 = vmul.f32 %v7350, %v7356
      %v7373 = vmul.f32 %v7351, %v7356
      %v7375 = vlaneseq
      %v7376 = vshrl.u32 %v7375, 7
      %v7377 = vsub.s32 0, %v7376
      %v7378 = vrot.slane %v7175, %v7377
      %v7380 = vadd.f32 %v7358, %v7378
      %v7381 = vadd.f32 %v7359, %v7378
      %v7382 = vadd.f32 %v7360, %v7378
      %v7383 = vadd.f32 %v7361, %v7378
      %v7384 = vadd.f32 %v7362, %v7378
      %v7385 = vadd.f32 %v7363, %v7378
      %v7386 = vadd.f32 %v7364, %v7378
      %v7387 = vadd.f32 %v7365, %v7378
      %v7388 = vadd.f32 %v7366, %v7378
      %v7389 = vadd.f32 %v7367, %v7378
      %v7390 = vadd.f32 %v7368, %v7378
      %v7391 = vadd.f32 %v7369, %v7378
      %v7392 = vadd.f32 %v7370, %v7378
      %v7393 = vadd.f32 %v7371, %v7378
      %v7394 = vadd.f32 %v7372, %v7378
      %v7395 = vadd.f32 %v7373, %v7378
      %v7396 = vpack.c.bf16 %v7381, %v7380
      %v7397 = vpack.c.bf16 %v7383, %v7382
      %v7398 = vpack.c.bf16 %v7385, %v7384
      %v7399 = vpack.c.bf16 %v7387, %v7386
      %v7400 = vpack.c.bf16 %v7389, %v7388
      %v7401 = vpack.c.bf16 %v7391, %v7390
      %v7402 = vpack.c.bf16 %v7393, %v7392
      %v7403 = vpack.c.bf16 %v7395, %v7394
      %v7412 = vunpack.c.l.b16 %v7396
      %v7413 = vunpack.c.h.b16 %v7396
      %v7414 = vunpack.c.l.b16 %v7397
      %v7415 = vunpack.c.h.b16 %v7397
      %v7416 = vunpack.c.l.b16 %v7398
      %v7417 = vunpack.c.h.b16 %v7398
      %v7418 = vunpack.c.l.b16 %v7399
      %v7419 = vunpack.c.h.b16 %v7399
      %v7420 = vunpack.c.l.b16 %v7400
      %v7421 = vunpack.c.h.b16 %v7400
      %v7422 = vunpack.c.l.b16 %v7401
      %v7423 = vunpack.c.h.b16 %v7401
      %v7424 = vunpack.c.l.b16 %v7402
      %v7425 = vunpack.c.h.b16 %v7402
      %v7426 = vunpack.c.l.b16 %v7403
      %v7427 = vunpack.c.h.b16 %v7403
      %v7428 = vpack.c.b16 %v7412, %v7412
      %v7429 = vpack.c.b16 %v7413, %v7413
      %v7430 = vpack.c.b16 %v7414, %v7414
      %v7431 = vpack.c.b16 %v7415, %v7415
      %v7432 = vpack.c.b16 %v7416, %v7416
      %v7433 = vpack.c.b16 %v7417, %v7417
      %v7434 = vpack.c.b16 %v7418, %v7418
      %v7435 = vpack.c.b16 %v7419, %v7419
      %v7436 = vpack.c.b16 %v7420, %v7420
      %v7437 = vpack.c.b16 %v7421, %v7421
      %v7438 = vpack.c.b16 %v7422, %v7422
      %v7439 = vpack.c.b16 %v7423, %v7423
      %v7440 = vpack.c.b16 %v7424, %v7424
      %v7441 = vpack.c.b16 %v7425, %v7425
      %v7442 = vpack.c.b16 %v7426, %v7426
      %v7443 = vpack.c.b16 %v7427, %v7427
      %7460 = vst [vmem:[#allocation2] sm:$0xf] %v7428
      %7461 = vst [vmem:[#allocation2 + $0x4] sm:$0xf] %v7429
      %7462 = vst [vmem:[#allocation2 + $0x8] sm:$0xf] %v7430
      %7463 = vst [vmem:[#allocation2 + $0xc] sm:$0xf] %v7431
      %7464 = vst [vmem:[#allocation2 + $0x10] sm:$0xf] %v7432
      %7465 = vst [vmem:[#allocation2 + $0x14] sm:$0xf] %v7433
      %7466 = vst [vmem:[#allocation2 + $0x18] sm:$0xf] %v7434
      %7467 = vst [vmem:[#allocation2 + $0x1c] sm:$0xf] %v7435
      %7468 = vst [vmem:[#allocation2 + $0x20] sm:$0xf] %v7436
      %7469 = vst [vmem:[#allocation2 + $0x24] sm:$0xf] %v7437
      %7470 = vst [vmem:[#allocation2 + $0x28] sm:$0xf] %v7438
      %7471 = vst [vmem:[#allocation2 + $0x2c] sm:$0xf] %v7439
      %7472 = vst [vmem:[#allocation2 + $0x30] sm:$0xf] %v7440
      %7473 = vst [vmem:[#allocation2 + $0x34] sm:$0xf] %v7441
      %7474 = vst [vmem:[#allocation2 + $0x38] sm:$0xf] %v7442
      %7475 = vst [vmem:[#allocation2 + $0x3c] sm:$0xf] %v7443
      %p7476 = scmp.eq.s32.totalorder %s38, 1
      // Predicated region
      $region135: #{_forward.1} parent=95 // pred_check
        %p7477 = pneg %p7476
      $region136: #{_forward.1} parent=95 // pred_check_branch
        %7479 = sbr.rel (%p7477) target = $region138
      $region137: #{_forward.1} parent=95 // pred_region
        %v7480 = vlaneseq
        %v7481 = vshrl.u32 %v7480, 7
        %v7482 = vadd.s32 %v7481, 8
        %vm7483 = vcmp.eq.s32.totalorder %v7481, 0
        %vm7484 = vcmp.eq.s32.totalorder %v7482, 0
        %v7485 = vsel %vm7483, 1, 0
        %v7486 = vsel %vm7484, 1, 0
        %v7487 = vcvt.s32.f32 %v7485
        %v7488 = vcvt.s32.f32 %v7486
        %v7489 = vmul.f32 %v7380, %v7487
        %v7490 = vmul.f32 %v7381, %v7488
        %v7491 = vmul.f32 %v7382, %v7487
        %v7492 = vmul.f32 %v7383, %v7488
        %v7493 = vmul.f32 %v7384, %v7487
        %v7494 = vmul.f32 %v7385, %v7488
        %v7495 = vmul.f32 %v7386, %v7487
        %v7496 = vmul.f32 %v7387, %v7488
        %v7497 = vmul.f32 %v7388, %v7487
        %v7498 = vmul.f32 %v7389, %v7488
        %v7499 = vmul.f32 %v7390, %v7487
        %v7500 = vmul.f32 %v7391, %v7488
        %v7501 = vmul.f32 %v7392, %v7487
        %v7502 = vmul.f32 %v7393, %v7488
        %v7503 = vmul.f32 %v7394, %v7487
        %v7504 = vmul.f32 %v7395, %v7488
        %v7505 = vadd.f32 %v7489, %v7490
        %v7506 = vrot.slane %v7505, 4
        %v7507 = vadd.f32 %v7505, %v7506
        %v7508 = vrot.slane %v7507, 2
        %v7509 = vadd.f32 %v7507, %v7508
        %v7510 = vrot.slane %v7509, 1
        %v7511 = vadd.f32 %v7509, %v7510
        %v7512 = vadd.f32 %v7491, %v7492
        %v7513 = vrot.slane %v7512, 4
        %v7514 = vadd.f32 %v7512, %v7513
        %v7515 = vrot.slane %v7514, 2
        %v7516 = vadd.f32 %v7514, %v7515
        %v7517 = vrot.slane %v7516, 1
        %v7518 = vadd.f32 %v7516, %v7517
        %v7519 = vadd.f32 %v7493, %v7494
        %v7520 = vrot.slane %v7519, 4
        %v7521 = vadd.f32 %v7519, %v7520
        %v7522 = vrot.slane %v7521, 2
        %v7523 = vadd.f32 %v7521, %v7522
        %v7524 = vrot.slane %v7523, 1
        %v7525 = vadd.f32 %v7523, %v7524
        %v7526 = vadd.f32 %v7495, %v7496
        %v7527 = vrot.slane %v7526, 4
        %v7528 = vadd.f32 %v7526, %v7527
        %v7529 = vrot.slane %v7528, 2
        %v7530 = vadd.f32 %v7528, %v7529
        %v7531 = vrot.slane %v7530, 1
        %v7532 = vadd.f32 %v7530, %v7531
        %v7533 = vadd.f32 %v7497, %v7498
        %v7534 = vrot.slane %v7533, 4
        %v7535 = vadd.f32 %v7533, %v7534
        %v7536 = vrot.slane %v7535, 2
        %v7537 = vadd.f32 %v7535, %v7536
        %v7538 = vrot.slane %v7537, 1
        %v7539 = vadd.f32 %v7537, %v7538
        %v7540 = vadd.f32 %v7499, %v7500
        %v7541 = vrot.slane %v7540, 4
        %v7542 = vadd.f32 %v7540, %v7541
        %v7543 = vrot.slane %v7542, 2
        %v7544 = vadd.f32 %v7542, %v7543
        %v7545 = vrot.slane %v7544, 1
        %v7546 = vadd.f32 %v7544, %v7545
        %v7547 = vadd.f32 %v7501, %v7502
        %v7548 = vrot.slane %v7547, 4
        %v7549 = vadd.f32 %v7547, %v7548
        %v7550 = vrot.slane %v7549, 2
        %v7551 = vadd.f32 %v7549, %v7550
        %v7552 = vrot.slane %v7551, 1
        %v7553 = vadd.f32 %v7551, %v7552
        %v7554 = vadd.f32 %v7503, %v7504
        %v7555 = vrot.slane %v7554, 4
        %v7556 = vadd.f32 %v7554, %v7555
        %v7557 = vrot.slane %v7556, 2
        %v7558 = vadd.f32 %v7556, %v7557
        %v7559 = vrot.slane %v7558, 1
        %v7560 = vadd.f32 %v7558, %v7559
        %v7561 = vpack.c.bf16 %v7511, %v7511
        %v7562 = vpack.c.bf16 %v7518, %v7518
        %v7563 = vpack.c.bf16 %v7525, %v7525
        %v7564 = vpack.c.bf16 %v7532, %v7532
        %v7565 = vpack.c.bf16 %v7539, %v7539
        %v7566 = vpack.c.bf16 %v7546, %v7546
        %v7567 = vpack.c.bf16 %v7553, %v7553
        %v7568 = vpack.c.bf16 %v7560, %v7560
        %v7569 = vld [vmem:[%s16] sm:$0xf]
        %v7570 = vld [vmem:[%s16 + $0x4] sm:$0xf]
        %v7571 = vld [vmem:[%s16 + $0x8] sm:$0xf]
        %v7572 = vld [vmem:[%s16 + $0xc] sm:$0xf]
        %v7573 = vld [vmem:[%s16 + $0x10] sm:$0xf]
        %v7574 = vld [vmem:[%s16 + $0x14] sm:$0xf]
        %v7575 = vld [vmem:[%s16 + $0x18] sm:$0xf]
        %v7576 = vld [vmem:[%s16 + $0x1c] sm:$0xf]
        %v7577 = vld [vmem:[%s16 + $0x20] sm:$0xf]
        %v7578 = vld [vmem:[%s16 + $0x24] sm:$0xf]
        %v7579 = vld [vmem:[%s16 + $0x28] sm:$0xf]
        %v7580 = vld [vmem:[%s16 + $0x2c] sm:$0xf]
        %v7581 = vld [vmem:[%s16 + $0x30] sm:$0xf]
        %v7582 = vld [vmem:[%s16 + $0x34] sm:$0xf]
        %v7583 = vld [vmem:[%s16 + $0x38] sm:$0xf]
        %v7584 = vld [vmem:[%s16 + $0x3c] sm:$0xf]
        %v7585 = vld [vmem:[%s17] sm:$0x1]
        %v7587 = vlaneseq
        %v7588 = vshrl.u32 %v7587, 7
        %v7589 = vsub.s32 0, %v7588
        %v7590 = vrot.slane %v7585, %v7589
        %v7600 = vunpack.c.l.b16 %v7561
        %v7601 = vunpack.c.l.b16 %v7562
        %v7602 = vunpack.c.l.b16 %v7563
        %v7603 = vunpack.c.l.b16 %v7564
        %v7604 = vunpack.c.l.b16 %v7565
        %v7605 = vunpack.c.l.b16 %v7566
        %v7606 = vunpack.c.l.b16 %v7567
        %v7607 = vunpack.c.l.b16 %v7568
        %vm7608 = vcmask 1041409
        %v7609 = vsel %vm7608, %v7601, %v7600
        %vm7610 = vcmask 1042434
        %v7611 = vsel %vm7610, %v7602, %v7609
        %vm7612 = vcmask 1043459
        %v7613 = vsel %vm7612, %v7603, %v7611
        %vm7614 = vcmask 1044484
        %v7615 = vsel %vm7614, %v7604, %v7613
        %vm7616 = vcmask 1045509
        %v7617 = vsel %vm7616, %v7605, %v7615
        %vm7618 = vcmask 1046534
        %v7619 = vsel %vm7618, %v7606, %v7617
        %vm7620 = vcmask 1047559
        %v7621 = vsel %vm7620, %v7607, %v7619
        %v7622 = vpack.c.b16 %v7621, %v7621
        %v7640 = vunpack.c.l.b16 %v7569
        %v7641 = vunpack.c.l.b16 %v7570
        %v7642 = vunpack.c.l.b16 %v7571
        %v7643 = vunpack.c.l.b16 %v7572
        %v7644 = vunpack.c.l.b16 %v7573
        %v7645 = vunpack.c.l.b16 %v7574
        %v7646 = vunpack.c.l.b16 %v7575
        %v7647 = vunpack.c.l.b16 %v7576
        %v7648 = vunpack.c.l.b16 %v7577
        %v7649 = vunpack.c.l.b16 %v7578
        %v7650 = vunpack.c.l.b16 %v7579
        %v7651 = vunpack.c.l.b16 %v7580
        %v7652 = vunpack.c.l.b16 %v7581
        %v7653 = vunpack.c.l.b16 %v7582
        %v7654 = vunpack.c.l.b16 %v7583
        %v7655 = vunpack.c.l.b16 %v7584
        %v7656 = vpack.c.b16 %v7641, %v7640
        %v7657 = vpack.c.b16 %v7643, %v7642
        %v7658 = vpack.c.b16 %v7645, %v7644
        %v7659 = vpack.c.b16 %v7647, %v7646
        %v7660 = vpack.c.b16 %v7649, %v7648
        %v7661 = vpack.c.b16 %v7651, %v7650
        %v7662 = vpack.c.b16 %v7653, %v7652
        %v7663 = vpack.c.b16 %v7655, %v7654
        %7672 = vmatprep.subr.bf16.mxu0 0
        %7673 = vmatpush1.bf16.msra.mxu0 %v7663
        %7674 = vmatprep.subr.bf16.mxu0 0
        %7675 = vmatpush1.bf16.msra.mxu0 %v7662
        %7676 = vmatprep.subr.bf16.mxu0 0
        %7677 = vmatpush1.bf16.msra.mxu0 %v7661
        %7678 = vmatprep.subr.bf16.mxu0 0
        %7679 = vmatpush1.bf16.msra.mxu0 %v7660
        %7680 = vmatprep.subr.bf16.mxu0 0
        %7681 = vmatpush1.bf16.msra.mxu0 %v7659
        %7682 = vmatprep.subr.bf16.mxu0 0
        %7683 = vmatpush1.bf16.msra.mxu0 %v7658
        %7684 = vmatprep.subr.bf16.mxu0 0
        %7685 = vmatpush1.bf16.msra.mxu0 %v7657
        %7686 = vmatprep.subr.bf16.mxu0 0
        %7687 = vmatpush1.bf16.msra.mxu0 %v7656
        %7688 = vmatprep.subr.bf16.mxu0 0
        %7689 = vmatpush2.bf16.msra.mxu0 0
        %7690 = vmatprep.subr.bf16.mxu0 0
        %7691 = vmatpush2.bf16.msra.mxu0 0
        %7692 = vmatprep.subr.bf16.mxu0 0
        %7693 = vmatpush2.bf16.msra.mxu0 0
        %7694 = vmatprep.subr.bf16.mxu0 0
        %7695 = vmatpush2.bf16.msra.mxu0 0
        %7696 = vmatprep.subr.bf16.mxu0 0
        %7697 = vmatpush2.bf16.msra.mxu0 0
        %7698 = vmatprep.subr.bf16.mxu0 0
        %7699 = vmatpush2.bf16.msra.mxu0 0
        %7700 = vmatprep.subr.bf16.mxu0 0
        %7701 = vmatpush2.bf16.msra.mxu0 0
        %7702 = vmatprep.subr.bf16.mxu0 0
        %7703 = vmatpush2.bf16.msra.mxu0 0
        %7704 = vmatprep.mubr.bf16.mxu0 0
        %7705 = vmatmul.mubr.bf16.gmra.mxu0 %v7622
        %v7706 = vpop.f32.mrf.mxu0
        %v7707 = vadd.f32 %v7590, %v7706
        %v7708 = vpop.f32.mrf.mxu0
        %v7709 = vpop.f32.mrf.mxu0
        %v7710 = vpop.f32.mrf.mxu0
        %7711 = vdwg.mxu0
        %v7712 = vld [vmem:[%s18] sm:$0x1]
        %v7714 = vlaneseq
        %v7715 = vshrl.u32 %v7714, 7
        %v7716 = vsub.s32 0, %v7715
        %v7717 = vrot.slane %v7712, %v7716
        %v7719 = vmul.f32 %v7707, %v7717
        %v7720 = vsel %vm1902, %v7719, 0.0
        %7721 = vadd.xlane.f32.xlu0 %v7720
        %v7722 = vpop.xlane.xlu0 %7721
        %v7723 = vld [vmem:[#allocation4] sm:$0x1]
        %v7725 = vlaneseq
        %v7726 = vshrl.u32 %v7725, 7
        %v7727 = vsub.s32 0, %v7726
        %v7728 = vrot.slane %v7723, %v7727
        %v7730 = vadd.f32 %v7722, %v7728
        %vm7731 = vcmask 7168
        %7732 = vst.msk [vmem:[%s812] sm:$0xff] %vm7731, %v7730
      $region138: #{_forward.1} parent=95 // pred_fallthru
        _
      %p7733 = scmp.lt.s32.totalorder %s37, 1
      %s7734 = scalar_select %p7733, %s37, 1
      %s7735 = smul.addr %s7734, 8
      %s7736 = scalar_lea.vmem %s20, %s7735
      // Predicated region
      $region139: #{_forward.1} parent=95 // pred_check
        %p7737 = pneg %p527
      $region140: #{_forward.1} parent=95 // pred_check_branch
        %7739 = sbr.rel (%p7737) target = $region142
      $region141: #{_forward.1} parent=95 // pred_region
        _
      $region142: #{_forward.1} parent=95 // pred_fallthru
        _
    $region96: #{_forward.1} parent=5 // pred_fallthru
      _
    %p7740 = scmp.le.s32.totalorder 2, %s28
    // Predicated region
    $region143: #{_forward.1} parent=5 // pred_check
      %p7741 = pneg %p7740
    $region144: #{_forward.1} parent=5 // pred_check_branch
      %7743 = sbr.rel (%p7741) target = $region146
    $region145: #{_forward.1} parent=5 // pred_region
      %s7744 = ssub.s32 %s28, 2
      // Predicated region
      $region147: #{_forward.1} parent=145 // pred_check
        %p7745 = pneg %p533
      $region148: #{_forward.1} parent=145 // pred_check_branch
        %7747 = sbr.rel (%p7745) target = $region150
      $region149: #{_forward.1} parent=145 // pred_region
        %p7748 = scmp.lt.s32.totalorder %s39, 1
        %s7749 = scalar_select %p7748, %s39, 1
        %s7750 = smul.addr %s7749, 8
        %s7751 = scalar_lea.vmem %s20, %s7750
      $region150: #{_forward.1} parent=145 // pred_fallthru
        _
    $region146: #{_forward.1} parent=5 // pred_fallthru
      _
  $region6: #{_forward.1} parent=0 // loop_footer
    %s32 = sadd.s32 1, %s28
  $region7: #{_forward.1} parent=0 // loop_footer_branch
    %27 = sbr.rel target = $region3
  $region8: #{_forward.1} parent=0 // loop_exit
    _
  %7752 = vsyncmov [#allocation3]
  %s7753 = vpop.sfrf %7752
  %p7754 = scmp.eq.s32.totalorder %s7753, 0
  %p7755 = pneg %p7754
  %7757 = shalt.err (%p7755)

</llo_original>
